<compile_context>
chip_gen: v7x
topology: tpu7x:2x2x1
jax: 0.10.0
libtpu: 0.0.40
codegen_flags: <defaults>
</compile_context>

<pallas_src>
import functools

import jax
import jax.numpy as jnp
from jax.experimental import pallas as pl
from jax.experimental.pallas import tpu as pltpu

V_TH = 1.0                      # LIF threshold; v_reset = 0, tau = 2
TPAD = 8                        # zero-pad rows above/below every packed activation
H_IMG = 128                     # 5x MaxPool2d(2,2) -> 4x4 flatten implies 128x128
WIDTHS = (128, 64, 32, 16, 8)   # square spatial size of each conv layer's input
BLOCK_H = (32, 32, 32, 16, 8)   # row-block height per layer (multiple of 8)
VMEM = pltpu.MemorySpace.VMEM


def _lif(v_ref, r0, bh, x):
    """LIFNode(tau=2, v_th=1, v_reset=0): charge v'=0.5*(v+x), fire, hard reset."""
    v_new = 0.5 * (v_ref[r0:r0 + bh, :] + x)
    fired = v_new >= V_TH
    v_ref[r0:r0 + bh, :] = jnp.where(fired, 0.0, v_new)
    return fired.astype(jnp.float32)


def _snn_step_kernel(
    # inputs
    x_ref,
    b0, b1, b2, b3, b4,                 # banded conv matrices (3, cin*W, cout*W)
    bia0, bia1, bia2, bia3, bia4,       # folded BN biases (1, cout*W)
    pw0, pw1, pw2, pw3, pw4,            # lane 2x sum-pool matrices (cout*W, cout*W/2)
    qh_ref,                             # row 2x sum-pool matrix (16, 32)
    w1p_ref, w2_ref, vote_ref,
    # outputs (all time-resident per sample)
    acc_ref, inp_rec_ref, hid_rec_ref,
    # scratch (persists across the whole (batch, time) grid)
    p0, p1, p2, p3, p4,                 # packed, zero-padded layer inputs
    v0, v1, v2, v3, v4,                 # conv LIF membranes
    vf1, vf2,                           # fc LIF membranes
    *, channels, hidden, inv_t,
):
    t = pl.program_id(1)

    # ---- t == 0: reset recurrent state; (re)zero only the pad rows ----
    @pl.when(t == 0)
    def _init():
        for r in (v0, v1, v2, v3, v4, vf1, vf2):
            r[...] = jnp.zeros_like(r)
        cins = (2, channels, channels, channels, channels)
        for p, hl, ci in zip((p0, p1, p2, p3, p4), WIDTHS, cins):
            zer = jnp.zeros((TPAD, ci * hl), jnp.float32)
            p[0:TPAD, :] = zer                              # rows above (y = -1 pad)
            p[TPAD + hl:TPAD + hl + TPAD, :] = zer          # rows below (y = H pad)
        acc_ref[...] = jnp.zeros_like(acc_ref)

    # ---- stage the current bf16 frame into the packed layer-0 input ----
    for ci in range(2):
        p0[TPAD:TPAD + H_IMG, ci * H_IMG:(ci + 1) * H_IMG] = (
            x_ref[ci].astype(jnp.float32))

    qh = qh_ref[...]                                        # (16, 32)

    def conv_bn_lif_pool(p_in, v_ref, b_ref, bias_ref, pw_ref, p_out, *, hl, bh):
        """conv3x3(pad=1) as 3 banded MXU matmuls + BN bias + LIF + maxpool(2,2)."""
        bs = [b_ref[k] for k in range(3)]                   # hoisted, block-invariant
        bias = bias_ref[...]
        pwm = pw_ref[...]
        qhl = qh[: bh // 2, :bh]
        last = None
        for blk in range(hl // bh):                         # fully unrolled (<= 4)
            r0 = blk * bh
            r_win = TPAD - 1 + r0                           # ky = 0 window start row
            pre = jnp.dot(p_in[r_win:r_win + bh, :], bs[0],
                          preferred_element_type=jnp.float32)
            pre = pre + jnp.dot(p_in[r_win + 1:r_win + 1 + bh, :], bs[1],
                                preferred_element_type=jnp.float32)
            pre = pre + jnp.dot(p_in[r_win + 2:r_win + 2 + bh, :], bs[2],
                                preferred_element_type=jnp.float32)
            spk = _lif(v_ref, r0, bh, pre + bias)
            # MaxPool2d(2,2) on {0,1} spikes == (2x2 sum-pool >= 1)
            pooled = jnp.dot(qhl, jnp.dot(spk, pwm, preferred_element_type=jnp.float32),
                             preferred_element_type=jnp.float32)
            pooled = (pooled > 0.5).astype(jnp.float32)
            if p_out is not None:                           # feed next layer (packed)
                p_out[TPAD + blk * (bh // 2):TPAD + (blk + 1) * (bh // 2), :] = pooled
            last = pooled
        return last

    p_refs = (p0, p1, p2, p3, p4, None)
    v_refs = (v0, v1, v2, v3, v4)
    b_refs = (b0, b1, b2, b3, b4)
    bia_refs = (bia0, bia1, bia2, bia3, bia4)
    pw_refs = (pw0, pw1, pw2, pw3, pw4)
    spk4 = None
    for l in range(5):
        spk4 = conv_bn_lif_pool(p_refs[l], v_refs[l], b_refs[l], bia_refs[l],
                                pw_refs[l], p_refs[l + 1],
                                hl=WIDTHS[l], bh=BLOCK_H[l])
    # spk4: (4, channels*4), packed [y, c*4 + x] - the flattened conv spikes

    inp_rec_ref[pl.ds(pl.multiple_of(t * 4, 4), 4), :] = spk4

    # ---- Flatten -> (Dropout: identity in eval) -> fc1 -> LIF ----
    seg = channels * 4
    z1 = jnp.zeros((1, hidden), jnp.float32)
    for y in range(4):
        z1 = z1 + jnp.dot(spk4[y:y + 1, :], w1p_ref[y * seg:(y + 1) * seg, :],
                          preferred_element_type=jnp.float32)
    s1 = _lif(vf1, 0, 1, z1)
    hid_rec_ref[pl.ds(t, 1), :] = s1

    # ---- fc2 -> LIF -> VotingLayer(10) -> running sum (averaged at t = T-1) ----
    z2 = jnp.dot(s1, w2_ref[...], preferred_element_type=jnp.float32)
    s2 = _lif(vf2, 0, 1, z2)
    acc_ref[...] = acc_ref[...] + jnp.dot(s2, vote_ref[...],
                                          preferred_element_type=jnp.float32)

    @pl.when(t == pl.num_programs(1) - 1)
    def _finalize():
        acc_ref[...] = acc_ref[...] * inv_t


@jax.jit
def python_net_forward(x, params):
    # x: (N, T, 2, 128, 128) spike frames (values {0,1}); module permutes to time-major.
    n, t_len, cin0, h, w = x.shape
    assert cin0 == 2 and h == H_IMG and w == H_IMG, (
        "PythonNet's 5x MaxPool2d(2,2) -> Flatten(channels*4*4) requires 2x128x128 input")
    conv_w, conv_b = params["conv_w"], params["conv_b"]       # BN (eval) already folded
    w1, w2 = params["w1"], params["w2"]
    channels = conv_w[0].shape[0]
    hidden = w1.shape[1]

    # Banded conv matrices: B[ky][(ci*W + xi), (co*W + xo)] = w[co, ci, ky, xi - xo + 1]
    # (zero outside the band -> implements the x zero-padding of Conv2d(padding=1)).
    def banded(wl, wsc):
        cout, cin = wsc.shape[0], wsc.shape[1]
        xi = jnp.arange(wl)[:, None]
        xo = jnp.arange(wl)[None, :]
        band = jnp.stack([(xi - xo == (kx - 1)) for kx in range(3)], 0).astype(jnp.float32)
        mats = []
        for ky in range(3):
            blk = jnp.einsum("ock,kab->caob", wsc[:, :, ky, :], band)
            mats.append(blk.reshape(cin * wl, cout * wl))
        return jnp.stack(mats, 0)

    # lane 2x sum-pool within each packed channel segment: (c*W + x) -> (c*W/2 + x//2)
    def lane_pool(wl):
        base = (jnp.arange(wl)[:, None] // 2 ==
                jnp.arange(wl // 2)[None, :]).astype(jnp.float32)
        return jnp.kron(jnp.eye(channels, dtype=jnp.float32), base)

    bmats = [banded(WIDTHS[l], conv_w[l]) for l in range(5)]
    biases = [jnp.repeat(conv_b[l], WIDTHS[l])[None, :] for l in range(5)]
    pws = [lane_pool(WIDTHS[l]) for l in range(5)]
    qh = (jnp.arange(32)[None, :] // 2 == jnp.arange(16)[:, None]).astype(jnp.float32)
    # fc1 weight permuted to the kernel's packed flatten order (y, c, x)
    w1p = (w1.reshape(channels, 4, 4, hidden)
             .transpose(1, 0, 2, 3).reshape(channels * 16, hidden))
    # VotingLayer(10) == AvgPool1d(10,10) over 110 logits -> constant matmul
    vote = jnp.repeat(jnp.eye(11, dtype=jnp.float32), 10, axis=0) * 0.1

    kernel = functools.partial(_snn_step_kernel, channels=channels, hidden=hidden,
                               inv_t=1.0 / t_len)

    cins = (2, channels, channels, channels, channels)
    scratch = (
        [pltpu.VMEM((WIDTHS[l] + 2 * TPAD, cins[l] * WIDTHS[l]), jnp.float32)
         for l in range(5)]                                   # packed layer inputs
        + [pltpu.VMEM((WIDTHS[l], channels * WIDTHS[l]), jnp.float32)
           for l in range(5)]                                 # conv LIF membranes
        + [pltpu.VMEM((1, hidden), jnp.float32),              # fc1 LIF membrane
           pltpu.VMEM((1, 110), jnp.float32)]                 # fc2 LIF membrane
    )

    grid_spec = pltpu.PrefetchScalarGridSpec(
        num_scalar_prefetch=0,
        # batch outer ("parallel" -> megacore on v7x), time inner ("arbitrary"):
        # the recurrent LIF membranes in scratch require time to run sequentially.
        grid=(n, t_len),
        in_specs=(
            [pl.BlockSpec((None, None, 2, H_IMG, H_IMG), lambda b, t: (b, t, 0, 0, 0))]
            + [pl.BlockSpec(memory_space=VMEM)] * 19
        ),
        out_specs=(
            pl.BlockSpec((None, 1, 11), lambda b, t: (b, 0, 0)),                  # resident
            pl.BlockSpec((None, 4 * t_len, channels * 4), lambda b, t: (b, 0, 0)),
            pl.BlockSpec((None, t_len, hidden), lambda b, t: (b, 0, 0)),
        ),
        scratch_shapes=scratch,
    )

    acc, inp_rec, hid_rec = pl.pallas_call(
        kernel,
        out_shape=(
            jax.ShapeDtypeStruct((n, 1, 11), jnp.float32),
            jax.ShapeDtypeStruct((n, 4 * t_len, channels * 4), jnp.float32),
            jax.ShapeDtypeStruct((n, t_len, hidden), jnp.float32),
        ),
        grid_spec=grid_spec,
        compiler_params=pltpu.CompilerParams(
            dimension_semantics=("parallel", "arbitrary"),
            vmem_limit_bytes=32 * 1024 * 1024),
    )(x.astype(jnp.bfloat16), *bmats, *biases, *pws, qh, w1p, w2, vote)

    out_spikes = acc.reshape(n, 11)
    # kernel records the conv spikes packed as [t*4 + y, c*4 + x]; convert to the
    # torch Flatten order c*16 + y*4 + x.
    input_spk_rec = (inp_rec.reshape(n, t_len, 4, channels, 4)
                     .transpose(0, 1, 3, 2, 4).reshape(n, t_len, channels * 16))
    hidden_spk_rec = hid_rec
    return out_spikes, (input_spk_rec, hidden_spk_rec)


# ------------------------------ parameter init -------------------------------- #
def make_params(key, channels, hidden_num):
    eps = 1e-5
    conv_w, conv_b = [], []
    for i in range(5):
        cin = 2 if i == 0 else channels
        key, kw, kg, kb, km, kv = jax.random.split(key, 6)
        w = jax.random.normal(kw, (channels, cin, 3, 3), jnp.float32) \
            * (1.5 / jnp.sqrt(cin * 9.0))
        gamma = 1.0 + 0.1 * jax.random.normal(kg, (channels,), jnp.float32)
        beta = 0.1 * jax.random.normal(kb, (channels,), jnp.float32)
        mean = 0.1 * jax.random.normal(km, (channels,), jnp.float32)
        var = jax.random.uniform(kv, (channels,), jnp.float32, 0.5, 1.5)
        scale = gamma / jnp.sqrt(var + eps)               # BatchNorm (eval) fold
        conv_w.append(w * scale[:, None, None, None])     # scale folded into weights
        conv_b.append(beta - mean * scale)                # remaining additive bias
    key, k1, k2 = jax.random.split(key, 3)
    fin = channels * 4 * 4
    return {
        "conv_w": conv_w,
        "conv_b": conv_b,
        "w1": jax.random.normal(k1, (fin, hidden_num), jnp.float32)
              * (2.0 / jnp.sqrt(fin)),
        "w2": jax.random.normal(k2, (hidden_num, 110), jnp.float32)
              * (2.0 / jnp.sqrt(hidden_num)),
    }


if __name__ == "__main__":
    key = jax.random.PRNGKey(0)
    N, T, channels, hidden = 2, 4, 4, 32
    H = W = 128   # forward implies 128x128: 5x MaxPool2d(2,2) -> 4x4 -> channels*4*4
    kx, kp = jax.random.split(key)
    x = (jax.random.uniform(kx, (N, T, 2, H, W)) < 0.3).astype(jnp.float32)
    params = make_params(kp, channels, hidden)

    out_spikes, (input_spk_rec, hidden_spk_rec) = python_net_forward(x, params)
    jax.block_until_ready(out_spikes)

    assert out_spikes.shape == (N, 11)
    assert input_spk_rec.shape == (N, T, channels * 4 * 4)
    assert hidden_spk_rec.shape == (N, T, hidden)
    print("KERNEL_OK")
</pallas_src>

<mosaic_0001>
module attributes {stable_mosaic.version = 11 : i64} {
  func.func @_snn_step_kernel(%arg0: i32, %arg1: i32, %arg2: memref<1x1x2x128x128xbf16, #tpu.memory_space<vmem>>, %arg3: memref<3x256x512xf32, #tpu.memory_space<vmem>>, %arg4: memref<3x256x256xf32, #tpu.memory_space<vmem>>, %arg5: memref<3x128x128xf32, #tpu.memory_space<vmem>>, %arg6: memref<3x64x64xf32, #tpu.memory_space<vmem>>, %arg7: memref<3x32x32xf32, #tpu.memory_space<vmem>>, %arg8: memref<1x512xf32, #tpu.memory_space<vmem>>, %arg9: memref<1x256xf32, #tpu.memory_space<vmem>>, %arg10: memref<1x128xf32, #tpu.memory_space<vmem>>, %arg11: memref<1x64xf32, #tpu.memory_space<vmem>>, %arg12: memref<1x32xf32, #tpu.memory_space<vmem>>, %arg13: memref<512x256xf32, #tpu.memory_space<vmem>>, %arg14: memref<256x128xf32, #tpu.memory_space<vmem>>, %arg15: memref<128x64xf32, #tpu.memory_space<vmem>>, %arg16: memref<64x32xf32, #tpu.memory_space<vmem>>, %arg17: memref<32x16xf32, #tpu.memory_space<vmem>>, %arg18: memref<16x32xf32, #tpu.memory_space<vmem>>, %arg19: memref<64x32xf32, #tpu.memory_space<vmem>>, %arg20: memref<32x110xf32, #tpu.memory_space<vmem>>, %arg21: memref<110x11xf32, #tpu.memory_space<vmem>>, %arg22: memref<1x1x11xf32, #tpu.memory_space<vmem>>, %arg23: memref<1x16x16xf32, #tpu.memory_space<vmem>>, %arg24: memref<1x4x32xf32, #tpu.memory_space<vmem>>, %arg25: memref<144x256xf32, #tpu.memory_space<vmem>>, %arg26: memref<80x256xf32, #tpu.memory_space<vmem>>, %arg27: memref<48x128xf32, #tpu.memory_space<vmem>>, %arg28: memref<32x64xf32, #tpu.memory_space<vmem>>, %arg29: memref<24x32xf32, #tpu.memory_space<vmem>>, %arg30: memref<128x512xf32, #tpu.memory_space<vmem>>, %arg31: memref<64x256xf32, #tpu.memory_space<vmem>>, %arg32: memref<32x128xf32, #tpu.memory_space<vmem>>, %arg33: memref<16x64xf32, #tpu.memory_space<vmem>>, %arg34: memref<8x32xf32, #tpu.memory_space<vmem>>, %arg35: memref<1x32xf32, #tpu.memory_space<vmem>>, %arg36: memref<1x110xf32, #tpu.memory_space<vmem>>) attributes {dimension_semantics = [#tpu.dimension_semantics<parallel>, #tpu.dimension_semantics<arbitrary>], iteration_bounds = array<i64: 2, 4>, scalar_prefetch = 0 : i64, scratch_operands = 12 : i64, tpu.core_type = #tpu.core_type<tc>, window_params = [{transform_indices = @transform_0, window_bounds = array<i64: 1, 1, 2, 128, 128>}, {pipeline_mode = #tpu.pipeline_mode<synchronous>, transform_indices = @transform_1, window_bounds = array<i64: 3, 256, 512>}, {pipeline_mode = #tpu.pipeline_mode<synchronous>, transform_indices = @transform_2, window_bounds = array<i64: 3, 256, 256>}, {pipeline_mode = #tpu.pipeline_mode<synchronous>, transform_indices = @transform_3, window_bounds = array<i64: 3, 128, 128>}, {pipeline_mode = #tpu.pipeline_mode<synchronous>, transform_indices = @transform_4, window_bounds = array<i64: 3, 64, 64>}, {pipeline_mode = #tpu.pipeline_mode<synchronous>, transform_indices = @transform_5, window_bounds = array<i64: 3, 32, 32>}, {pipeline_mode = #tpu.pipeline_mode<synchronous>, transform_indices = @transform_6, window_bounds = array<i64: 1, 512>}, {pipeline_mode = #tpu.pipeline_mode<synchronous>, transform_indices = @transform_7, window_bounds = array<i64: 1, 256>}, {pipeline_mode = #tpu.pipeline_mode<synchronous>, transform_indices = @transform_8, window_bounds = array<i64: 1, 128>}, {pipeline_mode = #tpu.pipeline_mode<synchronous>, transform_indices = @transform_9, window_bounds = array<i64: 1, 64>}, {pipeline_mode = #tpu.pipeline_mode<synchronous>, transform_indices = @transform_10, window_bounds = array<i64: 1, 32>}, {pipeline_mode = #tpu.pipeline_mode<synchronous>, transform_indices = @transform_11, window_bounds = array<i64: 512, 256>}, {pipeline_mode = #tpu.pipeline_mode<synchronous>, transform_indices = @transform_12, window_bounds = array<i64: 256, 128>}, {pipeline_mode = #tpu.pipeline_mode<synchronous>, transform_indices = @transform_13, window_bounds = array<i64: 128, 64>}, {pipeline_mode = #tpu.pipeline_mode<synchronous>, transform_indices = @transform_14, window_bounds = array<i64: 64, 32>}, {pipeline_mode = #tpu.pipeline_mode<synchronous>, transform_indices = @transform_15, window_bounds = array<i64: 32, 16>}, {pipeline_mode = #tpu.pipeline_mode<synchronous>, transform_indices = @transform_16, window_bounds = array<i64: 16, 32>}, {pipeline_mode = #tpu.pipeline_mode<synchronous>, transform_indices = @transform_17, window_bounds = array<i64: 64, 32>}, {pipeline_mode = #tpu.pipeline_mode<synchronous>, transform_indices = @transform_18, window_bounds = array<i64: 32, 110>}, {pipeline_mode = #tpu.pipeline_mode<synchronous>, transform_indices = @transform_19, window_bounds = array<i64: 110, 11>}, {transform_indices = @transform_20, window_bounds = array<i64: 1, 1, 11>}, {transform_indices = @transform_21, window_bounds = array<i64: 1, 16, 16>}, {transform_indices = @transform_22, window_bounds = array<i64: 1, 4, 32>}]} {
    %c0_i32 = arith.constant 0 : i32
    %0 = arith.cmpi eq, %arg1, %c0_i32 : i32
    %1 = arith.extui %0 : i1 to i32
    %c0_i32_0 = arith.constant 0 : i32
    %2 = arith.cmpi ne, %1, %c0_i32_0 : i32
    scf.if %2 {
      %cst_289 = arith.constant 0.000000e+00 : f32
      %367 = vector.broadcast %cst_289 : f32 to vector<128x512xf32>
      %c0_290 = arith.constant 0 : index
      %c0_291 = arith.constant 0 : index
      %368 = vector.load %arg30[%c0_290, %c0_291] : memref<128x512xf32, #tpu.memory_space<vmem>>, vector<128x512xf32>
      tpu.vector_store %arg30[%c0_290, %c0_291], %367 {strides = array<i32>} : memref<128x512xf32, #tpu.memory_space<vmem>>, vector<128x512xf32>,
      %cst_292 = arith.constant 0.000000e+00 : f32
      %369 = vector.broadcast %cst_292 : f32 to vector<64x256xf32>
      %c0_293 = arith.constant 0 : index
      %c0_294 = arith.constant 0 : index
      %370 = vector.load %arg31[%c0_293, %c0_294] : memref<64x256xf32, #tpu.memory_space<vmem>>, vector<64x256xf32>
      tpu.vector_store %arg31[%c0_293, %c0_294], %369 {strides = array<i32>} : memref<64x256xf32, #tpu.memory_space<vmem>>, vector<64x256xf32>,
      %cst_295 = arith.constant 0.000000e+00 : f32
      %371 = vector.broadcast %cst_295 : f32 to vector<32x128xf32>
      %c0_296 = arith.constant 0 : index
      %c0_297 = arith.constant 0 : index
      %372 = vector.load %arg32[%c0_296, %c0_297] : memref<32x128xf32, #tpu.memory_space<vmem>>, vector<32x128xf32>
      tpu.vector_store %arg32[%c0_296, %c0_297], %371 {strides = array<i32>} : memref<32x128xf32, #tpu.memory_space<vmem>>, vector<32x128xf32>,
      %cst_298 = arith.constant 0.000000e+00 : f32
      %373 = vector.broadcast %cst_298 : f32 to vector<16x64xf32>
      %c0_299 = arith.constant 0 : index
      %c0_300 = arith.constant 0 : index
      %374 = vector.load %arg33[%c0_299, %c0_300] : memref<16x64xf32, #tpu.memory_space<vmem>>, vector<16x64xf32>
      tpu.vector_store %arg33[%c0_299, %c0_300], %373 {strides = array<i32>} : memref<16x64xf32, #tpu.memory_space<vmem>>, vector<16x64xf32>,
      %cst_301 = arith.constant 0.000000e+00 : f32
      %375 = vector.broadcast %cst_301 : f32 to vector<8x32xf32>
      %c0_302 = arith.constant 0 : index
      %c0_303 = arith.constant 0 : index
      %376 = vector.load %arg34[%c0_302, %c0_303] : memref<8x32xf32, #tpu.memory_space<vmem>>, vector<8x32xf32>
      tpu.vector_store %arg34[%c0_302, %c0_303], %375 {strides = array<i32>} : memref<8x32xf32, #tpu.memory_space<vmem>>, vector<8x32xf32>,
      %cst_304 = arith.constant 0.000000e+00 : f32
      %377 = vector.broadcast %cst_304 : f32 to vector<1x32xf32>
      %c0_305 = arith.constant 0 : index
      %c0_306 = arith.constant 0 : index
      %378 = vector.load %arg35[%c0_305, %c0_306] : memref<1x32xf32, #tpu.memory_space<vmem>>, vector<1x32xf32>
      tpu.vector_store %arg35[%c0_305, %c0_306], %377 {strides = array<i32>} : memref<1x32xf32, #tpu.memory_space<vmem>>, vector<1x32xf32>,
      %cst_307 = arith.constant 0.000000e+00 : f32
      %379 = vector.broadcast %cst_307 : f32 to vector<1x110xf32>
      %c0_308 = arith.constant 0 : index
      %c0_309 = arith.constant 0 : index
      %380 = vector.load %arg36[%c0_308, %c0_309] : memref<1x110xf32, #tpu.memory_space<vmem>>, vector<1x110xf32>
      tpu.vector_store %arg36[%c0_308, %c0_309], %379 {strides = array<i32>} : memref<1x110xf32, #tpu.memory_space<vmem>>, vector<1x110xf32>,
      %cst_310 = arith.constant 0.000000e+00 : f32
      %381 = vector.broadcast %cst_310 : f32 to vector<8x256xf32>
      %c0_311 = arith.constant 0 : index
      %c0_312 = arith.constant 0 : index
      %382 = vector.load %arg25[%c0_311, %c0_312] : memref<144x256xf32, #tpu.memory_space<vmem>>, vector<8x256xf32>
      tpu.vector_store %arg25[%c0_311, %c0_312], %381 {strides = array<i32>} : memref<144x256xf32, #tpu.memory_space<vmem>>, vector<8x256xf32>,
      %c136 = arith.constant 136 : index
      %c0_313 = arith.constant 0 : index
      %383 = vector.load %arg25[%c136, %c0_313] : memref<144x256xf32, #tpu.memory_space<vmem>>, vector<8x256xf32>
      tpu.vector_store %arg25[%c136, %c0_313], %381 {strides = array<i32>} : memref<144x256xf32, #tpu.memory_space<vmem>>, vector<8x256xf32>,
      %cst_314 = arith.constant 0.000000e+00 : f32
      %384 = vector.broadcast %cst_314 : f32 to vector<8x256xf32>
      %c0_315 = arith.constant 0 : index
      %c0_316 = arith.constant 0 : index
      %385 = vector.load %arg26[%c0_315, %c0_316] : memref<80x256xf32, #tpu.memory_space<vmem>>, vector<8x256xf32>
      tpu.vector_store %arg26[%c0_315, %c0_316], %384 {strides = array<i32>} : memref<80x256xf32, #tpu.memory_space<vmem>>, vector<8x256xf32>,
      %c72_317 = arith.constant 72 : index
      %c0_318 = arith.constant 0 : index
      %386 = vector.load %arg26[%c72_317, %c0_318] : memref<80x256xf32, #tpu.memory_space<vmem>>, vector<8x256xf32>
      tpu.vector_store %arg26[%c72_317, %c0_318], %384 {strides = array<i32>} : memref<80x256xf32, #tpu.memory_space<vmem>>, vector<8x256xf32>,
      %cst_319 = arith.constant 0.000000e+00 : f32
      %387 = vector.broadcast %cst_319 : f32 to vector<8x128xf32>
      %c0_320 = arith.constant 0 : index
      %c0_321 = arith.constant 0 : index
      %388 = vector.load %arg27[%c0_320, %c0_321] : memref<48x128xf32, #tpu.memory_space<vmem>>, vector<8x128xf32>
      tpu.vector_store %arg27[%c0_320, %c0_321], %387 {strides = array<i32>} : memref<48x128xf32, #tpu.memory_space<vmem>>, vector<8x128xf32>,
      %c40_322 = arith.constant 40 : index
      %c0_323 = arith.constant 0 : index
      %389 = vector.load %arg27[%c40_322, %c0_323] : memref<48x128xf32, #tpu.memory_space<vmem>>, vector<8x128xf32>
      tpu.vector_store %arg27[%c40_322, %c0_323], %387 {strides = array<i32>} : memref<48x128xf32, #tpu.memory_space<vmem>>, vector<8x128xf32>,
      %cst_324 = arith.constant 0.000000e+00 : f32
      %390 = vector.broadcast %cst_324 : f32 to vector<8x64xf32>
      %c0_325 = arith.constant 0 : index
      %c0_326 = arith.constant 0 : index
      %391 = vector.load %arg28[%c0_325, %c0_326] : memref<32x64xf32, #tpu.memory_space<vmem>>, vector<8x64xf32>
      tpu.vector_store %arg28[%c0_325, %c0_326], %390 {strides = array<i32>} : memref<32x64xf32, #tpu.memory_space<vmem>>, vector<8x64xf32>,
      %c24_327 = arith.constant 24 : index
      %c0_328 = arith.constant 0 : index
      %392 = vector.load %arg28[%c24_327, %c0_328] : memref<32x64xf32, #tpu.memory_space<vmem>>, vector<8x64xf32>
      tpu.vector_store %arg28[%c24_327, %c0_328], %390 {strides = array<i32>} : memref<32x64xf32, #tpu.memory_space<vmem>>, vector<8x64xf32>,
      %cst_329 = arith.constant 0.000000e+00 : f32
      %393 = vector.broadcast %cst_329 : f32 to vector<8x32xf32>
      %c0_330 = arith.constant 0 : index
      %c0_331 = arith.constant 0 : index
      %394 = vector.load %arg29[%c0_330, %c0_331] : memref<24x32xf32, #tpu.memory_space<vmem>>, vector<8x32xf32>
      tpu.vector_store %arg29[%c0_330, %c0_331], %393 {strides = array<i32>} : memref<24x32xf32, #tpu.memory_space<vmem>>, vector<8x32xf32>,
      %c16_332 = arith.constant 16 : index
      %c0_333 = arith.constant 0 : index
      %395 = vector.load %arg29[%c16_332, %c0_333] : memref<24x32xf32, #tpu.memory_space<vmem>>, vector<8x32xf32>
      tpu.vector_store %arg29[%c16_332, %c0_333], %393 {strides = array<i32>} : memref<24x32xf32, #tpu.memory_space<vmem>>, vector<8x32xf32>,
      %cst_334 = arith.constant 0.000000e+00 : f32
      %396 = vector.broadcast %cst_334 : f32 to vector<1x11xf32>
      %c0_335 = arith.constant 0 : index
      %c0_336 = arith.constant 0 : index
      %c0_337 = arith.constant 0 : index
      %397 = vector.load %arg22[%c0_335, %c0_336, %c0_337] : memref<1x1x11xf32, #tpu.memory_space<vmem>>, vector<1x1x11xf32>
      %398 = vector.shape_cast %397 : vector<1x1x11xf32> to vector<1x11xf32>
      %399 = vector.shape_cast %396 : vector<1x11xf32> to vector<1x1x11xf32>
      tpu.vector_store %arg22[%c0_335, %c0_336, %c0_337], %399 {strides = array<i32>} : memref<1x1x11xf32, #tpu.memory_space<vmem>>, vector<1x1x11xf32>,
    } else {
    }
    %c0 = arith.constant 0 : index
    %c0_1 = arith.constant 0 : index
    %c0_2 = arith.constant 0 : index
    %c0_3 = arith.constant 0 : index
    %c0_4 = arith.constant 0 : index
    %3 = vector.load %arg2[%c0, %c0_1, %c0_2, %c0_3, %c0_4] : memref<1x1x2x128x128xbf16, #tpu.memory_space<vmem>>, vector<1x1x1x128x128xbf16>
    %4 = vector.shape_cast %3 : vector<1x1x1x128x128xbf16> to vector<128x128xbf16>
    %5 = arith.extf %4 : vector<128x128xbf16> to vector<128x128xf32>
    %c8 = arith.constant 8 : index
    %c0_5 = arith.constant 0 : index
    %6 = vector.load %arg25[%c8, %c0_5] : memref<144x256xf32, #tpu.memory_space<vmem>>, vector<128x128xf32>
    tpu.vector_store %arg25[%c8, %c0_5], %5 {strides = array<i32>} : memref<144x256xf32, #tpu.memory_space<vmem>>, vector<128x128xf32>,
    %c0_6 = arith.constant 0 : index
    %c0_7 = arith.constant 0 : index
    %c1 = arith.constant 1 : index
    %c0_8 = arith.constant 0 : index
    %c0_9 = arith.constant 0 : index
    %7 = vector.load %arg2[%c0_6, %c0_7, %c1, %c0_8, %c0_9] : memref<1x1x2x128x128xbf16, #tpu.memory_space<vmem>>, vector<1x1x1x128x128xbf16>
    %8 = vector.shape_cast %7 : vector<1x1x1x128x128xbf16> to vector<128x128xbf16>
    %9 = arith.extf %8 : vector<128x128xbf16> to vector<128x128xf32>
    %c8_10 = arith.constant 8 : index
    %c128 = arith.constant 128 : index
    %10 = vector.load %arg25[%c8_10, %c128] : memref<144x256xf32, #tpu.memory_space<vmem>>, vector<128x128xf32>
    tpu.vector_store %arg25[%c8_10, %c128], %9 {strides = array<i32>} : memref<144x256xf32, #tpu.memory_space<vmem>>, vector<128x128xf32>,
    %c0_11 = arith.constant 0 : index
    %c0_12 = arith.constant 0 : index
    %11 = vector.load %arg18[%c0_11, %c0_12] : memref<16x32xf32, #tpu.memory_space<vmem>>, vector<16x32xf32>
    %c0_13 = arith.constant 0 : index
    %c0_14 = arith.constant 0 : index
    %c0_15 = arith.constant 0 : index
    %12 = vector.load %arg3[%c0_13, %c0_14, %c0_15] : memref<3x256x512xf32, #tpu.memory_space<vmem>>, vector<1x256x512xf32>
    %13 = vector.shape_cast %12 : vector<1x256x512xf32> to vector<256x512xf32>
    %c1_16 = arith.constant 1 : index
    %c0_17 = arith.constant 0 : index
    %c0_18 = arith.constant 0 : index
    %14 = vector.load %arg3[%c1_16, %c0_17, %c0_18] : memref<3x256x512xf32, #tpu.memory_space<vmem>>, vector<1x256x512xf32>
    %15 = vector.shape_cast %14 : vector<1x256x512xf32> to vector<256x512xf32>
    %c2 = arith.constant 2 : index
    %c0_19 = arith.constant 0 : index
    %c0_20 = arith.constant 0 : index
    %16 = vector.load %arg3[%c2, %c0_19, %c0_20] : memref<3x256x512xf32, #tpu.memory_space<vmem>>, vector<1x256x512xf32>
    %17 = vector.shape_cast %16 : vector<1x256x512xf32> to vector<256x512xf32>
    %c0_21 = arith.constant 0 : index
    %c0_22 = arith.constant 0 : index
    %18 = vector.load %arg8[%c0_21, %c0_22] : memref<1x512xf32, #tpu.memory_space<vmem>>, vector<1x512xf32>
    %c0_23 = arith.constant 0 : index
    %c0_24 = arith.constant 0 : index
    %19 = vector.load %arg13[%c0_23, %c0_24] : memref<512x256xf32, #tpu.memory_space<vmem>>, vector<512x256xf32>
    %c7 = arith.constant 7 : index
    %c0_25 = arith.constant 0 : index
    %20 = vector.load %arg25[%c7, %c0_25] : memref<144x256xf32, #tpu.memory_space<vmem>>, vector<32x256xf32>
    %cst = arith.constant dense<0.000000e+00> : vector<32x512xf32>
    %21 = tpu.matmul %20, %13, %cst {dimension_numbers = #tpu.dot_dimension_numbers<[1], [0], [0], [1], [0, 0, 1, 1], [], []>} : vector<32x256xf32>, vector<256x512xf32>, vector<32x512xf32> -> vector<32x512xf32>
    %c8_26 = arith.constant 8 : index
    %c0_27 = arith.constant 0 : index
    %22 = vector.load %arg25[%c8_26, %c0_27] : memref<144x256xf32, #tpu.memory_space<vmem>>, vector<32x256xf32>
    %cst_28 = arith.constant dense<0.000000e+00> : vector<32x512xf32>
    %23 = tpu.matmul %22, %15, %cst_28 {dimension_numbers = #tpu.dot_dimension_numbers<[1], [0], [0], [1], [0, 0, 1, 1], [], []>} : vector<32x256xf32>, vector<256x512xf32>, vector<32x512xf32> -> vector<32x512xf32>
    %24 = arith.addf %21, %23 : vector<32x512xf32>
    %c9 = arith.constant 9 : index
    %c0_29 = arith.constant 0 : index
    %25 = vector.load %arg25[%c9, %c0_29] : memref<144x256xf32, #tpu.memory_space<vmem>>, vector<32x256xf32>
    %cst_30 = arith.constant dense<0.000000e+00> : vector<32x512xf32>
    %26 = tpu.matmul %25, %17, %cst_30 {dimension_numbers = #tpu.dot_dimension_numbers<[1], [0], [0], [1], [0, 0, 1, 1], [], []>} : vector<32x256xf32>, vector<256x512xf32>, vector<32x512xf32> -> vector<32x512xf32>
    %27 = arith.addf %24, %26 : vector<32x512xf32>
    %28 = vector.broadcast %18 : vector<1x512xf32> to vector<32x512xf32>
    %29 = arith.addf %27, %28 : vector<32x512xf32>
    %c0_31 = arith.constant 0 : index
    %c0_32 = arith.constant 0 : index
    %30 = vector.load %arg30[%c0_31, %c0_32] : memref<128x512xf32, #tpu.memory_space<vmem>>, vector<32x512xf32>
    %31 = arith.addf %30, %29 : vector<32x512xf32>
    %cst_33 = arith.constant 5.000000e-01 : f32
    %32 = vector.broadcast %cst_33 : f32 to vector<32x512xf32>
    %33 = arith.mulf %32, %31 : vector<32x512xf32>
    %cst_34 = arith.constant 1.000000e+00 : f32
    %34 = vector.broadcast %cst_34 : f32 to vector<32x512xf32>
    %35 = arith.cmpf oge, %33, %34 : vector<32x512xf32>
    %cst_35 = arith.constant 0.000000e+00 : f32
    %36 = vector.broadcast %cst_35 : f32 to vector<32x512xf32>
    %37 = arith.select %35, %36, %33 : vector<32x512xi1>, vector<32x512xf32>
    %c0_36 = arith.constant 0 : index
    %c0_37 = arith.constant 0 : index
    %38 = vector.load %arg30[%c0_36, %c0_37] : memref<128x512xf32, #tpu.memory_space<vmem>>, vector<32x512xf32>
    tpu.vector_store %arg30[%c0_36, %c0_37], %37 {strides = array<i32>} : memref<128x512xf32, #tpu.memory_space<vmem>>, vector<32x512xf32>,
    %39 = arith.extui %35 : vector<32x512xi1> to vector<32x512xi32>
    %40 = arith.sitofp %39 : vector<32x512xi32> to vector<32x512xf32>
    %cst_38 = arith.constant dense<0.000000e+00> : vector<32x256xf32>
    %41 = tpu.matmul %40, %19, %cst_38 {dimension_numbers = #tpu.dot_dimension_numbers<[1], [0], [0], [1], [0, 0, 1, 1], [], []>} : vector<32x512xf32>, vector<512x256xf32>, vector<32x256xf32> -> vector<32x256xf32>
    %cst_39 = arith.constant dense<0.000000e+00> : vector<16x256xf32>
    %42 = tpu.matmul %11, %41, %cst_39 {dimension_numbers = #tpu.dot_dimension_numbers<[1], [0], [0], [1], [0, 0, 1, 1], [], []>} : vector<16x32xf32>, vector<32x256xf32>, vector<16x256xf32> -> vector<16x256xf32>
    %cst_40 = arith.constant 5.000000e-01 : f32
    %43 = vector.broadcast %cst_40 : f32 to vector<16x256xf32>
    %44 = arith.cmpf ogt, %42, %43 : vector<16x256xf32>
    %45 = arith.extui %44 : vector<16x256xi1> to vector<16x256xi32>
    %46 = arith.sitofp %45 : vector<16x256xi32> to vector<16x256xf32>
    %c8_41 = arith.constant 8 : index
    %c0_42 = arith.constant 0 : index
    %47 = vector.load %arg26[%c8_41, %c0_42] : memref<80x256xf32, #tpu.memory_space<vmem>>, vector<16x256xf32>
    tpu.vector_store %arg26[%c8_41, %c0_42], %46 {strides = array<i32>} : memref<80x256xf32, #tpu.memory_space<vmem>>, vector<16x256xf32>,
    %c39 = arith.constant 39 : index
    %c0_43 = arith.constant 0 : index
    %48 = vector.load %arg25[%c39, %c0_43] : memref<144x256xf32, #tpu.memory_space<vmem>>, vector<32x256xf32>
    %cst_44 = arith.constant dense<0.000000e+00> : vector<32x512xf32>
    %49 = tpu.matmul %48, %13, %cst_44 {dimension_numbers = #tpu.dot_dimension_numbers<[1], [0], [0], [1], [0, 0, 1, 1], [], []>} : vector<32x256xf32>, vector<256x512xf32>, vector<32x512xf32> -> vector<32x512xf32>
    %c40 = arith.constant 40 : index
    %c0_45 = arith.constant 0 : index
    %50 = vector.load %arg25[%c40, %c0_45] : memref<144x256xf32, #tpu.memory_space<vmem>>, vector<32x256xf32>
    %cst_46 = arith.constant dense<0.000000e+00> : vector<32x512xf32>
    %51 = tpu.matmul %50, %15, %cst_46 {dimension_numbers = #tpu.dot_dimension_numbers<[1], [0], [0], [1], [0, 0, 1, 1], [], []>} : vector<32x256xf32>, vector<256x512xf32>, vector<32x512xf32> -> vector<32x512xf32>
    %52 = arith.addf %49, %51 : vector<32x512xf32>
    %c41 = arith.constant 41 : index
    %c0_47 = arith.constant 0 : index
    %53 = vector.load %arg25[%c41, %c0_47] : memref<144x256xf32, #tpu.memory_space<vmem>>, vector<32x256xf32>
    %cst_48 = arith.constant dense<0.000000e+00> : vector<32x512xf32>
    %54 = tpu.matmul %53, %17, %cst_48 {dimension_numbers = #tpu.dot_dimension_numbers<[1], [0], [0], [1], [0, 0, 1, 1], [], []>} : vector<32x256xf32>, vector<256x512xf32>, vector<32x512xf32> -> vector<32x512xf32>
    %55 = arith.addf %52, %54 : vector<32x512xf32>
    %56 = vector.broadcast %18 : vector<1x512xf32> to vector<32x512xf32>
    %57 = arith.addf %55, %56 : vector<32x512xf32>
    %c32 = arith.constant 32 : index
    %c0_49 = arith.constant 0 : index
    %58 = vector.load %arg30[%c32, %c0_49] : memref<128x512xf32, #tpu.memory_space<vmem>>, vector<32x512xf32>
    %59 = arith.addf %58, %57 : vector<32x512xf32>
    %cst_50 = arith.constant 5.000000e-01 : f32
    %60 = vector.broadcast %cst_50 : f32 to vector<32x512xf32>
    %61 = arith.mulf %60, %59 : vector<32x512xf32>
    %cst_51 = arith.constant 1.000000e+00 : f32
    %62 = vector.broadcast %cst_51 : f32 to vector<32x512xf32>
    %63 = arith.cmpf oge, %61, %62 : vector<32x512xf32>
    %cst_52 = arith.constant 0.000000e+00 : f32
    %64 = vector.broadcast %cst_52 : f32 to vector<32x512xf32>
    %65 = arith.select %63, %64, %61 : vector<32x512xi1>, vector<32x512xf32>
    %c32_53 = arith.constant 32 : index
    %c0_54 = arith.constant 0 : index
    %66 = vector.load %arg30[%c32_53, %c0_54] : memref<128x512xf32, #tpu.memory_space<vmem>>, vector<32x512xf32>
    tpu.vector_store %arg30[%c32_53, %c0_54], %65 {strides = array<i32>} : memref<128x512xf32, #tpu.memory_space<vmem>>, vector<32x512xf32>,
    %67 = arith.extui %63 : vector<32x512xi1> to vector<32x512xi32>
    %68 = arith.sitofp %67 : vector<32x512xi32> to vector<32x512xf32>
    %cst_55 = arith.constant dense<0.000000e+00> : vector<32x256xf32>
    %69 = tpu.matmul %68, %19, %cst_55 {dimension_numbers = #tpu.dot_dimension_numbers<[1], [0], [0], [1], [0, 0, 1, 1], [], []>} : vector<32x512xf32>, vector<512x256xf32>, vector<32x256xf32> -> vector<32x256xf32>
    %cst_56 = arith.constant dense<0.000000e+00> : vector<16x256xf32>
    %70 = tpu.matmul %11, %69, %cst_56 {dimension_numbers = #tpu.dot_dimension_numbers<[1], [0], [0], [1], [0, 0, 1, 1], [], []>} : vector<16x32xf32>, vector<32x256xf32>, vector<16x256xf32> -> vector<16x256xf32>
    %cst_57 = arith.constant 5.000000e-01 : f32
    %71 = vector.broadcast %cst_57 : f32 to vector<16x256xf32>
    %72 = arith.cmpf ogt, %70, %71 : vector<16x256xf32>
    %73 = arith.extui %72 : vector<16x256xi1> to vector<16x256xi32>
    %74 = arith.sitofp %73 : vector<16x256xi32> to vector<16x256xf32>
    %c24 = arith.constant 24 : index
    %c0_58 = arith.constant 0 : index
    %75 = vector.load %arg26[%c24, %c0_58] : memref<80x256xf32, #tpu.memory_space<vmem>>, vector<16x256xf32>
    tpu.vector_store %arg26[%c24, %c0_58], %74 {strides = array<i32>} : memref<80x256xf32, #tpu.memory_space<vmem>>, vector<16x256xf32>,
    %c71 = arith.constant 71 : index
    %c0_59 = arith.constant 0 : index
    %76 = vector.load %arg25[%c71, %c0_59] : memref<144x256xf32, #tpu.memory_space<vmem>>, vector<32x256xf32>
    %cst_60 = arith.constant dense<0.000000e+00> : vector<32x512xf32>
    %77 = tpu.matmul %76, %13, %cst_60 {dimension_numbers = #tpu.dot_dimension_numbers<[1], [0], [0], [1], [0, 0, 1, 1], [], []>} : vector<32x256xf32>, vector<256x512xf32>, vector<32x512xf32> -> vector<32x512xf32>
    %c72 = arith.constant 72 : index
    %c0_61 = arith.constant 0 : index
    %78 = vector.load %arg25[%c72, %c0_61] : memref<144x256xf32, #tpu.memory_space<vmem>>, vector<32x256xf32>
    %cst_62 = arith.constant dense<0.000000e+00> : vector<32x512xf32>
    %79 = tpu.matmul %78, %15, %cst_62 {dimension_numbers = #tpu.dot_dimension_numbers<[1], [0], [0], [1], [0, 0, 1, 1], [], []>} : vector<32x256xf32>, vector<256x512xf32>, vector<32x512xf32> -> vector<32x512xf32>
    %80 = arith.addf %77, %79 : vector<32x512xf32>
    %c73 = arith.constant 73 : index
    %c0_63 = arith.constant 0 : index
    %81 = vector.load %arg25[%c73, %c0_63] : memref<144x256xf32, #tpu.memory_space<vmem>>, vector<32x256xf32>
    %cst_64 = arith.constant dense<0.000000e+00> : vector<32x512xf32>
    %82 = tpu.matmul %81, %17, %cst_64 {dimension_numbers = #tpu.dot_dimension_numbers<[1], [0], [0], [1], [0, 0, 1, 1], [], []>} : vector<32x256xf32>, vector<256x512xf32>, vector<32x512xf32> -> vector<32x512xf32>
    %83 = arith.addf %80, %82 : vector<32x512xf32>
    %84 = vector.broadcast %18 : vector<1x512xf32> to vector<32x512xf32>
    %85 = arith.addf %83, %84 : vector<32x512xf32>
    %c64 = arith.constant 64 : index
    %c0_65 = arith.constant 0 : index
    %86 = vector.load %arg30[%c64, %c0_65] : memref<128x512xf32, #tpu.memory_space<vmem>>, vector<32x512xf32>
    %87 = arith.addf %86, %85 : vector<32x512xf32>
    %cst_66 = arith.constant 5.000000e-01 : f32
    %88 = vector.broadcast %cst_66 : f32 to vector<32x512xf32>
    %89 = arith.mulf %88, %87 : vector<32x512xf32>
    %cst_67 = arith.constant 1.000000e+00 : f32
    %90 = vector.broadcast %cst_67 : f32 to vector<32x512xf32>
    %91 = arith.cmpf oge, %89, %90 : vector<32x512xf32>
    %cst_68 = arith.constant 0.000000e+00 : f32
    %92 = vector.broadcast %cst_68 : f32 to vector<32x512xf32>
    %93 = arith.select %91, %92, %89 : vector<32x512xi1>, vector<32x512xf32>
    %c64_69 = arith.constant 64 : index
    %c0_70 = arith.constant 0 : index
    %94 = vector.load %arg30[%c64_69, %c0_70] : memref<128x512xf32, #tpu.memory_space<vmem>>, vector<32x512xf32>
    tpu.vector_store %arg30[%c64_69, %c0_70], %93 {strides = array<i32>} : memref<128x512xf32, #tpu.memory_space<vmem>>, vector<32x512xf32>,
    %95 = arith.extui %91 : vector<32x512xi1> to vector<32x512xi32>
    %96 = arith.sitofp %95 : vector<32x512xi32> to vector<32x512xf32>
    %cst_71 = arith.constant dense<0.000000e+00> : vector<32x256xf32>
    %97 = tpu.matmul %96, %19, %cst_71 {dimension_numbers = #tpu.dot_dimension_numbers<[1], [0], [0], [1], [0, 0, 1, 1], [], []>} : vector<32x512xf32>, vector<512x256xf32>, vector<32x256xf32> -> vector<32x256xf32>
    %cst_72 = arith.constant dense<0.000000e+00> : vector<16x256xf32>
    %98 = tpu.matmul %11, %97, %cst_72 {dimension_numbers = #tpu.dot_dimension_numbers<[1], [0], [0], [1], [0, 0, 1, 1], [], []>} : vector<16x32xf32>, vector<32x256xf32>, vector<16x256xf32> -> vector<16x256xf32>
    %cst_73 = arith.constant 5.000000e-01 : f32
    %99 = vector.broadcast %cst_73 : f32 to vector<16x256xf32>
    %100 = arith.cmpf ogt, %98, %99 : vector<16x256xf32>
    %101 = arith.extui %100 : vector<16x256xi1> to vector<16x256xi32>
    %102 = arith.sitofp %101 : vector<16x256xi32> to vector<16x256xf32>
    %c40_74 = arith.constant 40 : index
    %c0_75 = arith.constant 0 : index
    %103 = vector.load %arg26[%c40_74, %c0_75] : memref<80x256xf32, #tpu.memory_space<vmem>>, vector<16x256xf32>
    tpu.vector_store %arg26[%c40_74, %c0_75], %102 {strides = array<i32>} : memref<80x256xf32, #tpu.memory_space<vmem>>, vector<16x256xf32>,
    %c103 = arith.constant 103 : index
    %c0_76 = arith.constant 0 : index
    %104 = vector.load %arg25[%c103, %c0_76] : memref<144x256xf32, #tpu.memory_space<vmem>>, vector<32x256xf32>
    %cst_77 = arith.constant dense<0.000000e+00> : vector<32x512xf32>
    %105 = tpu.matmul %104, %13, %cst_77 {dimension_numbers = #tpu.dot_dimension_numbers<[1], [0], [0], [1], [0, 0, 1, 1], [], []>} : vector<32x256xf32>, vector<256x512xf32>, vector<32x512xf32> -> vector<32x512xf32>
    %c104 = arith.constant 104 : index
    %c0_78 = arith.constant 0 : index
    %106 = vector.load %arg25[%c104, %c0_78] : memref<144x256xf32, #tpu.memory_space<vmem>>, vector<32x256xf32>
    %cst_79 = arith.constant dense<0.000000e+00> : vector<32x512xf32>
    %107 = tpu.matmul %106, %15, %cst_79 {dimension_numbers = #tpu.dot_dimension_numbers<[1], [0], [0], [1], [0, 0, 1, 1], [], []>} : vector<32x256xf32>, vector<256x512xf32>, vector<32x512xf32> -> vector<32x512xf32>
    %108 = arith.addf %105, %107 : vector<32x512xf32>
    %c105 = arith.constant 105 : index
    %c0_80 = arith.constant 0 : index
    %109 = vector.load %arg25[%c105, %c0_80] : memref<144x256xf32, #tpu.memory_space<vmem>>, vector<32x256xf32>
    %cst_81 = arith.constant dense<0.000000e+00> : vector<32x512xf32>
    %110 = tpu.matmul %109, %17, %cst_81 {dimension_numbers = #tpu.dot_dimension_numbers<[1], [0], [0], [1], [0, 0, 1, 1], [], []>} : vector<32x256xf32>, vector<256x512xf32>, vector<32x512xf32> -> vector<32x512xf32>
    %111 = arith.addf %108, %110 : vector<32x512xf32>
    %112 = vector.broadcast %18 : vector<1x512xf32> to vector<32x512xf32>
    %113 = arith.addf %111, %112 : vector<32x512xf32>
    %c96 = arith.constant 96 : index
    %c0_82 = arith.constant 0 : index
    %114 = vector.load %arg30[%c96, %c0_82] : memref<128x512xf32, #tpu.memory_space<vmem>>, vector<32x512xf32>
    %115 = arith.addf %114, %113 : vector<32x512xf32>
    %cst_83 = arith.constant 5.000000e-01 : f32
    %116 = vector.broadcast %cst_83 : f32 to vector<32x512xf32>
    %117 = arith.mulf %116, %115 : vector<32x512xf32>
    %cst_84 = arith.constant 1.000000e+00 : f32
    %118 = vector.broadcast %cst_84 : f32 to vector<32x512xf32>
    %119 = arith.cmpf oge, %117, %118 : vector<32x512xf32>
    %cst_85 = arith.constant 0.000000e+00 : f32
    %120 = vector.broadcast %cst_85 : f32 to vector<32x512xf32>
    %121 = arith.select %119, %120, %117 : vector<32x512xi1>, vector<32x512xf32>
    %c96_86 = arith.constant 96 : index
    %c0_87 = arith.constant 0 : index
    %122 = vector.load %arg30[%c96_86, %c0_87] : memref<128x512xf32, #tpu.memory_space<vmem>>, vector<32x512xf32>
    tpu.vector_store %arg30[%c96_86, %c0_87], %121 {strides = array<i32>} : memref<128x512xf32, #tpu.memory_space<vmem>>, vector<32x512xf32>,
    %123 = arith.extui %119 : vector<32x512xi1> to vector<32x512xi32>
    %124 = arith.sitofp %123 : vector<32x512xi32> to vector<32x512xf32>
    %cst_88 = arith.constant dense<0.000000e+00> : vector<32x256xf32>
    %125 = tpu.matmul %124, %19, %cst_88 {dimension_numbers = #tpu.dot_dimension_numbers<[1], [0], [0], [1], [0, 0, 1, 1], [], []>} : vector<32x512xf32>, vector<512x256xf32>, vector<32x256xf32> -> vector<32x256xf32>
    %cst_89 = arith.constant dense<0.000000e+00> : vector<16x256xf32>
    %126 = tpu.matmul %11, %125, %cst_89 {dimension_numbers = #tpu.dot_dimension_numbers<[1], [0], [0], [1], [0, 0, 1, 1], [], []>} : vector<16x32xf32>, vector<32x256xf32>, vector<16x256xf32> -> vector<16x256xf32>
    %cst_90 = arith.constant 5.000000e-01 : f32
    %127 = vector.broadcast %cst_90 : f32 to vector<16x256xf32>
    %128 = arith.cmpf ogt, %126, %127 : vector<16x256xf32>
    %129 = arith.extui %128 : vector<16x256xi1> to vector<16x256xi32>
    %130 = arith.sitofp %129 : vector<16x256xi32> to vector<16x256xf32>
    %c56 = arith.constant 56 : index
    %c0_91 = arith.constant 0 : index
    %131 = vector.load %arg26[%c56, %c0_91] : memref<80x256xf32, #tpu.memory_space<vmem>>, vector<16x256xf32>
    tpu.vector_store %arg26[%c56, %c0_91], %130 {strides = array<i32>} : memref<80x256xf32, #tpu.memory_space<vmem>>, vector<16x256xf32>,
    %c0_92 = arith.constant 0 : index
    %c0_93 = arith.constant 0 : index
    %c0_94 = arith.constant 0 : index
    %132 = vector.load %arg4[%c0_92, %c0_93, %c0_94] : memref<3x256x256xf32, #tpu.memory_space<vmem>>, vector<1x256x256xf32>
    %133 = vector.shape_cast %132 : vector<1x256x256xf32> to vector<256x256xf32>
    %c1_95 = arith.constant 1 : index
    %c0_96 = arith.constant 0 : index
    %c0_97 = arith.constant 0 : index
    %134 = vector.load %arg4[%c1_95, %c0_96, %c0_97] : memref<3x256x256xf32, #tpu.memory_space<vmem>>, vector<1x256x256xf32>
    %135 = vector.shape_cast %134 : vector<1x256x256xf32> to vector<256x256xf32>
    %c2_98 = arith.constant 2 : index
    %c0_99 = arith.constant 0 : index
    %c0_100 = arith.constant 0 : index
    %136 = vector.load %arg4[%c2_98, %c0_99, %c0_100] : memref<3x256x256xf32, #tpu.memory_space<vmem>>, vector<1x256x256xf32>
    %137 = vector.shape_cast %136 : vector<1x256x256xf32> to vector<256x256xf32>
    %c0_101 = arith.constant 0 : index
    %c0_102 = arith.constant 0 : index
    %138 = vector.load %arg9[%c0_101, %c0_102] : memref<1x256xf32, #tpu.memory_space<vmem>>, vector<1x256xf32>
    %c0_103 = arith.constant 0 : index
    %c0_104 = arith.constant 0 : index
    %139 = vector.load %arg14[%c0_103, %c0_104] : memref<256x128xf32, #tpu.memory_space<vmem>>, vector<256x128xf32>
    %c7_105 = arith.constant 7 : index
    %c0_106 = arith.constant 0 : index
    %140 = vector.load %arg26[%c7_105, %c0_106] : memref<80x256xf32, #tpu.memory_space<vmem>>, vector<32x256xf32>
    %cst_107 = arith.constant dense<0.000000e+00> : vector<32x256xf32>
    %141 = tpu.matmul %140, %133, %cst_107 {dimension_numbers = #tpu.dot_dimension_numbers<[1], [0], [0], [1], [0, 0, 1, 1], [], []>} : vector<32x256xf32>, vector<256x256xf32>, vector<32x256xf32> -> vector<32x256xf32>
    %c8_108 = arith.constant 8 : index
    %c0_109 = arith.constant 0 : index
    %142 = vector.load %arg26[%c8_108, %c0_109] : memref<80x256xf32, #tpu.memory_space<vmem>>, vector<32x256xf32>
    %cst_110 = arith.constant dense<0.000000e+00> : vector<32x256xf32>
    %143 = tpu.matmul %142, %135, %cst_110 {dimension_numbers = #tpu.dot_dimension_numbers<[1], [0], [0], [1], [0, 0, 1, 1], [], []>} : vector<32x256xf32>, vector<256x256xf32>, vector<32x256xf32> -> vector<32x256xf32>
    %144 = arith.addf %141, %143 : vector<32x256xf32>
    %c9_111 = arith.constant 9 : index
    %c0_112 = arith.constant 0 : index
    %145 = vector.load %arg26[%c9_111, %c0_112] : memref<80x256xf32, #tpu.memory_space<vmem>>, vector<32x256xf32>
    %cst_113 = arith.constant dense<0.000000e+00> : vector<32x256xf32>
    %146 = tpu.matmul %145, %137, %cst_113 {dimension_numbers = #tpu.dot_dimension_numbers<[1], [0], [0], [1], [0, 0, 1, 1], [], []>} : vector<32x256xf32>, vector<256x256xf32>, vector<32x256xf32> -> vector<32x256xf32>
    %147 = arith.addf %144, %146 : vector<32x256xf32>
    %148 = vector.broadcast %138 : vector<1x256xf32> to vector<32x256xf32>
    %149 = arith.addf %147, %148 : vector<32x256xf32>
    %c0_114 = arith.constant 0 : index
    %c0_115 = arith.constant 0 : index
    %150 = vector.load %arg31[%c0_114, %c0_115] : memref<64x256xf32, #tpu.memory_space<vmem>>, vector<32x256xf32>
    %151 = arith.addf %150, %149 : vector<32x256xf32>
    %cst_116 = arith.constant 5.000000e-01 : f32
    %152 = vector.broadcast %cst_116 : f32 to vector<32x256xf32>
    %153 = arith.mulf %152, %151 : vector<32x256xf32>
    %cst_117 = arith.constant 1.000000e+00 : f32
    %154 = vector.broadcast %cst_117 : f32 to vector<32x256xf32>
    %155 = arith.cmpf oge, %153, %154 : vector<32x256xf32>
    %cst_118 = arith.constant 0.000000e+00 : f32
    %156 = vector.broadcast %cst_118 : f32 to vector<32x256xf32>
    %157 = arith.select %155, %156, %153 : vector<32x256xi1>, vector<32x256xf32>
    %c0_119 = arith.constant 0 : index
    %c0_120 = arith.constant 0 : index
    %158 = vector.load %arg31[%c0_119, %c0_120] : memref<64x256xf32, #tpu.memory_space<vmem>>, vector<32x256xf32>
    tpu.vector_store %arg31[%c0_119, %c0_120], %157 {strides = array<i32>} : memref<64x256xf32, #tpu.memory_space<vmem>>, vector<32x256xf32>,
    %159 = arith.extui %155 : vector<32x256xi1> to vector<32x256xi32>
    %160 = arith.sitofp %159 : vector<32x256xi32> to vector<32x256xf32>
    %cst_121 = arith.constant dense<0.000000e+00> : vector<32x128xf32>
    %161 = tpu.matmul %160, %139, %cst_121 {dimension_numbers = #tpu.dot_dimension_numbers<[1], [0], [0], [1], [0, 0, 1, 1], [], []>} : vector<32x256xf32>, vector<256x128xf32>, vector<32x128xf32> -> vector<32x128xf32>
    %cst_122 = arith.constant dense<0.000000e+00> : vector<16x128xf32>
    %162 = tpu.matmul %11, %161, %cst_122 {dimension_numbers = #tpu.dot_dimension_numbers<[1], [0], [0], [1], [0, 0, 1, 1], [], []>} : vector<16x32xf32>, vector<32x128xf32>, vector<16x128xf32> -> vector<16x128xf32>
    %cst_123 = arith.constant 5.000000e-01 : f32
    %163 = vector.broadcast %cst_123 : f32 to vector<16x128xf32>
    %164 = arith.cmpf ogt, %162, %163 : vector<16x128xf32>
    %165 = arith.extui %164 : vector<16x128xi1> to vector<16x128xi32>
    %166 = arith.sitofp %165 : vector<16x128xi32> to vector<16x128xf32>
    %c8_124 = arith.constant 8 : index
    %c0_125 = arith.constant 0 : index
    %167 = vector.load %arg27[%c8_124, %c0_125] : memref<48x128xf32, #tpu.memory_space<vmem>>, vector<16x128xf32>
    tpu.vector_store %arg27[%c8_124, %c0_125], %166 {strides = array<i32>} : memref<48x128xf32, #tpu.memory_space<vmem>>, vector<16x128xf32>,
    %c39_126 = arith.constant 39 : index
    %c0_127 = arith.constant 0 : index
    %168 = vector.load %arg26[%c39_126, %c0_127] : memref<80x256xf32, #tpu.memory_space<vmem>>, vector<32x256xf32>
    %cst_128 = arith.constant dense<0.000000e+00> : vector<32x256xf32>
    %169 = tpu.matmul %168, %133, %cst_128 {dimension_numbers = #tpu.dot_dimension_numbers<[1], [0], [0], [1], [0, 0, 1, 1], [], []>} : vector<32x256xf32>, vector<256x256xf32>, vector<32x256xf32> -> vector<32x256xf32>
    %c40_129 = arith.constant 40 : index
    %c0_130 = arith.constant 0 : index
    %170 = vector.load %arg26[%c40_129, %c0_130] : memref<80x256xf32, #tpu.memory_space<vmem>>, vector<32x256xf32>
    %cst_131 = arith.constant dense<0.000000e+00> : vector<32x256xf32>
    %171 = tpu.matmul %170, %135, %cst_131 {dimension_numbers = #tpu.dot_dimension_numbers<[1], [0], [0], [1], [0, 0, 1, 1], [], []>} : vector<32x256xf32>, vector<256x256xf32>, vector<32x256xf32> -> vector<32x256xf32>
    %172 = arith.addf %169, %171 : vector<32x256xf32>
    %c41_132 = arith.constant 41 : index
    %c0_133 = arith.constant 0 : index
    %173 = vector.load %arg26[%c41_132, %c0_133] : memref<80x256xf32, #tpu.memory_space<vmem>>, vector<32x256xf32>
    %cst_134 = arith.constant dense<0.000000e+00> : vector<32x256xf32>
    %174 = tpu.matmul %173, %137, %cst_134 {dimension_numbers = #tpu.dot_dimension_numbers<[1], [0], [0], [1], [0, 0, 1, 1], [], []>} : vector<32x256xf32>, vector<256x256xf32>, vector<32x256xf32> -> vector<32x256xf32>
    %175 = arith.addf %172, %174 : vector<32x256xf32>
    %176 = vector.broadcast %138 : vector<1x256xf32> to vector<32x256xf32>
    %177 = arith.addf %175, %176 : vector<32x256xf32>
    %c32_135 = arith.constant 32 : index
    %c0_136 = arith.constant 0 : index
    %178 = vector.load %arg31[%c32_135, %c0_136] : memref<64x256xf32, #tpu.memory_space<vmem>>, vector<32x256xf32>
    %179 = arith.addf %178, %177 : vector<32x256xf32>
    %cst_137 = arith.constant 5.000000e-01 : f32
    %180 = vector.broadcast %cst_137 : f32 to vector<32x256xf32>
    %181 = arith.mulf %180, %179 : vector<32x256xf32>
    %cst_138 = arith.constant 1.000000e+00 : f32
    %182 = vector.broadcast %cst_138 : f32 to vector<32x256xf32>
    %183 = arith.cmpf oge, %181, %182 : vector<32x256xf32>
    %cst_139 = arith.constant 0.000000e+00 : f32
    %184 = vector.broadcast %cst_139 : f32 to vector<32x256xf32>
    %185 = arith.select %183, %184, %181 : vector<32x256xi1>, vector<32x256xf32>
    %c32_140 = arith.constant 32 : index
    %c0_141 = arith.constant 0 : index
    %186 = vector.load %arg31[%c32_140, %c0_141] : memref<64x256xf32, #tpu.memory_space<vmem>>, vector<32x256xf32>
    tpu.vector_store %arg31[%c32_140, %c0_141], %185 {strides = array<i32>} : memref<64x256xf32, #tpu.memory_space<vmem>>, vector<32x256xf32>,
    %187 = arith.extui %183 : vector<32x256xi1> to vector<32x256xi32>
    %188 = arith.sitofp %187 : vector<32x256xi32> to vector<32x256xf32>
    %cst_142 = arith.constant dense<0.000000e+00> : vector<32x128xf32>
    %189 = tpu.matmul %188, %139, %cst_142 {dimension_numbers = #tpu.dot_dimension_numbers<[1], [0], [0], [1], [0, 0, 1, 1], [], []>} : vector<32x256xf32>, vector<256x128xf32>, vector<32x128xf32> -> vector<32x128xf32>
    %cst_143 = arith.constant dense<0.000000e+00> : vector<16x128xf32>
    %190 = tpu.matmul %11, %189, %cst_143 {dimension_numbers = #tpu.dot_dimension_numbers<[1], [0], [0], [1], [0, 0, 1, 1], [], []>} : vector<16x32xf32>, vector<32x128xf32>, vector<16x128xf32> -> vector<16x128xf32>
    %cst_144 = arith.constant 5.000000e-01 : f32
    %191 = vector.broadcast %cst_144 : f32 to vector<16x128xf32>
    %192 = arith.cmpf ogt, %190, %191 : vector<16x128xf32>
    %193 = arith.extui %192 : vector<16x128xi1> to vector<16x128xi32>
    %194 = arith.sitofp %193 : vector<16x128xi32> to vector<16x128xf32>
    %c24_145 = arith.constant 24 : index
    %c0_146 = arith.constant 0 : index
    %195 = vector.load %arg27[%c24_145, %c0_146] : memref<48x128xf32, #tpu.memory_space<vmem>>, vector<16x128xf32>
    tpu.vector_store %arg27[%c24_145, %c0_146], %194 {strides = array<i32>} : memref<48x128xf32, #tpu.memory_space<vmem>>, vector<16x128xf32>,
    %c0_147 = arith.constant 0 : index
    %c0_148 = arith.constant 0 : index
    %c0_149 = arith.constant 0 : index
    %196 = vector.load %arg5[%c0_147, %c0_148, %c0_149] : memref<3x128x128xf32, #tpu.memory_space<vmem>>, vector<1x128x128xf32>
    %197 = vector.shape_cast %196 : vector<1x128x128xf32> to vector<128x128xf32>
    %c1_150 = arith.constant 1 : index
    %c0_151 = arith.constant 0 : index
    %c0_152 = arith.constant 0 : index
    %198 = vector.load %arg5[%c1_150, %c0_151, %c0_152] : memref<3x128x128xf32, #tpu.memory_space<vmem>>, vector<1x128x128xf32>
    %199 = vector.shape_cast %198 : vector<1x128x128xf32> to vector<128x128xf32>
    %c2_153 = arith.constant 2 : index
    %c0_154 = arith.constant 0 : index
    %c0_155 = arith.constant 0 : index
    %200 = vector.load %arg5[%c2_153, %c0_154, %c0_155] : memref<3x128x128xf32, #tpu.memory_space<vmem>>, vector<1x128x128xf32>
    %201 = vector.shape_cast %200 : vector<1x128x128xf32> to vector<128x128xf32>
    %c0_156 = arith.constant 0 : index
    %c0_157 = arith.constant 0 : index
    %202 = vector.load %arg10[%c0_156, %c0_157] : memref<1x128xf32, #tpu.memory_space<vmem>>, vector<1x128xf32>
    %c0_158 = arith.constant 0 : index
    %c0_159 = arith.constant 0 : index
    %203 = vector.load %arg15[%c0_158, %c0_159] : memref<128x64xf32, #tpu.memory_space<vmem>>, vector<128x64xf32>
    %c7_160 = arith.constant 7 : index
    %c0_161 = arith.constant 0 : index
    %204 = vector.load %arg27[%c7_160, %c0_161] : memref<48x128xf32, #tpu.memory_space<vmem>>, vector<32x128xf32>
    %cst_162 = arith.constant dense<0.000000e+00> : vector<32x128xf32>
    %205 = tpu.matmul %204, %197, %cst_162 {dimension_numbers = #tpu.dot_dimension_numbers<[1], [0], [0], [1], [0, 0, 1, 1], [], []>} : vector<32x128xf32>, vector<128x128xf32>, vector<32x128xf32> -> vector<32x128xf32>
    %c8_163 = arith.constant 8 : index
    %c0_164 = arith.constant 0 : index
    %206 = vector.load %arg27[%c8_163, %c0_164] : memref<48x128xf32, #tpu.memory_space<vmem>>, vector<32x128xf32>
    %cst_165 = arith.constant dense<0.000000e+00> : vector<32x128xf32>
    %207 = tpu.matmul %206, %199, %cst_165 {dimension_numbers = #tpu.dot_dimension_numbers<[1], [0], [0], [1], [0, 0, 1, 1], [], []>} : vector<32x128xf32>, vector<128x128xf32>, vector<32x128xf32> -> vector<32x128xf32>
    %208 = arith.addf %205, %207 : vector<32x128xf32>
    %c9_166 = arith.constant 9 : index
    %c0_167 = arith.constant 0 : index
    %209 = vector.load %arg27[%c9_166, %c0_167] : memref<48x128xf32, #tpu.memory_space<vmem>>, vector<32x128xf32>
    %cst_168 = arith.constant dense<0.000000e+00> : vector<32x128xf32>
    %210 = tpu.matmul %209, %201, %cst_168 {dimension_numbers = #tpu.dot_dimension_numbers<[1], [0], [0], [1], [0, 0, 1, 1], [], []>} : vector<32x128xf32>, vector<128x128xf32>, vector<32x128xf32> -> vector<32x128xf32>
    %211 = arith.addf %208, %210 : vector<32x128xf32>
    %212 = vector.broadcast %202 : vector<1x128xf32> to vector<32x128xf32>
    %213 = arith.addf %211, %212 : vector<32x128xf32>
    %c0_169 = arith.constant 0 : index
    %c0_170 = arith.constant 0 : index
    %214 = vector.load %arg32[%c0_169, %c0_170] : memref<32x128xf32, #tpu.memory_space<vmem>>, vector<32x128xf32>
    %215 = arith.addf %214, %213 : vector<32x128xf32>
    %cst_171 = arith.constant 5.000000e-01 : f32
    %216 = vector.broadcast %cst_171 : f32 to vector<32x128xf32>
    %217 = arith.mulf %216, %215 : vector<32x128xf32>
    %cst_172 = arith.constant 1.000000e+00 : f32
    %218 = vector.broadcast %cst_172 : f32 to vector<32x128xf32>
    %219 = arith.cmpf oge, %217, %218 : vector<32x128xf32>
    %cst_173 = arith.constant 0.000000e+00 : f32
    %220 = vector.broadcast %cst_173 : f32 to vector<32x128xf32>
    %221 = arith.select %219, %220, %217 : vector<32x128xi1>, vector<32x128xf32>
    %c0_174 = arith.constant 0 : index
    %c0_175 = arith.constant 0 : index
    %222 = vector.load %arg32[%c0_174, %c0_175] : memref<32x128xf32, #tpu.memory_space<vmem>>, vector<32x128xf32>
    tpu.vector_store %arg32[%c0_174, %c0_175], %221 {strides = array<i32>} : memref<32x128xf32, #tpu.memory_space<vmem>>, vector<32x128xf32>,
    %223 = arith.extui %219 : vector<32x128xi1> to vector<32x128xi32>
    %224 = arith.sitofp %223 : vector<32x128xi32> to vector<32x128xf32>
    %cst_176 = arith.constant dense<0.000000e+00> : vector<32x64xf32>
    %225 = tpu.matmul %224, %203, %cst_176 {dimension_numbers = #tpu.dot_dimension_numbers<[1], [0], [0], [1], [0, 0, 1, 1], [], []>} : vector<32x128xf32>, vector<128x64xf32>, vector<32x64xf32> -> vector<32x64xf32>
    %cst_177 = arith.constant dense<0.000000e+00> : vector<16x64xf32>
    %226 = tpu.matmul %11, %225, %cst_177 {dimension_numbers = #tpu.dot_dimension_numbers<[1], [0], [0], [1], [0, 0, 1, 1], [], []>} : vector<16x32xf32>, vector<32x64xf32>, vector<16x64xf32> -> vector<16x64xf32>
    %cst_178 = arith.constant 5.000000e-01 : f32
    %227 = vector.broadcast %cst_178 : f32 to vector<16x64xf32>
    %228 = arith.cmpf ogt, %226, %227 : vector<16x64xf32>
    %229 = arith.extui %228 : vector<16x64xi1> to vector<16x64xi32>
    %230 = arith.sitofp %229 : vector<16x64xi32> to vector<16x64xf32>
    %c8_179 = arith.constant 8 : index
    %c0_180 = arith.constant 0 : index
    %231 = vector.load %arg28[%c8_179, %c0_180] : memref<32x64xf32, #tpu.memory_space<vmem>>, vector<16x64xf32>
    tpu.vector_store %arg28[%c8_179, %c0_180], %230 {strides = array<i32>} : memref<32x64xf32, #tpu.memory_space<vmem>>, vector<16x64xf32>,
    %c0_181 = arith.constant 0 : index
    %c0_182 = arith.constant 0 : index
    %c0_183 = arith.constant 0 : index
    %232 = vector.load %arg6[%c0_181, %c0_182, %c0_183] : memref<3x64x64xf32, #tpu.memory_space<vmem>>, vector<1x64x64xf32>
    %233 = vector.shape_cast %232 : vector<1x64x64xf32> to vector<64x64xf32>
    %c1_184 = arith.constant 1 : index
    %c0_185 = arith.constant 0 : index
    %c0_186 = arith.constant 0 : index
    %234 = vector.load %arg6[%c1_184, %c0_185, %c0_186] : memref<3x64x64xf32, #tpu.memory_space<vmem>>, vector<1x64x64xf32>
    %235 = vector.shape_cast %234 : vector<1x64x64xf32> to vector<64x64xf32>
    %c2_187 = arith.constant 2 : index
    %c0_188 = arith.constant 0 : index
    %c0_189 = arith.constant 0 : index
    %236 = vector.load %arg6[%c2_187, %c0_188, %c0_189] : memref<3x64x64xf32, #tpu.memory_space<vmem>>, vector<1x64x64xf32>
    %237 = vector.shape_cast %236 : vector<1x64x64xf32> to vector<64x64xf32>
    %c0_190 = arith.constant 0 : index
    %c0_191 = arith.constant 0 : index
    %238 = vector.load %arg11[%c0_190, %c0_191] : memref<1x64xf32, #tpu.memory_space<vmem>>, vector<1x64xf32>
    %c0_192 = arith.constant 0 : index
    %c0_193 = arith.constant 0 : index
    %239 = vector.load %arg16[%c0_192, %c0_193] : memref<64x32xf32, #tpu.memory_space<vmem>>, vector<64x32xf32>
    %240 = vector.extract_strided_slice %11 {offsets = [0, 0], sizes = [8, 16], strides = [1, 1]} : vector<16x32xf32> to vector<8x16xf32>
    %c7_194 = arith.constant 7 : index
    %c0_195 = arith.constant 0 : index
    %241 = vector.load %arg28[%c7_194, %c0_195] : memref<32x64xf32, #tpu.memory_space<vmem>>, vector<16x64xf32>
    %cst_196 = arith.constant dense<0.000000e+00> : vector<16x64xf32>
    %242 = tpu.matmul %241, %233, %cst_196 {dimension_numbers = #tpu.dot_dimension_numbers<[1], [0], [0], [1], [0, 0, 1, 1], [], []>} : vector<16x64xf32>, vector<64x64xf32>, vector<16x64xf32> -> vector<16x64xf32>
    %c8_197 = arith.constant 8 : index
    %c0_198 = arith.constant 0 : index
    %243 = vector.load %arg28[%c8_197, %c0_198] : memref<32x64xf32, #tpu.memory_space<vmem>>, vector<16x64xf32>
    %cst_199 = arith.constant dense<0.000000e+00> : vector<16x64xf32>
    %244 = tpu.matmul %243, %235, %cst_199 {dimension_numbers = #tpu.dot_dimension_numbers<[1], [0], [0], [1], [0, 0, 1, 1], [], []>} : vector<16x64xf32>, vector<64x64xf32>, vector<16x64xf32> -> vector<16x64xf32>
    %245 = arith.addf %242, %244 : vector<16x64xf32>
    %c9_200 = arith.constant 9 : index
    %c0_201 = arith.constant 0 : index
    %246 = vector.load %arg28[%c9_200, %c0_201] : memref<32x64xf32, #tpu.memory_space<vmem>>, vector<16x64xf32>
    %cst_202 = arith.constant dense<0.000000e+00> : vector<16x64xf32>
    %247 = tpu.matmul %246, %237, %cst_202 {dimension_numbers = #tpu.dot_dimension_numbers<[1], [0], [0], [1], [0, 0, 1, 1], [], []>} : vector<16x64xf32>, vector<64x64xf32>, vector<16x64xf32> -> vector<16x64xf32>
    %248 = arith.addf %245, %247 : vector<16x64xf32>
    %249 = vector.broadcast %238 : vector<1x64xf32> to vector<16x64xf32>
    %250 = arith.addf %248, %249 : vector<16x64xf32>
    %c0_203 = arith.constant 0 : index
    %c0_204 = arith.constant 0 : index
    %251 = vector.load %arg33[%c0_203, %c0_204] : memref<16x64xf32, #tpu.memory_space<vmem>>, vector<16x64xf32>
    %252 = arith.addf %251, %250 : vector<16x64xf32>
    %cst_205 = arith.constant 5.000000e-01 : f32
    %253 = vector.broadcast %cst_205 : f32 to vector<16x64xf32>
    %254 = arith.mulf %253, %252 : vector<16x64xf32>
    %cst_206 = arith.constant 1.000000e+00 : f32
    %255 = vector.broadcast %cst_206 : f32 to vector<16x64xf32>
    %256 = arith.cmpf oge, %254, %255 : vector<16x64xf32>
    %cst_207 = arith.constant 0.000000e+00 : f32
    %257 = vector.broadcast %cst_207 : f32 to vector<16x64xf32>
    %258 = arith.select %256, %257, %254 : vector<16x64xi1>, vector<16x64xf32>
    %c0_208 = arith.constant 0 : index
    %c0_209 = arith.constant 0 : index
    %259 = vector.load %arg33[%c0_208, %c0_209] : memref<16x64xf32, #tpu.memory_space<vmem>>, vector<16x64xf32>
    tpu.vector_store %arg33[%c0_208, %c0_209], %258 {strides = array<i32>} : memref<16x64xf32, #tpu.memory_space<vmem>>, vector<16x64xf32>,
    %260 = arith.extui %256 : vector<16x64xi1> to vector<16x64xi32>
    %261 = arith.sitofp %260 : vector<16x64xi32> to vector<16x64xf32>
    %cst_210 = arith.constant dense<0.000000e+00> : vector<16x32xf32>
    %262 = tpu.matmul %261, %239, %cst_210 {dimension_numbers = #tpu.dot_dimension_numbers<[1], [0], [0], [1], [0, 0, 1, 1], [], []>} : vector<16x64xf32>, vector<64x32xf32>, vector<16x32xf32> -> vector<16x32xf32>
    %cst_211 = arith.constant dense<0.000000e+00> : vector<8x32xf32>
    %263 = tpu.matmul %240, %262, %cst_211 {dimension_numbers = #tpu.dot_dimension_numbers<[1], [0], [0], [1], [0, 0, 1, 1], [], []>} : vector<8x16xf32>, vector<16x32xf32>, vector<8x32xf32> -> vector<8x32xf32>
    %cst_212 = arith.constant 5.000000e-01 : f32
    %264 = vector.broadcast %cst_212 : f32 to vector<8x32xf32>
    %265 = arith.cmpf ogt, %263, %264 : vector<8x32xf32>
    %266 = arith.extui %265 : vector<8x32xi1> to vector<8x32xi32>
    %267 = arith.sitofp %266 : vector<8x32xi32> to vector<8x32xf32>
    %c8_213 = arith.constant 8 : index
    %c0_214 = arith.constant 0 : index
    %268 = vector.load %arg29[%c8_213, %c0_214] : memref<24x32xf32, #tpu.memory_space<vmem>>, vector<8x32xf32>
    tpu.vector_store %arg29[%c8_213, %c0_214], %267 {strides = array<i32>} : memref<24x32xf32, #tpu.memory_space<vmem>>, vector<8x32xf32>,
    %c0_215 = arith.constant 0 : index
    %c0_216 = arith.constant 0 : index
    %c0_217 = arith.constant 0 : index
    %269 = vector.load %arg7[%c0_215, %c0_216, %c0_217] : memref<3x32x32xf32, #tpu.memory_space<vmem>>, vector<1x32x32xf32>
    %270 = vector.shape_cast %269 : vector<1x32x32xf32> to vector<32x32xf32>
    %c1_218 = arith.constant 1 : index
    %c0_219 = arith.constant 0 : index
    %c0_220 = arith.constant 0 : index
    %271 = vector.load %arg7[%c1_218, %c0_219, %c0_220] : memref<3x32x32xf32, #tpu.memory_space<vmem>>, vector<1x32x32xf32>
    %272 = vector.shape_cast %271 : vector<1x32x32xf32> to vector<32x32xf32>
    %c2_221 = arith.constant 2 : index
    %c0_222 = arith.constant 0 : index
    %c0_223 = arith.constant 0 : index
    %273 = vector.load %arg7[%c2_221, %c0_222, %c0_223] : memref<3x32x32xf32, #tpu.memory_space<vmem>>, vector<1x32x32xf32>
    %274 = vector.shape_cast %273 : vector<1x32x32xf32> to vector<32x32xf32>
    %c0_224 = arith.constant 0 : index
    %c0_225 = arith.constant 0 : index
    %275 = vector.load %arg12[%c0_224, %c0_225] : memref<1x32xf32, #tpu.memory_space<vmem>>, vector<1x32xf32>
    %c0_226 = arith.constant 0 : index
    %c0_227 = arith.constant 0 : index
    %276 = vector.load %arg17[%c0_226, %c0_227] : memref<32x16xf32, #tpu.memory_space<vmem>>, vector<32x16xf32>
    %277 = vector.extract_strided_slice %11 {offsets = [0, 0], sizes = [4, 8], strides = [1, 1]} : vector<16x32xf32> to vector<4x8xf32>
    %c7_228 = arith.constant 7 : index
    %c0_229 = arith.constant 0 : index
    %278 = vector.load %arg29[%c7_228, %c0_229] : memref<24x32xf32, #tpu.memory_space<vmem>>, vector<8x32xf32>
    %cst_230 = arith.constant dense<0.000000e+00> : vector<8x32xf32>
    %279 = tpu.matmul %278, %270, %cst_230 {dimension_numbers = #tpu.dot_dimension_numbers<[1], [0], [0], [1], [0, 0, 1, 1], [], []>} : vector<8x32xf32>, vector<32x32xf32>, vector<8x32xf32> -> vector<8x32xf32>
    %c8_231 = arith.constant 8 : index
    %c0_232 = arith.constant 0 : index
    %280 = vector.load %arg29[%c8_231, %c0_232] : memref<24x32xf32, #tpu.memory_space<vmem>>, vector<8x32xf32>
    %cst_233 = arith.constant dense<0.000000e+00> : vector<8x32xf32>
    %281 = tpu.matmul %280, %272, %cst_233 {dimension_numbers = #tpu.dot_dimension_numbers<[1], [0], [0], [1], [0, 0, 1, 1], [], []>} : vector<8x32xf32>, vector<32x32xf32>, vector<8x32xf32> -> vector<8x32xf32>
    %282 = arith.addf %279, %281 : vector<8x32xf32>
    %c9_234 = arith.constant 9 : index
    %c0_235 = arith.constant 0 : index
    %283 = vector.load %arg29[%c9_234, %c0_235] : memref<24x32xf32, #tpu.memory_space<vmem>>, vector<8x32xf32>
    %cst_236 = arith.constant dense<0.000000e+00> : vector<8x32xf32>
    %284 = tpu.matmul %283, %274, %cst_236 {dimension_numbers = #tpu.dot_dimension_numbers<[1], [0], [0], [1], [0, 0, 1, 1], [], []>} : vector<8x32xf32>, vector<32x32xf32>, vector<8x32xf32> -> vector<8x32xf32>
    %285 = arith.addf %282, %284 : vector<8x32xf32>
    %286 = vector.broadcast %275 : vector<1x32xf32> to vector<8x32xf32>
    %287 = arith.addf %285, %286 : vector<8x32xf32>
    %c0_237 = arith.constant 0 : index
    %c0_238 = arith.constant 0 : index
    %288 = vector.load %arg34[%c0_237, %c0_238] : memref<8x32xf32, #tpu.memory_space<vmem>>, vector<8x32xf32>
    %289 = arith.addf %288, %287 : vector<8x32xf32>
    %cst_239 = arith.constant 5.000000e-01 : f32
    %290 = vector.broadcast %cst_239 : f32 to vector<8x32xf32>
    %291 = arith.mulf %290, %289 : vector<8x32xf32>
    %cst_240 = arith.constant 1.000000e+00 : f32
    %292 = vector.broadcast %cst_240 : f32 to vector<8x32xf32>
    %293 = arith.cmpf oge, %291, %292 : vector<8x32xf32>
    %cst_241 = arith.constant 0.000000e+00 : f32
    %294 = vector.broadcast %cst_241 : f32 to vector<8x32xf32>
    %295 = arith.select %293, %294, %291 : vector<8x32xi1>, vector<8x32xf32>
    %c0_242 = arith.constant 0 : index
    %c0_243 = arith.constant 0 : index
    %296 = vector.load %arg34[%c0_242, %c0_243] : memref<8x32xf32, #tpu.memory_space<vmem>>, vector<8x32xf32>
    tpu.vector_store %arg34[%c0_242, %c0_243], %295 {strides = array<i32>} : memref<8x32xf32, #tpu.memory_space<vmem>>, vector<8x32xf32>,
    %297 = arith.extui %293 : vector<8x32xi1> to vector<8x32xi32>
    %298 = arith.sitofp %297 : vector<8x32xi32> to vector<8x32xf32>
    %cst_244 = arith.constant dense<0.000000e+00> : vector<8x16xf32>
    %299 = tpu.matmul %298, %276, %cst_244 {dimension_numbers = #tpu.dot_dimension_numbers<[1], [0], [0], [1], [0, 0, 1, 1], [], []>} : vector<8x32xf32>, vector<32x16xf32>, vector<8x16xf32> -> vector<8x16xf32>
    %cst_245 = arith.constant dense<0.000000e+00> : vector<4x16xf32>
    %300 = tpu.matmul %277, %299, %cst_245 {dimension_numbers = #tpu.dot_dimension_numbers<[1], [0], [0], [1], [0, 0, 1, 1], [], []>} : vector<4x8xf32>, vector<8x16xf32>, vector<4x16xf32> -> vector<4x16xf32>
    %cst_246 = arith.constant 5.000000e-01 : f32
    %301 = vector.broadcast %cst_246 : f32 to vector<4x16xf32>
    %302 = arith.cmpf ogt, %300, %301 : vector<4x16xf32>
    %303 = arith.extui %302 : vector<4x16xi1> to vector<4x16xi32>
    %304 = arith.sitofp %303 : vector<4x16xi32> to vector<4x16xf32>
    %c4_i32 = arith.constant 4 : i32
    %305 = arith.muli %arg1, %c4_i32 : i32
    %306 = tpu.assume_multiple %305, 4 : i32
    %c0_247 = arith.constant 0 : index
    %307 = arith.index_cast %306 : i32 to index
    %c0_248 = arith.constant 0 : index
    %308 = vector.load %arg23[%c0_247, %307, %c0_248] : memref<1x16x16xf32, #tpu.memory_space<vmem>>, vector<1x4x16xf32>
    %309 = vector.shape_cast %308 : vector<1x4x16xf32> to vector<4x16xf32>
    %310 = vector.shape_cast %304 : vector<4x16xf32> to vector<1x4x16xf32>
    tpu.vector_store %arg23[%c0_247, %307, %c0_248], %310 {strides = array<i32>} : memref<1x16x16xf32, #tpu.memory_space<vmem>>, vector<1x4x16xf32>,
    %cst_249 = arith.constant 0.000000e+00 : f32
    %311 = vector.broadcast %cst_249 : f32 to vector<1x32xf32>
    %312 = vector.extract_strided_slice %304 {offsets = [0, 0], sizes = [1, 16], strides = [1, 1]} : vector<4x16xf32> to vector<1x16xf32>
    %c0_250 = arith.constant 0 : index
    %c0_251 = arith.constant 0 : index
    %313 = vector.load %arg19[%c0_250, %c0_251] : memref<64x32xf32, #tpu.memory_space<vmem>>, vector<16x32xf32>
    %cst_252 = arith.constant dense<0.000000e+00> : vector<1x32xf32>
    %314 = tpu.matmul %312, %313, %cst_252 {dimension_numbers = #tpu.dot_dimension_numbers<[1], [0], [0], [1], [0, 0, 1, 1], [], []>} : vector<1x16xf32>, vector<16x32xf32>, vector<1x32xf32> -> vector<1x32xf32>
    %315 = arith.addf %311, %314 : vector<1x32xf32>
    %316 = vector.extract_strided_slice %304 {offsets = [1, 0], sizes = [1, 16], strides = [1, 1]} : vector<4x16xf32> to vector<1x16xf32>
    %c16 = arith.constant 16 : index
    %c0_253 = arith.constant 0 : index
    %317 = vector.load %arg19[%c16, %c0_253] : memref<64x32xf32, #tpu.memory_space<vmem>>, vector<16x32xf32>
    %cst_254 = arith.constant dense<0.000000e+00> : vector<1x32xf32>
    %318 = tpu.matmul %316, %317, %cst_254 {dimension_numbers = #tpu.dot_dimension_numbers<[1], [0], [0], [1], [0, 0, 1, 1], [], []>} : vector<1x16xf32>, vector<16x32xf32>, vector<1x32xf32> -> vector<1x32xf32>
    %319 = arith.addf %315, %318 : vector<1x32xf32>
    %320 = vector.extract_strided_slice %304 {offsets = [2, 0], sizes = [1, 16], strides = [1, 1]} : vector<4x16xf32> to vector<1x16xf32>
    %c32_255 = arith.constant 32 : index
    %c0_256 = arith.constant 0 : index
    %321 = vector.load %arg19[%c32_255, %c0_256] : memref<64x32xf32, #tpu.memory_space<vmem>>, vector<16x32xf32>
    %cst_257 = arith.constant dense<0.000000e+00> : vector<1x32xf32>
    %322 = tpu.matmul %320, %321, %cst_257 {dimension_numbers = #tpu.dot_dimension_numbers<[1], [0], [0], [1], [0, 0, 1, 1], [], []>} : vector<1x16xf32>, vector<16x32xf32>, vector<1x32xf32> -> vector<1x32xf32>
    %323 = arith.addf %319, %322 : vector<1x32xf32>
    %324 = vector.extract_strided_slice %304 {offsets = [3, 0], sizes = [1, 16], strides = [1, 1]} : vector<4x16xf32> to vector<1x16xf32>
    %c48 = arith.constant 48 : index
    %c0_258 = arith.constant 0 : index
    %325 = vector.load %arg19[%c48, %c0_258] : memref<64x32xf32, #tpu.memory_space<vmem>>, vector<16x32xf32>
    %cst_259 = arith.constant dense<0.000000e+00> : vector<1x32xf32>
    %326 = tpu.matmul %324, %325, %cst_259 {dimension_numbers = #tpu.dot_dimension_numbers<[1], [0], [0], [1], [0, 0, 1, 1], [], []>} : vector<1x16xf32>, vector<16x32xf32>, vector<1x32xf32> -> vector<1x32xf32>
    %327 = arith.addf %323, %326 : vector<1x32xf32>
    %c0_260 = arith.constant 0 : index
    %c0_261 = arith.constant 0 : index
    %328 = vector.load %arg35[%c0_260, %c0_261] : memref<1x32xf32, #tpu.memory_space<vmem>>, vector<1x32xf32>
    %329 = arith.addf %328, %327 : vector<1x32xf32>
    %cst_262 = arith.constant 5.000000e-01 : f32
    %330 = vector.broadcast %cst_262 : f32 to vector<1x32xf32>
    %331 = arith.mulf %330, %329 : vector<1x32xf32>
    %cst_263 = arith.constant 1.000000e+00 : f32
    %332 = vector.broadcast %cst_263 : f32 to vector<1x32xf32>
    %333 = arith.cmpf oge, %331, %332 : vector<1x32xf32>
    %cst_264 = arith.constant 0.000000e+00 : f32
    %334 = vector.broadcast %cst_264 : f32 to vector<1x32xf32>
    %335 = arith.select %333, %334, %331 : vector<1x32xi1>, vector<1x32xf32>
    %c0_265 = arith.constant 0 : index
    %c0_266 = arith.constant 0 : index
    %336 = vector.load %arg35[%c0_265, %c0_266] : memref<1x32xf32, #tpu.memory_space<vmem>>, vector<1x32xf32>
    tpu.vector_store %arg35[%c0_265, %c0_266], %335 {strides = array<i32>} : memref<1x32xf32, #tpu.memory_space<vmem>>, vector<1x32xf32>,
    %337 = arith.extui %333 : vector<1x32xi1> to vector<1x32xi32>
    %338 = arith.sitofp %337 : vector<1x32xi32> to vector<1x32xf32>
    %c0_267 = arith.constant 0 : index
    %339 = arith.index_cast %arg1 : i32 to index
    %c0_268 = arith.constant 0 : index
    %340 = vector.load %arg24[%c0_267, %339, %c0_268] : memref<1x4x32xf32, #tpu.memory_space<vmem>>, vector<1x1x32xf32>
    %341 = vector.shape_cast %340 : vector<1x1x32xf32> to vector<1x32xf32>
    %342 = vector.shape_cast %338 : vector<1x32xf32> to vector<1x1x32xf32>
    tpu.vector_store %arg24[%c0_267, %339, %c0_268], %342 {strides = array<i32>} : memref<1x4x32xf32, #tpu.memory_space<vmem>>, vector<1x1x32xf32>,
    %c0_269 = arith.constant 0 : index
    %c0_270 = arith.constant 0 : index
    %343 = vector.load %arg20[%c0_269, %c0_270] : memref<32x110xf32, #tpu.memory_space<vmem>>, vector<32x110xf32>
    %cst_271 = arith.constant dense<0.000000e+00> : vector<1x110xf32>
    %344 = tpu.matmul %338, %343, %cst_271 {dimension_numbers = #tpu.dot_dimension_numbers<[1], [0], [0], [1], [0, 0, 1, 1], [], []>} : vector<1x32xf32>, vector<32x110xf32>, vector<1x110xf32> -> vector<1x110xf32>
    %c0_272 = arith.constant 0 : index
    %c0_273 = arith.constant 0 : index
    %345 = vector.load %arg36[%c0_272, %c0_273] : memref<1x110xf32, #tpu.memory_space<vmem>>, vector<1x110xf32>
    %346 = arith.addf %345, %344 : vector<1x110xf32>
    %cst_274 = arith.constant 5.000000e-01 : f32
    %347 = vector.broadcast %cst_274 : f32 to vector<1x110xf32>
    %348 = arith.mulf %347, %346 : vector<1x110xf32>
    %cst_275 = arith.constant 1.000000e+00 : f32
    %349 = vector.broadcast %cst_275 : f32 to vector<1x110xf32>
    %350 = arith.cmpf oge, %348, %349 : vector<1x110xf32>
    %cst_276 = arith.constant 0.000000e+00 : f32
    %351 = vector.broadcast %cst_276 : f32 to vector<1x110xf32>
    %352 = arith.select %350, %351, %348 : vector<1x110xi1>, vector<1x110xf32>
    %c0_277 = arith.constant 0 : index
    %c0_278 = arith.constant 0 : index
    %353 = vector.load %arg36[%c0_277, %c0_278] : memref<1x110xf32, #tpu.memory_space<vmem>>, vector<1x110xf32>
    tpu.vector_store %arg36[%c0_277, %c0_278], %352 {strides = array<i32>} : memref<1x110xf32, #tpu.memory_space<vmem>>, vector<1x110xf32>,
    %354 = arith.extui %350 : vector<1x110xi1> to vector<1x110xi32>
    %355 = arith.sitofp %354 : vector<1x110xi32> to vector<1x110xf32>
    %c0_279 = arith.constant 0 : index
    %c0_280 = arith.constant 0 : index
    %c0_281 = arith.constant 0 : index
    %356 = vector.load %arg22[%c0_279, %c0_280, %c0_281] : memref<1x1x11xf32, #tpu.memory_space<vmem>>, vector<1x1x11xf32>
    %357 = vector.shape_cast %356 : vector<1x1x11xf32> to vector<1x11xf32>
    %c0_282 = arith.constant 0 : index
    %c0_283 = arith.constant 0 : index
    %358 = vector.load %arg21[%c0_282, %c0_283] : memref<110x11xf32, #tpu.memory_space<vmem>>, vector<110x11xf32>
    %cst_284 = arith.constant dense<0.000000e+00> : vector<1x11xf32>
    %359 = tpu.matmul %355, %358, %cst_284 {dimension_numbers = #tpu.dot_dimension_numbers<[1], [0], [0], [1], [0, 0, 1, 1], [], []>} : vector<1x110xf32>, vector<110x11xf32>, vector<1x11xf32> -> vector<1x11xf32>
    %360 = arith.addf %357, %359 : vector<1x11xf32>
    %c0_285 = arith.constant 0 : index
    %c0_286 = arith.constant 0 : index
    %c0_287 = arith.constant 0 : index
    %361 = vector.load %arg22[%c0_285, %c0_286, %c0_287] : memref<1x1x11xf32, #tpu.memory_space<vmem>>, vector<1x1x11xf32>
    %362 = vector.shape_cast %361 : vector<1x1x11xf32> to vector<1x11xf32>
    %363 = vector.shape_cast %360 : vector<1x11xf32> to vector<1x1x11xf32>
    tpu.vector_store %arg22[%c0_285, %c0_286, %c0_287], %363 {strides = array<i32>} : memref<1x1x11xf32, #tpu.memory_space<vmem>>, vector<1x1x11xf32>,
    %c3_i32 = arith.constant 3 : i32
    %364 = arith.cmpi eq, %arg1, %c3_i32 : i32
    %365 = arith.extui %364 : i1 to i32
    %c0_i32_288 = arith.constant 0 : i32
    %366 = arith.cmpi ne, %365, %c0_i32_288 : i32
    scf.if %366 {
      %c0_289 = arith.constant 0 : index
      %c0_290 = arith.constant 0 : index
      %c0_291 = arith.constant 0 : index
      %367 = vector.load %arg22[%c0_289, %c0_290, %c0_291] : memref<1x1x11xf32, #tpu.memory_space<vmem>>, vector<1x1x11xf32>
      %368 = vector.shape_cast %367 : vector<1x1x11xf32> to vector<1x11xf32>
      %cst_292 = arith.constant 2.500000e-01 : f32
      %369 = vector.broadcast %cst_292 : f32 to vector<1x11xf32>
      %370 = arith.mulf %368, %369 : vector<1x11xf32>
      %c0_293 = arith.constant 0 : index
      %c0_294 = arith.constant 0 : index
      %c0_295 = arith.constant 0 : index
      %371 = vector.load %arg22[%c0_293, %c0_294, %c0_295] : memref<1x1x11xf32, #tpu.memory_space<vmem>>, vector<1x1x11xf32>
      %372 = vector.shape_cast %371 : vector<1x1x11xf32> to vector<1x11xf32>
      %373 = vector.shape_cast %370 : vector<1x11xf32> to vector<1x1x11xf32>
      tpu.vector_store %arg22[%c0_293, %c0_294, %c0_295], %373 {strides = array<i32>} : memref<1x1x11xf32, #tpu.memory_space<vmem>>, vector<1x1x11xf32>,
    } else {
    }
    return
  }
  func.func @transform_0(%arg0: i32, %arg1: i32) -> (i32, i32, i32, i32, i32) {
    %c0_i32 = arith.constant 0 : i32
    %c0_i32_0 = arith.constant 0 : i32
    %c0_i32_1 = arith.constant 0 : i32
    %c0_i32_2 = arith.constant 0 : i32
    return %arg0, %arg1, %c0_i32, %c0_i32_0, %c0_i32_1 : i32, i32, i32, i32, i32
  }
  func.func @transform_1(%arg0: i32, %arg1: i32) -> (i32, i32, i32) {
    %c0_i32 = arith.constant 0 : i32
    %c0_i32_0 = arith.constant 0 : i32
    %c0_i32_1 = arith.constant 0 : i32
    %c0_i32_2 = arith.constant 0 : i32
    return %c0_i32, %c0_i32_0, %c0_i32_1 : i32, i32, i32
  }
  func.func @transform_2(%arg0: i32, %arg1: i32) -> (i32, i32, i32) {
    %c0_i32 = arith.constant 0 : i32
    %c0_i32_0 = arith.constant 0 : i32
    %c0_i32_1 = arith.constant 0 : i32
    %c0_i32_2 = arith.constant 0 : i32
    return %c0_i32, %c0_i32_0, %c0_i32_1 : i32, i32, i32
  }
  func.func @transform_3(%arg0: i32, %arg1: i32) -> (i32, i32, i32) {
    %c0_i32 = arith.constant 0 : i32
    %c0_i32_0 = arith.constant 0 : i32
    %c0_i32_1 = arith.constant 0 : i32
    %c0_i32_2 = arith.constant 0 : i32
    return %c0_i32, %c0_i32_0, %c0_i32_1 : i32, i32, i32
  }
  func.func @transform_4(%arg0: i32, %arg1: i32) -> (i32, i32, i32) {
    %c0_i32 = arith.constant 0 : i32
    %c0_i32_0 = arith.constant 0 : i32
    %c0_i32_1 = arith.constant 0 : i32
    %c0_i32_2 = arith.constant 0 : i32
    return %c0_i32, %c0_i32_0, %c0_i32_1 : i32, i32, i32
  }
  func.func @transform_5(%arg0: i32, %arg1: i32) -> (i32, i32, i32) {
    %c0_i32 = arith.constant 0 : i32
    %c0_i32_0 = arith.constant 0 : i32
    %c0_i32_1 = arith.constant 0 : i32
    %c0_i32_2 = arith.constant 0 : i32
    return %c0_i32, %c0_i32_0, %c0_i32_1 : i32, i32, i32
  }
  func.func @transform_6(%arg0: i32, %arg1: i32) -> (i32, i32) {
    %c0_i32 = arith.constant 0 : i32
    %c0_i32_0 = arith.constant 0 : i32
    %c0_i32_1 = arith.constant 0 : i32
    return %c0_i32, %c0_i32_0 : i32, i32
  }
  func.func @transform_7(%arg0: i32, %arg1: i32) -> (i32, i32) {
    %c0_i32 = arith.constant 0 : i32
    %c0_i32_0 = arith.constant 0 : i32
    %c0_i32_1 = arith.constant 0 : i32
    return %c0_i32, %c0_i32_0 : i32, i32
  }
  func.func @transform_8(%arg0: i32, %arg1: i32) -> (i32, i32) {
    %c0_i32 = arith.constant 0 : i32
    %c0_i32_0 = arith.constant 0 : i32
    %c0_i32_1 = arith.constant 0 : i32
    return %c0_i32, %c0_i32_0 : i32, i32
  }
  func.func @transform_9(%arg0: i32, %arg1: i32) -> (i32, i32) {
    %c0_i32 = arith.constant 0 : i32
    %c0_i32_0 = arith.constant 0 : i32
    %c0_i32_1 = arith.constant 0 : i32
    return %c0_i32, %c0_i32_0 : i32, i32
  }
  func.func @transform_10(%arg0: i32, %arg1: i32) -> (i32, i32) {
    %c0_i32 = arith.constant 0 : i32
    %c0_i32_0 = arith.constant 0 : i32
    %c0_i32_1 = arith.constant 0 : i32
    return %c0_i32, %c0_i32_0 : i32, i32
  }
  func.func @transform_11(%arg0: i32, %arg1: i32) -> (i32, i32) {
    %c0_i32 = arith.constant 0 : i32
    %c0_i32_0 = arith.constant 0 : i32
    %c0_i32_1 = arith.constant 0 : i32
    return %c0_i32, %c0_i32_0 : i32, i32
  }
  func.func @transform_12(%arg0: i32, %arg1: i32) -> (i32, i32) {
    %c0_i32 = arith.constant 0 : i32
    %c0_i32_0 = arith.constant 0 : i32
    %c0_i32_1 = arith.constant 0 : i32
    return %c0_i32, %c0_i32_0 : i32, i32
  }
  func.func @transform_13(%arg0: i32, %arg1: i32) -> (i32, i32) {
    %c0_i32 = arith.constant 0 : i32
    %c0_i32_0 = arith.constant 0 : i32
    %c0_i32_1 = arith.constant 0 : i32
    return %c0_i32, %c0_i32_0 : i32, i32
  }
  func.func @transform_14(%arg0: i32, %arg1: i32) -> (i32, i32) {
    %c0_i32 = arith.constant 0 : i32
    %c0_i32_0 = arith.constant 0 : i32
    %c0_i32_1 = arith.constant 0 : i32
    return %c0_i32, %c0_i32_0 : i32, i32
  }
  func.func @transform_15(%arg0: i32, %arg1: i32) -> (i32, i32) {
    %c0_i32 = arith.constant 0 : i32
    %c0_i32_0 = arith.constant 0 : i32
    %c0_i32_1 = arith.constant 0 : i32
    return %c0_i32, %c0_i32_0 : i32, i32
  }
  func.func @transform_16(%arg0: i32, %arg1: i32) -> (i32, i32) {
    %c0_i32 = arith.constant 0 : i32
    %c0_i32_0 = arith.constant 0 : i32
    %c0_i32_1 = arith.constant 0 : i32
    return %c0_i32, %c0_i32_0 : i32, i32
  }
  func.func @transform_17(%arg0: i32, %arg1: i32) -> (i32, i32) {
    %c0_i32 = arith.constant 0 : i32
    %c0_i32_0 = arith.constant 0 : i32
    %c0_i32_1 = arith.constant 0 : i32
    return %c0_i32, %c0_i32_0 : i32, i32
  }
  func.func @transform_18(%arg0: i32, %arg1: i32) -> (i32, i32) {
    %c0_i32 = arith.constant 0 : i32
    %c0_i32_0 = arith.constant 0 : i32
    %c0_i32_1 = arith.constant 0 : i32
    return %c0_i32, %c0_i32_0 : i32, i32
  }
  func.func @transform_19(%arg0: i32, %arg1: i32) -> (i32, i32) {
    %c0_i32 = arith.constant 0 : i32
    %c0_i32_0 = arith.constant 0 : i32
    %c0_i32_1 = arith.constant 0 : i32
    return %c0_i32, %c0_i32_0 : i32, i32
  }
  func.func @transform_20(%arg0: i32, %arg1: i32) -> (i32, i32, i32) {
    %c0_i32 = arith.constant 0 : i32
    %c0_i32_0 = arith.constant 0 : i32
    %c0_i32_1 = arith.constant 0 : i32
    return %arg0, %c0_i32, %c0_i32_0 : i32, i32, i32
  }
  func.func @transform_21(%arg0: i32, %arg1: i32) -> (i32, i32, i32) {
    %c0_i32 = arith.constant 0 : i32
    %c0_i32_0 = arith.constant 0 : i32
    %c0_i32_1 = arith.constant 0 : i32
    return %arg0, %c0_i32, %c0_i32_0 : i32, i32, i32
  }
  func.func @transform_22(%arg0: i32, %arg1: i32) -> (i32, i32, i32) {
    %c0_i32 = arith.constant 0 : i32
    %c0_i32_0 = arith.constant 0 : i32
    %c0_i32_1 = arith.constant 0 : i32
    return %arg0, %c0_i32, %c0_i32_0 : i32, i32, i32
  }
}

</mosaic_0001>

<llo_original>
// kernel: python_net_forward.1
$region0: #{python_net_forward.1}
  #allocation0 [shape = 'u32[]', space=smem, size = 0x4, offset = 0x4, fixed_abs, tag = 'smem constant byte address 0x4 - core index']
  #allocation1 [shape = 'u32[144,128]{1,0:T(1,128)}', space=vmem, size = 0x12000, scoped, tag = 'internal scratch']
  #allocation2 [shape = 'f32[144,256]{1,0:T(8,128)}', space=vmem, size = 0x24000, scoped, tag = 'scratch operand']
  #allocation3 [shape = 'f32[80,256]{1,0:T(8,128)}', space=vmem, size = 0x14000, scoped, tag = 'scratch operand']
  #allocation4 [shape = 'f32[48,128]{1,0:T(8,128)}', space=vmem, size = 0x6000, scoped, tag = 'scratch operand']
  #allocation5 [shape = 'f32[32,64]{1,0:T(8,128)}', space=vmem, size = 0x4000, scoped, tag = 'scratch operand']
  #allocation6 [shape = 'f32[24,32]{1,0:T(8,128)}', space=vmem, size = 0x3000, scoped, tag = 'scratch operand']
  #allocation7 [shape = 'f32[128,512]{1,0:T(8,128)}', space=vmem, size = 0x40000, scoped, tag = 'scratch operand']
  #allocation8 [shape = 'f32[64,256]{1,0:T(8,128)}', space=vmem, size = 0x10000, scoped, tag = 'scratch operand']
  #allocation9 [shape = 'f32[32,128]{1,0:T(8,128)}', space=vmem, size = 0x4000, scoped, tag = 'scratch operand']
  #allocation10 [shape = 'f32[16,64]{1,0:T(8,128)}', space=vmem, size = 0x2000, scoped, tag = 'scratch operand']
  #allocation11 [shape = 'f32[8,32]{1,0:T(8,128)}', space=vmem, size = 0x1000, scoped, tag = 'scratch operand']
  #allocation12 [shape = 'f32[1,32]{1,0:T(1,128)}', space=vmem, size = 0x200, scoped, tag = 'scratch operand']
  #allocation13 [shape = 'f32[1,110]{1,0:T(1,128)}', space=vmem, size = 0x200, scoped, tag = 'scratch operand']
  %s0 = inlined_call_operand.vmem [shape: bf16[2,4,2,128,128], index: 0, kind: input, shape index: {}]
  %s1 = inlined_call_operand.vmem [shape: f32[3,256,512], index: 1, kind: input, shape index: {}]
  %s2 = inlined_call_operand.vmem [shape: f32[3,256,256], index: 2, kind: input, shape index: {}]
  %s3 = inlined_call_operand.vmem [shape: f32[3,128,128], index: 3, kind: input, shape index: {}]
  %s4 = inlined_call_operand.vmem [shape: f32[3,64,64], index: 4, kind: input, shape index: {}]
  %s5 = inlined_call_operand.vmem [shape: f32[3,32,32], index: 5, kind: input, shape index: {}]
  %s6 = inlined_call_operand.vmem [shape: f32[1,512], index: 6, kind: input, shape index: {}]
  %s7 = inlined_call_operand.vmem [shape: f32[1,256], index: 7, kind: input, shape index: {}]
  %s8 = inlined_call_operand.vmem [shape: f32[1,128], index: 8, kind: input, shape index: {}]
  %s9 = inlined_call_operand.vmem [shape: f32[1,64], index: 9, kind: input, shape index: {}]
  %s10 = inlined_call_operand.vmem [shape: f32[1,32], index: 10, kind: input, shape index: {}]
  %s11 = inlined_call_operand.vmem [shape: f32[512,256], index: 11, kind: input, shape index: {}]
  %s12 = inlined_call_operand.vmem [shape: f32[256,128], index: 12, kind: input, shape index: {}]
  %s13 = inlined_call_operand.vmem [shape: f32[128,64], index: 13, kind: input, shape index: {}]
  %s14 = inlined_call_operand.vmem [shape: f32[64,32], index: 14, kind: input, shape index: {}]
  %s15 = inlined_call_operand.vmem [shape: f32[32,16], index: 15, kind: input, shape index: {}]
  %s16 = inlined_call_operand.vmem [shape: f32[16,32], index: 16, kind: input, shape index: {}]
  %s17 = inlined_call_operand.vmem [shape: f32[64,32], index: 17, kind: input, shape index: {}]
  %s18 = inlined_call_operand.vmem [shape: f32[32,110], index: 18, kind: input, shape index: {}]
  %s19 = inlined_call_operand.vmem [shape: f32[110,11], index: 19, kind: input, shape index: {}]
  %s20 = inlined_call_operand.hbm [shape: f32[2,1,11], index: 20, kind: output, shape index: {0}]
  %s21 = inlined_call_operand.vmem [shape: f32[2,16,16], index: 21, kind: output, shape index: {1}]
  %s22 = inlined_call_operand.hbm [shape: f32[2,4,32], index: 22, kind: output, shape index: {2}]
  %23 = xla_tuple %s20, %s21, %s22
  %s24 = sld [smem:[#allocation0]]
  $region137: #{python_net_forward.1} parent=0
    _
  %s26 = ssub.s32 1, %s24
  %s27 = scalar_select 0, %s26, %s24
  $region1: #{python_net_forward.1} parent=0
    #allocation14 [shape = 'u8[1024]{0}', space=vmem, size = 0x400, scoped, tag = 'output window, operand 0']
    #allocation15 [shape = 's32[2]{0}', space=sflag, size = 0x8, scoped, tag = 'scoped memory for python_net_forward.1']
    #allocation16 [shape = 'u8[4096]{0}', space=vmem, size = 0x1000, scoped, tag = 'output window, operand 2']
    #allocation17 [shape = 's32[2]{0}', space=sflag, size = 0x8, scoped, tag = 'scoped memory for python_net_forward.1']
    %28 = vsyncpa [#allocation15], 0
    %s29 = scalar_lea.sflag [#allocation15], 1
    %30 = vsyncpa %s29, 0
    %31 = vsyncpa [#allocation17], 0
    %s32 = scalar_lea.sflag [#allocation17], 1
    %33 = vsyncpa %s32, 0
    loop: start=0, step=1, limit=10
    $region2: #{python_net_forward.1} parent=1 // loop_pre_header
      _
    $region3: #{python_net_forward.1} parent=1 // loop_header
      %s35 = sphi 0, %s39
      %p36 = scmp.ge.s32.totalorder %s35, 10
      %s42 = sphi 0, %s54
      %s43 = sphi 0, %s50
      %s44 = sphi 0, %s42
      %s45 = sphi 0, %s43
      %s46 = sphi 0, %s44
      %s47 = sphi 0, %s45
      %s59 = sphi 0, %s61
      %s62 = sphi 0, %s59
      %s63 = sphi 0, %s62
      %s79 = sphi 0, %s63
      %s83 = sphi 0, %s83
      %s85 = sphi 0, %s83
      %s86 = sphi 0, %s85
      %s100 = sphi 0, %s86
      %s104 = sphi 0, %s104
      %s106 = sphi 0, %s104
      %s107 = sphi 0, %s106
      %s121 = sphi 0, %s107
      %s125 = sphi 0, %s125
      %s127 = sphi 0, %s125
      %s128 = sphi 0, %s127
      %s142 = sphi 0, %s128
      %s146 = sphi 0, %s146
      %s148 = sphi 0, %s146
      %s149 = sphi 0, %s148
      %s163 = sphi 0, %s149
      %s167 = sphi 0, %s167
      %s169 = sphi 0, %s167
      %s170 = sphi 0, %s169
      %s184 = sphi 0, %s170
      %s188 = sphi 0, %s188
      %s190 = sphi 0, %s188
      %s191 = sphi 0, %s190
      %s205 = sphi 0, %s191
      %s209 = sphi 0, %s209
      %s211 = sphi 0, %s209
      %s212 = sphi 0, %s211
      %s226 = sphi 0, %s212
      %s230 = sphi 0, %s230
      %s232 = sphi 0, %s230
      %s233 = sphi 0, %s232
      %s247 = sphi 0, %s233
      %s251 = sphi 0, %s251
      %s253 = sphi 0, %s251
      %s254 = sphi 0, %s253
      %s268 = sphi 0, %s254
      %s272 = sphi 0, %s272
      %s274 = sphi 0, %s272
      %s275 = sphi 0, %s274
      %s289 = sphi 0, %s275
      %s293 = sphi 0, %s293
      %s295 = sphi 0, %s293
      %s296 = sphi 0, %s295
      %s310 = sphi 0, %s296
      %s314 = sphi 0, %s314
      %s316 = sphi 0, %s314
      %s317 = sphi 0, %s316
      %s331 = sphi 0, %s317
      %s335 = sphi 0, %s335
      %s337 = sphi 0, %s335
      %s338 = sphi 0, %s337
      %s352 = sphi 0, %s338
      %s356 = sphi 0, %s356
      %s358 = sphi 0, %s356
      %s359 = sphi 0, %s358
      %s373 = sphi 0, %s359
      %s377 = sphi 0, %s377
      %s379 = sphi 0, %s377
      %s380 = sphi 0, %s379
      %s394 = sphi 0, %s380
      %s398 = sphi 0, %s398
      %s400 = sphi 0, %s398
      %s401 = sphi 0, %s400
      %s415 = sphi 0, %s401
      %s419 = sphi 0, %s419
      %s421 = sphi 0, %s419
      %s422 = sphi 0, %s421
      %s436 = sphi 0, %s422
      %s440 = sphi 0, %s440
      %s442 = sphi 0, %s440
      %s443 = sphi 0, %s442
      %s457 = sphi 0, %s443
      %s461 = sphi 0, %s461
      %s463 = sphi 0, %s461
      %s464 = sphi 0, %s463
      %s478 = sphi 0, %s464
      %s484 = sphi 0, %s486
      %s487 = sphi 0, %s484
      %s488 = sphi 0, %s487
      %s504 = sphi 0, %s488
      %s510 = sphi 0, %s512
      %s513 = sphi 0, %s510
      %s514 = sphi 0, %s513
      %s530 = sphi 0, %s514
      %s536 = sphi 0, %s538
      %s539 = sphi 0, %s536
      %s540 = sphi 0, %s539
      %s556 = sphi 0, %s540
    $region4: #{python_net_forward.1} parent=1 // loop_header_branch
      %38 = sbr.rel (%p36) target = $region8
    $region5: #{python_net_forward.1} parent=1 // loop_body
      %s40 = ssub.s32 %s35, 1
      %s41 = ssub.s32 %s35, 2
      %s48 = sadd.s32 1, %s43
      %p49 = scmp.ge.s32.totalorder %s48, 4
      %s50 = scalar_select %p49, 0, %s48
      %s51 = sadd.s32 1, %s42
      %s52 = scalar_select %p49, %s51, %s42
      %p53 = scmp.ge.s32.totalorder %s52, 2
      %s54 = scalar_select %p53, 0, %s52
      %s55 = ssub.s32 %s42, %s54
      %s56 = ssub.s32 %s43, %s50
      %s57 = sor.u32 %s55, %s56
      %p58 = scmp.eq.s32.totalorder %s57, 0
      %s60 = sadd.s32 %s59, 1
      %s61 = scalar_select %p58, %s59, %s60
      %p64 = pneg %p58
      %p65 = scmp.eq.s32.totalorder %s35, 7
      %p66 = por %p64, %p65
      %p67 = scmp.ne.s32.totalorder %s59, %s62
      %p68 = scmp.eq.s32.totalorder %s35, 0
      %p69 = por %p67, %p68
      %p70 = scmp.ne.s32.totalorder %s59, %s62
      %p71 = scmp.eq.s32.totalorder %s40, 7
      %p72 = por %p70, %p71
      %p73 = scmp.ne.s32.totalorder %s62, %s63
      %p74 = scmp.eq.s32.totalorder %s40, 0
      %p75 = por %p73, %p74
      %p76 = scmp.ne.s32.totalorder %s62, %s63
      %p77 = scmp.eq.s32.totalorder %s41, 7
      %p78 = por %p76, %p77
      %p80 = scmp.ne.s32.totalorder %s63, %s79
      %p81 = scmp.eq.s32.totalorder %s41, 0
      %p82 = por %p80, %p81
      %s84 = sadd.s32 %s83, 1
      %p87 = scmp.eq.s32.totalorder %s35, 7
      %p88 = scmp.ne.s32.totalorder %s83, %s85
      %p89 = scmp.eq.s32.totalorder %s35, 0
      %p90 = por %p88, %p89
      %p91 = scmp.ne.s32.totalorder %s83, %s85
      %p92 = scmp.eq.s32.totalorder %s40, 7
      %p93 = por %p91, %p92
      %p94 = scmp.ne.s32.totalorder %s85, %s86
      %p95 = scmp.eq.s32.totalorder %s40, 0
      %p96 = por %p94, %p95
      %p97 = scmp.ne.s32.totalorder %s85, %s86
      %p98 = scmp.eq.s32.totalorder %s41, 7
      %p99 = por %p97, %p98
      %p101 = scmp.ne.s32.totalorder %s86, %s100
      %p102 = scmp.eq.s32.totalorder %s41, 0
      %p103 = por %p101, %p102
      %s105 = sadd.s32 %s104, 1
      %p108 = scmp.eq.s32.totalorder %s35, 7
      %p109 = scmp.ne.s32.totalorder %s104, %s106
      %p110 = scmp.eq.s32.totalorder %s35, 0
      %p111 = por %p109, %p110
      %p112 = scmp.ne.s32.totalorder %s104, %s106
      %p113 = scmp.eq.s32.totalorder %s40, 7
      %p114 = por %p112, %p113
      %p115 = scmp.ne.s32.totalorder %s106, %s107
      %p116 = scmp.eq.s32.totalorder %s40, 0
      %p117 = por %p115, %p116
      %p118 = scmp.ne.s32.totalorder %s106, %s107
      %p119 = scmp.eq.s32.totalorder %s41, 7
      %p120 = por %p118, %p119
      %p122 = scmp.ne.s32.totalorder %s107, %s121
      %p123 = scmp.eq.s32.totalorder %s41, 0
      %p124 = por %p122, %p123
      %s126 = sadd.s32 %s125, 1
      %p129 = scmp.eq.s32.totalorder %s35, 7
      %p130 = scmp.ne.s32.totalorder %s125, %s127
      %p131 = scmp.eq.s32.totalorder %s35, 0
      %p132 = por %p130, %p131
      %p133 = scmp.ne.s32.totalorder %s125, %s127
      %p134 = scmp.eq.s32.totalorder %s40, 7
      %p135 = por %p133, %p134
      %p136 = scmp.ne.s32.totalorder %s127, %s128
      %p137 = scmp.eq.s32.totalorder %s40, 0
      %p138 = por %p136, %p137
      %p139 = scmp.ne.s32.totalorder %s127, %s128
      %p140 = scmp.eq.s32.totalorder %s41, 7
      %p141 = por %p139, %p140
      %p143 = scmp.ne.s32.totalorder %s128, %s142
      %p144 = scmp.eq.s32.totalorder %s41, 0
      %p145 = por %p143, %p144
      %s147 = sadd.s32 %s146, 1
      %p150 = scmp.eq.s32.totalorder %s35, 7
      %p151 = scmp.ne.s32.totalorder %s146, %s148
      %p152 = scmp.eq.s32.totalorder %s35, 0
      %p153 = por %p151, %p152
      %p154 = scmp.ne.s32.totalorder %s146, %s148
      %p155 = scmp.eq.s32.totalorder %s40, 7
      %p156 = por %p154, %p155
      %p157 = scmp.ne.s32.totalorder %s148, %s149
      %p158 = scmp.eq.s32.totalorder %s40, 0
      %p159 = por %p157, %p158
      %p160 = scmp.ne.s32.totalorder %s148, %s149
      %p161 = scmp.eq.s32.totalorder %s41, 7
      %p162 = por %p160, %p161
      %p164 = scmp.ne.s32.totalorder %s149, %s163
      %p165 = scmp.eq.s32.totalorder %s41, 0
      %p166 = por %p164, %p165
      %s168 = sadd.s32 %s167, 1
      %p171 = scmp.eq.s32.totalorder %s35, 7
      %p172 = scmp.ne.s32.totalorder %s167, %s169
      %p173 = scmp.eq.s32.totalorder %s35, 0
      %p174 = por %p172, %p173
      %p175 = scmp.ne.s32.totalorder %s167, %s169
      %p176 = scmp.eq.s32.totalorder %s40, 7
      %p177 = por %p175, %p176
      %p178 = scmp.ne.s32.totalorder %s169, %s170
      %p179 = scmp.eq.s32.totalorder %s40, 0
      %p180 = por %p178, %p179
      %p181 = scmp.ne.s32.totalorder %s169, %s170
      %p182 = scmp.eq.s32.totalorder %s41, 7
      %p183 = por %p181, %p182
      %p185 = scmp.ne.s32.totalorder %s170, %s184
      %p186 = scmp.eq.s32.totalorder %s41, 0
      %p187 = por %p185, %p186
      %s189 = sadd.s32 %s188, 1
      %p192 = scmp.eq.s32.totalorder %s35, 7
      %p193 = scmp.ne.s32.totalorder %s188, %s190
      %p194 = scmp.eq.s32.totalorder %s35, 0
      %p195 = por %p193, %p194
      %p196 = scmp.ne.s32.totalorder %s188, %s190
      %p197 = scmp.eq.s32.totalorder %s40, 7
      %p198 = por %p196, %p197
      %p199 = scmp.ne.s32.totalorder %s190, %s191
      %p200 = scmp.eq.s32.totalorder %s40, 0
      %p201 = por %p199, %p200
      %p202 = scmp.ne.s32.totalorder %s190, %s191
      %p203 = scmp.eq.s32.totalorder %s41, 7
      %p204 = por %p202, %p203
      %p206 = scmp.ne.s32.totalorder %s191, %s205
      %p207 = scmp.eq.s32.totalorder %s41, 0
      %p208 = por %p206, %p207
      %s210 = sadd.s32 %s209, 1
      %p213 = scmp.eq.s32.totalorder %s35, 7
      %p214 = scmp.ne.s32.totalorder %s209, %s211
      %p215 = scmp.eq.s32.totalorder %s35, 0
      %p216 = por %p214, %p215
      %p217 = scmp.ne.s32.totalorder %s209, %s211
      %p218 = scmp.eq.s32.totalorder %s40, 7
      %p219 = por %p217, %p218
      %p220 = scmp.ne.s32.totalorder %s211, %s212
      %p221 = scmp.eq.s32.totalorder %s40, 0
      %p222 = por %p220, %p221
      %p223 = scmp.ne.s32.totalorder %s211, %s212
      %p224 = scmp.eq.s32.totalorder %s41, 7
      %p225 = por %p223, %p224
      %p227 = scmp.ne.s32.totalorder %s212, %s226
      %p228 = scmp.eq.s32.totalorder %s41, 0
      %p229 = por %p227, %p228
      %s231 = sadd.s32 %s230, 1
      %p234 = scmp.eq.s32.totalorder %s35, 7
      %p235 = scmp.ne.s32.totalorder %s230, %s232
      %p236 = scmp.eq.s32.totalorder %s35, 0
      %p237 = por %p235, %p236
      %p238 = scmp.ne.s32.totalorder %s230, %s232
      %p239 = scmp.eq.s32.totalorder %s40, 7
      %p240 = por %p238, %p239
      %p241 = scmp.ne.s32.totalorder %s232, %s233
      %p242 = scmp.eq.s32.totalorder %s40, 0
      %p243 = por %p241, %p242
      %p244 = scmp.ne.s32.totalorder %s232, %s233
      %p245 = scmp.eq.s32.totalorder %s41, 7
      %p246 = por %p244, %p245
      %p248 = scmp.ne.s32.totalorder %s233, %s247
      %p249 = scmp.eq.s32.totalorder %s41, 0
      %p250 = por %p248, %p249
      %s252 = sadd.s32 %s251, 1
      %p255 = scmp.eq.s32.totalorder %s35, 7
      %p256 = scmp.ne.s32.totalorder %s251, %s253
      %p257 = scmp.eq.s32.totalorder %s35, 0
      %p258 = por %p256, %p257
      %p259 = scmp.ne.s32.totalorder %s251, %s253
      %p260 = scmp.eq.s32.totalorder %s40, 7
      %p261 = por %p259, %p260
      %p262 = scmp.ne.s32.totalorder %s253, %s254
      %p263 = scmp.eq.s32.totalorder %s40, 0
      %p264 = por %p262, %p263
      %p265 = scmp.ne.s32.totalorder %s253, %s254
      %p266 = scmp.eq.s32.totalorder %s41, 7
      %p267 = por %p265, %p266
      %p269 = scmp.ne.s32.totalorder %s254, %s268
      %p270 = scmp.eq.s32.totalorder %s41, 0
      %p271 = por %p269, %p270
      %s273 = sadd.s32 %s272, 1
      %p276 = scmp.eq.s32.totalorder %s35, 7
      %p277 = scmp.ne.s32.totalorder %s272, %s274
      %p278 = scmp.eq.s32.totalorder %s35, 0
      %p279 = por %p277, %p278
      %p280 = scmp.ne.s32.totalorder %s272, %s274
      %p281 = scmp.eq.s32.totalorder %s40, 7
      %p282 = por %p280, %p281
      %p283 = scmp.ne.s32.totalorder %s274, %s275
      %p284 = scmp.eq.s32.totalorder %s40, 0
      %p285 = por %p283, %p284
      %p286 = scmp.ne.s32.totalorder %s274, %s275
      %p287 = scmp.eq.s32.totalorder %s41, 7
      %p288 = por %p286, %p287
      %p290 = scmp.ne.s32.totalorder %s275, %s289
      %p291 = scmp.eq.s32.totalorder %s41, 0
      %p292 = por %p290, %p291
      %s294 = sadd.s32 %s293, 1
      %p297 = scmp.eq.s32.totalorder %s35, 7
      %p298 = scmp.ne.s32.totalorder %s293, %s295
      %p299 = scmp.eq.s32.totalorder %s35, 0
      %p300 = por %p298, %p299
      %p301 = scmp.ne.s32.totalorder %s293, %s295
      %p302 = scmp.eq.s32.totalorder %s40, 7
      %p303 = por %p301, %p302
      %p304 = scmp.ne.s32.totalorder %s295, %s296
      %p305 = scmp.eq.s32.totalorder %s40, 0
      %p306 = por %p304, %p305
      %p307 = scmp.ne.s32.totalorder %s295, %s296
      %p308 = scmp.eq.s32.totalorder %s41, 7
      %p309 = por %p307, %p308
      %p311 = scmp.ne.s32.totalorder %s296, %s310
      %p312 = scmp.eq.s32.totalorder %s41, 0
      %p313 = por %p311, %p312
      %s315 = sadd.s32 %s314, 1
      %p318 = scmp.eq.s32.totalorder %s35, 7
      %p319 = scmp.ne.s32.totalorder %s314, %s316
      %p320 = scmp.eq.s32.totalorder %s35, 0
      %p321 = por %p319, %p320
      %p322 = scmp.ne.s32.totalorder %s314, %s316
      %p323 = scmp.eq.s32.totalorder %s40, 7
      %p324 = por %p322, %p323
      %p325 = scmp.ne.s32.totalorder %s316, %s317
      %p326 = scmp.eq.s32.totalorder %s40, 0
      %p327 = por %p325, %p326
      %p328 = scmp.ne.s32.totalorder %s316, %s317
      %p329 = scmp.eq.s32.totalorder %s41, 7
      %p330 = por %p328, %p329
      %p332 = scmp.ne.s32.totalorder %s317, %s331
      %p333 = scmp.eq.s32.totalorder %s41, 0
      %p334 = por %p332, %p333
      %s336 = sadd.s32 %s335, 1
      %p339 = scmp.eq.s32.totalorder %s35, 7
      %p340 = scmp.ne.s32.totalorder %s335, %s337
      %p341 = scmp.eq.s32.totalorder %s35, 0
      %p342 = por %p340, %p341
      %p343 = scmp.ne.s32.totalorder %s335, %s337
      %p344 = scmp.eq.s32.totalorder %s40, 7
      %p345 = por %p343, %p344
      %p346 = scmp.ne.s32.totalorder %s337, %s338
      %p347 = scmp.eq.s32.totalorder %s40, 0
      %p348 = por %p346, %p347
      %p349 = scmp.ne.s32.totalorder %s337, %s338
      %p350 = scmp.eq.s32.totalorder %s41, 7
      %p351 = por %p349, %p350
      %p353 = scmp.ne.s32.totalorder %s338, %s352
      %p354 = scmp.eq.s32.totalorder %s41, 0
      %p355 = por %p353, %p354
      %s357 = sadd.s32 %s356, 1
      %p360 = scmp.eq.s32.totalorder %s35, 7
      %p361 = scmp.ne.s32.totalorder %s356, %s358
      %p362 = scmp.eq.s32.totalorder %s35, 0
      %p363 = por %p361, %p362
      %p364 = scmp.ne.s32.totalorder %s356, %s358
      %p365 = scmp.eq.s32.totalorder %s40, 7
      %p366 = por %p364, %p365
      %p367 = scmp.ne.s32.totalorder %s358, %s359
      %p368 = scmp.eq.s32.totalorder %s40, 0
      %p369 = por %p367, %p368
      %p370 = scmp.ne.s32.totalorder %s358, %s359
      %p371 = scmp.eq.s32.totalorder %s41, 7
      %p372 = por %p370, %p371
      %p374 = scmp.ne.s32.totalorder %s359, %s373
      %p375 = scmp.eq.s32.totalorder %s41, 0
      %p376 = por %p374, %p375
      %s378 = sadd.s32 %s377, 1
      %p381 = scmp.eq.s32.totalorder %s35, 7
      %p382 = scmp.ne.s32.totalorder %s377, %s379
      %p383 = scmp.eq.s32.totalorder %s35, 0
      %p384 = por %p382, %p383
      %p385 = scmp.ne.s32.totalorder %s377, %s379
      %p386 = scmp.eq.s32.totalorder %s40, 7
      %p387 = por %p385, %p386
      %p388 = scmp.ne.s32.totalorder %s379, %s380
      %p389 = scmp.eq.s32.totalorder %s40, 0
      %p390 = por %p388, %p389
      %p391 = scmp.ne.s32.totalorder %s379, %s380
      %p392 = scmp.eq.s32.totalorder %s41, 7
      %p393 = por %p391, %p392
      %p395 = scmp.ne.s32.totalorder %s380, %s394
      %p396 = scmp.eq.s32.totalorder %s41, 0
      %p397 = por %p395, %p396
      %s399 = sadd.s32 %s398, 1
      %p402 = scmp.eq.s32.totalorder %s35, 7
      %p403 = scmp.ne.s32.totalorder %s398, %s400
      %p404 = scmp.eq.s32.totalorder %s35, 0
      %p405 = por %p403, %p404
      %p406 = scmp.ne.s32.totalorder %s398, %s400
      %p407 = scmp.eq.s32.totalorder %s40, 7
      %p408 = por %p406, %p407
      %p409 = scmp.ne.s32.totalorder %s400, %s401
      %p410 = scmp.eq.s32.totalorder %s40, 0
      %p411 = por %p409, %p410
      %p412 = scmp.ne.s32.totalorder %s400, %s401
      %p413 = scmp.eq.s32.totalorder %s41, 7
      %p414 = por %p412, %p413
      %p416 = scmp.ne.s32.totalorder %s401, %s415
      %p417 = scmp.eq.s32.totalorder %s41, 0
      %p418 = por %p416, %p417
      %s420 = sadd.s32 %s419, 1
      %p423 = scmp.eq.s32.totalorder %s35, 7
      %p424 = scmp.ne.s32.totalorder %s419, %s421
      %p425 = scmp.eq.s32.totalorder %s35, 0
      %p426 = por %p424, %p425
      %p427 = scmp.ne.s32.totalorder %s419, %s421
      %p428 = scmp.eq.s32.totalorder %s40, 7
      %p429 = por %p427, %p428
      %p430 = scmp.ne.s32.totalorder %s421, %s422
      %p431 = scmp.eq.s32.totalorder %s40, 0
      %p432 = por %p430, %p431
      %p433 = scmp.ne.s32.totalorder %s421, %s422
      %p434 = scmp.eq.s32.totalorder %s41, 7
      %p435 = por %p433, %p434
      %p437 = scmp.ne.s32.totalorder %s422, %s436
      %p438 = scmp.eq.s32.totalorder %s41, 0
      %p439 = por %p437, %p438
      %s441 = sadd.s32 %s440, 1
      %p444 = scmp.eq.s32.totalorder %s35, 7
      %p445 = scmp.ne.s32.totalorder %s440, %s442
      %p446 = scmp.eq.s32.totalorder %s35, 0
      %p447 = por %p445, %p446
      %p448 = scmp.ne.s32.totalorder %s440, %s442
      %p449 = scmp.eq.s32.totalorder %s40, 7
      %p450 = por %p448, %p449
      %p451 = scmp.ne.s32.totalorder %s442, %s443
      %p452 = scmp.eq.s32.totalorder %s40, 0
      %p453 = por %p451, %p452
      %p454 = scmp.ne.s32.totalorder %s442, %s443
      %p455 = scmp.eq.s32.totalorder %s41, 7
      %p456 = por %p454, %p455
      %p458 = scmp.ne.s32.totalorder %s443, %s457
      %p459 = scmp.eq.s32.totalorder %s41, 0
      %p460 = por %p458, %p459
      %s462 = sadd.s32 %s461, 1
      %p465 = scmp.eq.s32.totalorder %s35, 7
      %p466 = scmp.ne.s32.totalorder %s461, %s463
      %p467 = scmp.eq.s32.totalorder %s35, 0
      %p468 = por %p466, %p467
      %p469 = scmp.ne.s32.totalorder %s461, %s463
      %p470 = scmp.eq.s32.totalorder %s40, 7
      %p471 = por %p469, %p470
      %p472 = scmp.ne.s32.totalorder %s463, %s464
      %p473 = scmp.eq.s32.totalorder %s40, 0
      %p474 = por %p472, %p473
      %p475 = scmp.ne.s32.totalorder %s463, %s464
      %p476 = scmp.eq.s32.totalorder %s41, 7
      %p477 = por %p475, %p476
      %p479 = scmp.ne.s32.totalorder %s464, %s478
      %p480 = scmp.eq.s32.totalorder %s41, 0
      %p481 = por %p479, %p480
      %s482 = ssub.s32 %s42, %s54
      %p483 = scmp.eq.s32.totalorder %s482, 0
      %s485 = sadd.s32 %s484, 1
      %s486 = scalar_select %p483, %s484, %s485
      %p489 = pneg %p483
      %p490 = scmp.eq.s32.totalorder %s35, 7
      %p491 = por %p489, %p490
      %p492 = scmp.ne.s32.totalorder %s484, %s487
      %p493 = scmp.eq.s32.totalorder %s35, 0
      %p494 = por %p492, %p493
      %p495 = scmp.ne.s32.totalorder %s484, %s487
      %p496 = scmp.eq.s32.totalorder %s40, 7
      %p497 = por %p495, %p496
      %p498 = scmp.ne.s32.totalorder %s487, %s488
      %p499 = scmp.eq.s32.totalorder %s40, 0
      %p500 = por %p498, %p499
      %p501 = scmp.ne.s32.totalorder %s487, %s488
      %p502 = scmp.eq.s32.totalorder %s41, 7
      %p503 = por %p501, %p502
      %p505 = scmp.ne.s32.totalorder %s488, %s504
      %p506 = scmp.eq.s32.totalorder %s41, 0
      %p507 = por %p505, %p506
      %s508 = ssub.s32 %s42, %s54
      %p509 = scmp.eq.s32.totalorder %s508, 0
      %s511 = sadd.s32 %s510, 1
      %s512 = scalar_select %p509, %s510, %s511
      %p515 = pneg %p509
      %p516 = scmp.eq.s32.totalorder %s35, 7
      %p517 = por %p515, %p516
      %p518 = scmp.ne.s32.totalorder %s510, %s513
      %p519 = scmp.eq.s32.totalorder %s35, 0
      %p520 = por %p518, %p519
      %p521 = scmp.ne.s32.totalorder %s510, %s513
      %p522 = scmp.eq.s32.totalorder %s40, 7
      %p523 = por %p521, %p522
      %p524 = scmp.ne.s32.totalorder %s513, %s514
      %p525 = scmp.eq.s32.totalorder %s40, 0
      %p526 = por %p524, %p525
      %p527 = scmp.ne.s32.totalorder %s513, %s514
      %p528 = scmp.eq.s32.totalorder %s41, 7
      %p529 = por %p527, %p528
      %p531 = scmp.ne.s32.totalorder %s514, %s530
      %p532 = scmp.eq.s32.totalorder %s41, 0
      %p533 = por %p531, %p532
      %s534 = ssub.s32 %s42, %s54
      %p535 = scmp.eq.s32.totalorder %s534, 0
      %s537 = sadd.s32 %s536, 1
      %s538 = scalar_select %p535, %s536, %s537
      %p541 = pneg %p535
      %p542 = scmp.eq.s32.totalorder %s35, 7
      %p543 = por %p541, %p542
      %p544 = scmp.ne.s32.totalorder %s536, %s539
      %p545 = scmp.eq.s32.totalorder %s35, 0
      %p546 = por %p544, %p545
      %p547 = scmp.ne.s32.totalorder %s536, %s539
      %p548 = scmp.eq.s32.totalorder %s40, 7
      %p549 = por %p547, %p548
      %p550 = scmp.ne.s32.totalorder %s539, %s540
      %p551 = scmp.eq.s32.totalorder %s40, 0
      %p552 = por %p550, %p551
      %p553 = scmp.ne.s32.totalorder %s539, %s540
      %p554 = scmp.eq.s32.totalorder %s41, 7
      %p555 = por %p553, %p554
      %p557 = scmp.ne.s32.totalorder %s540, %s556
      %p558 = scmp.eq.s32.totalorder %s41, 0
      %p559 = por %p557, %p558
      %p560 = scmp.le.s32.totalorder 1, %s35
      %p561 = scmp.lt.s32.totalorder %s35, 9
      %p562 = pnand %p560, %p561
      %p563 = pneg %p562
      // Predicated region
      $region9: #{python_net_forward.1} parent=5 // pred_check
        _
      $region10: #{python_net_forward.1} parent=5 // pred_check_branch
        %565 = sbr.rel (%p562) target = $region12
      $region11: #{python_net_forward.1} parent=5 // pred_region
        %s566 = ssub.s32 %s35, 1
        // Predicated region
        $region13: #{python_net_forward.1} parent=11 // pred_check
          %p567 = pneg %p96
        $region14: #{python_net_forward.1} parent=11 // pred_check_branch
          %569 = sbr.rel (%p567) target = $region16
        $region15: #{python_net_forward.1} parent=11 // pred_region
          _
        $region16: #{python_net_forward.1} parent=11 // pred_fallthru
          _
        // Predicated region
        $region17: #{python_net_forward.1} parent=11 // pred_check
          %p570 = pneg %p117
        $region18: #{python_net_forward.1} parent=11 // pred_check_branch
          %572 = sbr.rel (%p570) target = $region20
        $region19: #{python_net_forward.1} parent=11 // pred_region
          _
        $region20: #{python_net_forward.1} parent=11 // pred_fallthru
          _
        // Predicated region
        $region21: #{python_net_forward.1} parent=11 // pred_check
          %p573 = pneg %p138
        $region22: #{python_net_forward.1} parent=11 // pred_check_branch
          %575 = sbr.rel (%p573) target = $region24
        $region23: #{python_net_forward.1} parent=11 // pred_region
          _
        $region24: #{python_net_forward.1} parent=11 // pred_fallthru
          _
        // Predicated region
        $region25: #{python_net_forward.1} parent=11 // pred_check
          %p576 = pneg %p159
        $region26: #{python_net_forward.1} parent=11 // pred_check_branch
          %578 = sbr.rel (%p576) target = $region28
        $region27: #{python_net_forward.1} parent=11 // pred_region
          _
        $region28: #{python_net_forward.1} parent=11 // pred_fallthru
          _
        // Predicated region
        $region29: #{python_net_forward.1} parent=11 // pred_check
          %p579 = pneg %p180
        $region30: #{python_net_forward.1} parent=11 // pred_check_branch
          %581 = sbr.rel (%p579) target = $region32
        $region31: #{python_net_forward.1} parent=11 // pred_region
          _
        $region32: #{python_net_forward.1} parent=11 // pred_fallthru
          _
        // Predicated region
        $region33: #{python_net_forward.1} parent=11 // pred_check
          %p582 = pneg %p201
        $region34: #{python_net_forward.1} parent=11 // pred_check_branch
          %584 = sbr.rel (%p582) target = $region36
        $region35: #{python_net_forward.1} parent=11 // pred_region
          _
        $region36: #{python_net_forward.1} parent=11 // pred_fallthru
          _
        // Predicated region
        $region37: #{python_net_forward.1} parent=11 // pred_check
          %p585 = pneg %p222
        $region38: #{python_net_forward.1} parent=11 // pred_check_branch
          %587 = sbr.rel (%p585) target = $region40
        $region39: #{python_net_forward.1} parent=11 // pred_region
          _
        $region40: #{python_net_forward.1} parent=11 // pred_fallthru
          _
        // Predicated region
        $region41: #{python_net_forward.1} parent=11 // pred_check
          %p588 = pneg %p243
        $region42: #{python_net_forward.1} parent=11 // pred_check_branch
          %590 = sbr.rel (%p588) target = $region44
        $region43: #{python_net_forward.1} parent=11 // pred_region
          _
        $region44: #{python_net_forward.1} parent=11 // pred_fallthru
          _
        // Predicated region
        $region45: #{python_net_forward.1} parent=11 // pred_check
          %p591 = pneg %p264
        $region46: #{python_net_forward.1} parent=11 // pred_check_branch
          %593 = sbr.rel (%p591) target = $region48
        $region47: #{python_net_forward.1} parent=11 // pred_region
          _
        $region48: #{python_net_forward.1} parent=11 // pred_fallthru
          _
        // Predicated region
        $region49: #{python_net_forward.1} parent=11 // pred_check
          %p594 = pneg %p285
        $region50: #{python_net_forward.1} parent=11 // pred_check_branch
          %596 = sbr.rel (%p594) target = $region52
        $region51: #{python_net_forward.1} parent=11 // pred_region
          _
        $region52: #{python_net_forward.1} parent=11 // pred_fallthru
          _
        // Predicated region
        $region53: #{python_net_forward.1} parent=11 // pred_check
          %p597 = pneg %p306
        $region54: #{python_net_forward.1} parent=11 // pred_check_branch
          %599 = sbr.rel (%p597) target = $region56
        $region55: #{python_net_forward.1} parent=11 // pred_region
          _
        $region56: #{python_net_forward.1} parent=11 // pred_fallthru
          _
        // Predicated region
        $region57: #{python_net_forward.1} parent=11 // pred_check
          %p600 = pneg %p327
        $region58: #{python_net_forward.1} parent=11 // pred_check_branch
          %602 = sbr.rel (%p600) target = $region60
        $region59: #{python_net_forward.1} parent=11 // pred_region
          _
        $region60: #{python_net_forward.1} parent=11 // pred_fallthru
          _
        // Predicated region
        $region61: #{python_net_forward.1} parent=11 // pred_check
          %p603 = pneg %p348
        $region62: #{python_net_forward.1} parent=11 // pred_check_branch
          %605 = sbr.rel (%p603) target = $region64
        $region63: #{python_net_forward.1} parent=11 // pred_region
          _
        $region64: #{python_net_forward.1} parent=11 // pred_fallthru
          _
        // Predicated region
        $region65: #{python_net_forward.1} parent=11 // pred_check
          %p606 = pneg %p369
        $region66: #{python_net_forward.1} parent=11 // pred_check_branch
          %608 = sbr.rel (%p606) target = $region68
        $region67: #{python_net_forward.1} parent=11 // pred_region
          _
        $region68: #{python_net_forward.1} parent=11 // pred_fallthru
          _
        // Predicated region
        $region69: #{python_net_forward.1} parent=11 // pred_check
          %p609 = pneg %p390
        $region70: #{python_net_forward.1} parent=11 // pred_check_branch
          %611 = sbr.rel (%p609) target = $region72
        $region71: #{python_net_forward.1} parent=11 // pred_region
          _
        $region72: #{python_net_forward.1} parent=11 // pred_fallthru
          _
        // Predicated region
        $region73: #{python_net_forward.1} parent=11 // pred_check
          %p612 = pneg %p411
        $region74: #{python_net_forward.1} parent=11 // pred_check_branch
          %614 = sbr.rel (%p612) target = $region76
        $region75: #{python_net_forward.1} parent=11 // pred_region
          _
        $region76: #{python_net_forward.1} parent=11 // pred_fallthru
          _
        // Predicated region
        $region77: #{python_net_forward.1} parent=11 // pred_check
          %p615 = pneg %p432
        $region78: #{python_net_forward.1} parent=11 // pred_check_branch
          %617 = sbr.rel (%p615) target = $region80
        $region79: #{python_net_forward.1} parent=11 // pred_region
          _
        $region80: #{python_net_forward.1} parent=11 // pred_fallthru
          _
        // Predicated region
        $region81: #{python_net_forward.1} parent=11 // pred_check
          %p618 = pneg %p453
        $region82: #{python_net_forward.1} parent=11 // pred_check_branch
          %620 = sbr.rel (%p618) target = $region84
        $region83: #{python_net_forward.1} parent=11 // pred_region
          _
        $region84: #{python_net_forward.1} parent=11 // pred_fallthru
          _
        // Predicated region
        $region85: #{python_net_forward.1} parent=11 // pred_check
          %p621 = pneg %p474
        $region86: #{python_net_forward.1} parent=11 // pred_check_branch
          %623 = sbr.rel (%p621) target = $region88
        $region87: #{python_net_forward.1} parent=11 // pred_region
          _
        $region88: #{python_net_forward.1} parent=11 // pred_fallthru
          _
      $region12: #{python_net_forward.1} parent=5 // pred_fallthru
        _
      %p624 = scmp.lt.s32.totalorder %s35, 8
      // Predicated region
      $region89: #{python_net_forward.1} parent=5 // pred_check
        %p625 = pneg %p624
      $region90: #{python_net_forward.1} parent=5 // pred_check_branch
        %627 = sbr.rel (%p625) target = $region92
      $region91: #{python_net_forward.1} parent=5 // pred_region
        // Predicated region
        $region93: #{python_net_forward.1} parent=91 // pred_check
          %p628 = pneg %p69
        $region94: #{python_net_forward.1} parent=91 // pred_check_branch
          %630 = sbr.rel (%p628) target = $region96
        $region95: #{python_net_forward.1} parent=91 // pred_region
          %p631 = scmp.lt.s32.totalorder %s42, 1
          %s632 = scalar_select %p631, %s42, 1
          %p633 = scmp.lt.s32.totalorder %s43, 3
          %s634 = scalar_select %p633, %s43, 3
          %s635 = smul.addr %s634, 32
          %s636 = smul.addr %s632, 128
          %s637 = sadd.s32 %s635, %s636
          %s638 = smul.addr %s637, 4
          %s639 = scalar_lea.vmem %s0, %s638
        $region96: #{python_net_forward.1} parent=91 // pred_fallthru
          _
      $region92: #{python_net_forward.1} parent=5 // pred_fallthru
        _
      %p640 = scmp.le.s32.totalorder 1, %s35
      %p641 = scmp.lt.s32.totalorder %s35, 9
      %p642 = pnand %p640, %p641
      %p643 = pneg %p642
      // Predicated region
      $region97: #{python_net_forward.1} parent=5 // pred_check
        _
      $region98: #{python_net_forward.1} parent=5 // pred_check_branch
        %645 = sbr.rel (%p642) target = $region100
      $region99: #{python_net_forward.1} parent=5 // pred_region
        %s646 = ssub.s32 %s35, 1
        %p647 = scmp.lt.s32.totalorder %s44, 1
        %s648 = scalar_select %p647, %s44, 1
        %p649 = scmp.lt.s32.totalorder %s45, 3
        %s650 = scalar_select %p649, %s45, 3
        %s651 = smul.addr %s650, 32
        %s652 = smul.addr %s648, 128
        %s653 = sadd.s32 %s651, %s652
        %s654 = smul.addr %s653, 4
        %s655 = scalar_lea.vmem %s0, %s654
        %p656 = pneg %p75
        %p657 = pneg %p72
        %p658 = pneg %p96
        %p659 = pneg %p93
        %p660 = pneg %p117
        %p661 = pneg %p114
        %p662 = pneg %p138
        %p663 = pneg %p135
        %p664 = pneg %p159
        %p665 = pneg %p156
        %p666 = pneg %p180
        %p667 = pneg %p177
        %p668 = pneg %p201
        %p669 = pneg %p198
        %p670 = pneg %p222
        %p671 = pneg %p219
        %p672 = pneg %p243
        %p673 = pneg %p240
        %p674 = pneg %p264
        %p675 = pneg %p261
        %p676 = pneg %p285
        %p677 = pneg %p282
        %p678 = pneg %p306
        %p679 = pneg %p303
        %p680 = pneg %p327
        %p681 = pneg %p324
        %p682 = pneg %p348
        %p683 = pneg %p345
        %p684 = pneg %p369
        %p685 = pneg %p366
        %p686 = pneg %p390
        %p687 = pneg %p387
        %p688 = pneg %p411
        %p689 = pneg %p408
        %p690 = pneg %p432
        %p691 = pneg %p429
        %p692 = pneg %p453
        %p693 = pneg %p450
        %p694 = pneg %p474
        %p695 = pneg %p471
        %p696 = pneg %p500
        %p697 = pneg %p497
        %s698 = sand.u32 %s487, 1
        %s699 = scalar_lea.sflag [#allocation15], %s698
        %s700 = sand.u32 %s487, 1
        %s701 = scalar_lea.vmem [#allocation14], %s700
        %p702 = pneg %p526
        %p703 = pneg %p523
        %p704 = scmp.lt.s32.totalorder %s44, 1
        %s705 = scalar_select %p704, %s44, 1
        %s706 = smul.addr %s705, 2
        %s707 = smul.addr %s706, 8
        %s708 = scalar_lea.vmem %s21, %s707
        %p709 = pneg %p552
        %p710 = pneg %p549
        %s711 = sand.u32 %s539, 1
        %s712 = scalar_lea.sflag [#allocation17], %s711
        %s713 = sand.u32 %s539, 1
        %s714 = smul.addr %s713, 4
        %s715 = scalar_lea.vmem [#allocation16], %s714
        %p716 = scmp.lt.s32.totalorder %s44, 1
        %s717 = scalar_select %p716, %s44, 1
        %p718 = scmp.lt.s32.totalorder %s45, 3
        %s719 = scalar_select %p718, %s45, 3
        %s720 = smul.addr %s719, 32
        %s721 = smul.addr %s717, 128
        %s722 = sadd.s32 %s720, %s721
        %s723 = smul.addr %s722, 4
        %s724 = scalar_lea.vmem %s0, %s723
        %p725 = scmp.lt.s32.totalorder %s44, 1
        %s726 = scalar_select %p725, %s44, 1
        %s727 = smul.addr %s726, 2
        %s728 = smul.addr %s727, 8
        %s729 = scalar_lea.vmem %s21, %s728
        %p730 = scmp.eq.s32.totalorder %s45, 0
        // Predicated region
        $region101: #{python_net_forward.1} parent=99 // pred_check
          %p731 = pneg %p730
        $region102: #{python_net_forward.1} parent=99 // pred_check_branch
          %733 = sbr.rel (%p731) target = $region104
        $region103: #{python_net_forward.1} parent=99 // pred_region
          %734 = vst [vmem:[#allocation7] sm:$0xff] 0.0
          %735 = vst [vmem:[#allocation7 + $0x8] sm:$0xff] 0.0
          %736 = vst [vmem:[#allocation7 + $0x10] sm:$0xff] 0.0
          %737 = vst [vmem:[#allocation7 + $0x18] sm:$0xff] 0.0
          %738 = vst [vmem:[#allocation7 + $0x20] sm:$0xff] 0.0
          %739 = vst [vmem:[#allocation7 + $0x28] sm:$0xff] 0.0
          %740 = vst [vmem:[#allocation7 + $0x30] sm:$0xff] 0.0
          %741 = vst [vmem:[#allocation7 + $0x38] sm:$0xff] 0.0
          %742 = vst [vmem:[#allocation7 + $0x40] sm:$0xff] 0.0
          %743 = vst [vmem:[#allocation7 + $0x48] sm:$0xff] 0.0
          %744 = vst [vmem:[#allocation7 + $0x50] sm:$0xff] 0.0
          %745 = vst [vmem:[#allocation7 + $0x58] sm:$0xff] 0.0
          %746 = vst [vmem:[#allocation7 + $0x60] sm:$0xff] 0.0
          %747 = vst [vmem:[#allocation7 + $0x68] sm:$0xff] 0.0
          %748 = vst [vmem:[#allocation7 + $0x70] sm:$0xff] 0.0
          %749 = vst [vmem:[#allocation7 + $0x78] sm:$0xff] 0.0
          %750 = vst [vmem:[#allocation7 + $0x80] sm:$0xff] 0.0
          %751 = vst [vmem:[#allocation7 + $0x88] sm:$0xff] 0.0
          %752 = vst [vmem:[#allocation7 + $0x90] sm:$0xff] 0.0
          %753 = vst [vmem:[#allocation7 + $0x98] sm:$0xff] 0.0
          %754 = vst [vmem:[#allocation7 + $0xa0] sm:$0xff] 0.0
          %755 = vst [vmem:[#allocation7 + $0xa8] sm:$0xff] 0.0
          %756 = vst [vmem:[#allocation7 + $0xb0] sm:$0xff] 0.0
          %757 = vst [vmem:[#allocation7 + $0xb8] sm:$0xff] 0.0
          %758 = vst [vmem:[#allocation7 + $0xc0] sm:$0xff] 0.0
          %759 = vst [vmem:[#allocation7 + $0xc8] sm:$0xff] 0.0
          %760 = vst [vmem:[#allocation7 + $0xd0] sm:$0xff] 0.0
          %761 = vst [vmem:[#allocation7 + $0xd8] sm:$0xff] 0.0
          %762 = vst [vmem:[#allocation7 + $0xe0] sm:$0xff] 0.0
          %763 = vst [vmem:[#allocation7 + $0xe8] sm:$0xff] 0.0
          %764 = vst [vmem:[#allocation7 + $0xf0] sm:$0xff] 0.0
          %765 = vst [vmem:[#allocation7 + $0xf8] sm:$0xff] 0.0
          %766 = vst [vmem:[#allocation7 + $0x100] sm:$0xff] 0.0
          %767 = vst [vmem:[#allocation7 + $0x108] sm:$0xff] 0.0
          %768 = vst [vmem:[#allocation7 + $0x110] sm:$0xff] 0.0
          %769 = vst [vmem:[#allocation7 + $0x118] sm:$0xff] 0.0
          %770 = vst [vmem:[#allocation7 + $0x120] sm:$0xff] 0.0
          %771 = vst [vmem:[#allocation7 + $0x128] sm:$0xff] 0.0
          %772 = vst [vmem:[#allocation7 + $0x130] sm:$0xff] 0.0
          %773 = vst [vmem:[#allocation7 + $0x138] sm:$0xff] 0.0
          %774 = vst [vmem:[#allocation7 + $0x140] sm:$0xff] 0.0
          %775 = vst [vmem:[#allocation7 + $0x148] sm:$0xff] 0.0
          %776 = vst [vmem:[#allocation7 + $0x150] sm:$0xff] 0.0
          %777 = vst [vmem:[#allocation7 + $0x158] sm:$0xff] 0.0
          %778 = vst [vmem:[#allocation7 + $0x160] sm:$0xff] 0.0
          %779 = vst [vmem:[#allocation7 + $0x168] sm:$0xff] 0.0
          %780 = vst [vmem:[#allocation7 + $0x170] sm:$0xff] 0.0
          %781 = vst [vmem:[#allocation7 + $0x178] sm:$0xff] 0.0
          %782 = vst [vmem:[#allocation7 + $0x180] sm:$0xff] 0.0
          %783 = vst [vmem:[#allocation7 + $0x188] sm:$0xff] 0.0
          %784 = vst [vmem:[#allocation7 + $0x190] sm:$0xff] 0.0
          %785 = vst [vmem:[#allocation7 + $0x198] sm:$0xff] 0.0
          %786 = vst [vmem:[#allocation7 + $0x1a0] sm:$0xff] 0.0
          %787 = vst [vmem:[#allocation7 + $0x1a8] sm:$0xff] 0.0
          %788 = vst [vmem:[#allocation7 + $0x1b0] sm:$0xff] 0.0
          %789 = vst [vmem:[#allocation7 + $0x1b8] sm:$0xff] 0.0
          %790 = vst [vmem:[#allocation7 + $0x1c0] sm:$0xff] 0.0
          %791 = vst [vmem:[#allocation7 + $0x1c8] sm:$0xff] 0.0
          %792 = vst [vmem:[#allocation7 + $0x1d0] sm:$0xff] 0.0
          %793 = vst [vmem:[#allocation7 + $0x1d8] sm:$0xff] 0.0
          %794 = vst [vmem:[#allocation7 + $0x1e0] sm:$0xff] 0.0
          %795 = vst [vmem:[#allocation7 + $0x1e8] sm:$0xff] 0.0
          %796 = vst [vmem:[#allocation7 + $0x1f0] sm:$0xff] 0.0
          %797 = vst [vmem:[#allocation7 + $0x1f8] sm:$0xff] 0.0
          %798 = vst [vmem:[#allocation8] sm:$0xff] 0.0
          %799 = vst [vmem:[#allocation8 + $0x8] sm:$0xff] 0.0
          %800 = vst [vmem:[#allocation8 + $0x10] sm:$0xff] 0.0
          %801 = vst [vmem:[#allocation8 + $0x18] sm:$0xff] 0.0
          %802 = vst [vmem:[#allocation8 + $0x20] sm:$0xff] 0.0
          %803 = vst [vmem:[#allocation8 + $0x28] sm:$0xff] 0.0
          %804 = vst [vmem:[#allocation8 + $0x30] sm:$0xff] 0.0
          %805 = vst [vmem:[#allocation8 + $0x38] sm:$0xff] 0.0
          %806 = vst [vmem:[#allocation8 + $0x40] sm:$0xff] 0.0
          %807 = vst [vmem:[#allocation8 + $0x48] sm:$0xff] 0.0
          %808 = vst [vmem:[#allocation8 + $0x50] sm:$0xff] 0.0
          %809 = vst [vmem:[#allocation8 + $0x58] sm:$0xff] 0.0
          %810 = vst [vmem:[#allocation8 + $0x60] sm:$0xff] 0.0
          %811 = vst [vmem:[#allocation8 + $0x68] sm:$0xff] 0.0
          %812 = vst [vmem:[#allocation8 + $0x70] sm:$0xff] 0.0
          %813 = vst [vmem:[#allocation8 + $0x78] sm:$0xff] 0.0
          %814 = vst [vmem:[#allocation9] sm:$0xff] 0.0
          %815 = vst [vmem:[#allocation9 + $0x8] sm:$0xff] 0.0
          %816 = vst [vmem:[#allocation9 + $0x10] sm:$0xff] 0.0
          %817 = vst [vmem:[#allocation9 + $0x18] sm:$0xff] 0.0
          %vm818 = vcmask 523264
          %819 = vst.msk [vmem:[#allocation10] sm:$0xff] %vm818, 0.0
          %820 = vst.msk [vmem:[#allocation10 + $0x8] sm:$0xff] %vm818, 0.0
          %vm821 = vcmask 261120
          %822 = vst.msk [vmem:[#allocation11] sm:$0xff] %vm821, 0.0
          %vm823 = vcmask 253952
          %824 = vst.msk [vmem:[#allocation12] sm:$0x1] %vm823, 0.0
          %vm825 = vcmask 892928
          %826 = vst.msk [vmem:[#allocation13] sm:$0x1] %vm825, 0.0
          %827 = vst [vmem:[#allocation2] sm:$0xff] 0.0
          %828 = vst [vmem:[#allocation2 + $0x8] sm:$0xff] 0.0
          %829 = vst [vmem:[#allocation2 + $0x110] sm:$0xff] 0.0
          %830 = vst [vmem:[#allocation2 + $0x118] sm:$0xff] 0.0
          %831 = vst [vmem:[#allocation3] sm:$0xff] 0.0
          %832 = vst [vmem:[#allocation3 + $0x8] sm:$0xff] 0.0
          %833 = vst [vmem:[#allocation3 + $0x90] sm:$0xff] 0.0
          %834 = vst [vmem:[#allocation3 + $0x98] sm:$0xff] 0.0
          %835 = vst [vmem:[#allocation4] sm:$0xff] 0.0
          %836 = vst [vmem:[#allocation4 + $0x28] sm:$0xff] 0.0
          %837 = vst.msk [vmem:[#allocation5] sm:$0xff] %vm818, 0.0
          %838 = vst.msk [vmem:[#allocation5 + $0x18] sm:$0xff] %vm818, 0.0
          %839 = vst.msk [vmem:[#allocation6] sm:$0xff] %vm821, 0.0
          %840 = vst.msk [vmem:[#allocation6 + $0x10] sm:$0xff] %vm821, 0.0
          %vm841 = vcmask 81920
          %842 = vst.msk [vmem:[%s701] sm:$0x1] %vm841, 0.0
        $region104: #{python_net_forward.1} parent=99 // pred_fallthru
          _
        %v843 = vld [vmem:[%s724] sm:$0xf]
        %v844 = vld [vmem:[%s724 + $0x4] sm:$0xf]
        %v845 = vld [vmem:[%s724 + $0x8] sm:$0xf]
        %v846 = vld [vmem:[%s724 + $0xc] sm:$0xf]
        %v847 = vld [vmem:[%s724 + $0x10] sm:$0xf]
        %v848 = vld [vmem:[%s724 + $0x14] sm:$0xf]
        %v849 = vld [vmem:[%s724 + $0x18] sm:$0xf]
        %v850 = vld [vmem:[%s724 + $0x1c] sm:$0xf]
        %v851 = vld [vmem:[%s724 + $0x20] sm:$0xf]
        %v852 = vld [vmem:[%s724 + $0x24] sm:$0xf]
        %v853 = vld [vmem:[%s724 + $0x28] sm:$0xf]
        %v854 = vld [vmem:[%s724 + $0x2c] sm:$0xf]
        %v855 = vld [vmem:[%s724 + $0x30] sm:$0xf]
        %v856 = vld [vmem:[%s724 + $0x34] sm:$0xf]
        %v857 = vld [vmem:[%s724 + $0x38] sm:$0xf]
        %v858 = vld [vmem:[%s724 + $0x3c] sm:$0xf]
        %v859 = vunpack.c.l.bf16 %v843
        %v860 = vunpack.c.l.bf16 %v844
        %v861 = vunpack.c.l.bf16 %v845
        %v862 = vunpack.c.l.bf16 %v846
        %v863 = vunpack.c.l.bf16 %v847
        %v864 = vunpack.c.l.bf16 %v848
        %v865 = vunpack.c.l.bf16 %v849
        %v866 = vunpack.c.l.bf16 %v850
        %v867 = vunpack.c.l.bf16 %v851
        %v868 = vunpack.c.l.bf16 %v852
        %v869 = vunpack.c.l.bf16 %v853
        %v870 = vunpack.c.l.bf16 %v854
        %v871 = vunpack.c.l.bf16 %v855
        %v872 = vunpack.c.l.bf16 %v856
        %v873 = vunpack.c.l.bf16 %v857
        %v874 = vunpack.c.l.bf16 %v858
        %875 = vst [vmem:[#allocation2 + $0x10] sm:$0xff] %v859
        %876 = vst [vmem:[#allocation2 + $0x20] sm:$0xff] %v860
        %877 = vst [vmem:[#allocation2 + $0x30] sm:$0xff] %v861
        %878 = vst [vmem:[#allocation2 + $0x40] sm:$0xff] %v862
        %879 = vst [vmem:[#allocation2 + $0x50] sm:$0xff] %v863
        %880 = vst [vmem:[#allocation2 + $0x60] sm:$0xff] %v864
        %881 = vst [vmem:[#allocation2 + $0x70] sm:$0xff] %v865
        %882 = vst [vmem:[#allocation2 + $0x80] sm:$0xff] %v866
        %883 = vst [vmem:[#allocation2 + $0x90] sm:$0xff] %v867
        %884 = vst [vmem:[#allocation2 + $0xa0] sm:$0xff] %v868
        %885 = vst [vmem:[#allocation2 + $0xb0] sm:$0xff] %v869
        %886 = vst [vmem:[#allocation2 + $0xc0] sm:$0xff] %v870
        %887 = vst [vmem:[#allocation2 + $0xd0] sm:$0xff] %v871
        %888 = vst [vmem:[#allocation2 + $0xe0] sm:$0xff] %v872
        %889 = vst [vmem:[#allocation2 + $0xf0] sm:$0xff] %v873
        %890 = vst [vmem:[#allocation2 + $0x100] sm:$0xff] %v874
        %s891 = scalar_lea.vmem %s724, 64
        %v892 = vld [vmem:[%s891] sm:$0xf]
        %v893 = vld [vmem:[%s891 + $0x4] sm:$0xf]
        %v894 = vld [vmem:[%s891 + $0x8] sm:$0xf]
        %v895 = vld [vmem:[%s891 + $0xc] sm:$0xf]
        %v896 = vld [vmem:[%s891 + $0x10] sm:$0xf]
        %v897 = vld [vmem:[%s891 + $0x14] sm:$0xf]
        %v898 = vld [vmem:[%s891 + $0x18] sm:$0xf]
        %v899 = vld [vmem:[%s891 + $0x1c] sm:$0xf]
        %v900 = vld [vmem:[%s891 + $0x20] sm:$0xf]
        %v901 = vld [vmem:[%s891 + $0x24] sm:$0xf]
        %v902 = vld [vmem:[%s891 + $0x28] sm:$0xf]
        %v903 = vld [vmem:[%s891 + $0x2c] sm:$0xf]
        %v904 = vld [vmem:[%s891 + $0x30] sm:$0xf]
        %v905 = vld [vmem:[%s891 + $0x34] sm:$0xf]
        %v906 = vld [vmem:[%s891 + $0x38] sm:$0xf]
        %v907 = vld [vmem:[%s891 + $0x3c] sm:$0xf]
        %v908 = vunpack.c.l.bf16 %v892
        %v909 = vunpack.c.l.bf16 %v893
        %v910 = vunpack.c.l.bf16 %v894
        %v911 = vunpack.c.l.bf16 %v895
        %v912 = vunpack.c.l.bf16 %v896
        %v913 = vunpack.c.l.bf16 %v897
        %v914 = vunpack.c.l.bf16 %v898
        %v915 = vunpack.c.l.bf16 %v899
        %v916 = vunpack.c.l.bf16 %v900
        %v917 = vunpack.c.l.bf16 %v901
        %v918 = vunpack.c.l.bf16 %v902
        %v919 = vunpack.c.l.bf16 %v903
        %v920 = vunpack.c.l.bf16 %v904
        %v921 = vunpack.c.l.bf16 %v905
        %v922 = vunpack.c.l.bf16 %v906
        %v923 = vunpack.c.l.bf16 %v907
        %924 = vst [vmem:[#allocation2 + $0x18] sm:$0xff] %v908
        %925 = vst [vmem:[#allocation2 + $0x28] sm:$0xff] %v909
        %926 = vst [vmem:[#allocation2 + $0x38] sm:$0xff] %v910
        %927 = vst [vmem:[#allocation2 + $0x48] sm:$0xff] %v911
        %928 = vst [vmem:[#allocation2 + $0x58] sm:$0xff] %v912
        %929 = vst [vmem:[#allocation2 + $0x68] sm:$0xff] %v913
        %930 = vst [vmem:[#allocation2 + $0x78] sm:$0xff] %v914
        %931 = vst [vmem:[#allocation2 + $0x88] sm:$0xff] %v915
        %932 = vst [vmem:[#allocation2 + $0x98] sm:$0xff] %v916
        %933 = vst [vmem:[#allocation2 + $0xa8] sm:$0xff] %v917
        %934 = vst [vmem:[#allocation2 + $0xb8] sm:$0xff] %v918
        %935 = vst [vmem:[#allocation2 + $0xc8] sm:$0xff] %v919
        %936 = vst [vmem:[#allocation2 + $0xd8] sm:$0xff] %v920
        %937 = vst [vmem:[#allocation2 + $0xe8] sm:$0xff] %v921
        %938 = vst [vmem:[#allocation2 + $0xf8] sm:$0xff] %v922
        %939 = vst [vmem:[#allocation2 + $0x108] sm:$0xff] %v923
        %v940 = vld [vmem:[%s16] sm:$0xff]
        %v941 = vld [vmem:[%s16 + $0x8] sm:$0xff]
        %v942 = vld [vmem:[%s1] sm:$0xff]
        %v943 = vld [vmem:[%s1 + $0x8] sm:$0xff]
        %v944 = vld [vmem:[%s1 + $0x10] sm:$0xff]
        %v945 = vld [vmem:[%s1 + $0x18] sm:$0xff]
        %v946 = vld [vmem:[%s1 + $0x20] sm:$0xff]
        %v947 = vld [vmem:[%s1 + $0x28] sm:$0xff]
        %v948 = vld [vmem:[%s1 + $0x30] sm:$0xff]
        %v949 = vld [vmem:[%s1 + $0x38] sm:$0xff]
        %v950 = vld [vmem:[%s1 + $0x40] sm:$0xff]
        %v951 = vld [vmem:[%s1 + $0x48] sm:$0xff]
        %v952 = vld [vmem:[%s1 + $0x50] sm:$0xff]
        %v953 = vld [vmem:[%s1 + $0x58] sm:$0xff]
        %v954 = vld [vmem:[%s1 + $0x60] sm:$0xff]
        %v955 = vld [vmem:[%s1 + $0x68] sm:$0xff]
        %v956 = vld [vmem:[%s1 + $0x70] sm:$0xff]
        %v957 = vld [vmem:[%s1 + $0x78] sm:$0xff]
        %v958 = vld [vmem:[%s1 + $0x80] sm:$0xff]
        %v959 = vld [vmem:[%s1 + $0x88] sm:$0xff]
        %v960 = vld [vmem:[%s1 + $0x90] sm:$0xff]
        %v961 = vld [vmem:[%s1 + $0x98] sm:$0xff]
        %v962 = vld [vmem:[%s1 + $0xa0] sm:$0xff]
        %v963 = vld [vmem:[%s1 + $0xa8] sm:$0xff]
        %v964 = vld [vmem:[%s1 + $0xb0] sm:$0xff]
        %v965 = vld [vmem:[%s1 + $0xb8] sm:$0xff]
        %v966 = vld [vmem:[%s1 + $0xc0] sm:$0xff]
        %v967 = vld [vmem:[%s1 + $0xc8] sm:$0xff]
        %v968 = vld [vmem:[%s1 + $0xd0] sm:$0xff]
        %v969 = vld [vmem:[%s1 + $0xd8] sm:$0xff]
        %v970 = vld [vmem:[%s1 + $0xe0] sm:$0xff]
        %v971 = vld [vmem:[%s1 + $0xe8] sm:$0xff]
        %v972 = vld [vmem:[%s1 + $0xf0] sm:$0xff]
        %v973 = vld [vmem:[%s1 + $0xf8] sm:$0xff]
        %v974 = vld [vmem:[%s1 + $0x100] sm:$0xff]
        %v975 = vld [vmem:[%s1 + $0x108] sm:$0xff]
        %v976 = vld [vmem:[%s1 + $0x110] sm:$0xff]
        %v977 = vld [vmem:[%s1 + $0x118] sm:$0xff]
        %v978 = vld [vmem:[%s1 + $0x120] sm:$0xff]
        %v979 = vld [vmem:[%s1 + $0x128] sm:$0xff]
        %v980 = vld [vmem:[%s1 + $0x130] sm:$0xff]
        %v981 = vld [vmem:[%s1 + $0x138] sm:$0xff]
        %v982 = vld [vmem:[%s1 + $0x140] sm:$0xff]
        %v983 = vld [vmem:[%s1 + $0x148] sm:$0xff]
        %v984 = vld [vmem:[%s1 + $0x150] sm:$0xff]
        %v985 = vld [vmem:[%s1 + $0x158] sm:$0xff]
        %v986 = vld [vmem:[%s1 + $0x160] sm:$0xff]
        %v987 = vld [vmem:[%s1 + $0x168] sm:$0xff]
        %v988 = vld [vmem:[%s1 + $0x170] sm:$0xff]
        %v989 = vld [vmem:[%s1 + $0x178] sm:$0xff]
        %v990 = vld [vmem:[%s1 + $0x180] sm:$0xff]
        %v991 = vld [vmem:[%s1 + $0x188] sm:$0xff]
        %v992 = vld [vmem:[%s1 + $0x190] sm:$0xff]
        %v993 = vld [vmem:[%s1 + $0x198] sm:$0xff]
        %v994 = vld [vmem:[%s1 + $0x1a0] sm:$0xff]
        %v995 = vld [vmem:[%s1 + $0x1a8] sm:$0xff]
        %v996 = vld [vmem:[%s1 + $0x1b0] sm:$0xff]
        %v997 = vld [vmem:[%s1 + $0x1b8] sm:$0xff]
        %v998 = vld [vmem:[%s1 + $0x1c0] sm:$0xff]
        %v999 = vld [vmem:[%s1 + $0x1c8] sm:$0xff]
        %v1000 = vld [vmem:[%s1 + $0x1d0] sm:$0xff]
        %v1001 = vld [vmem:[%s1 + $0x1d8] sm:$0xff]
        %v1002 = vld [vmem:[%s1 + $0x1e0] sm:$0xff]
        %v1003 = vld [vmem:[%s1 + $0x1e8] sm:$0xff]
        %v1004 = vld [vmem:[%s1 + $0x1f0] sm:$0xff]
        %v1005 = vld [vmem:[%s1 + $0x1f8] sm:$0xff]
        %v1006 = vld [vmem:[%s1 + $0x200] sm:$0xff]
        %v1007 = vld [vmem:[%s1 + $0x208] sm:$0xff]
        %v1008 = vld [vmem:[%s1 + $0x210] sm:$0xff]
        %v1009 = vld [vmem:[%s1 + $0x218] sm:$0xff]
        %v1010 = vld [vmem:[%s1 + $0x220] sm:$0xff]
        %v1011 = vld [vmem:[%s1 + $0x228] sm:$0xff]
        %v1012 = vld [vmem:[%s1 + $0x230] sm:$0xff]
        %v1013 = vld [vmem:[%s1 + $0x238] sm:$0xff]
        %v1014 = vld [vmem:[%s1 + $0x240] sm:$0xff]
        %v1015 = vld [vmem:[%s1 + $0x248] sm:$0xff]
        %v1016 = vld [vmem:[%s1 + $0x250] sm:$0xff]
        %v1017 = vld [vmem:[%s1 + $0x258] sm:$0xff]
        %v1018 = vld [vmem:[%s1 + $0x260] sm:$0xff]
        %v1019 = vld [vmem:[%s1 + $0x268] sm:$0xff]
        %v1020 = vld [vmem:[%s1 + $0x270] sm:$0xff]
        %v1021 = vld [vmem:[%s1 + $0x278] sm:$0xff]
        %v1022 = vld [vmem:[%s1 + $0x280] sm:$0xff]
        %v1023 = vld [vmem:[%s1 + $0x288] sm:$0xff]
        %v1024 = vld [vmem:[%s1 + $0x290] sm:$0xff]
        %v1025 = vld [vmem:[%s1 + $0x298] sm:$0xff]
        %v1026 = vld [vmem:[%s1 + $0x2a0] sm:$0xff]
        %v1027 = vld [vmem:[%s1 + $0x2a8] sm:$0xff]
        %v1028 = vld [vmem:[%s1 + $0x2b0] sm:$0xff]
        %v1029 = vld [vmem:[%s1 + $0x2b8] sm:$0xff]
        %v1030 = vld [vmem:[%s1 + $0x2c0] sm:$0xff]
        %v1031 = vld [vmem:[%s1 + $0x2c8] sm:$0xff]
        %v1032 = vld [vmem:[%s1 + $0x2d0] sm:$0xff]
        %v1033 = vld [vmem:[%s1 + $0x2d8] sm:$0xff]
        %v1034 = vld [vmem:[%s1 + $0x2e0] sm:$0xff]
        %v1035 = vld [vmem:[%s1 + $0x2e8] sm:$0xff]
        %v1036 = vld [vmem:[%s1 + $0x2f0] sm:$0xff]
        %v1037 = vld [vmem:[%s1 + $0x2f8] sm:$0xff]
        %v1038 = vld [vmem:[%s1 + $0x300] sm:$0xff]
        %v1039 = vld [vmem:[%s1 + $0x308] sm:$0xff]
        %v1040 = vld [vmem:[%s1 + $0x310] sm:$0xff]
        %v1041 = vld [vmem:[%s1 + $0x318] sm:$0xff]
        %v1042 = vld [vmem:[%s1 + $0x320] sm:$0xff]
        %v1043 = vld [vmem:[%s1 + $0x328] sm:$0xff]
        %v1044 = vld [vmem:[%s1 + $0x330] sm:$0xff]
        %v1045 = vld [vmem:[%s1 + $0x338] sm:$0xff]
        %v1046 = vld [vmem:[%s1 + $0x340] sm:$0xff]
        %v1047 = vld [vmem:[%s1 + $0x348] sm:$0xff]
        %v1048 = vld [vmem:[%s1 + $0x350] sm:$0xff]
        %v1049 = vld [vmem:[%s1 + $0x358] sm:$0xff]
        %v1050 = vld [vmem:[%s1 + $0x360] sm:$0xff]
        %v1051 = vld [vmem:[%s1 + $0x368] sm:$0xff]
        %v1052 = vld [vmem:[%s1 + $0x370] sm:$0xff]
        %v1053 = vld [vmem:[%s1 + $0x378] sm:$0xff]
        %v1054 = vld [vmem:[%s1 + $0x380] sm:$0xff]
        %v1055 = vld [vmem:[%s1 + $0x388] sm:$0xff]
        %v1056 = vld [vmem:[%s1 + $0x390] sm:$0xff]
        %v1057 = vld [vmem:[%s1 + $0x398] sm:$0xff]
        %v1058 = vld [vmem:[%s1 + $0x3a0] sm:$0xff]
        %v1059 = vld [vmem:[%s1 + $0x3a8] sm:$0xff]
        %v1060 = vld [vmem:[%s1 + $0x3b0] sm:$0xff]
        %v1061 = vld [vmem:[%s1 + $0x3b8] sm:$0xff]
        %v1062 = vld [vmem:[%s1 + $0x3c0] sm:$0xff]
        %v1063 = vld [vmem:[%s1 + $0x3c8] sm:$0xff]
        %v1064 = vld [vmem:[%s1 + $0x3d0] sm:$0xff]
        %v1065 = vld [vmem:[%s1 + $0x3d8] sm:$0xff]
        %v1066 = vld [vmem:[%s1 + $0x3e0] sm:$0xff]
        %v1067 = vld [vmem:[%s1 + $0x3e8] sm:$0xff]
        %v1068 = vld [vmem:[%s1 + $0x3f0] sm:$0xff]
        %v1069 = vld [vmem:[%s1 + $0x3f8] sm:$0xff]
        %s1070 = scalar_lea.vmem %s1, 1024
        %v1071 = vld [vmem:[%s1070] sm:$0xff]
        %v1072 = vld [vmem:[%s1070 + $0x8] sm:$0xff]
        %v1073 = vld [vmem:[%s1070 + $0x10] sm:$0xff]
        %v1074 = vld [vmem:[%s1070 + $0x18] sm:$0xff]
        %v1075 = vld [vmem:[%s1070 + $0x20] sm:$0xff]
        %v1076 = vld [vmem:[%s1070 + $0x28] sm:$0xff]
        %v1077 = vld [vmem:[%s1070 + $0x30] sm:$0xff]
        %v1078 = vld [vmem:[%s1070 + $0x38] sm:$0xff]
        %v1079 = vld [vmem:[%s1070 + $0x40] sm:$0xff]
        %v1080 = vld [vmem:[%s1070 + $0x48] sm:$0xff]
        %v1081 = vld [vmem:[%s1070 + $0x50] sm:$0xff]
        %v1082 = vld [vmem:[%s1070 + $0x58] sm:$0xff]
        %v1083 = vld [vmem:[%s1070 + $0x60] sm:$0xff]
        %v1084 = vld [vmem:[%s1070 + $0x68] sm:$0xff]
        %v1085 = vld [vmem:[%s1070 + $0x70] sm:$0xff]
        %v1086 = vld [vmem:[%s1070 + $0x78] sm:$0xff]
        %v1087 = vld [vmem:[%s1070 + $0x80] sm:$0xff]
        %v1088 = vld [vmem:[%s1070 + $0x88] sm:$0xff]
        %v1089 = vld [vmem:[%s1070 + $0x90] sm:$0xff]
        %v1090 = vld [vmem:[%s1070 + $0x98] sm:$0xff]
        %v1091 = vld [vmem:[%s1070 + $0xa0] sm:$0xff]
        %v1092 = vld [vmem:[%s1070 + $0xa8] sm:$0xff]
        %v1093 = vld [vmem:[%s1070 + $0xb0] sm:$0xff]
        %v1094 = vld [vmem:[%s1070 + $0xb8] sm:$0xff]
        %v1095 = vld [vmem:[%s1070 + $0xc0] sm:$0xff]
        %v1096 = vld [vmem:[%s1070 + $0xc8] sm:$0xff]
        %v1097 = vld [vmem:[%s1070 + $0xd0] sm:$0xff]
        %v1098 = vld [vmem:[%s1070 + $0xd8] sm:$0xff]
        %v1099 = vld [vmem:[%s1070 + $0xe0] sm:$0xff]
        %v1100 = vld [vmem:[%s1070 + $0xe8] sm:$0xff]
        %v1101 = vld [vmem:[%s1070 + $0xf0] sm:$0xff]
        %v1102 = vld [vmem:[%s1070 + $0xf8] sm:$0xff]
        %v1103 = vld [vmem:[%s1070 + $0x100] sm:$0xff]
        %v1104 = vld [vmem:[%s1070 + $0x108] sm:$0xff]
        %v1105 = vld [vmem:[%s1070 + $0x110] sm:$0xff]
        %v1106 = vld [vmem:[%s1070 + $0x118] sm:$0xff]
        %v1107 = vld [vmem:[%s1070 + $0x120] sm:$0xff]
        %v1108 = vld [vmem:[%s1070 + $0x128] sm:$0xff]
        %v1109 = vld [vmem:[%s1070 + $0x130] sm:$0xff]
        %v1110 = vld [vmem:[%s1070 + $0x138] sm:$0xff]
        %v1111 = vld [vmem:[%s1070 + $0x140] sm:$0xff]
        %v1112 = vld [vmem:[%s1070 + $0x148] sm:$0xff]
        %v1113 = vld [vmem:[%s1070 + $0x150] sm:$0xff]
        %v1114 = vld [vmem:[%s1070 + $0x158] sm:$0xff]
        %v1115 = vld [vmem:[%s1070 + $0x160] sm:$0xff]
        %v1116 = vld [vmem:[%s1070 + $0x168] sm:$0xff]
        %v1117 = vld [vmem:[%s1070 + $0x170] sm:$0xff]
        %v1118 = vld [vmem:[%s1070 + $0x178] sm:$0xff]
        %v1119 = vld [vmem:[%s1070 + $0x180] sm:$0xff]
        %v1120 = vld [vmem:[%s1070 + $0x188] sm:$0xff]
        %v1121 = vld [vmem:[%s1070 + $0x190] sm:$0xff]
        %v1122 = vld [vmem:[%s1070 + $0x198] sm:$0xff]
        %v1123 = vld [vmem:[%s1070 + $0x1a0] sm:$0xff]
        %v1124 = vld [vmem:[%s1070 + $0x1a8] sm:$0xff]
        %v1125 = vld [vmem:[%s1070 + $0x1b0] sm:$0xff]
        %v1126 = vld [vmem:[%s1070 + $0x1b8] sm:$0xff]
        %v1127 = vld [vmem:[%s1070 + $0x1c0] sm:$0xff]
        %v1128 = vld [vmem:[%s1070 + $0x1c8] sm:$0xff]
        %v1129 = vld [vmem:[%s1070 + $0x1d0] sm:$0xff]
        %v1130 = vld [vmem:[%s1070 + $0x1d8] sm:$0xff]
        %v1131 = vld [vmem:[%s1070 + $0x1e0] sm:$0xff]
        %v1132 = vld [vmem:[%s1070 + $0x1e8] sm:$0xff]
        %v1133 = vld [vmem:[%s1070 + $0x1f0] sm:$0xff]
        %v1134 = vld [vmem:[%s1070 + $0x1f8] sm:$0xff]
        %v1135 = vld [vmem:[%s1070 + $0x200] sm:$0xff]
        %v1136 = vld [vmem:[%s1070 + $0x208] sm:$0xff]
        %v1137 = vld [vmem:[%s1070 + $0x210] sm:$0xff]
        %v1138 = vld [vmem:[%s1070 + $0x218] sm:$0xff]
        %v1139 = vld [vmem:[%s1070 + $0x220] sm:$0xff]
        %v1140 = vld [vmem:[%s1070 + $0x228] sm:$0xff]
        %v1141 = vld [vmem:[%s1070 + $0x230] sm:$0xff]
        %v1142 = vld [vmem:[%s1070 + $0x238] sm:$0xff]
        %v1143 = vld [vmem:[%s1070 + $0x240] sm:$0xff]
        %v1144 = vld [vmem:[%s1070 + $0x248] sm:$0xff]
        %v1145 = vld [vmem:[%s1070 + $0x250] sm:$0xff]
        %v1146 = vld [vmem:[%s1070 + $0x258] sm:$0xff]
        %v1147 = vld [vmem:[%s1070 + $0x260] sm:$0xff]
        %v1148 = vld [vmem:[%s1070 + $0x268] sm:$0xff]
        %v1149 = vld [vmem:[%s1070 + $0x270] sm:$0xff]
        %v1150 = vld [vmem:[%s1070 + $0x278] sm:$0xff]
        %v1151 = vld [vmem:[%s1070 + $0x280] sm:$0xff]
        %v1152 = vld [vmem:[%s1070 + $0x288] sm:$0xff]
        %v1153 = vld [vmem:[%s1070 + $0x290] sm:$0xff]
        %v1154 = vld [vmem:[%s1070 + $0x298] sm:$0xff]
        %v1155 = vld [vmem:[%s1070 + $0x2a0] sm:$0xff]
        %v1156 = vld [vmem:[%s1070 + $0x2a8] sm:$0xff]
        %v1157 = vld [vmem:[%s1070 + $0x2b0] sm:$0xff]
        %v1158 = vld [vmem:[%s1070 + $0x2b8] sm:$0xff]
        %v1159 = vld [vmem:[%s1070 + $0x2c0] sm:$0xff]
        %v1160 = vld [vmem:[%s1070 + $0x2c8] sm:$0xff]
        %v1161 = vld [vmem:[%s1070 + $0x2d0] sm:$0xff]
        %v1162 = vld [vmem:[%s1070 + $0x2d8] sm:$0xff]
        %v1163 = vld [vmem:[%s1070 + $0x2e0] sm:$0xff]
        %v1164 = vld [vmem:[%s1070 + $0x2e8] sm:$0xff]
        %v1165 = vld [vmem:[%s1070 + $0x2f0] sm:$0xff]
        %v1166 = vld [vmem:[%s1070 + $0x2f8] sm:$0xff]
        %v1167 = vld [vmem:[%s1070 + $0x300] sm:$0xff]
        %v1168 = vld [vmem:[%s1070 + $0x308] sm:$0xff]
        %v1169 = vld [vmem:[%s1070 + $0x310] sm:$0xff]
        %v1170 = vld [vmem:[%s1070 + $0x318] sm:$0xff]
        %v1171 = vld [vmem:[%s1070 + $0x320] sm:$0xff]
        %v1172 = vld [vmem:[%s1070 + $0x328] sm:$0xff]
        %v1173 = vld [vmem:[%s1070 + $0x330] sm:$0xff]
        %v1174 = vld [vmem:[%s1070 + $0x338] sm:$0xff]
        %v1175 = vld [vmem:[%s1070 + $0x340] sm:$0xff]
        %v1176 = vld [vmem:[%s1070 + $0x348] sm:$0xff]
        %v1177 = vld [vmem:[%s1070 + $0x350] sm:$0xff]
        %v1178 = vld [vmem:[%s1070 + $0x358] sm:$0xff]
        %v1179 = vld [vmem:[%s1070 + $0x360] sm:$0xff]
        %v1180 = vld [vmem:[%s1070 + $0x368] sm:$0xff]
        %v1181 = vld [vmem:[%s1070 + $0x370] sm:$0xff]
        %v1182 = vld [vmem:[%s1070 + $0x378] sm:$0xff]
        %v1183 = vld [vmem:[%s1070 + $0x380] sm:$0xff]
        %v1184 = vld [vmem:[%s1070 + $0x388] sm:$0xff]
        %v1185 = vld [vmem:[%s1070 + $0x390] sm:$0xff]
        %v1186 = vld [vmem:[%s1070 + $0x398] sm:$0xff]
        %v1187 = vld [vmem:[%s1070 + $0x3a0] sm:$0xff]
        %v1188 = vld [vmem:[%s1070 + $0x3a8] sm:$0xff]
        %v1189 = vld [vmem:[%s1070 + $0x3b0] sm:$0xff]
        %v1190 = vld [vmem:[%s1070 + $0x3b8] sm:$0xff]
        %v1191 = vld [vmem:[%s1070 + $0x3c0] sm:$0xff]
        %v1192 = vld [vmem:[%s1070 + $0x3c8] sm:$0xff]
        %v1193 = vld [vmem:[%s1070 + $0x3d0] sm:$0xff]
        %v1194 = vld [vmem:[%s1070 + $0x3d8] sm:$0xff]
        %v1195 = vld [vmem:[%s1070 + $0x3e0] sm:$0xff]
        %v1196 = vld [vmem:[%s1070 + $0x3e8] sm:$0xff]
        %v1197 = vld [vmem:[%s1070 + $0x3f0] sm:$0xff]
        %v1198 = vld [vmem:[%s1070 + $0x3f8] sm:$0xff]
        %s1199 = scalar_lea.vmem %s1, 2048
        %v1200 = vld [vmem:[%s1199] sm:$0xff]
        %v1201 = vld [vmem:[%s1199 + $0x8] sm:$0xff]
        %v1202 = vld [vmem:[%s1199 + $0x10] sm:$0xff]
        %v1203 = vld [vmem:[%s1199 + $0x18] sm:$0xff]
        %v1204 = vld [vmem:[%s1199 + $0x20] sm:$0xff]
        %v1205 = vld [vmem:[%s1199 + $0x28] sm:$0xff]
        %v1206 = vld [vmem:[%s1199 + $0x30] sm:$0xff]
        %v1207 = vld [vmem:[%s1199 + $0x38] sm:$0xff]
        %v1208 = vld [vmem:[%s1199 + $0x40] sm:$0xff]
        %v1209 = vld [vmem:[%s1199 + $0x48] sm:$0xff]
        %v1210 = vld [vmem:[%s1199 + $0x50] sm:$0xff]
        %v1211 = vld [vmem:[%s1199 + $0x58] sm:$0xff]
        %v1212 = vld [vmem:[%s1199 + $0x60] sm:$0xff]
        %v1213 = vld [vmem:[%s1199 + $0x68] sm:$0xff]
        %v1214 = vld [vmem:[%s1199 + $0x70] sm:$0xff]
        %v1215 = vld [vmem:[%s1199 + $0x78] sm:$0xff]
        %v1216 = vld [vmem:[%s1199 + $0x80] sm:$0xff]
        %v1217 = vld [vmem:[%s1199 + $0x88] sm:$0xff]
        %v1218 = vld [vmem:[%s1199 + $0x90] sm:$0xff]
        %v1219 = vld [vmem:[%s1199 + $0x98] sm:$0xff]
        %v1220 = vld [vmem:[%s1199 + $0xa0] sm:$0xff]
        %v1221 = vld [vmem:[%s1199 + $0xa8] sm:$0xff]
        %v1222 = vld [vmem:[%s1199 + $0xb0] sm:$0xff]
        %v1223 = vld [vmem:[%s1199 + $0xb8] sm:$0xff]
        %v1224 = vld [vmem:[%s1199 + $0xc0] sm:$0xff]
        %v1225 = vld [vmem:[%s1199 + $0xc8] sm:$0xff]
        %v1226 = vld [vmem:[%s1199 + $0xd0] sm:$0xff]
        %v1227 = vld [vmem:[%s1199 + $0xd8] sm:$0xff]
        %v1228 = vld [vmem:[%s1199 + $0xe0] sm:$0xff]
        %v1229 = vld [vmem:[%s1199 + $0xe8] sm:$0xff]
        %v1230 = vld [vmem:[%s1199 + $0xf0] sm:$0xff]
        %v1231 = vld [vmem:[%s1199 + $0xf8] sm:$0xff]
        %v1232 = vld [vmem:[%s1199 + $0x100] sm:$0xff]
        %v1233 = vld [vmem:[%s1199 + $0x108] sm:$0xff]
        %v1234 = vld [vmem:[%s1199 + $0x110] sm:$0xff]
        %v1235 = vld [vmem:[%s1199 + $0x118] sm:$0xff]
        %v1236 = vld [vmem:[%s1199 + $0x120] sm:$0xff]
        %v1237 = vld [vmem:[%s1199 + $0x128] sm:$0xff]
        %v1238 = vld [vmem:[%s1199 + $0x130] sm:$0xff]
        %v1239 = vld [vmem:[%s1199 + $0x138] sm:$0xff]
        %v1240 = vld [vmem:[%s1199 + $0x140] sm:$0xff]
        %v1241 = vld [vmem:[%s1199 + $0x148] sm:$0xff]
        %v1242 = vld [vmem:[%s1199 + $0x150] sm:$0xff]
        %v1243 = vld [vmem:[%s1199 + $0x158] sm:$0xff]
        %v1244 = vld [vmem:[%s1199 + $0x160] sm:$0xff]
        %v1245 = vld [vmem:[%s1199 + $0x168] sm:$0xff]
        %v1246 = vld [vmem:[%s1199 + $0x170] sm:$0xff]
        %v1247 = vld [vmem:[%s1199 + $0x178] sm:$0xff]
        %v1248 = vld [vmem:[%s1199 + $0x180] sm:$0xff]
        %v1249 = vld [vmem:[%s1199 + $0x188] sm:$0xff]
        %v1250 = vld [vmem:[%s1199 + $0x190] sm:$0xff]
        %v1251 = vld [vmem:[%s1199 + $0x198] sm:$0xff]
        %v1252 = vld [vmem:[%s1199 + $0x1a0] sm:$0xff]
        %v1253 = vld [vmem:[%s1199 + $0x1a8] sm:$0xff]
        %v1254 = vld [vmem:[%s1199 + $0x1b0] sm:$0xff]
        %v1255 = vld [vmem:[%s1199 + $0x1b8] sm:$0xff]
        %v1256 = vld [vmem:[%s1199 + $0x1c0] sm:$0xff]
        %v1257 = vld [vmem:[%s1199 + $0x1c8] sm:$0xff]
        %v1258 = vld [vmem:[%s1199 + $0x1d0] sm:$0xff]
        %v1259 = vld [vmem:[%s1199 + $0x1d8] sm:$0xff]
        %v1260 = vld [vmem:[%s1199 + $0x1e0] sm:$0xff]
        %v1261 = vld [vmem:[%s1199 + $0x1e8] sm:$0xff]
        %v1262 = vld [vmem:[%s1199 + $0x1f0] sm:$0xff]
        %v1263 = vld [vmem:[%s1199 + $0x1f8] sm:$0xff]
        %v1264 = vld [vmem:[%s1199 + $0x200] sm:$0xff]
        %v1265 = vld [vmem:[%s1199 + $0x208] sm:$0xff]
        %v1266 = vld [vmem:[%s1199 + $0x210] sm:$0xff]
        %v1267 = vld [vmem:[%s1199 + $0x218] sm:$0xff]
        %v1268 = vld [vmem:[%s1199 + $0x220] sm:$0xff]
        %v1269 = vld [vmem:[%s1199 + $0x228] sm:$0xff]
        %v1270 = vld [vmem:[%s1199 + $0x230] sm:$0xff]
        %v1271 = vld [vmem:[%s1199 + $0x238] sm:$0xff]
        %v1272 = vld [vmem:[%s1199 + $0x240] sm:$0xff]
        %v1273 = vld [vmem:[%s1199 + $0x248] sm:$0xff]
        %v1274 = vld [vmem:[%s1199 + $0x250] sm:$0xff]
        %v1275 = vld [vmem:[%s1199 + $0x258] sm:$0xff]
        %v1276 = vld [vmem:[%s1199 + $0x260] sm:$0xff]
        %v1277 = vld [vmem:[%s1199 + $0x268] sm:$0xff]
        %v1278 = vld [vmem:[%s1199 + $0x270] sm:$0xff]
        %v1279 = vld [vmem:[%s1199 + $0x278] sm:$0xff]
        %v1280 = vld [vmem:[%s1199 + $0x280] sm:$0xff]
        %v1281 = vld [vmem:[%s1199 + $0x288] sm:$0xff]
        %v1282 = vld [vmem:[%s1199 + $0x290] sm:$0xff]
        %v1283 = vld [vmem:[%s1199 + $0x298] sm:$0xff]
        %v1284 = vld [vmem:[%s1199 + $0x2a0] sm:$0xff]
        %v1285 = vld [vmem:[%s1199 + $0x2a8] sm:$0xff]
        %v1286 = vld [vmem:[%s1199 + $0x2b0] sm:$0xff]
        %v1287 = vld [vmem:[%s1199 + $0x2b8] sm:$0xff]
        %v1288 = vld [vmem:[%s1199 + $0x2c0] sm:$0xff]
        %v1289 = vld [vmem:[%s1199 + $0x2c8] sm:$0xff]
        %v1290 = vld [vmem:[%s1199 + $0x2d0] sm:$0xff]
        %v1291 = vld [vmem:[%s1199 + $0x2d8] sm:$0xff]
        %v1292 = vld [vmem:[%s1199 + $0x2e0] sm:$0xff]
        %v1293 = vld [vmem:[%s1199 + $0x2e8] sm:$0xff]
        %v1294 = vld [vmem:[%s1199 + $0x2f0] sm:$0xff]
        %v1295 = vld [vmem:[%s1199 + $0x2f8] sm:$0xff]
        %v1296 = vld [vmem:[%s1199 + $0x300] sm:$0xff]
        %v1297 = vld [vmem:[%s1199 + $0x308] sm:$0xff]
        %v1298 = vld [vmem:[%s1199 + $0x310] sm:$0xff]
        %v1299 = vld [vmem:[%s1199 + $0x318] sm:$0xff]
        %v1300 = vld [vmem:[%s1199 + $0x320] sm:$0xff]
        %v1301 = vld [vmem:[%s1199 + $0x328] sm:$0xff]
        %v1302 = vld [vmem:[%s1199 + $0x330] sm:$0xff]
        %v1303 = vld [vmem:[%s1199 + $0x338] sm:$0xff]
        %v1304 = vld [vmem:[%s1199 + $0x340] sm:$0xff]
        %v1305 = vld [vmem:[%s1199 + $0x348] sm:$0xff]
        %v1306 = vld [vmem:[%s1199 + $0x350] sm:$0xff]
        %v1307 = vld [vmem:[%s1199 + $0x358] sm:$0xff]
        %v1308 = vld [vmem:[%s1199 + $0x360] sm:$0xff]
        %v1309 = vld [vmem:[%s1199 + $0x368] sm:$0xff]
        %v1310 = vld [vmem:[%s1199 + $0x370] sm:$0xff]
        %v1311 = vld [vmem:[%s1199 + $0x378] sm:$0xff]
        %v1312 = vld [vmem:[%s1199 + $0x380] sm:$0xff]
        %v1313 = vld [vmem:[%s1199 + $0x388] sm:$0xff]
        %v1314 = vld [vmem:[%s1199 + $0x390] sm:$0xff]
        %v1315 = vld [vmem:[%s1199 + $0x398] sm:$0xff]
        %v1316 = vld [vmem:[%s1199 + $0x3a0] sm:$0xff]
        %v1317 = vld [vmem:[%s1199 + $0x3a8] sm:$0xff]
        %v1318 = vld [vmem:[%s1199 + $0x3b0] sm:$0xff]
        %v1319 = vld [vmem:[%s1199 + $0x3b8] sm:$0xff]
        %v1320 = vld [vmem:[%s1199 + $0x3c0] sm:$0xff]
        %v1321 = vld [vmem:[%s1199 + $0x3c8] sm:$0xff]
        %v1322 = vld [vmem:[%s1199 + $0x3d0] sm:$0xff]
        %v1323 = vld [vmem:[%s1199 + $0x3d8] sm:$0xff]
        %v1324 = vld [vmem:[%s1199 + $0x3e0] sm:$0xff]
        %v1325 = vld [vmem:[%s1199 + $0x3e8] sm:$0xff]
        %v1326 = vld [vmem:[%s1199 + $0x3f0] sm:$0xff]
        %v1327 = vld [vmem:[%s1199 + $0x3f8] sm:$0xff]
        %v1328 = vld [vmem:[%s6] sm:$0xf]
        %v1329 = vld [vmem:[%s11] sm:$0xff]
        %v1330 = vld [vmem:[%s11 + $0x8] sm:$0xff]
        %v1331 = vld [vmem:[%s11 + $0x10] sm:$0xff]
        %v1332 = vld [vmem:[%s11 + $0x18] sm:$0xff]
        %v1333 = vld [vmem:[%s11 + $0x20] sm:$0xff]
        %v1334 = vld [vmem:[%s11 + $0x28] sm:$0xff]
        %v1335 = vld [vmem:[%s11 + $0x30] sm:$0xff]
        %v1336 = vld [vmem:[%s11 + $0x38] sm:$0xff]
        %v1337 = vld [vmem:[%s11 + $0x40] sm:$0xff]
        %v1338 = vld [vmem:[%s11 + $0x48] sm:$0xff]
        %v1339 = vld [vmem:[%s11 + $0x50] sm:$0xff]
        %v1340 = vld [vmem:[%s11 + $0x58] sm:$0xff]
        %v1341 = vld [vmem:[%s11 + $0x60] sm:$0xff]
        %v1342 = vld [vmem:[%s11 + $0x68] sm:$0xff]
        %v1343 = vld [vmem:[%s11 + $0x70] sm:$0xff]
        %v1344 = vld [vmem:[%s11 + $0x78] sm:$0xff]
        %v1345 = vld [vmem:[%s11 + $0x80] sm:$0xff]
        %v1346 = vld [vmem:[%s11 + $0x88] sm:$0xff]
        %v1347 = vld [vmem:[%s11 + $0x90] sm:$0xff]
        %v1348 = vld [vmem:[%s11 + $0x98] sm:$0xff]
        %v1349 = vld [vmem:[%s11 + $0xa0] sm:$0xff]
        %v1350 = vld [vmem:[%s11 + $0xa8] sm:$0xff]
        %v1351 = vld [vmem:[%s11 + $0xb0] sm:$0xff]
        %v1352 = vld [vmem:[%s11 + $0xb8] sm:$0xff]
        %v1353 = vld [vmem:[%s11 + $0xc0] sm:$0xff]
        %v1354 = vld [vmem:[%s11 + $0xc8] sm:$0xff]
        %v1355 = vld [vmem:[%s11 + $0xd0] sm:$0xff]
        %v1356 = vld [vmem:[%s11 + $0xd8] sm:$0xff]
        %v1357 = vld [vmem:[%s11 + $0xe0] sm:$0xff]
        %v1358 = vld [vmem:[%s11 + $0xe8] sm:$0xff]
        %v1359 = vld [vmem:[%s11 + $0xf0] sm:$0xff]
        %v1360 = vld [vmem:[%s11 + $0xf8] sm:$0xff]
        %v1361 = vld [vmem:[%s11 + $0x100] sm:$0xff]
        %v1362 = vld [vmem:[%s11 + $0x108] sm:$0xff]
        %v1363 = vld [vmem:[%s11 + $0x110] sm:$0xff]
        %v1364 = vld [vmem:[%s11 + $0x118] sm:$0xff]
        %v1365 = vld [vmem:[%s11 + $0x120] sm:$0xff]
        %v1366 = vld [vmem:[%s11 + $0x128] sm:$0xff]
        %v1367 = vld [vmem:[%s11 + $0x130] sm:$0xff]
        %v1368 = vld [vmem:[%s11 + $0x138] sm:$0xff]
        %v1369 = vld [vmem:[%s11 + $0x140] sm:$0xff]
        %v1370 = vld [vmem:[%s11 + $0x148] sm:$0xff]
        %v1371 = vld [vmem:[%s11 + $0x150] sm:$0xff]
        %v1372 = vld [vmem:[%s11 + $0x158] sm:$0xff]
        %v1373 = vld [vmem:[%s11 + $0x160] sm:$0xff]
        %v1374 = vld [vmem:[%s11 + $0x168] sm:$0xff]
        %v1375 = vld [vmem:[%s11 + $0x170] sm:$0xff]
        %v1376 = vld [vmem:[%s11 + $0x178] sm:$0xff]
        %v1377 = vld [vmem:[%s11 + $0x180] sm:$0xff]
        %v1378 = vld [vmem:[%s11 + $0x188] sm:$0xff]
        %v1379 = vld [vmem:[%s11 + $0x190] sm:$0xff]
        %v1380 = vld [vmem:[%s11 + $0x198] sm:$0xff]
        %v1381 = vld [vmem:[%s11 + $0x1a0] sm:$0xff]
        %v1382 = vld [vmem:[%s11 + $0x1a8] sm:$0xff]
        %v1383 = vld [vmem:[%s11 + $0x1b0] sm:$0xff]
        %v1384 = vld [vmem:[%s11 + $0x1b8] sm:$0xff]
        %v1385 = vld [vmem:[%s11 + $0x1c0] sm:$0xff]
        %v1386 = vld [vmem:[%s11 + $0x1c8] sm:$0xff]
        %v1387 = vld [vmem:[%s11 + $0x1d0] sm:$0xff]
        %v1388 = vld [vmem:[%s11 + $0x1d8] sm:$0xff]
        %v1389 = vld [vmem:[%s11 + $0x1e0] sm:$0xff]
        %v1390 = vld [vmem:[%s11 + $0x1e8] sm:$0xff]
        %v1391 = vld [vmem:[%s11 + $0x1f0] sm:$0xff]
        %v1392 = vld [vmem:[%s11 + $0x1f8] sm:$0xff]
        %v1393 = vld [vmem:[%s11 + $0x200] sm:$0xff]
        %v1394 = vld [vmem:[%s11 + $0x208] sm:$0xff]
        %v1395 = vld [vmem:[%s11 + $0x210] sm:$0xff]
        %v1396 = vld [vmem:[%s11 + $0x218] sm:$0xff]
        %v1397 = vld [vmem:[%s11 + $0x220] sm:$0xff]
        %v1398 = vld [vmem:[%s11 + $0x228] sm:$0xff]
        %v1399 = vld [vmem:[%s11 + $0x230] sm:$0xff]
        %v1400 = vld [vmem:[%s11 + $0x238] sm:$0xff]
        %v1401 = vld [vmem:[%s11 + $0x240] sm:$0xff]
        %v1402 = vld [vmem:[%s11 + $0x248] sm:$0xff]
        %v1403 = vld [vmem:[%s11 + $0x250] sm:$0xff]
        %v1404 = vld [vmem:[%s11 + $0x258] sm:$0xff]
        %v1405 = vld [vmem:[%s11 + $0x260] sm:$0xff]
        %v1406 = vld [vmem:[%s11 + $0x268] sm:$0xff]
        %v1407 = vld [vmem:[%s11 + $0x270] sm:$0xff]
        %v1408 = vld [vmem:[%s11 + $0x278] sm:$0xff]
        %v1409 = vld [vmem:[%s11 + $0x280] sm:$0xff]
        %v1410 = vld [vmem:[%s11 + $0x288] sm:$0xff]
        %v1411 = vld [vmem:[%s11 + $0x290] sm:$0xff]
        %v1412 = vld [vmem:[%s11 + $0x298] sm:$0xff]
        %v1413 = vld [vmem:[%s11 + $0x2a0] sm:$0xff]
        %v1414 = vld [vmem:[%s11 + $0x2a8] sm:$0xff]
        %v1415 = vld [vmem:[%s11 + $0x2b0] sm:$0xff]
        %v1416 = vld [vmem:[%s11 + $0x2b8] sm:$0xff]
        %v1417 = vld [vmem:[%s11 + $0x2c0] sm:$0xff]
        %v1418 = vld [vmem:[%s11 + $0x2c8] sm:$0xff]
        %v1419 = vld [vmem:[%s11 + $0x2d0] sm:$0xff]
        %v1420 = vld [vmem:[%s11 + $0x2d8] sm:$0xff]
        %v1421 = vld [vmem:[%s11 + $0x2e0] sm:$0xff]
        %v1422 = vld [vmem:[%s11 + $0x2e8] sm:$0xff]
        %v1423 = vld [vmem:[%s11 + $0x2f0] sm:$0xff]
        %v1424 = vld [vmem:[%s11 + $0x2f8] sm:$0xff]
        %v1425 = vld [vmem:[%s11 + $0x300] sm:$0xff]
        %v1426 = vld [vmem:[%s11 + $0x308] sm:$0xff]
        %v1427 = vld [vmem:[%s11 + $0x310] sm:$0xff]
        %v1428 = vld [vmem:[%s11 + $0x318] sm:$0xff]
        %v1429 = vld [vmem:[%s11 + $0x320] sm:$0xff]
        %v1430 = vld [vmem:[%s11 + $0x328] sm:$0xff]
        %v1431 = vld [vmem:[%s11 + $0x330] sm:$0xff]
        %v1432 = vld [vmem:[%s11 + $0x338] sm:$0xff]
        %v1433 = vld [vmem:[%s11 + $0x340] sm:$0xff]
        %v1434 = vld [vmem:[%s11 + $0x348] sm:$0xff]
        %v1435 = vld [vmem:[%s11 + $0x350] sm:$0xff]
        %v1436 = vld [vmem:[%s11 + $0x358] sm:$0xff]
        %v1437 = vld [vmem:[%s11 + $0x360] sm:$0xff]
        %v1438 = vld [vmem:[%s11 + $0x368] sm:$0xff]
        %v1439 = vld [vmem:[%s11 + $0x370] sm:$0xff]
        %v1440 = vld [vmem:[%s11 + $0x378] sm:$0xff]
        %v1441 = vld [vmem:[%s11 + $0x380] sm:$0xff]
        %v1442 = vld [vmem:[%s11 + $0x388] sm:$0xff]
        %v1443 = vld [vmem:[%s11 + $0x390] sm:$0xff]
        %v1444 = vld [vmem:[%s11 + $0x398] sm:$0xff]
        %v1445 = vld [vmem:[%s11 + $0x3a0] sm:$0xff]
        %v1446 = vld [vmem:[%s11 + $0x3a8] sm:$0xff]
        %v1447 = vld [vmem:[%s11 + $0x3b0] sm:$0xff]
        %v1448 = vld [vmem:[%s11 + $0x3b8] sm:$0xff]
        %v1449 = vld [vmem:[%s11 + $0x3c0] sm:$0xff]
        %v1450 = vld [vmem:[%s11 + $0x3c8] sm:$0xff]
        %v1451 = vld [vmem:[%s11 + $0x3d0] sm:$0xff]
        %v1452 = vld [vmem:[%s11 + $0x3d8] sm:$0xff]
        %v1453 = vld [vmem:[%s11 + $0x3e0] sm:$0xff]
        %v1454 = vld [vmem:[%s11 + $0x3e8] sm:$0xff]
        %v1455 = vld [vmem:[%s11 + $0x3f0] sm:$0xff]
        %v1456 = vld [vmem:[%s11 + $0x3f8] sm:$0xff]
        %v1457 = vld [vmem:[#allocation2] sm:$0x80]
        %v1458 = vld [vmem:[#allocation2 + $0x8] sm:$0x80]
        %v1459 = vld [vmem:[#allocation2 + $0x10] sm:$0xff]
        %v1460 = vld [vmem:[#allocation2 + $0x18] sm:$0xff]
        %v1461 = vld [vmem:[#allocation2 + $0x20] sm:$0xff]
        %v1462 = vld [vmem:[#allocation2 + $0x28] sm:$0xff]
        %v1463 = vld [vmem:[#allocation2 + $0x30] sm:$0xff]
        %v1464 = vld [vmem:[#allocation2 + $0x38] sm:$0xff]
        %v1465 = vld [vmem:[#allocation2 + $0x40] sm:$0x7f]
        %v1466 = vld [vmem:[#allocation2 + $0x48] sm:$0x7f]
        %v1467 = vld [vmem:[#allocation2 + $0x40] sm:$0xff]
        %v1468 = vld [vmem:[#allocation2 + $0x48] sm:$0xff]
        %1469 = vmatprep.subr.mxu0 %v1072
        %1470 = vmatpush1.msra.mxu0 %v1071
        %1471 = vmatprep.subr.mxu0 %v1076
        %1472 = vmatpush1.msra.mxu0 %v1075
        %1473 = vmatprep.subr.mxu0 %v1080
        %1474 = vmatpush1.msra.mxu0 %v1079
        %1475 = vmatprep.subr.mxu0 %v1084
        %1476 = vmatpush1.msra.mxu0 %v1083
        %1477 = vmatprep.subr.mxu0 %v1088
        %1478 = vmatpush1.msra.mxu0 %v1087
        %1479 = vmatprep.subr.mxu0 %v1092
        %1480 = vmatpush1.msra.mxu0 %v1091
        %1481 = vmatprep.subr.mxu0 %v1096
        %1482 = vmatpush1.msra.mxu0 %v1095
        %1483 = vmatprep.subr.mxu0 %v1100
        %1484 = vmatpush1.msra.mxu0 %v1099
        %1485 = vmatprep.subr.mxu0 %v1104
        %1486 = vmatpush1.msra.mxu0 %v1103
        %1487 = vmatprep.subr.mxu0 %v1108
        %1488 = vmatpush1.msra.mxu0 %v1107
        %1489 = vmatprep.subr.mxu0 %v1112
        %1490 = vmatpush1.msra.mxu0 %v1111
        %1491 = vmatprep.subr.mxu0 %v1116
        %1492 = vmatpush1.msra.mxu0 %v1115
        %1493 = vmatprep.subr.mxu0 %v1120
        %1494 = vmatpush1.msra.mxu0 %v1119
        %1495 = vmatprep.subr.mxu0 %v1124
        %1496 = vmatpush1.msra.mxu0 %v1123
        %1497 = vmatprep.subr.mxu0 %v1128
        %1498 = vmatpush1.msra.mxu0 %v1127
        %1499 = vmatprep.subr.mxu0 %v1132
        %1500 = vmatpush1.msra.mxu0 %v1131
        %1501 = vmatprep.subr.mxu0 %v1136
        %1502 = vmatpush1.msra.mxu0 %v1135
        %1503 = vmatprep.subr.mxu0 %v1140
        %1504 = vmatpush1.msra.mxu0 %v1139
        %1505 = vmatprep.subr.mxu0 %v1144
        %1506 = vmatpush1.msra.mxu0 %v1143
        %1507 = vmatprep.subr.mxu0 %v1148
        %1508 = vmatpush1.msra.mxu0 %v1147
        %1509 = vmatprep.subr.mxu0 %v1152
        %1510 = vmatpush1.msra.mxu0 %v1151
        %1511 = vmatprep.subr.mxu0 %v1156
        %1512 = vmatpush1.msra.mxu0 %v1155
        %1513 = vmatprep.subr.mxu0 %v1160
        %1514 = vmatpush1.msra.mxu0 %v1159
        %1515 = vmatprep.subr.mxu0 %v1164
        %1516 = vmatpush1.msra.mxu0 %v1163
        %1517 = vmatprep.subr.mxu0 %v1168
        %1518 = vmatpush1.msra.mxu0 %v1167
        %1519 = vmatprep.subr.mxu0 %v1172
        %1520 = vmatpush1.msra.mxu0 %v1171
        %1521 = vmatprep.subr.mxu0 %v1176
        %1522 = vmatpush1.msra.mxu0 %v1175
        %1523 = vmatprep.subr.mxu0 %v1180
        %1524 = vmatpush1.msra.mxu0 %v1179
        %1525 = vmatprep.subr.mxu0 %v1184
        %1526 = vmatpush1.msra.mxu0 %v1183
        %1527 = vmatprep.subr.mxu0 %v1188
        %1528 = vmatpush1.msra.mxu0 %v1187
        %1529 = vmatprep.subr.mxu0 %v1192
        %1530 = vmatpush1.msra.mxu0 %v1191
        %1531 = vmatprep.subr.mxu0 %v1196
        %1532 = vmatpush1.msra.mxu0 %v1195
        %1533 = vmatprep.mubr.f32.mxu0 %v1460
        %1534 = vmatmul.mubr.f32.gmra.mrb[0].mxu0 %v1459
        %v1535 = vpop.f32.mrb[0].mxu0
        %v1536 = vadd.f32 0.0, %v1535
        %v1537 = vpop.f32.mrb[0].mxu0
        %v1538 = vadd.f32 0.0, %v1537
        %1539 = vmatprep.mubr.f32.mxu0 %v1462
        %1540 = vmatmul.mubr.f32.gmra.mrb[0].mxu0 %v1461
        %v1541 = vpop.f32.mrb[0].mxu0
        %v1542 = vadd.f32 0.0, %v1541
        %v1543 = vpop.f32.mrb[0].mxu0
        %v1544 = vadd.f32 0.0, %v1543
        %1545 = vmatprep.mubr.f32.mxu0 %v1464
        %1546 = vmatmul.mubr.f32.gmra.mrb[0].mxu0 %v1463
        %v1547 = vpop.f32.mrb[0].mxu0
        %v1548 = vadd.f32 0.0, %v1547
        %v1549 = vpop.f32.mrb[0].mxu0
        %v1550 = vadd.f32 0.0, %v1549
        %1551 = vmatprep.mubr.f32.mxu0 %v1468
        %1552 = vmatmul.mubr.f32.gmra.mrb[0].mxu0 %v1467
        %v1553 = vpop.f32.mrb[0].mxu0
        %v1554 = vadd.f32 0.0, %v1553
        %v1555 = vpop.f32.mrb[0].mxu0
        %v1556 = vadd.f32 0.0, %v1555
        %1557 = vdwg.mxu0
        %1558 = vmatprep.subr.mxu0 %v1074
        %1559 = vmatpush1.msra.mxu0 %v1073
        %1560 = vmatprep.subr.mxu0 %v1078
        %1561 = vmatpush1.msra.mxu0 %v1077
        %1562 = vmatprep.subr.mxu0 %v1082
        %1563 = vmatpush1.msra.mxu0 %v1081
        %1564 = vmatprep.subr.mxu0 %v1086
        %1565 = vmatpush1.msra.mxu0 %v1085
        %1566 = vmatprep.subr.mxu0 %v1090
        %1567 = vmatpush1.msra.mxu0 %v1089
        %1568 = vmatprep.subr.mxu0 %v1094
        %1569 = vmatpush1.msra.mxu0 %v1093
        %1570 = vmatprep.subr.mxu0 %v1098
        %1571 = vmatpush1.msra.mxu0 %v1097
        %1572 = vmatprep.subr.mxu0 %v1102
        %1573 = vmatpush1.msra.mxu0 %v1101
        %1574 = vmatprep.subr.mxu0 %v1106
        %1575 = vmatpush1.msra.mxu0 %v1105
        %1576 = vmatprep.subr.mxu0 %v1110
        %1577 = vmatpush1.msra.mxu0 %v1109
        %1578 = vmatprep.subr.mxu0 %v1114
        %1579 = vmatpush1.msra.mxu0 %v1113
        %1580 = vmatprep.subr.mxu0 %v1118
        %1581 = vmatpush1.msra.mxu0 %v1117
        %1582 = vmatprep.subr.mxu0 %v1122
        %1583 = vmatpush1.msra.mxu0 %v1121
        %1584 = vmatprep.subr.mxu0 %v1126
        %1585 = vmatpush1.msra.mxu0 %v1125
        %1586 = vmatprep.subr.mxu0 %v1130
        %1587 = vmatpush1.msra.mxu0 %v1129
        %1588 = vmatprep.subr.mxu0 %v1134
        %1589 = vmatpush1.msra.mxu0 %v1133
        %1590 = vmatprep.subr.mxu0 %v1138
        %1591 = vmatpush1.msra.mxu0 %v1137
        %1592 = vmatprep.subr.mxu0 %v1142
        %1593 = vmatpush1.msra.mxu0 %v1141
        %1594 = vmatprep.subr.mxu0 %v1146
        %1595 = vmatpush1.msra.mxu0 %v1145
        %1596 = vmatprep.subr.mxu0 %v1150
        %1597 = vmatpush1.msra.mxu0 %v1149
        %1598 = vmatprep.subr.mxu0 %v1154
        %1599 = vmatpush1.msra.mxu0 %v1153
        %1600 = vmatprep.subr.mxu0 %v1158
        %1601 = vmatpush1.msra.mxu0 %v1157
        %1602 = vmatprep.subr.mxu0 %v1162
        %1603 = vmatpush1.msra.mxu0 %v1161
        %1604 = vmatprep.subr.mxu0 %v1166
        %1605 = vmatpush1.msra.mxu0 %v1165
        %1606 = vmatprep.subr.mxu0 %v1170
        %1607 = vmatpush1.msra.mxu0 %v1169
        %1608 = vmatprep.subr.mxu0 %v1174
        %1609 = vmatpush1.msra.mxu0 %v1173
        %1610 = vmatprep.subr.mxu0 %v1178
        %1611 = vmatpush1.msra.mxu0 %v1177
        %1612 = vmatprep.subr.mxu0 %v1182
        %1613 = vmatpush1.msra.mxu0 %v1181
        %1614 = vmatprep.subr.mxu0 %v1186
        %1615 = vmatpush1.msra.mxu0 %v1185
        %1616 = vmatprep.subr.mxu0 %v1190
        %1617 = vmatpush1.msra.mxu0 %v1189
        %1618 = vmatprep.subr.mxu0 %v1194
        %1619 = vmatpush1.msra.mxu0 %v1193
        %1620 = vmatprep.subr.mxu0 %v1198
        %1621 = vmatpush1.msra.mxu0 %v1197
        %1622 = vmatprep.mubr.f32.mxu0 %v1460
        %1623 = vmatmul.mubr.f32.gmra.mrb[0].mxu0 %v1459
        %v1624 = vpop.f32.mrb[0].mxu0
        %v1625 = vadd.f32 0.0, %v1624
        %v1626 = vpop.f32.mrb[0].mxu0
        %v1627 = vadd.f32 0.0, %v1626
        %1628 = vmatprep.mubr.f32.mxu0 %v1462
        %1629 = vmatmul.mubr.f32.gmra.mrb[0].mxu0 %v1461
        %v1630 = vpop.f32.mrb[0].mxu0
        %v1631 = vadd.f32 0.0, %v1630
        %v1632 = vpop.f32.mrb[0].mxu0
        %v1633 = vadd.f32 0.0, %v1632
        %1634 = vmatprep.mubr.f32.mxu0 %v1464
        %1635 = vmatmul.mubr.f32.gmra.mrb[0].mxu0 %v1463
        %v1636 = vpop.f32.mrb[0].mxu0
        %v1637 = vadd.f32 0.0, %v1636
        %v1638 = vpop.f32.mrb[0].mxu0
        %v1639 = vadd.f32 0.0, %v1638
        %1640 = vmatprep.mubr.f32.mxu0 %v1468
        %1641 = vmatmul.mubr.f32.gmra.mrb[0].mxu0 %v1467
        %v1642 = vpop.f32.mrb[0].mxu0
        %v1643 = vadd.f32 0.0, %v1642
        %v1644 = vpop.f32.mrb[0].mxu0
        %v1645 = vadd.f32 0.0, %v1644
        %1646 = vdwg.mxu0
        %vm1657 = vcmask 1040384
        %v1658 = vrot.slane %v1457, 7
        %v1659 = vrot.slane %v1459, 7
        %v1660 = vsel %vm1657, %v1658, %v1659
        %v1661 = vrot.slane %v1458, 7
        %v1662 = vrot.slane %v1460, 7
        %v1663 = vsel %vm1657, %v1661, %v1662
        %v1664 = vrot.slane %v1461, 7
        %v1665 = vsel %vm1657, %v1659, %v1664
        %v1666 = vrot.slane %v1462, 7
        %v1667 = vsel %vm1657, %v1662, %v1666
        %v1668 = vrot.slane %v1463, 7
        %v1669 = vsel %vm1657, %v1664, %v1668
        %v1670 = vrot.slane %v1464, 7
        %v1671 = vsel %vm1657, %v1666, %v1670
        %v1672 = vrot.slane %v1465, 7
        %v1673 = vsel %vm1657, %v1668, %v1672
        %v1674 = vrot.slane %v1466, 7
        %v1675 = vsel %vm1657, %v1670, %v1674
        %1684 = vmatprep.subr.mxu0 %v943
        %1685 = vmatpush1.msra.mxu0 %v942
        %1686 = vmatprep.subr.mxu0 %v947
        %1687 = vmatpush1.msra.mxu0 %v946
        %1688 = vmatprep.subr.mxu0 %v951
        %1689 = vmatpush1.msra.mxu0 %v950
        %1690 = vmatprep.subr.mxu0 %v955
        %1691 = vmatpush1.msra.mxu0 %v954
        %1692 = vmatprep.subr.mxu0 %v959
        %1693 = vmatpush1.msra.mxu0 %v958
        %1694 = vmatprep.subr.mxu0 %v963
        %1695 = vmatpush1.msra.mxu0 %v962
        %1696 = vmatprep.subr.mxu0 %v967
        %1697 = vmatpush1.msra.mxu0 %v966
        %1698 = vmatprep.subr.mxu0 %v971
        %1699 = vmatpush1.msra.mxu0 %v970
        %1700 = vmatprep.subr.mxu0 %v975
        %1701 = vmatpush1.msra.mxu0 %v974
        %1702 = vmatprep.subr.mxu0 %v979
        %1703 = vmatpush1.msra.mxu0 %v978
        %1704 = vmatprep.subr.mxu0 %v983
        %1705 = vmatpush1.msra.mxu0 %v982
        %1706 = vmatprep.subr.mxu0 %v987
        %1707 = vmatpush1.msra.mxu0 %v986
        %1708 = vmatprep.subr.mxu0 %v991
        %1709 = vmatpush1.msra.mxu0 %v990
        %1710 = vmatprep.subr.mxu0 %v995
        %1711 = vmatpush1.msra.mxu0 %v994
        %1712 = vmatprep.subr.mxu0 %v999
        %1713 = vmatpush1.msra.mxu0 %v998
        %1714 = vmatprep.subr.mxu0 %v1003
        %1715 = vmatpush1.msra.mxu0 %v1002
        %1716 = vmatprep.subr.mxu0 %v1007
        %1717 = vmatpush1.msra.mxu0 %v1006
        %1718 = vmatprep.subr.mxu0 %v1011
        %1719 = vmatpush1.msra.mxu0 %v1010
        %1720 = vmatprep.subr.mxu0 %v1015
        %1721 = vmatpush1.msra.mxu0 %v1014
        %1722 = vmatprep.subr.mxu0 %v1019
        %1723 = vmatpush1.msra.mxu0 %v1018
        %1724 = vmatprep.subr.mxu0 %v1023
        %1725 = vmatpush1.msra.mxu0 %v1022
        %1726 = vmatprep.subr.mxu0 %v1027
        %1727 = vmatpush1.msra.mxu0 %v1026
        %1728 = vmatprep.subr.mxu0 %v1031
        %1729 = vmatpush1.msra.mxu0 %v1030
        %1730 = vmatprep.subr.mxu0 %v1035
        %1731 = vmatpush1.msra.mxu0 %v1034
        %1732 = vmatprep.subr.mxu0 %v1039
        %1733 = vmatpush1.msra.mxu0 %v1038
        %1734 = vmatprep.subr.mxu0 %v1043
        %1735 = vmatpush1.msra.mxu0 %v1042
        %1736 = vmatprep.subr.mxu0 %v1047
        %1737 = vmatpush1.msra.mxu0 %v1046
        %1738 = vmatprep.subr.mxu0 %v1051
        %1739 = vmatpush1.msra.mxu0 %v1050
        %1740 = vmatprep.subr.mxu0 %v1055
        %1741 = vmatpush1.msra.mxu0 %v1054
        %1742 = vmatprep.subr.mxu0 %v1059
        %1743 = vmatpush1.msra.mxu0 %v1058
        %1744 = vmatprep.subr.mxu0 %v1063
        %1745 = vmatpush1.msra.mxu0 %v1062
        %1746 = vmatprep.subr.mxu0 %v1067
        %1747 = vmatpush1.msra.mxu0 %v1066
        %1748 = vmatprep.mubr.f32.mxu0 %v1663
        %1749 = vmatmul.mubr.f32.gmra.mrb[0].mxu0 %v1660
        %v1750 = vpop.f32.mrb[0].mxu0
        %v1751 = vadd.f32 %v1536, %v1750
        %v1752 = vpop.f32.mrb[0].mxu0
        %v1753 = vadd.f32 %v1538, %v1752
        %1754 = vmatprep.mubr.f32.mxu0 %v1667
        %1755 = vmatmul.mubr.f32.gmra.mrb[0].mxu0 %v1665
        %v1756 = vpop.f32.mrb[0].mxu0
        %v1757 = vadd.f32 %v1542, %v1756
        %v1758 = vpop.f32.mrb[0].mxu0
        %v1759 = vadd.f32 %v1544, %v1758
        %1760 = vmatprep.mubr.f32.mxu0 %v1671
        %1761 = vmatmul.mubr.f32.gmra.mrb[0].mxu0 %v1669
        %v1762 = vpop.f32.mrb[0].mxu0
        %v1763 = vadd.f32 %v1548, %v1762
        %v1764 = vpop.f32.mrb[0].mxu0
        %v1765 = vadd.f32 %v1550, %v1764
        %1766 = vmatprep.mubr.f32.mxu0 %v1675
        %1767 = vmatmul.mubr.f32.gmra.mrb[0].mxu0 %v1673
        %v1768 = vpop.f32.mrb[0].mxu0
        %v1769 = vadd.f32 %v1554, %v1768
        %v1770 = vpop.f32.mrb[0].mxu0
        %v1771 = vadd.f32 %v1556, %v1770
        %1772 = vdwg.mxu0
        %1773 = vmatprep.subr.mxu0 %v945
        %1774 = vmatpush1.msra.mxu0 %v944
        %1775 = vmatprep.subr.mxu0 %v949
        %1776 = vmatpush1.msra.mxu0 %v948
        %1777 = vmatprep.subr.mxu0 %v953
        %1778 = vmatpush1.msra.mxu0 %v952
        %1779 = vmatprep.subr.mxu0 %v957
        %1780 = vmatpush1.msra.mxu0 %v956
        %1781 = vmatprep.subr.mxu0 %v961
        %1782 = vmatpush1.msra.mxu0 %v960
        %1783 = vmatprep.subr.mxu0 %v965
        %1784 = vmatpush1.msra.mxu0 %v964
        %1785 = vmatprep.subr.mxu0 %v969
        %1786 = vmatpush1.msra.mxu0 %v968
        %1787 = vmatprep.subr.mxu0 %v973
        %1788 = vmatpush1.msra.mxu0 %v972
        %1789 = vmatprep.subr.mxu0 %v977
        %1790 = vmatpush1.msra.mxu0 %v976
        %1791 = vmatprep.subr.mxu0 %v981
        %1792 = vmatpush1.msra.mxu0 %v980
        %1793 = vmatprep.subr.mxu0 %v985
        %1794 = vmatpush1.msra.mxu0 %v984
        %1795 = vmatprep.subr.mxu0 %v989
        %1796 = vmatpush1.msra.mxu0 %v988
        %1797 = vmatprep.subr.mxu0 %v993
        %1798 = vmatpush1.msra.mxu0 %v992
        %1799 = vmatprep.subr.mxu0 %v997
        %1800 = vmatpush1.msra.mxu0 %v996
        %1801 = vmatprep.subr.mxu0 %v1001
        %1802 = vmatpush1.msra.mxu0 %v1000
        %1803 = vmatprep.subr.mxu0 %v1005
        %1804 = vmatpush1.msra.mxu0 %v1004
        %1805 = vmatprep.subr.mxu0 %v1009
        %1806 = vmatpush1.msra.mxu0 %v1008
        %1807 = vmatprep.subr.mxu0 %v1013
        %1808 = vmatpush1.msra.mxu0 %v1012
        %1809 = vmatprep.subr.mxu0 %v1017
        %1810 = vmatpush1.msra.mxu0 %v1016
        %1811 = vmatprep.subr.mxu0 %v1021
        %1812 = vmatpush1.msra.mxu0 %v1020
        %1813 = vmatprep.subr.mxu0 %v1025
        %1814 = vmatpush1.msra.mxu0 %v1024
        %1815 = vmatprep.subr.mxu0 %v1029
        %1816 = vmatpush1.msra.mxu0 %v1028
        %1817 = vmatprep.subr.mxu0 %v1033
        %1818 = vmatpush1.msra.mxu0 %v1032
        %1819 = vmatprep.subr.mxu0 %v1037
        %1820 = vmatpush1.msra.mxu0 %v1036
        %1821 = vmatprep.subr.mxu0 %v1041
        %1822 = vmatpush1.msra.mxu0 %v1040
        %1823 = vmatprep.subr.mxu0 %v1045
        %1824 = vmatpush1.msra.mxu0 %v1044
        %1825 = vmatprep.subr.mxu0 %v1049
        %1826 = vmatpush1.msra.mxu0 %v1048
        %1827 = vmatprep.subr.mxu0 %v1053
        %1828 = vmatpush1.msra.mxu0 %v1052
        %1829 = vmatprep.subr.mxu0 %v1057
        %1830 = vmatpush1.msra.mxu0 %v1056
        %1831 = vmatprep.subr.mxu0 %v1061
        %1832 = vmatpush1.msra.mxu0 %v1060
        %1833 = vmatprep.subr.mxu0 %v1065
        %1834 = vmatpush1.msra.mxu0 %v1064
        %1835 = vmatprep.subr.mxu0 %v1069
        %1836 = vmatpush1.msra.mxu0 %v1068
        %1837 = vmatprep.mubr.f32.mxu0 %v1663
        %1838 = vmatmul.mubr.f32.gmra.mrb[0].mxu0 %v1660
        %v1839 = vpop.f32.mrb[0].mxu0
        %v1840 = vadd.f32 %v1625, %v1839
        %v1841 = vpop.f32.mrb[0].mxu0
        %v1842 = vadd.f32 %v1627, %v1841
        %1843 = vmatprep.mubr.f32.mxu0 %v1667
        %1844 = vmatmul.mubr.f32.gmra.mrb[0].mxu0 %v1665
        %v1845 = vpop.f32.mrb[0].mxu0
        %v1846 = vadd.f32 %v1631, %v1845
        %v1847 = vpop.f32.mrb[0].mxu0
        %v1848 = vadd.f32 %v1633, %v1847
        %1849 = vmatprep.mubr.f32.mxu0 %v1671
        %1850 = vmatmul.mubr.f32.gmra.mrb[0].mxu0 %v1669
        %v1851 = vpop.f32.mrb[0].mxu0
        %v1852 = vadd.f32 %v1637, %v1851
        %v1853 = vpop.f32.mrb[0].mxu0
        %v1854 = vadd.f32 %v1639, %v1853
        %1855 = vmatprep.mubr.f32.mxu0 %v1675
        %1856 = vmatmul.mubr.f32.gmra.mrb[0].mxu0 %v1673
        %v1857 = vpop.f32.mrb[0].mxu0
        %v1858 = vadd.f32 %v1643, %v1857
        %v1859 = vpop.f32.mrb[0].mxu0
        %v1860 = vadd.f32 %v1645, %v1859
        %1861 = vdwg.mxu0
        %v1862 = vld [vmem:[#allocation2 + $0x10] sm:$0xfe]
        %v1863 = vld [vmem:[#allocation2 + $0x18] sm:$0xfe]
        %v1864 = vld [vmem:[#allocation2 + $0x20] sm:$0xff]
        %v1865 = vld [vmem:[#allocation2 + $0x28] sm:$0xff]
        %v1866 = vld [vmem:[#allocation2 + $0x30] sm:$0xff]
        %v1867 = vld [vmem:[#allocation2 + $0x38] sm:$0xff]
        %v1868 = vld [vmem:[#allocation2 + $0x40] sm:$0xff]
        %v1869 = vld [vmem:[#allocation2 + $0x48] sm:$0xff]
        %v1870 = vld [vmem:[#allocation2 + $0x50] sm:$0x1]
        %v1871 = vld [vmem:[#allocation2 + $0x58] sm:$0x1]
        %vm1882 = vcmask 1046528
        %v1883 = vrot.slane %v1862, 1
        %v1884 = vrot.slane %v1864, 1
        %v1885 = vsel %vm1882, %v1883, %v1884
        %v1886 = vrot.slane %v1863, 1
        %v1887 = vrot.slane %v1865, 1
        %v1888 = vsel %vm1882, %v1886, %v1887
        %v1889 = vrot.slane %v1866, 1
        %v1890 = vsel %vm1882, %v1884, %v1889
        %v1891 = vrot.slane %v1867, 1
        %v1892 = vsel %vm1882, %v1887, %v1891
        %v1893 = vrot.slane %v1868, 1
        %v1894 = vsel %vm1882, %v1889, %v1893
        %v1895 = vrot.slane %v1869, 1
        %v1896 = vsel %vm1882, %v1891, %v1895
        %v1897 = vrot.slane %v1870, 1
        %v1898 = vsel %vm1882, %v1893, %v1897
        %v1899 = vrot.slane %v1871, 1
        %v1900 = vsel %vm1882, %v1895, %v1899
        %1909 = vmatprep.subr.mxu0 %v1201
        %1910 = vmatpush1.msra.mxu0 %v1200
        %1911 = vmatprep.subr.mxu0 %v1205
        %1912 = vmatpush1.msra.mxu0 %v1204
        %1913 = vmatprep.subr.mxu0 %v1209
        %1914 = vmatpush1.msra.mxu0 %v1208
        %1915 = vmatprep.subr.mxu0 %v1213
        %1916 = vmatpush1.msra.mxu0 %v1212
        %1917 = vmatprep.subr.mxu0 %v1217
        %1918 = vmatpush1.msra.mxu0 %v1216
        %1919 = vmatprep.subr.mxu0 %v1221
        %1920 = vmatpush1.msra.mxu0 %v1220
        %1921 = vmatprep.subr.mxu0 %v1225
        %1922 = vmatpush1.msra.mxu0 %v1224
        %1923 = vmatprep.subr.mxu0 %v1229
        %1924 = vmatpush1.msra.mxu0 %v1228
        %1925 = vmatprep.subr.mxu0 %v1233
        %1926 = vmatpush1.msra.mxu0 %v1232
        %1927 = vmatprep.subr.mxu0 %v1237
        %1928 = vmatpush1.msra.mxu0 %v1236
        %1929 = vmatprep.subr.mxu0 %v1241
        %1930 = vmatpush1.msra.mxu0 %v1240
        %1931 = vmatprep.subr.mxu0 %v1245
        %1932 = vmatpush1.msra.mxu0 %v1244
        %1933 = vmatprep.subr.mxu0 %v1249
        %1934 = vmatpush1.msra.mxu0 %v1248
        %1935 = vmatprep.subr.mxu0 %v1253
        %1936 = vmatpush1.msra.mxu0 %v1252
        %1937 = vmatprep.subr.mxu0 %v1257
        %1938 = vmatpush1.msra.mxu0 %v1256
        %1939 = vmatprep.subr.mxu0 %v1261
        %1940 = vmatpush1.msra.mxu0 %v1260
        %1941 = vmatprep.subr.mxu0 %v1265
        %1942 = vmatpush1.msra.mxu0 %v1264
        %1943 = vmatprep.subr.mxu0 %v1269
        %1944 = vmatpush1.msra.mxu0 %v1268
        %1945 = vmatprep.subr.mxu0 %v1273
        %1946 = vmatpush1.msra.mxu0 %v1272
        %1947 = vmatprep.subr.mxu0 %v1277
        %1948 = vmatpush1.msra.mxu0 %v1276
        %1949 = vmatprep.subr.mxu0 %v1281
        %1950 = vmatpush1.msra.mxu0 %v1280
        %1951 = vmatprep.subr.mxu0 %v1285
        %1952 = vmatpush1.msra.mxu0 %v1284
        %1953 = vmatprep.subr.mxu0 %v1289
        %1954 = vmatpush1.msra.mxu0 %v1288
        %1955 = vmatprep.subr.mxu0 %v1293
        %1956 = vmatpush1.msra.mxu0 %v1292
        %1957 = vmatprep.subr.mxu0 %v1297
        %1958 = vmatpush1.msra.mxu0 %v1296
        %1959 = vmatprep.subr.mxu0 %v1301
        %1960 = vmatpush1.msra.mxu0 %v1300
        %1961 = vmatprep.subr.mxu0 %v1305
        %1962 = vmatpush1.msra.mxu0 %v1304
        %1963 = vmatprep.subr.mxu0 %v1309
        %1964 = vmatpush1.msra.mxu0 %v1308
        %1965 = vmatprep.subr.mxu0 %v1313
        %1966 = vmatpush1.msra.mxu0 %v1312
        %1967 = vmatprep.subr.mxu0 %v1317
        %1968 = vmatpush1.msra.mxu0 %v1316
        %1969 = vmatprep.subr.mxu0 %v1321
        %1970 = vmatpush1.msra.mxu0 %v1320
        %1971 = vmatprep.subr.mxu0 %v1325
        %1972 = vmatpush1.msra.mxu0 %v1324
        %1973 = vmatprep.mubr.f32.mxu0 %v1888
        %1974 = vmatmul.mubr.f32.gmra.mrb[0].mxu0 %v1885
        %v1975 = vpop.f32.mrb[0].mxu0
        %v1976 = vadd.f32 0.0, %v1975
        %v1977 = vpop.f32.mrb[0].mxu0
        %v1978 = vadd.f32 0.0, %v1977
        %1979 = vmatprep.mubr.f32.mxu0 %v1892
        %1980 = vmatmul.mubr.f32.gmra.mrb[0].mxu0 %v1890
        %v1981 = vpop.f32.mrb[0].mxu0
        %v1982 = vadd.f32 0.0, %v1981
        %v1983 = vpop.f32.mrb[0].mxu0
        %v1984 = vadd.f32 0.0, %v1983
        %1985 = vmatprep.mubr.f32.mxu0 %v1896
        %1986 = vmatmul.mubr.f32.gmra.mrb[0].mxu0 %v1894
        %v1987 = vpop.f32.mrb[0].mxu0
        %v1988 = vadd.f32 0.0, %v1987
        %v1989 = vpop.f32.mrb[0].mxu0
        %v1990 = vadd.f32 0.0, %v1989
        %1991 = vmatprep.mubr.f32.mxu0 %v1900
        %1992 = vmatmul.mubr.f32.gmra.mrb[0].mxu0 %v1898
        %v1993 = vpop.f32.mrb[0].mxu0
        %v1994 = vadd.f32 0.0, %v1993
        %v1995 = vpop.f32.mrb[0].mxu0
        %v1996 = vadd.f32 0.0, %v1995
        %1997 = vdwg.mxu0
        %1998 = vmatprep.subr.mxu0 %v1203
        %1999 = vmatpush1.msra.mxu0 %v1202
        %2000 = vmatprep.subr.mxu0 %v1207
        %2001 = vmatpush1.msra.mxu0 %v1206
        %2002 = vmatprep.subr.mxu0 %v1211
        %2003 = vmatpush1.msra.mxu0 %v1210
        %2004 = vmatprep.subr.mxu0 %v1215
        %2005 = vmatpush1.msra.mxu0 %v1214
        %2006 = vmatprep.subr.mxu0 %v1219
        %2007 = vmatpush1.msra.mxu0 %v1218
        %2008 = vmatprep.subr.mxu0 %v1223
        %2009 = vmatpush1.msra.mxu0 %v1222
        %2010 = vmatprep.subr.mxu0 %v1227
        %2011 = vmatpush1.msra.mxu0 %v1226
        %2012 = vmatprep.subr.mxu0 %v1231
        %2013 = vmatpush1.msra.mxu0 %v1230
        %2014 = vmatprep.subr.mxu0 %v1235
        %2015 = vmatpush1.msra.mxu0 %v1234
        %2016 = vmatprep.subr.mxu0 %v1239
        %2017 = vmatpush1.msra.mxu0 %v1238
        %2018 = vmatprep.subr.mxu0 %v1243
        %2019 = vmatpush1.msra.mxu0 %v1242
        %2020 = vmatprep.subr.mxu0 %v1247
        %2021 = vmatpush1.msra.mxu0 %v1246
        %2022 = vmatprep.subr.mxu0 %v1251
        %2023 = vmatpush1.msra.mxu0 %v1250
        %2024 = vmatprep.subr.mxu0 %v1255
        %2025 = vmatpush1.msra.mxu0 %v1254
        %2026 = vmatprep.subr.mxu0 %v1259
        %2027 = vmatpush1.msra.mxu0 %v1258
        %2028 = vmatprep.subr.mxu0 %v1263
        %2029 = vmatpush1.msra.mxu0 %v1262
        %2030 = vmatprep.subr.mxu0 %v1267
        %2031 = vmatpush1.msra.mxu0 %v1266
        %2032 = vmatprep.subr.mxu0 %v1271
        %2033 = vmatpush1.msra.mxu0 %v1270
        %2034 = vmatprep.subr.mxu0 %v1275
        %2035 = vmatpush1.msra.mxu0 %v1274
        %2036 = vmatprep.subr.mxu0 %v1279
        %2037 = vmatpush1.msra.mxu0 %v1278
        %2038 = vmatprep.subr.mxu0 %v1283
        %2039 = vmatpush1.msra.mxu0 %v1282
        %2040 = vmatprep.subr.mxu0 %v1287
        %2041 = vmatpush1.msra.mxu0 %v1286
        %2042 = vmatprep.subr.mxu0 %v1291
        %2043 = vmatpush1.msra.mxu0 %v1290
        %2044 = vmatprep.subr.mxu0 %v1295
        %2045 = vmatpush1.msra.mxu0 %v1294
        %2046 = vmatprep.subr.mxu0 %v1299
        %2047 = vmatpush1.msra.mxu0 %v1298
        %2048 = vmatprep.subr.mxu0 %v1303
        %2049 = vmatpush1.msra.mxu0 %v1302
        %2050 = vmatprep.subr.mxu0 %v1307
        %2051 = vmatpush1.msra.mxu0 %v1306
        %2052 = vmatprep.subr.mxu0 %v1311
        %2053 = vmatpush1.msra.mxu0 %v1310
        %2054 = vmatprep.subr.mxu0 %v1315
        %2055 = vmatpush1.msra.mxu0 %v1314
        %2056 = vmatprep.subr.mxu0 %v1319
        %2057 = vmatpush1.msra.mxu0 %v1318
        %2058 = vmatprep.subr.mxu0 %v1323
        %2059 = vmatpush1.msra.mxu0 %v1322
        %2060 = vmatprep.subr.mxu0 %v1327
        %2061 = vmatpush1.msra.mxu0 %v1326
        %2062 = vmatprep.mubr.f32.mxu0 %v1888
        %2063 = vmatmul.mubr.f32.gmra.mrb[0].mxu0 %v1885
        %v2064 = vpop.f32.mrb[0].mxu0
        %v2065 = vadd.f32 0.0, %v2064
        %v2066 = vpop.f32.mrb[0].mxu0
        %v2067 = vadd.f32 0.0, %v2066
        %2068 = vmatprep.mubr.f32.mxu0 %v1892
        %2069 = vmatmul.mubr.f32.gmra.mrb[0].mxu0 %v1890
        %v2070 = vpop.f32.mrb[0].mxu0
        %v2071 = vadd.f32 0.0, %v2070
        %v2072 = vpop.f32.mrb[0].mxu0
        %v2073 = vadd.f32 0.0, %v2072
        %2074 = vmatprep.mubr.f32.mxu0 %v1896
        %2075 = vmatmul.mubr.f32.gmra.mrb[0].mxu0 %v1894
        %v2076 = vpop.f32.mrb[0].mxu0
        %v2077 = vadd.f32 0.0, %v2076
        %v2078 = vpop.f32.mrb[0].mxu0
        %v2079 = vadd.f32 0.0, %v2078
        %2080 = vmatprep.mubr.f32.mxu0 %v1900
        %2081 = vmatmul.mubr.f32.gmra.mrb[0].mxu0 %v1898
        %v2082 = vpop.f32.mrb[0].mxu0
        %v2083 = vadd.f32 0.0, %v2082
        %v2084 = vpop.f32.mrb[0].mxu0
        %v2085 = vadd.f32 0.0, %v2084
        %2086 = vdwg.mxu0
        %v2087 = vadd.f32 %v1751, %v1976
        %v2088 = vadd.f32 %v1753, %v1978
        %v2089 = vadd.f32 %v1840, %v2065
        %v2090 = vadd.f32 %v1842, %v2067
        %v2091 = vadd.f32 %v1757, %v1982
        %v2092 = vadd.f32 %v1759, %v1984
        %v2093 = vadd.f32 %v1846, %v2071
        %v2094 = vadd.f32 %v1848, %v2073
        %v2095 = vadd.f32 %v1763, %v1988
        %v2096 = vadd.f32 %v1765, %v1990
        %v2097 = vadd.f32 %v1852, %v2077
        %v2098 = vadd.f32 %v1854, %v2079
        %v2099 = vadd.f32 %v1769, %v1994
        %v2100 = vadd.f32 %v1771, %v1996
        %v2101 = vadd.f32 %v1858, %v2083
        %v2102 = vadd.f32 %v1860, %v2085
        %v2104 = vlaneseq
        %v2105 = vshrl.u32 %v2104, 7
        %v2106 = vsub.s32 0, %v2105
        %v2107 = vrot.slane %v1328, %v2106
        %v2108 = vlaneseq
        %v2109 = vshrl.u32 %v2108, 7
        %v2110 = vsub.s32 1, %v2109
        %v2111 = vrot.slane %v1328, %v2110
        %v2112 = vlaneseq
        %v2113 = vshrl.u32 %v2112, 7
        %v2114 = vsub.s32 2, %v2113
        %v2115 = vrot.slane %v1328, %v2114
        %v2116 = vlaneseq
        %v2117 = vshrl.u32 %v2116, 7
        %v2118 = vsub.s32 3, %v2117
        %v2119 = vrot.slane %v1328, %v2118
        %v2124 = vadd.f32 %v2087, %v2107
        %v2125 = vadd.f32 %v2088, %v2111
        %v2126 = vadd.f32 %v2089, %v2115
        %v2127 = vadd.f32 %v2090, %v2119
        %v2128 = vadd.f32 %v2091, %v2107
        %v2129 = vadd.f32 %v2092, %v2111
        %v2130 = vadd.f32 %v2093, %v2115
        %v2131 = vadd.f32 %v2094, %v2119
        %v2132 = vadd.f32 %v2095, %v2107
        %v2133 = vadd.f32 %v2096, %v2111
        %v2134 = vadd.f32 %v2097, %v2115
        %v2135 = vadd.f32 %v2098, %v2119
        %v2136 = vadd.f32 %v2099, %v2107
        %v2137 = vadd.f32 %v2100, %v2111
        %v2138 = vadd.f32 %v2101, %v2115
        %v2139 = vadd.f32 %v2102, %v2119
        %v2140 = vld [vmem:[#allocation7] sm:$0xff]
        %v2141 = vld [vmem:[#allocation7 + $0x8] sm:$0xff]
        %v2142 = vld [vmem:[#allocation7 + $0x10] sm:$0xff]
        %v2143 = vld [vmem:[#allocation7 + $0x18] sm:$0xff]
        %v2144 = vld [vmem:[#allocation7 + $0x20] sm:$0xff]
        %v2145 = vld [vmem:[#allocation7 + $0x28] sm:$0xff]
        %v2146 = vld [vmem:[#allocation7 + $0x30] sm:$0xff]
        %v2147 = vld [vmem:[#allocation7 + $0x38] sm:$0xff]
        %v2148 = vld [vmem:[#allocation7 + $0x40] sm:$0xff]
        %v2149 = vld [vmem:[#allocation7 + $0x48] sm:$0xff]
        %v2150 = vld [vmem:[#allocation7 + $0x50] sm:$0xff]
        %v2151 = vld [vmem:[#allocation7 + $0x58] sm:$0xff]
        %v2152 = vld [vmem:[#allocation7 + $0x60] sm:$0xff]
        %v2153 = vld [vmem:[#allocation7 + $0x68] sm:$0xff]
        %v2154 = vld [vmem:[#allocation7 + $0x70] sm:$0xff]
        %v2155 = vld [vmem:[#allocation7 + $0x78] sm:$0xff]
        %v2156 = vadd.f32 %v2140, %v2124
        %v2157 = vadd.f32 %v2141, %v2125
        %v2158 = vadd.f32 %v2142, %v2126
        %v2159 = vadd.f32 %v2143, %v2127
        %v2160 = vadd.f32 %v2144, %v2128
        %v2161 = vadd.f32 %v2145, %v2129
        %v2162 = vadd.f32 %v2146, %v2130
        %v2163 = vadd.f32 %v2147, %v2131
        %v2164 = vadd.f32 %v2148, %v2132
        %v2165 = vadd.f32 %v2149, %v2133
        %v2166 = vadd.f32 %v2150, %v2134
        %v2167 = vadd.f32 %v2151, %v2135
        %v2168 = vadd.f32 %v2152, %v2136
        %v2169 = vadd.f32 %v2153, %v2137
        %v2170 = vadd.f32 %v2154, %v2138
        %v2171 = vadd.f32 %v2155, %v2139
        %v2172 = vmul.f32 %v2156, 0.5
        %v2173 = vmul.f32 %v2157, 0.5
        %v2174 = vmul.f32 %v2158, 0.5
        %v2175 = vmul.f32 %v2159, 0.5
        %v2176 = vmul.f32 %v2160, 0.5
        %v2177 = vmul.f32 %v2161, 0.5
        %v2178 = vmul.f32 %v2162, 0.5
        %v2179 = vmul.f32 %v2163, 0.5
        %v2180 = vmul.f32 %v2164, 0.5
        %v2181 = vmul.f32 %v2165, 0.5
        %v2182 = vmul.f32 %v2166, 0.5
        %v2183 = vmul.f32 %v2167, 0.5
        %v2184 = vmul.f32 %v2168, 0.5
        %v2185 = vmul.f32 %v2169, 0.5
        %v2186 = vmul.f32 %v2170, 0.5
        %v2187 = vmul.f32 %v2171, 0.5
        %vm2188 = vcmp.ge.f32.partialorder %v2172, 1.0
        %vm2189 = vcmp.ge.f32.partialorder %v2173, 1.0
        %vm2190 = vcmp.ge.f32.partialorder %v2174, 1.0
        %vm2191 = vcmp.ge.f32.partialorder %v2175, 1.0
        %vm2192 = vcmp.ge.f32.partialorder %v2176, 1.0
        %vm2193 = vcmp.ge.f32.partialorder %v2177, 1.0
        %vm2194 = vcmp.ge.f32.partialorder %v2178, 1.0
        %vm2195 = vcmp.ge.f32.partialorder %v2179, 1.0
        %vm2196 = vcmp.ge.f32.partialorder %v2180, 1.0
        %vm2197 = vcmp.ge.f32.partialorder %v2181, 1.0
        %vm2198 = vcmp.ge.f32.partialorder %v2182, 1.0
        %vm2199 = vcmp.ge.f32.partialorder %v2183, 1.0
        %vm2200 = vcmp.ge.f32.partialorder %v2184, 1.0
        %vm2201 = vcmp.ge.f32.partialorder %v2185, 1.0
        %vm2202 = vcmp.ge.f32.partialorder %v2186, 1.0
        %vm2203 = vcmp.ge.f32.partialorder %v2187, 1.0
        %v2204 = vsel %vm2188, 0.0, %v2172
        %v2205 = vsel %vm2189, 0.0, %v2173
        %v2206 = vsel %vm2190, 0.0, %v2174
        %v2207 = vsel %vm2191, 0.0, %v2175
        %v2208 = vsel %vm2192, 0.0, %v2176
        %v2209 = vsel %vm2193, 0.0, %v2177
        %v2210 = vsel %vm2194, 0.0, %v2178
        %v2211 = vsel %vm2195, 0.0, %v2179
        %v2212 = vsel %vm2196, 0.0, %v2180
        %v2213 = vsel %vm2197, 0.0, %v2181
        %v2214 = vsel %vm2198, 0.0, %v2182
        %v2215 = vsel %vm2199, 0.0, %v2183
        %v2216 = vsel %vm2200, 0.0, %v2184
        %v2217 = vsel %vm2201, 0.0, %v2185
        %v2218 = vsel %vm2202, 0.0, %v2186
        %v2219 = vsel %vm2203, 0.0, %v2187
        %2220 = vst [vmem:[#allocation7] sm:$0xff] %v2204
        %2221 = vst [vmem:[#allocation7 + $0x8] sm:$0xff] %v2205
        %2222 = vst [vmem:[#allocation7 + $0x10] sm:$0xff] %v2206
        %2223 = vst [vmem:[#allocation7 + $0x18] sm:$0xff] %v2207
        %2224 = vst [vmem:[#allocation7 + $0x20] sm:$0xff] %v2208
        %2225 = vst [vmem:[#allocation7 + $0x28] sm:$0xff] %v2209
        %2226 = vst [vmem:[#allocation7 + $0x30] sm:$0xff] %v2210
        %2227 = vst [vmem:[#allocation7 + $0x38] sm:$0xff] %v2211
        %2228 = vst [vmem:[#allocation7 + $0x40] sm:$0xff] %v2212
        %2229 = vst [vmem:[#allocation7 + $0x48] sm:$0xff] %v2213
        %2230 = vst [vmem:[#allocation7 + $0x50] sm:$0xff] %v2214
        %2231 = vst [vmem:[#allocation7 + $0x58] sm:$0xff] %v2215
        %2232 = vst [vmem:[#allocation7 + $0x60] sm:$0xff] %v2216
        %2233 = vst [vmem:[#allocation7 + $0x68] sm:$0xff] %v2217
        %2234 = vst [vmem:[#allocation7 + $0x70] sm:$0xff] %v2218
        %2235 = vst [vmem:[#allocation7 + $0x78] sm:$0xff] %v2219
        %v2236 = vsel %vm2188, 1, 0
        %v2237 = vsel %vm2189, 1, 0
        %v2238 = vsel %vm2190, 1, 0
        %v2239 = vsel %vm2191, 1, 0
        %v2240 = vsel %vm2192, 1, 0
        %v2241 = vsel %vm2193, 1, 0
        %v2242 = vsel %vm2194, 1, 0
        %v2243 = vsel %vm2195, 1, 0
        %v2244 = vsel %vm2196, 1, 0
        %v2245 = vsel %vm2197, 1, 0
        %v2246 = vsel %vm2198, 1, 0
        %v2247 = vsel %vm2199, 1, 0
        %v2248 = vsel %vm2200, 1, 0
        %v2249 = vsel %vm2201, 1, 0
        %v2250 = vsel %vm2202, 1, 0
        %v2251 = vsel %vm2203, 1, 0
        %v2252 = vcvt.s32.f32 %v2236
        %v2253 = vcvt.s32.f32 %v2237
        %v2254 = vcvt.s32.f32 %v2238
        %v2255 = vcvt.s32.f32 %v2239
        %v2256 = vcvt.s32.f32 %v2240
        %v2257 = vcvt.s32.f32 %v2241
        %v2258 = vcvt.s32.f32 %v2242
        %v2259 = vcvt.s32.f32 %v2243
        %v2260 = vcvt.s32.f32 %v2244
        %v2261 = vcvt.s32.f32 %v2245
        %v2262 = vcvt.s32.f32 %v2246
        %v2263 = vcvt.s32.f32 %v2247
        %v2264 = vcvt.s32.f32 %v2248
        %v2265 = vcvt.s32.f32 %v2249
        %v2266 = vcvt.s32.f32 %v2250
        %v2267 = vcvt.s32.f32 %v2251
        %2268 = vmatprep.subr.mxu0 %v1330
        %2269 = vmatpush1.msra.mxu0 %v1329
        %2270 = vmatprep.subr.mxu0 %v1332
        %2271 = vmatpush1.msra.mxu0 %v1331
        %2272 = vmatprep.subr.mxu0 %v1334
        %2273 = vmatpush1.msra.mxu0 %v1333
        %2274 = vmatprep.subr.mxu0 %v1336
        %2275 = vmatpush1.msra.mxu0 %v1335
        %2276 = vmatprep.subr.mxu0 %v1338
        %2277 = vmatpush1.msra.mxu0 %v1337
        %2278 = vmatprep.subr.mxu0 %v1340
        %2279 = vmatpush1.msra.mxu0 %v1339
        %2280 = vmatprep.subr.mxu0 %v1342
        %2281 = vmatpush1.msra.mxu0 %v1341
        %2282 = vmatprep.subr.mxu0 %v1344
        %2283 = vmatpush1.msra.mxu0 %v1343
        %2284 = vmatprep.subr.mxu0 %v1346
        %2285 = vmatpush1.msra.mxu0 %v1345
        %2286 = vmatprep.subr.mxu0 %v1348
        %2287 = vmatpush1.msra.mxu0 %v1347
        %2288 = vmatprep.subr.mxu0 %v1350
        %2289 = vmatpush1.msra.mxu0 %v1349
        %2290 = vmatprep.subr.mxu0 %v1352
        %2291 = vmatpush1.msra.mxu0 %v1351
        %2292 = vmatprep.subr.mxu0 %v1354
        %2293 = vmatpush1.msra.mxu0 %v1353
        %2294 = vmatprep.subr.mxu0 %v1356
        %2295 = vmatpush1.msra.mxu0 %v1355
        %2296 = vmatprep.subr.mxu0 %v1358
        %2297 = vmatpush1.msra.mxu0 %v1357
        %2298 = vmatprep.subr.mxu0 %v1360
        %2299 = vmatpush1.msra.mxu0 %v1359
        %2300 = vmatprep.subr.mxu0 %v1362
        %2301 = vmatpush1.msra.mxu0 %v1361
        %2302 = vmatprep.subr.mxu0 %v1364
        %2303 = vmatpush1.msra.mxu0 %v1363
        %2304 = vmatprep.subr.mxu0 %v1366
        %2305 = vmatpush1.msra.mxu0 %v1365
        %2306 = vmatprep.subr.mxu0 %v1368
        %2307 = vmatpush1.msra.mxu0 %v1367
        %2308 = vmatprep.subr.mxu0 %v1370
        %2309 = vmatpush1.msra.mxu0 %v1369
        %2310 = vmatprep.subr.mxu0 %v1372
        %2311 = vmatpush1.msra.mxu0 %v1371
        %2312 = vmatprep.subr.mxu0 %v1374
        %2313 = vmatpush1.msra.mxu0 %v1373
        %2314 = vmatprep.subr.mxu0 %v1376
        %2315 = vmatpush1.msra.mxu0 %v1375
        %2316 = vmatprep.subr.mxu0 %v1378
        %2317 = vmatpush1.msra.mxu0 %v1377
        %2318 = vmatprep.subr.mxu0 %v1380
        %2319 = vmatpush1.msra.mxu0 %v1379
        %2320 = vmatprep.subr.mxu0 %v1382
        %2321 = vmatpush1.msra.mxu0 %v1381
        %2322 = vmatprep.subr.mxu0 %v1384
        %2323 = vmatpush1.msra.mxu0 %v1383
        %2324 = vmatprep.subr.mxu0 %v1386
        %2325 = vmatpush1.msra.mxu0 %v1385
        %2326 = vmatprep.subr.mxu0 %v1388
        %2327 = vmatpush1.msra.mxu0 %v1387
        %2328 = vmatprep.subr.mxu0 %v1390
        %2329 = vmatpush1.msra.mxu0 %v1389
        %2330 = vmatprep.subr.mxu0 %v1392
        %2331 = vmatpush1.msra.mxu0 %v1391
        %2332 = vmatprep.mubr.f32.mxu0 %v2253
        %2333 = vmatmul.mubr.f32.gmra.mrb[0].mxu0 %v2252
        %v2334 = vpop.f32.mrb[0].mxu0
        %v2335 = vadd.f32 0.0, %v2334
        %v2336 = vpop.f32.mrb[0].mxu0
        %v2337 = vadd.f32 0.0, %v2336
        %2338 = vmatprep.mubr.f32.mxu0 %v2257
        %2339 = vmatmul.mubr.f32.gmra.mrb[0].mxu0 %v2256
        %v2340 = vpop.f32.mrb[0].mxu0
        %v2341 = vadd.f32 0.0, %v2340
        %v2342 = vpop.f32.mrb[0].mxu0
        %v2343 = vadd.f32 0.0, %v2342
        %2344 = vmatprep.mubr.f32.mxu0 %v2261
        %2345 = vmatmul.mubr.f32.gmra.mrb[0].mxu0 %v2260
        %v2346 = vpop.f32.mrb[0].mxu0
        %v2347 = vadd.f32 0.0, %v2346
        %v2348 = vpop.f32.mrb[0].mxu0
        %v2349 = vadd.f32 0.0, %v2348
        %2350 = vmatprep.mubr.f32.mxu0 %v2265
        %2351 = vmatmul.mubr.f32.gmra.mrb[0].mxu0 %v2264
        %v2352 = vpop.f32.mrb[0].mxu0
        %v2353 = vadd.f32 0.0, %v2352
        %v2354 = vpop.f32.mrb[0].mxu0
        %v2355 = vadd.f32 0.0, %v2354
        %2356 = vdwg.mxu0
        %2357 = vmatprep.subr.mxu0 %v1394
        %2358 = vmatpush1.msra.mxu0 %v1393
        %2359 = vmatprep.subr.mxu0 %v1396
        %2360 = vmatpush1.msra.mxu0 %v1395
        %2361 = vmatprep.subr.mxu0 %v1398
        %2362 = vmatpush1.msra.mxu0 %v1397
        %2363 = vmatprep.subr.mxu0 %v1400
        %2364 = vmatpush1.msra.mxu0 %v1399
        %2365 = vmatprep.subr.mxu0 %v1402
        %2366 = vmatpush1.msra.mxu0 %v1401
        %2367 = vmatprep.subr.mxu0 %v1404
        %2368 = vmatpush1.msra.mxu0 %v1403
        %2369 = vmatprep.subr.mxu0 %v1406
        %2370 = vmatpush1.msra.mxu0 %v1405
        %2371 = vmatprep.subr.mxu0 %v1408
        %2372 = vmatpush1.msra.mxu0 %v1407
        %2373 = vmatprep.subr.mxu0 %v1410
        %2374 = vmatpush1.msra.mxu0 %v1409
        %2375 = vmatprep.subr.mxu0 %v1412
        %2376 = vmatpush1.msra.mxu0 %v1411
        %2377 = vmatprep.subr.mxu0 %v1414
        %2378 = vmatpush1.msra.mxu0 %v1413
        %2379 = vmatprep.subr.mxu0 %v1416
        %2380 = vmatpush1.msra.mxu0 %v1415
        %2381 = vmatprep.subr.mxu0 %v1418
        %2382 = vmatpush1.msra.mxu0 %v1417
        %2383 = vmatprep.subr.mxu0 %v1420
        %2384 = vmatpush1.msra.mxu0 %v1419
        %2385 = vmatprep.subr.mxu0 %v1422
        %2386 = vmatpush1.msra.mxu0 %v1421
        %2387 = vmatprep.subr.mxu0 %v1424
        %2388 = vmatpush1.msra.mxu0 %v1423
        %2389 = vmatprep.subr.mxu0 %v1426
        %2390 = vmatpush1.msra.mxu0 %v1425
        %2391 = vmatprep.subr.mxu0 %v1428
        %2392 = vmatpush1.msra.mxu0 %v1427
        %2393 = vmatprep.subr.mxu0 %v1430
        %2394 = vmatpush1.msra.mxu0 %v1429
        %2395 = vmatprep.subr.mxu0 %v1432
        %2396 = vmatpush1.msra.mxu0 %v1431
        %2397 = vmatprep.subr.mxu0 %v1434
        %2398 = vmatpush1.msra.mxu0 %v1433
        %2399 = vmatprep.subr.mxu0 %v1436
        %2400 = vmatpush1.msra.mxu0 %v1435
        %2401 = vmatprep.subr.mxu0 %v1438
        %2402 = vmatpush1.msra.mxu0 %v1437
        %2403 = vmatprep.subr.mxu0 %v1440
        %2404 = vmatpush1.msra.mxu0 %v1439
        %2405 = vmatprep.subr.mxu0 %v1442
        %2406 = vmatpush1.msra.mxu0 %v1441
        %2407 = vmatprep.subr.mxu0 %v1444
        %2408 = vmatpush1.msra.mxu0 %v1443
        %2409 = vmatprep.subr.mxu0 %v1446
        %2410 = vmatpush1.msra.mxu0 %v1445
        %2411 = vmatprep.subr.mxu0 %v1448
        %2412 = vmatpush1.msra.mxu0 %v1447
        %2413 = vmatprep.subr.mxu0 %v1450
        %2414 = vmatpush1.msra.mxu0 %v1449
        %2415 = vmatprep.subr.mxu0 %v1452
        %2416 = vmatpush1.msra.mxu0 %v1451
        %2417 = vmatprep.subr.mxu0 %v1454
        %2418 = vmatpush1.msra.mxu0 %v1453
        %2419 = vmatprep.subr.mxu0 %v1456
        %2420 = vmatpush1.msra.mxu0 %v1455
        %2421 = vmatprep.mubr.f32.mxu0 %v2255
        %2422 = vmatmul.mubr.f32.gmra.mrb[0].mxu0 %v2254
        %v2423 = vpop.f32.mrb[0].mxu0
        %v2424 = vadd.f32 %v2335, %v2423
        %v2425 = vpop.f32.mrb[0].mxu0
        %v2426 = vadd.f32 %v2337, %v2425
        %2427 = vmatprep.mubr.f32.mxu0 %v2259
        %2428 = vmatmul.mubr.f32.gmra.mrb[0].mxu0 %v2258
        %v2429 = vpop.f32.mrb[0].mxu0
        %v2430 = vadd.f32 %v2341, %v2429
        %v2431 = vpop.f32.mrb[0].mxu0
        %v2432 = vadd.f32 %v2343, %v2431
        %2433 = vmatprep.mubr.f32.mxu0 %v2263
        %2434 = vmatmul.mubr.f32.gmra.mrb[0].mxu0 %v2262
        %v2435 = vpop.f32.mrb[0].mxu0
        %v2436 = vadd.f32 %v2347, %v2435
        %v2437 = vpop.f32.mrb[0].mxu0
        %v2438 = vadd.f32 %v2349, %v2437
        %2439 = vmatprep.mubr.f32.mxu0 %v2267
        %2440 = vmatmul.mubr.f32.gmra.mrb[0].mxu0 %v2266
        %v2441 = vpop.f32.mrb[0].mxu0
        %v2442 = vadd.f32 %v2353, %v2441
        %v2443 = vpop.f32.mrb[0].mxu0
        %v2444 = vadd.f32 %v2355, %v2443
        %2445 = vdwg.mxu0
        %vm2446 = vcmask 261120
        %v2448 = vsel %vm2446, %v940, 0
        %v2451 = vsel %vm2446, %v941, 0
        %2453 = vmatprep.subr.mxu0 %v2426
        %2454 = vmatpush1.msra.mxu0 %v2424
        %2455 = vmatprep.subr.mxu0 %v2432
        %2456 = vmatpush1.msra.mxu0 %v2430
        %2457 = vmatprep.subr.mxu0 %v2438
        %2458 = vmatpush1.msra.mxu0 %v2436
        %2459 = vmatprep.subr.mxu0 %v2444
        %2460 = vmatpush1.msra.mxu0 %v2442
        %2461 = vmatprep.subr.mxu0 0.0
        %2462 = vmatpush1.msra.mxu0 0.0
        %2463 = vmatprep.subr.mxu0 0.0
        %2464 = vmatpush1.msra.mxu0 0.0
        %2465 = vmatprep.subr.mxu0 0.0
        %2466 = vmatpush1.msra.mxu0 0.0
        %2467 = vmatprep.subr.mxu0 0.0
        %2468 = vmatpush1.msra.mxu0 0.0
        %2469 = vmatprep.subr.mxu0 0.0
        %2470 = vmatpush1.msra.mxu0 0.0
        %2471 = vmatprep.subr.mxu0 0.0
        %2472 = vmatpush1.msra.mxu0 0.0
        %2473 = vmatprep.subr.mxu0 0.0
        %2474 = vmatpush1.msra.mxu0 0.0
        %2475 = vmatprep.subr.mxu0 0.0
        %2476 = vmatpush1.msra.mxu0 0.0
        %2477 = vmatprep.subr.mxu0 0.0
        %2478 = vmatpush1.msra.mxu0 0.0
        %2479 = vmatprep.subr.mxu0 0.0
        %2480 = vmatpush1.msra.mxu0 0.0
        %2481 = vmatprep.subr.mxu0 0.0
        %2482 = vmatpush1.msra.mxu0 0.0
        %2483 = vmatprep.subr.mxu0 0.0
        %2484 = vmatpush1.msra.mxu0 0.0
        %2485 = vmatprep.subr.mxu0 0.0
        %2486 = vmatpush1.msra.mxu0 0.0
        %2487 = vmatprep.subr.mxu0 0.0
        %2488 = vmatpush1.msra.mxu0 0.0
        %2489 = vmatprep.subr.mxu0 0.0
        %2490 = vmatpush1.msra.mxu0 0.0
        %2491 = vmatprep.subr.mxu0 0.0
        %2492 = vmatpush1.msra.mxu0 0.0
        %2493 = vmatprep.subr.mxu0 0.0
        %2494 = vmatpush1.msra.mxu0 0.0
        %2495 = vmatprep.subr.mxu0 0.0
        %2496 = vmatpush1.msra.mxu0 0.0
        %2497 = vmatprep.subr.mxu0 0.0
        %2498 = vmatpush1.msra.mxu0 0.0
        %2499 = vmatprep.subr.mxu0 0.0
        %2500 = vmatpush1.msra.mxu0 0.0
        %2501 = vmatprep.subr.mxu0 0.0
        %2502 = vmatpush1.msra.mxu0 0.0
        %2503 = vmatprep.subr.mxu0 0.0
        %2504 = vmatpush1.msra.mxu0 0.0
        %2505 = vmatprep.subr.mxu0 0.0
        %2506 = vmatpush1.msra.mxu0 0.0
        %2507 = vmatprep.subr.mxu0 0.0
        %2508 = vmatpush1.msra.mxu0 0.0
        %2509 = vmatprep.subr.mxu0 0.0
        %2510 = vmatpush1.msra.mxu0 0.0
        %2511 = vmatprep.subr.mxu0 0.0
        %2512 = vmatpush1.msra.mxu0 0.0
        %2513 = vmatprep.subr.mxu0 0.0
        %2514 = vmatpush1.msra.mxu0 0.0
        %2515 = vmatprep.subr.mxu0 0.0
        %2516 = vmatpush1.msra.mxu0 0.0
        %2517 = vmatprep.mubr.f32.mxu0 0.0
        %2518 = vmatmul.mubr.f32.gmra.mrb[0].mxu0 %v2448
        %v2519 = vpop.f32.mrb[0].mxu0
        %v2520 = vadd.f32 0.0, %v2519
        %v2521 = vpop.f32.mrb[0].mxu0
        %v2522 = vadd.f32 0.0, %v2521
        %2523 = vmatprep.mubr.f32.mxu0 0.0
        %2524 = vmatmul.mubr.f32.gmra.mrb[0].mxu0 %v2451
        %v2525 = vpop.f32.mrb[0].mxu0
        %v2526 = vadd.f32 0.0, %v2525
        %v2527 = vpop.f32.mrb[0].mxu0
        %v2528 = vadd.f32 0.0, %v2527
        %2529 = vdwg.mxu0
        %vm2530 = vcmp.gt.f32.partialorder %v2520, 0.5
        %vm2531 = vcmp.gt.f32.partialorder %v2522, 0.5
        %vm2532 = vcmp.gt.f32.partialorder %v2526, 0.5
        %vm2533 = vcmp.gt.f32.partialorder %v2528, 0.5
        %v2534 = vsel %vm2530, 1, 0
        %v2535 = vsel %vm2531, 1, 0
        %v2536 = vsel %vm2532, 1, 0
        %v2537 = vsel %vm2533, 1, 0
        %v2538 = vcvt.s32.f32 %v2534
        %v2539 = vcvt.s32.f32 %v2535
        %v2540 = vcvt.s32.f32 %v2536
        %v2541 = vcvt.s32.f32 %v2537
        %2542 = vst [vmem:[#allocation3 + $0x10] sm:$0xff] %v2538
        %2543 = vst [vmem:[#allocation3 + $0x18] sm:$0xff] %v2539
        %2544 = vst [vmem:[#allocation3 + $0x20] sm:$0xff] %v2540
        %2545 = vst [vmem:[#allocation3 + $0x28] sm:$0xff] %v2541
        %v2546 = vld [vmem:[#allocation2 + $0x40] sm:$0x80]
        %v2547 = vld [vmem:[#allocation2 + $0x48] sm:$0x80]
        %v2548 = vld [vmem:[#allocation2 + $0x50] sm:$0xff]
        %v2549 = vld [vmem:[#allocation2 + $0x58] sm:$0xff]
        %v2550 = vld [vmem:[#allocation2 + $0x60] sm:$0xff]
        %v2551 = vld [vmem:[#allocation2 + $0x68] sm:$0xff]
        %v2552 = vld [vmem:[#allocation2 + $0x70] sm:$0xff]
        %v2553 = vld [vmem:[#allocation2 + $0x78] sm:$0xff]
        %v2554 = vld [vmem:[#allocation2 + $0x80] sm:$0x7f]
        %v2555 = vld [vmem:[#allocation2 + $0x88] sm:$0x7f]
        %v2556 = vld [vmem:[#allocation2 + $0x80] sm:$0xff]
        %v2557 = vld [vmem:[#allocation2 + $0x88] sm:$0xff]
        %2558 = vmatprep.subr.mxu0 %v1072
        %2559 = vmatpush1.msra.mxu0 %v1071
        %2560 = vmatprep.subr.mxu0 %v1076
        %2561 = vmatpush1.msra.mxu0 %v1075
        %2562 = vmatprep.subr.mxu0 %v1080
        %2563 = vmatpush1.msra.mxu0 %v1079
        %2564 = vmatprep.subr.mxu0 %v1084
        %2565 = vmatpush1.msra.mxu0 %v1083
        %2566 = vmatprep.subr.mxu0 %v1088
        %2567 = vmatpush1.msra.mxu0 %v1087
        %2568 = vmatprep.subr.mxu0 %v1092
        %2569 = vmatpush1.msra.mxu0 %v1091
        %2570 = vmatprep.subr.mxu0 %v1096
        %2571 = vmatpush1.msra.mxu0 %v1095
        %2572 = vmatprep.subr.mxu0 %v1100
        %2573 = vmatpush1.msra.mxu0 %v1099
        %2574 = vmatprep.subr.mxu0 %v1104
        %2575 = vmatpush1.msra.mxu0 %v1103
        %2576 = vmatprep.subr.mxu0 %v1108
        %2577 = vmatpush1.msra.mxu0 %v1107
        %2578 = vmatprep.subr.mxu0 %v1112
        %2579 = vmatpush1.msra.mxu0 %v1111
        %2580 = vmatprep.subr.mxu0 %v1116
        %2581 = vmatpush1.msra.mxu0 %v1115
        %2582 = vmatprep.subr.mxu0 %v1120
        %2583 = vmatpush1.msra.mxu0 %v1119
        %2584 = vmatprep.subr.mxu0 %v1124
        %2585 = vmatpush1.msra.mxu0 %v1123
        %2586 = vmatprep.subr.mxu0 %v1128
        %2587 = vmatpush1.msra.mxu0 %v1127
        %2588 = vmatprep.subr.mxu0 %v1132
        %2589 = vmatpush1.msra.mxu0 %v1131
        %2590 = vmatprep.subr.mxu0 %v1136
        %2591 = vmatpush1.msra.mxu0 %v1135
        %2592 = vmatprep.subr.mxu0 %v1140
        %2593 = vmatpush1.msra.mxu0 %v1139
        %2594 = vmatprep.subr.mxu0 %v1144
        %2595 = vmatpush1.msra.mxu0 %v1143
        %2596 = vmatprep.subr.mxu0 %v1148
        %2597 = vmatpush1.msra.mxu0 %v1147
        %2598 = vmatprep.subr.mxu0 %v1152
        %2599 = vmatpush1.msra.mxu0 %v1151
        %2600 = vmatprep.subr.mxu0 %v1156
        %2601 = vmatpush1.msra.mxu0 %v1155
        %2602 = vmatprep.subr.mxu0 %v1160
        %2603 = vmatpush1.msra.mxu0 %v1159
        %2604 = vmatprep.subr.mxu0 %v1164
        %2605 = vmatpush1.msra.mxu0 %v1163
        %2606 = vmatprep.subr.mxu0 %v1168
        %2607 = vmatpush1.msra.mxu0 %v1167
        %2608 = vmatprep.subr.mxu0 %v1172
        %2609 = vmatpush1.msra.mxu0 %v1171
        %2610 = vmatprep.subr.mxu0 %v1176
        %2611 = vmatpush1.msra.mxu0 %v1175
        %2612 = vmatprep.subr.mxu0 %v1180
        %2613 = vmatpush1.msra.mxu0 %v1179
        %2614 = vmatprep.subr.mxu0 %v1184
        %2615 = vmatpush1.msra.mxu0 %v1183
        %2616 = vmatprep.subr.mxu0 %v1188
        %2617 = vmatpush1.msra.mxu0 %v1187
        %2618 = vmatprep.subr.mxu0 %v1192
        %2619 = vmatpush1.msra.mxu0 %v1191
        %2620 = vmatprep.subr.mxu0 %v1196
        %2621 = vmatpush1.msra.mxu0 %v1195
        %2622 = vmatprep.mubr.f32.mxu0 %v2549
        %2623 = vmatmul.mubr.f32.gmra.mrb[0].mxu0 %v2548
        %v2624 = vpop.f32.mrb[0].mxu0
        %v2625 = vadd.f32 0.0, %v2624
        %v2626 = vpop.f32.mrb[0].mxu0
        %v2627 = vadd.f32 0.0, %v2626
        %2628 = vmatprep.mubr.f32.mxu0 %v2551
        %2629 = vmatmul.mubr.f32.gmra.mrb[0].mxu0 %v2550
        %v2630 = vpop.f32.mrb[0].mxu0
        %v2631 = vadd.f32 0.0, %v2630
        %v2632 = vpop.f32.mrb[0].mxu0
        %v2633 = vadd.f32 0.0, %v2632
        %2634 = vmatprep.mubr.f32.mxu0 %v2553
        %2635 = vmatmul.mubr.f32.gmra.mrb[0].mxu0 %v2552
        %v2636 = vpop.f32.mrb[0].mxu0
        %v2637 = vadd.f32 0.0, %v2636
        %v2638 = vpop.f32.mrb[0].mxu0
        %v2639 = vadd.f32 0.0, %v2638
        %2640 = vmatprep.mubr.f32.mxu0 %v2557
        %2641 = vmatmul.mubr.f32.gmra.mrb[0].mxu0 %v2556
        %v2642 = vpop.f32.mrb[0].mxu0
        %v2643 = vadd.f32 0.0, %v2642
        %v2644 = vpop.f32.mrb[0].mxu0
        %v2645 = vadd.f32 0.0, %v2644
        %2646 = vdwg.mxu0
        %2647 = vmatprep.subr.mxu0 %v1074
        %2648 = vmatpush1.msra.mxu0 %v1073
        %2649 = vmatprep.subr.mxu0 %v1078
        %2650 = vmatpush1.msra.mxu0 %v1077
        %2651 = vmatprep.subr.mxu0 %v1082
        %2652 = vmatpush1.msra.mxu0 %v1081
        %2653 = vmatprep.subr.mxu0 %v1086
        %2654 = vmatpush1.msra.mxu0 %v1085
        %2655 = vmatprep.subr.mxu0 %v1090
        %2656 = vmatpush1.msra.mxu0 %v1089
        %2657 = vmatprep.subr.mxu0 %v1094
        %2658 = vmatpush1.msra.mxu0 %v1093
        %2659 = vmatprep.subr.mxu0 %v1098
        %2660 = vmatpush1.msra.mxu0 %v1097
        %2661 = vmatprep.subr.mxu0 %v1102
        %2662 = vmatpush1.msra.mxu0 %v1101
        %2663 = vmatprep.subr.mxu0 %v1106
        %2664 = vmatpush1.msra.mxu0 %v1105
        %2665 = vmatprep.subr.mxu0 %v1110
        %2666 = vmatpush1.msra.mxu0 %v1109
        %2667 = vmatprep.subr.mxu0 %v1114
        %2668 = vmatpush1.msra.mxu0 %v1113
        %2669 = vmatprep.subr.mxu0 %v1118
        %2670 = vmatpush1.msra.mxu0 %v1117
        %2671 = vmatprep.subr.mxu0 %v1122
        %2672 = vmatpush1.msra.mxu0 %v1121
        %2673 = vmatprep.subr.mxu0 %v1126
        %2674 = vmatpush1.msra.mxu0 %v1125
        %2675 = vmatprep.subr.mxu0 %v1130
        %2676 = vmatpush1.msra.mxu0 %v1129
        %2677 = vmatprep.subr.mxu0 %v1134
        %2678 = vmatpush1.msra.mxu0 %v1133
        %2679 = vmatprep.subr.mxu0 %v1138
        %2680 = vmatpush1.msra.mxu0 %v1137
        %2681 = vmatprep.subr.mxu0 %v1142
        %2682 = vmatpush1.msra.mxu0 %v1141
        %2683 = vmatprep.subr.mxu0 %v1146
        %2684 = vmatpush1.msra.mxu0 %v1145
        %2685 = vmatprep.subr.mxu0 %v1150
        %2686 = vmatpush1.msra.mxu0 %v1149
        %2687 = vmatprep.subr.mxu0 %v1154
        %2688 = vmatpush1.msra.mxu0 %v1153
        %2689 = vmatprep.subr.mxu0 %v1158
        %2690 = vmatpush1.msra.mxu0 %v1157
        %2691 = vmatprep.subr.mxu0 %v1162
        %2692 = vmatpush1.msra.mxu0 %v1161
        %2693 = vmatprep.subr.mxu0 %v1166
        %2694 = vmatpush1.msra.mxu0 %v1165
        %2695 = vmatprep.subr.mxu0 %v1170
        %2696 = vmatpush1.msra.mxu0 %v1169
        %2697 = vmatprep.subr.mxu0 %v1174
        %2698 = vmatpush1.msra.mxu0 %v1173
        %2699 = vmatprep.subr.mxu0 %v1178
        %2700 = vmatpush1.msra.mxu0 %v1177
        %2701 = vmatprep.subr.mxu0 %v1182
        %2702 = vmatpush1.msra.mxu0 %v1181
        %2703 = vmatprep.subr.mxu0 %v1186
        %2704 = vmatpush1.msra.mxu0 %v1185
        %2705 = vmatprep.subr.mxu0 %v1190
        %2706 = vmatpush1.msra.mxu0 %v1189
        %2707 = vmatprep.subr.mxu0 %v1194
        %2708 = vmatpush1.msra.mxu0 %v1193
        %2709 = vmatprep.subr.mxu0 %v1198
        %2710 = vmatpush1.msra.mxu0 %v1197
        %2711 = vmatprep.mubr.f32.mxu0 %v2549
        %2712 = vmatmul.mubr.f32.gmra.mrb[0].mxu0 %v2548
        %v2713 = vpop.f32.mrb[0].mxu0
        %v2714 = vadd.f32 0.0, %v2713
        %v2715 = vpop.f32.mrb[0].mxu0
        %v2716 = vadd.f32 0.0, %v2715
        %2717 = vmatprep.mubr.f32.mxu0 %v2551
        %2718 = vmatmul.mubr.f32.gmra.mrb[0].mxu0 %v2550
        %v2719 = vpop.f32.mrb[0].mxu0
        %v2720 = vadd.f32 0.0, %v2719
        %v2721 = vpop.f32.mrb[0].mxu0
        %v2722 = vadd.f32 0.0, %v2721
        %2723 = vmatprep.mubr.f32.mxu0 %v2553
        %2724 = vmatmul.mubr.f32.gmra.mrb[0].mxu0 %v2552
        %v2725 = vpop.f32.mrb[0].mxu0
        %v2726 = vadd.f32 0.0, %v2725
        %v2727 = vpop.f32.mrb[0].mxu0
        %v2728 = vadd.f32 0.0, %v2727
        %2729 = vmatprep.mubr.f32.mxu0 %v2557
        %2730 = vmatmul.mubr.f32.gmra.mrb[0].mxu0 %v2556
        %v2731 = vpop.f32.mrb[0].mxu0
        %v2732 = vadd.f32 0.0, %v2731
        %v2733 = vpop.f32.mrb[0].mxu0
        %v2734 = vadd.f32 0.0, %v2733
        %2735 = vdwg.mxu0
        %v2746 = vrot.slane %v2546, 7
        %v2747 = vrot.slane %v2548, 7
        %v2748 = vsel %vm1657, %v2746, %v2747
        %v2749 = vrot.slane %v2547, 7
        %v2750 = vrot.slane %v2549, 7
        %v2751 = vsel %vm1657, %v2749, %v2750
        %v2752 = vrot.slane %v2550, 7
        %v2753 = vsel %vm1657, %v2747, %v2752
        %v2754 = vrot.slane %v2551, 7
        %v2755 = vsel %vm1657, %v2750, %v2754
        %v2756 = vrot.slane %v2552, 7
        %v2757 = vsel %vm1657, %v2752, %v2756
        %v2758 = vrot.slane %v2553, 7
        %v2759 = vsel %vm1657, %v2754, %v2758
        %v2760 = vrot.slane %v2554, 7
        %v2761 = vsel %vm1657, %v2756, %v2760
        %v2762 = vrot.slane %v2555, 7
        %v2763 = vsel %vm1657, %v2758, %v2762
        %2772 = vmatprep.subr.mxu0 %v943
        %2773 = vmatpush1.msra.mxu0 %v942
        %2774 = vmatprep.subr.mxu0 %v947
        %2775 = vmatpush1.msra.mxu0 %v946
        %2776 = vmatprep.subr.mxu0 %v951
        %2777 = vmatpush1.msra.mxu0 %v950
        %2778 = vmatprep.subr.mxu0 %v955
        %2779 = vmatpush1.msra.mxu0 %v954
        %2780 = vmatprep.subr.mxu0 %v959
        %2781 = vmatpush1.msra.mxu0 %v958
        %2782 = vmatprep.subr.mxu0 %v963
        %2783 = vmatpush1.msra.mxu0 %v962
        %2784 = vmatprep.subr.mxu0 %v967
        %2785 = vmatpush1.msra.mxu0 %v966
        %2786 = vmatprep.subr.mxu0 %v971
        %2787 = vmatpush1.msra.mxu0 %v970
        %2788 = vmatprep.subr.mxu0 %v975
        %2789 = vmatpush1.msra.mxu0 %v974
        %2790 = vmatprep.subr.mxu0 %v979
        %2791 = vmatpush1.msra.mxu0 %v978
        %2792 = vmatprep.subr.mxu0 %v983
        %2793 = vmatpush1.msra.mxu0 %v982
        %2794 = vmatprep.subr.mxu0 %v987
        %2795 = vmatpush1.msra.mxu0 %v986
        %2796 = vmatprep.subr.mxu0 %v991
        %2797 = vmatpush1.msra.mxu0 %v990
        %2798 = vmatprep.subr.mxu0 %v995
        %2799 = vmatpush1.msra.mxu0 %v994
        %2800 = vmatprep.subr.mxu0 %v999
        %2801 = vmatpush1.msra.mxu0 %v998
        %2802 = vmatprep.subr.mxu0 %v1003
        %2803 = vmatpush1.msra.mxu0 %v1002
        %2804 = vmatprep.subr.mxu0 %v1007
        %2805 = vmatpush1.msra.mxu0 %v1006
        %2806 = vmatprep.subr.mxu0 %v1011
        %2807 = vmatpush1.msra.mxu0 %v1010
        %2808 = vmatprep.subr.mxu0 %v1015
        %2809 = vmatpush1.msra.mxu0 %v1014
        %2810 = vmatprep.subr.mxu0 %v1019
        %2811 = vmatpush1.msra.mxu0 %v1018
        %2812 = vmatprep.subr.mxu0 %v1023
        %2813 = vmatpush1.msra.mxu0 %v1022
        %2814 = vmatprep.subr.mxu0 %v1027
        %2815 = vmatpush1.msra.mxu0 %v1026
        %2816 = vmatprep.subr.mxu0 %v1031
        %2817 = vmatpush1.msra.mxu0 %v1030
        %2818 = vmatprep.subr.mxu0 %v1035
        %2819 = vmatpush1.msra.mxu0 %v1034
        %2820 = vmatprep.subr.mxu0 %v1039
        %2821 = vmatpush1.msra.mxu0 %v1038
        %2822 = vmatprep.subr.mxu0 %v1043
        %2823 = vmatpush1.msra.mxu0 %v1042
        %2824 = vmatprep.subr.mxu0 %v1047
        %2825 = vmatpush1.msra.mxu0 %v1046
        %2826 = vmatprep.subr.mxu0 %v1051
        %2827 = vmatpush1.msra.mxu0 %v1050
        %2828 = vmatprep.subr.mxu0 %v1055
        %2829 = vmatpush1.msra.mxu0 %v1054
        %2830 = vmatprep.subr.mxu0 %v1059
        %2831 = vmatpush1.msra.mxu0 %v1058
        %2832 = vmatprep.subr.mxu0 %v1063
        %2833 = vmatpush1.msra.mxu0 %v1062
        %2834 = vmatprep.subr.mxu0 %v1067
        %2835 = vmatpush1.msra.mxu0 %v1066
        %2836 = vmatprep.mubr.f32.mxu0 %v2751
        %2837 = vmatmul.mubr.f32.gmra.mrb[0].mxu0 %v2748
        %v2838 = vpop.f32.mrb[0].mxu0
        %v2839 = vadd.f32 %v2625, %v2838
        %v2840 = vpop.f32.mrb[0].mxu0
        %v2841 = vadd.f32 %v2627, %v2840
        %2842 = vmatprep.mubr.f32.mxu0 %v2755
        %2843 = vmatmul.mubr.f32.gmra.mrb[0].mxu0 %v2753
        %v2844 = vpop.f32.mrb[0].mxu0
        %v2845 = vadd.f32 %v2631, %v2844
        %v2846 = vpop.f32.mrb[0].mxu0
        %v2847 = vadd.f32 %v2633, %v2846
        %2848 = vmatprep.mubr.f32.mxu0 %v2759
        %2849 = vmatmul.mubr.f32.gmra.mrb[0].mxu0 %v2757
        %v2850 = vpop.f32.mrb[0].mxu0
        %v2851 = vadd.f32 %v2637, %v2850
        %v2852 = vpop.f32.mrb[0].mxu0
        %v2853 = vadd.f32 %v2639, %v2852
        %2854 = vmatprep.mubr.f32.mxu0 %v2763
        %2855 = vmatmul.mubr.f32.gmra.mrb[0].mxu0 %v2761
        %v2856 = vpop.f32.mrb[0].mxu0
        %v2857 = vadd.f32 %v2643, %v2856
        %v2858 = vpop.f32.mrb[0].mxu0
        %v2859 = vadd.f32 %v2645, %v2858
        %2860 = vdwg.mxu0
        %2861 = vmatprep.subr.mxu0 %v945
        %2862 = vmatpush1.msra.mxu0 %v944
        %2863 = vmatprep.subr.mxu0 %v949
        %2864 = vmatpush1.msra.mxu0 %v948
        %2865 = vmatprep.subr.mxu0 %v953
        %2866 = vmatpush1.msra.mxu0 %v952
        %2867 = vmatprep.subr.mxu0 %v957
        %2868 = vmatpush1.msra.mxu0 %v956
        %2869 = vmatprep.subr.mxu0 %v961
        %2870 = vmatpush1.msra.mxu0 %v960
        %2871 = vmatprep.subr.mxu0 %v965
        %2872 = vmatpush1.msra.mxu0 %v964
        %2873 = vmatprep.subr.mxu0 %v969
        %2874 = vmatpush1.msra.mxu0 %v968
        %2875 = vmatprep.subr.mxu0 %v973
        %2876 = vmatpush1.msra.mxu0 %v972
        %2877 = vmatprep.subr.mxu0 %v977
        %2878 = vmatpush1.msra.mxu0 %v976
        %2879 = vmatprep.subr.mxu0 %v981
        %2880 = vmatpush1.msra.mxu0 %v980
        %2881 = vmatprep.subr.mxu0 %v985
        %2882 = vmatpush1.msra.mxu0 %v984
        %2883 = vmatprep.subr.mxu0 %v989
        %2884 = vmatpush1.msra.mxu0 %v988
        %2885 = vmatprep.subr.mxu0 %v993
        %2886 = vmatpush1.msra.mxu0 %v992
        %2887 = vmatprep.subr.mxu0 %v997
        %2888 = vmatpush1.msra.mxu0 %v996
        %2889 = vmatprep.subr.mxu0 %v1001
        %2890 = vmatpush1.msra.mxu0 %v1000
        %2891 = vmatprep.subr.mxu0 %v1005
        %2892 = vmatpush1.msra.mxu0 %v1004
        %2893 = vmatprep.subr.mxu0 %v1009
        %2894 = vmatpush1.msra.mxu0 %v1008
        %2895 = vmatprep.subr.mxu0 %v1013
        %2896 = vmatpush1.msra.mxu0 %v1012
        %2897 = vmatprep.subr.mxu0 %v1017
        %2898 = vmatpush1.msra.mxu0 %v1016
        %2899 = vmatprep.subr.mxu0 %v1021
        %2900 = vmatpush1.msra.mxu0 %v1020
        %2901 = vmatprep.subr.mxu0 %v1025
        %2902 = vmatpush1.msra.mxu0 %v1024
        %2903 = vmatprep.subr.mxu0 %v1029
        %2904 = vmatpush1.msra.mxu0 %v1028
        %2905 = vmatprep.subr.mxu0 %v1033
        %2906 = vmatpush1.msra.mxu0 %v1032
        %2907 = vmatprep.subr.mxu0 %v1037
        %2908 = vmatpush1.msra.mxu0 %v1036
        %2909 = vmatprep.subr.mxu0 %v1041
        %2910 = vmatpush1.msra.mxu0 %v1040
        %2911 = vmatprep.subr.mxu0 %v1045
        %2912 = vmatpush1.msra.mxu0 %v1044
        %2913 = vmatprep.subr.mxu0 %v1049
        %2914 = vmatpush1.msra.mxu0 %v1048
        %2915 = vmatprep.subr.mxu0 %v1053
        %2916 = vmatpush1.msra.mxu0 %v1052
        %2917 = vmatprep.subr.mxu0 %v1057
        %2918 = vmatpush1.msra.mxu0 %v1056
        %2919 = vmatprep.subr.mxu0 %v1061
        %2920 = vmatpush1.msra.mxu0 %v1060
        %2921 = vmatprep.subr.mxu0 %v1065
        %2922 = vmatpush1.msra.mxu0 %v1064
        %2923 = vmatprep.subr.mxu0 %v1069
        %2924 = vmatpush1.msra.mxu0 %v1068
        %2925 = vmatprep.mubr.f32.mxu0 %v2751
        %2926 = vmatmul.mubr.f32.gmra.mrb[0].mxu0 %v2748
        %v2927 = vpop.f32.mrb[0].mxu0
        %v2928 = vadd.f32 %v2714, %v2927
        %v2929 = vpop.f32.mrb[0].mxu0
        %v2930 = vadd.f32 %v2716, %v2929
        %2931 = vmatprep.mubr.f32.mxu0 %v2755
        %2932 = vmatmul.mubr.f32.gmra.mrb[0].mxu0 %v2753
        %v2933 = vpop.f32.mrb[0].mxu0
        %v2934 = vadd.f32 %v2720, %v2933
        %v2935 = vpop.f32.mrb[0].mxu0
        %v2936 = vadd.f32 %v2722, %v2935
        %2937 = vmatprep.mubr.f32.mxu0 %v2759
        %2938 = vmatmul.mubr.f32.gmra.mrb[0].mxu0 %v2757
        %v2939 = vpop.f32.mrb[0].mxu0
        %v2940 = vadd.f32 %v2726, %v2939
        %v2941 = vpop.f32.mrb[0].mxu0
        %v2942 = vadd.f32 %v2728, %v2941
        %2943 = vmatprep.mubr.f32.mxu0 %v2763
        %2944 = vmatmul.mubr.f32.gmra.mrb[0].mxu0 %v2761
        %v2945 = vpop.f32.mrb[0].mxu0
        %v2946 = vadd.f32 %v2732, %v2945
        %v2947 = vpop.f32.mrb[0].mxu0
        %v2948 = vadd.f32 %v2734, %v2947
        %2949 = vdwg.mxu0
        %v2950 = vld [vmem:[#allocation2 + $0x50] sm:$0xfe]
        %v2951 = vld [vmem:[#allocation2 + $0x58] sm:$0xfe]
        %v2952 = vld [vmem:[#allocation2 + $0x60] sm:$0xff]
        %v2953 = vld [vmem:[#allocation2 + $0x68] sm:$0xff]
        %v2954 = vld [vmem:[#allocation2 + $0x70] sm:$0xff]
        %v2955 = vld [vmem:[#allocation2 + $0x78] sm:$0xff]
        %v2956 = vld [vmem:[#allocation2 + $0x80] sm:$0xff]
        %v2957 = vld [vmem:[#allocation2 + $0x88] sm:$0xff]
        %v2958 = vld [vmem:[#allocation2 + $0x90] sm:$0x1]
        %v2959 = vld [vmem:[#allocation2 + $0x98] sm:$0x1]
        %v2970 = vrot.slane %v2950, 1
        %v2971 = vrot.slane %v2952, 1
        %v2972 = vsel %vm1882, %v2970, %v2971
        %v2973 = vrot.slane %v2951, 1
        %v2974 = vrot.slane %v2953, 1
        %v2975 = vsel %vm1882, %v2973, %v2974
        %v2976 = vrot.slane %v2954, 1
        %v2977 = vsel %vm1882, %v2971, %v2976
        %v2978 = vrot.slane %v2955, 1
        %v2979 = vsel %vm1882, %v2974, %v2978
        %v2980 = vrot.slane %v2956, 1
        %v2981 = vsel %vm1882, %v2976, %v2980
        %v2982 = vrot.slane %v2957, 1
        %v2983 = vsel %vm1882, %v2978, %v2982
        %v2984 = vrot.slane %v2958, 1
        %v2985 = vsel %vm1882, %v2980, %v2984
        %v2986 = vrot.slane %v2959, 1
        %v2987 = vsel %vm1882, %v2982, %v2986
        %2996 = vmatprep.subr.mxu0 %v1201
        %2997 = vmatpush1.msra.mxu0 %v1200
        %2998 = vmatprep.subr.mxu0 %v1205
        %2999 = vmatpush1.msra.mxu0 %v1204
        %3000 = vmatprep.subr.mxu0 %v1209
        %3001 = vmatpush1.msra.mxu0 %v1208
        %3002 = vmatprep.subr.mxu0 %v1213
        %3003 = vmatpush1.msra.mxu0 %v1212
        %3004 = vmatprep.subr.mxu0 %v1217
        %3005 = vmatpush1.msra.mxu0 %v1216
        %3006 = vmatprep.subr.mxu0 %v1221
        %3007 = vmatpush1.msra.mxu0 %v1220
        %3008 = vmatprep.subr.mxu0 %v1225
        %3009 = vmatpush1.msra.mxu0 %v1224
        %3010 = vmatprep.subr.mxu0 %v1229
        %3011 = vmatpush1.msra.mxu0 %v1228
        %3012 = vmatprep.subr.mxu0 %v1233
        %3013 = vmatpush1.msra.mxu0 %v1232
        %3014 = vmatprep.subr.mxu0 %v1237
        %3015 = vmatpush1.msra.mxu0 %v1236
        %3016 = vmatprep.subr.mxu0 %v1241
        %3017 = vmatpush1.msra.mxu0 %v1240
        %3018 = vmatprep.subr.mxu0 %v1245
        %3019 = vmatpush1.msra.mxu0 %v1244
        %3020 = vmatprep.subr.mxu0 %v1249
        %3021 = vmatpush1.msra.mxu0 %v1248
        %3022 = vmatprep.subr.mxu0 %v1253
        %3023 = vmatpush1.msra.mxu0 %v1252
        %3024 = vmatprep.subr.mxu0 %v1257
        %3025 = vmatpush1.msra.mxu0 %v1256
        %3026 = vmatprep.subr.mxu0 %v1261
        %3027 = vmatpush1.msra.mxu0 %v1260
        %3028 = vmatprep.subr.mxu0 %v1265
        %3029 = vmatpush1.msra.mxu0 %v1264
        %3030 = vmatprep.subr.mxu0 %v1269
        %3031 = vmatpush1.msra.mxu0 %v1268
        %3032 = vmatprep.subr.mxu0 %v1273
        %3033 = vmatpush1.msra.mxu0 %v1272
        %3034 = vmatprep.subr.mxu0 %v1277
        %3035 = vmatpush1.msra.mxu0 %v1276
        %3036 = vmatprep.subr.mxu0 %v1281
        %3037 = vmatpush1.msra.mxu0 %v1280
        %3038 = vmatprep.subr.mxu0 %v1285
        %3039 = vmatpush1.msra.mxu0 %v1284
        %3040 = vmatprep.subr.mxu0 %v1289
        %3041 = vmatpush1.msra.mxu0 %v1288
        %3042 = vmatprep.subr.mxu0 %v1293
        %3043 = vmatpush1.msra.mxu0 %v1292
        %3044 = vmatprep.subr.mxu0 %v1297
        %3045 = vmatpush1.msra.mxu0 %v1296
        %3046 = vmatprep.subr.mxu0 %v1301
        %3047 = vmatpush1.msra.mxu0 %v1300
        %3048 = vmatprep.subr.mxu0 %v1305
        %3049 = vmatpush1.msra.mxu0 %v1304
        %3050 = vmatprep.subr.mxu0 %v1309
        %3051 = vmatpush1.msra.mxu0 %v1308
        %3052 = vmatprep.subr.mxu0 %v1313
        %3053 = vmatpush1.msra.mxu0 %v1312
        %3054 = vmatprep.subr.mxu0 %v1317
        %3055 = vmatpush1.msra.mxu0 %v1316
        %3056 = vmatprep.subr.mxu0 %v1321
        %3057 = vmatpush1.msra.mxu0 %v1320
        %3058 = vmatprep.subr.mxu0 %v1325
        %3059 = vmatpush1.msra.mxu0 %v1324
        %3060 = vmatprep.mubr.f32.mxu0 %v2975
        %3061 = vmatmul.mubr.f32.gmra.mrb[0].mxu0 %v2972
        %v3062 = vpop.f32.mrb[0].mxu0
        %v3063 = vadd.f32 0.0, %v3062
        %v3064 = vpop.f32.mrb[0].mxu0
        %v3065 = vadd.f32 0.0, %v3064
        %3066 = vmatprep.mubr.f32.mxu0 %v2979
        %3067 = vmatmul.mubr.f32.gmra.mrb[0].mxu0 %v2977
        %v3068 = vpop.f32.mrb[0].mxu0
        %v3069 = vadd.f32 0.0, %v3068
        %v3070 = vpop.f32.mrb[0].mxu0
        %v3071 = vadd.f32 0.0, %v3070
        %3072 = vmatprep.mubr.f32.mxu0 %v2983
        %3073 = vmatmul.mubr.f32.gmra.mrb[0].mxu0 %v2981
        %v3074 = vpop.f32.mrb[0].mxu0
        %v3075 = vadd.f32 0.0, %v3074
        %v3076 = vpop.f32.mrb[0].mxu0
        %v3077 = vadd.f32 0.0, %v3076
        %3078 = vmatprep.mubr.f32.mxu0 %v2987
        %3079 = vmatmul.mubr.f32.gmra.mrb[0].mxu0 %v2985
        %v3080 = vpop.f32.mrb[0].mxu0
        %v3081 = vadd.f32 0.0, %v3080
        %v3082 = vpop.f32.mrb[0].mxu0
        %v3083 = vadd.f32 0.0, %v3082
        %3084 = vdwg.mxu0
        %3085 = vmatprep.subr.mxu0 %v1203
        %3086 = vmatpush1.msra.mxu0 %v1202
        %3087 = vmatprep.subr.mxu0 %v1207
        %3088 = vmatpush1.msra.mxu0 %v1206
        %3089 = vmatprep.subr.mxu0 %v1211
        %3090 = vmatpush1.msra.mxu0 %v1210
        %3091 = vmatprep.subr.mxu0 %v1215
        %3092 = vmatpush1.msra.mxu0 %v1214
        %3093 = vmatprep.subr.mxu0 %v1219
        %3094 = vmatpush1.msra.mxu0 %v1218
        %3095 = vmatprep.subr.mxu0 %v1223
        %3096 = vmatpush1.msra.mxu0 %v1222
        %3097 = vmatprep.subr.mxu0 %v1227
        %3098 = vmatpush1.msra.mxu0 %v1226
        %3099 = vmatprep.subr.mxu0 %v1231
        %3100 = vmatpush1.msra.mxu0 %v1230
        %3101 = vmatprep.subr.mxu0 %v1235
        %3102 = vmatpush1.msra.mxu0 %v1234
        %3103 = vmatprep.subr.mxu0 %v1239
        %3104 = vmatpush1.msra.mxu0 %v1238
        %3105 = vmatprep.subr.mxu0 %v1243
        %3106 = vmatpush1.msra.mxu0 %v1242
        %3107 = vmatprep.subr.mxu0 %v1247
        %3108 = vmatpush1.msra.mxu0 %v1246
        %3109 = vmatprep.subr.mxu0 %v1251
        %3110 = vmatpush1.msra.mxu0 %v1250
        %3111 = vmatprep.subr.mxu0 %v1255
        %3112 = vmatpush1.msra.mxu0 %v1254
        %3113 = vmatprep.subr.mxu0 %v1259
        %3114 = vmatpush1.msra.mxu0 %v1258
        %3115 = vmatprep.subr.mxu0 %v1263
        %3116 = vmatpush1.msra.mxu0 %v1262
        %3117 = vmatprep.subr.mxu0 %v1267
        %3118 = vmatpush1.msra.mxu0 %v1266
        %3119 = vmatprep.subr.mxu0 %v1271
        %3120 = vmatpush1.msra.mxu0 %v1270
        %3121 = vmatprep.subr.mxu0 %v1275
        %3122 = vmatpush1.msra.mxu0 %v1274
        %3123 = vmatprep.subr.mxu0 %v1279
        %3124 = vmatpush1.msra.mxu0 %v1278
        %3125 = vmatprep.subr.mxu0 %v1283
        %3126 = vmatpush1.msra.mxu0 %v1282
        %3127 = vmatprep.subr.mxu0 %v1287
        %3128 = vmatpush1.msra.mxu0 %v1286
        %3129 = vmatprep.subr.mxu0 %v1291
        %3130 = vmatpush1.msra.mxu0 %v1290
        %3131 = vmatprep.subr.mxu0 %v1295
        %3132 = vmatpush1.msra.mxu0 %v1294
        %3133 = vmatprep.subr.mxu0 %v1299
        %3134 = vmatpush1.msra.mxu0 %v1298
        %3135 = vmatprep.subr.mxu0 %v1303
        %3136 = vmatpush1.msra.mxu0 %v1302
        %3137 = vmatprep.subr.mxu0 %v1307
        %3138 = vmatpush1.msra.mxu0 %v1306
        %3139 = vmatprep.subr.mxu0 %v1311
        %3140 = vmatpush1.msra.mxu0 %v1310
        %3141 = vmatprep.subr.mxu0 %v1315
        %3142 = vmatpush1.msra.mxu0 %v1314
        %3143 = vmatprep.subr.mxu0 %v1319
        %3144 = vmatpush1.msra.mxu0 %v1318
        %3145 = vmatprep.subr.mxu0 %v1323
        %3146 = vmatpush1.msra.mxu0 %v1322
        %3147 = vmatprep.subr.mxu0 %v1327
        %3148 = vmatpush1.msra.mxu0 %v1326
        %3149 = vmatprep.mubr.f32.mxu0 %v2975
        %3150 = vmatmul.mubr.f32.gmra.mrb[0].mxu0 %v2972
        %v3151 = vpop.f32.mrb[0].mxu0
        %v3152 = vadd.f32 0.0, %v3151
        %v3153 = vpop.f32.mrb[0].mxu0
        %v3154 = vadd.f32 0.0, %v3153
        %3155 = vmatprep.mubr.f32.mxu0 %v2979
        %3156 = vmatmul.mubr.f32.gmra.mrb[0].mxu0 %v2977
        %v3157 = vpop.f32.mrb[0].mxu0
        %v3158 = vadd.f32 0.0, %v3157
        %v3159 = vpop.f32.mrb[0].mxu0
        %v3160 = vadd.f32 0.0, %v3159
        %3161 = vmatprep.mubr.f32.mxu0 %v2983
        %3162 = vmatmul.mubr.f32.gmra.mrb[0].mxu0 %v2981
        %v3163 = vpop.f32.mrb[0].mxu0
        %v3164 = vadd.f32 0.0, %v3163
        %v3165 = vpop.f32.mrb[0].mxu0
        %v3166 = vadd.f32 0.0, %v3165
        %3167 = vmatprep.mubr.f32.mxu0 %v2987
        %3168 = vmatmul.mubr.f32.gmra.mrb[0].mxu0 %v2985
        %v3169 = vpop.f32.mrb[0].mxu0
        %v3170 = vadd.f32 0.0, %v3169
        %v3171 = vpop.f32.mrb[0].mxu0
        %v3172 = vadd.f32 0.0, %v3171
        %3173 = vdwg.mxu0
        %v3174 = vadd.f32 %v2839, %v3063
        %v3175 = vadd.f32 %v2841, %v3065
        %v3176 = vadd.f32 %v2928, %v3152
        %v3177 = vadd.f32 %v2930, %v3154
        %v3178 = vadd.f32 %v2845, %v3069
        %v3179 = vadd.f32 %v2847, %v3071
        %v3180 = vadd.f32 %v2934, %v3158
        %v3181 = vadd.f32 %v2936, %v3160
        %v3182 = vadd.f32 %v2851, %v3075
        %v3183 = vadd.f32 %v2853, %v3077
        %v3184 = vadd.f32 %v2940, %v3164
        %v3185 = vadd.f32 %v2942, %v3166
        %v3186 = vadd.f32 %v2857, %v3081
        %v3187 = vadd.f32 %v2859, %v3083
        %v3188 = vadd.f32 %v2946, %v3170
        %v3189 = vadd.f32 %v2948, %v3172
        %v3190 = vadd.f32 %v3174, %v2107
        %v3191 = vadd.f32 %v3175, %v2111
        %v3192 = vadd.f32 %v3176, %v2115
        %v3193 = vadd.f32 %v3177, %v2119
        %v3194 = vadd.f32 %v3178, %v2107
        %v3195 = vadd.f32 %v3179, %v2111
        %v3196 = vadd.f32 %v3180, %v2115
        %v3197 = vadd.f32 %v3181, %v2119
        %v3198 = vadd.f32 %v3182, %v2107
        %v3199 = vadd.f32 %v3183, %v2111
        %v3200 = vadd.f32 %v3184, %v2115
        %v3201 = vadd.f32 %v3185, %v2119
        %v3202 = vadd.f32 %v3186, %v2107
        %v3203 = vadd.f32 %v3187, %v2111
        %v3204 = vadd.f32 %v3188, %v2115
        %v3205 = vadd.f32 %v3189, %v2119
        %v3206 = vld [vmem:[#allocation7 + $0x80] sm:$0xff]
        %v3207 = vld [vmem:[#allocation7 + $0x88] sm:$0xff]
        %v3208 = vld [vmem:[#allocation7 + $0x90] sm:$0xff]
        %v3209 = vld [vmem:[#allocation7 + $0x98] sm:$0xff]
        %v3210 = vld [vmem:[#allocation7 + $0xa0] sm:$0xff]
        %v3211 = vld [vmem:[#allocation7 + $0xa8] sm:$0xff]
        %v3212 = vld [vmem:[#allocation7 + $0xb0] sm:$0xff]
        %v3213 = vld [vmem:[#allocation7 + $0xb8] sm:$0xff]
        %v3214 = vld [vmem:[#allocation7 + $0xc0] sm:$0xff]
        %v3215 = vld [vmem:[#allocation7 + $0xc8] sm:$0xff]
        %v3216 = vld [vmem:[#allocation7 + $0xd0] sm:$0xff]
        %v3217 = vld [vmem:[#allocation7 + $0xd8] sm:$0xff]
        %v3218 = vld [vmem:[#allocation7 + $0xe0] sm:$0xff]
        %v3219 = vld [vmem:[#allocation7 + $0xe8] sm:$0xff]
        %v3220 = vld [vmem:[#allocation7 + $0xf0] sm:$0xff]
        %v3221 = vld [vmem:[#allocation7 + $0xf8] sm:$0xff]
        %v3222 = vadd.f32 %v3206, %v3190
        %v3223 = vadd.f32 %v3207, %v3191
        %v3224 = vadd.f32 %v3208, %v3192
        %v3225 = vadd.f32 %v3209, %v3193
        %v3226 = vadd.f32 %v3210, %v3194
        %v3227 = vadd.f32 %v3211, %v3195
        %v3228 = vadd.f32 %v3212, %v3196
        %v3229 = vadd.f32 %v3213, %v3197
        %v3230 = vadd.f32 %v3214, %v3198
        %v3231 = vadd.f32 %v3215, %v3199
        %v3232 = vadd.f32 %v3216, %v3200
        %v3233 = vadd.f32 %v3217, %v3201
        %v3234 = vadd.f32 %v3218, %v3202
        %v3235 = vadd.f32 %v3219, %v3203
        %v3236 = vadd.f32 %v3220, %v3204
        %v3237 = vadd.f32 %v3221, %v3205
        %v3238 = vmul.f32 %v3222, 0.5
        %v3239 = vmul.f32 %v3223, 0.5
        %v3240 = vmul.f32 %v3224, 0.5
        %v3241 = vmul.f32 %v3225, 0.5
        %v3242 = vmul.f32 %v3226, 0.5
        %v3243 = vmul.f32 %v3227, 0.5
        %v3244 = vmul.f32 %v3228, 0.5
        %v3245 = vmul.f32 %v3229, 0.5
        %v3246 = vmul.f32 %v3230, 0.5
        %v3247 = vmul.f32 %v3231, 0.5
        %v3248 = vmul.f32 %v3232, 0.5
        %v3249 = vmul.f32 %v3233, 0.5
        %v3250 = vmul.f32 %v3234, 0.5
        %v3251 = vmul.f32 %v3235, 0.5
        %v3252 = vmul.f32 %v3236, 0.5
        %v3253 = vmul.f32 %v3237, 0.5
        %vm3254 = vcmp.ge.f32.partialorder %v3238, 1.0
        %vm3255 = vcmp.ge.f32.partialorder %v3239, 1.0
        %vm3256 = vcmp.ge.f32.partialorder %v3240, 1.0
        %vm3257 = vcmp.ge.f32.partialorder %v3241, 1.0
        %vm3258 = vcmp.ge.f32.partialorder %v3242, 1.0
        %vm3259 = vcmp.ge.f32.partialorder %v3243, 1.0
        %vm3260 = vcmp.ge.f32.partialorder %v3244, 1.0
        %vm3261 = vcmp.ge.f32.partialorder %v3245, 1.0
        %vm3262 = vcmp.ge.f32.partialorder %v3246, 1.0
        %vm3263 = vcmp.ge.f32.partialorder %v3247, 1.0
        %vm3264 = vcmp.ge.f32.partialorder %v3248, 1.0
        %vm3265 = vcmp.ge.f32.partialorder %v3249, 1.0
        %vm3266 = vcmp.ge.f32.partialorder %v3250, 1.0
        %vm3267 = vcmp.ge.f32.partialorder %v3251, 1.0
        %vm3268 = vcmp.ge.f32.partialorder %v3252, 1.0
        %vm3269 = vcmp.ge.f32.partialorder %v3253, 1.0
        %v3270 = vsel %vm3254, 0.0, %v3238
        %v3271 = vsel %vm3255, 0.0, %v3239
        %v3272 = vsel %vm3256, 0.0, %v3240
        %v3273 = vsel %vm3257, 0.0, %v3241
        %v3274 = vsel %vm3258, 0.0, %v3242
        %v3275 = vsel %vm3259, 0.0, %v3243
        %v3276 = vsel %vm3260, 0.0, %v3244
        %v3277 = vsel %vm3261, 0.0, %v3245
        %v3278 = vsel %vm3262, 0.0, %v3246
        %v3279 = vsel %vm3263, 0.0, %v3247
        %v3280 = vsel %vm3264, 0.0, %v3248
        %v3281 = vsel %vm3265, 0.0, %v3249
        %v3282 = vsel %vm3266, 0.0, %v3250
        %v3283 = vsel %vm3267, 0.0, %v3251
        %v3284 = vsel %vm3268, 0.0, %v3252
        %v3285 = vsel %vm3269, 0.0, %v3253
        %3286 = vst [vmem:[#allocation7 + $0x80] sm:$0xff] %v3270
        %3287 = vst [vmem:[#allocation7 + $0x88] sm:$0xff] %v3271
        %3288 = vst [vmem:[#allocation7 + $0x90] sm:$0xff] %v3272
        %3289 = vst [vmem:[#allocation7 + $0x98] sm:$0xff] %v3273
        %3290 = vst [vmem:[#allocation7 + $0xa0] sm:$0xff] %v3274
        %3291 = vst [vmem:[#allocation7 + $0xa8] sm:$0xff] %v3275
        %3292 = vst [vmem:[#allocation7 + $0xb0] sm:$0xff] %v3276
        %3293 = vst [vmem:[#allocation7 + $0xb8] sm:$0xff] %v3277
        %3294 = vst [vmem:[#allocation7 + $0xc0] sm:$0xff] %v3278
        %3295 = vst [vmem:[#allocation7 + $0xc8] sm:$0xff] %v3279
        %3296 = vst [vmem:[#allocation7 + $0xd0] sm:$0xff] %v3280
        %3297 = vst [vmem:[#allocation7 + $0xd8] sm:$0xff] %v3281
        %3298 = vst [vmem:[#allocation7 + $0xe0] sm:$0xff] %v3282
        %3299 = vst [vmem:[#allocation7 + $0xe8] sm:$0xff] %v3283
        %3300 = vst [vmem:[#allocation7 + $0xf0] sm:$0xff] %v3284
        %3301 = vst [vmem:[#allocation7 + $0xf8] sm:$0xff] %v3285
        %v3302 = vsel %vm3254, 1, 0
        %v3303 = vsel %vm3255, 1, 0
        %v3304 = vsel %vm3256, 1, 0
        %v3305 = vsel %vm3257, 1, 0
        %v3306 = vsel %vm3258, 1, 0
        %v3307 = vsel %vm3259, 1, 0
        %v3308 = vsel %vm3260, 1, 0
        %v3309 = vsel %vm3261, 1, 0
        %v3310 = vsel %vm3262, 1, 0
        %v3311 = vsel %vm3263, 1, 0
        %v3312 = vsel %vm3264, 1, 0
        %v3313 = vsel %vm3265, 1, 0
        %v3314 = vsel %vm3266, 1, 0
        %v3315 = vsel %vm3267, 1, 0
        %v3316 = vsel %vm3268, 1, 0
        %v3317 = vsel %vm3269, 1, 0
        %v3318 = vcvt.s32.f32 %v3302
        %v3319 = vcvt.s32.f32 %v3303
        %v3320 = vcvt.s32.f32 %v3304
        %v3321 = vcvt.s32.f32 %v3305
        %v3322 = vcvt.s32.f32 %v3306
        %v3323 = vcvt.s32.f32 %v3307
        %v3324 = vcvt.s32.f32 %v3308
        %v3325 = vcvt.s32.f32 %v3309
        %v3326 = vcvt.s32.f32 %v3310
        %v3327 = vcvt.s32.f32 %v3311
        %v3328 = vcvt.s32.f32 %v3312
        %v3329 = vcvt.s32.f32 %v3313
        %v3330 = vcvt.s32.f32 %v3314
        %v3331 = vcvt.s32.f32 %v3315
        %v3332 = vcvt.s32.f32 %v3316
        %v3333 = vcvt.s32.f32 %v3317
        %3334 = vmatprep.subr.mxu0 %v1330
        %3335 = vmatpush1.msra.mxu0 %v1329
        %3336 = vmatprep.subr.mxu0 %v1332
        %3337 = vmatpush1.msra.mxu0 %v1331
        %3338 = vmatprep.subr.mxu0 %v1334
        %3339 = vmatpush1.msra.mxu0 %v1333
        %3340 = vmatprep.subr.mxu0 %v1336
        %3341 = vmatpush1.msra.mxu0 %v1335
        %3342 = vmatprep.subr.mxu0 %v1338
        %3343 = vmatpush1.msra.mxu0 %v1337
        %3344 = vmatprep.subr.mxu0 %v1340
        %3345 = vmatpush1.msra.mxu0 %v1339
        %3346 = vmatprep.subr.mxu0 %v1342
        %3347 = vmatpush1.msra.mxu0 %v1341
        %3348 = vmatprep.subr.mxu0 %v1344
        %3349 = vmatpush1.msra.mxu0 %v1343
        %3350 = vmatprep.subr.mxu0 %v1346
        %3351 = vmatpush1.msra.mxu0 %v1345
        %3352 = vmatprep.subr.mxu0 %v1348
        %3353 = vmatpush1.msra.mxu0 %v1347
        %3354 = vmatprep.subr.mxu0 %v1350
        %3355 = vmatpush1.msra.mxu0 %v1349
        %3356 = vmatprep.subr.mxu0 %v1352
        %3357 = vmatpush1.msra.mxu0 %v1351
        %3358 = vmatprep.subr.mxu0 %v1354
        %3359 = vmatpush1.msra.mxu0 %v1353
        %3360 = vmatprep.subr.mxu0 %v1356
        %3361 = vmatpush1.msra.mxu0 %v1355
        %3362 = vmatprep.subr.mxu0 %v1358
        %3363 = vmatpush1.msra.mxu0 %v1357
        %3364 = vmatprep.subr.mxu0 %v1360
        %3365 = vmatpush1.msra.mxu0 %v1359
        %3366 = vmatprep.subr.mxu0 %v1362
        %3367 = vmatpush1.msra.mxu0 %v1361
        %3368 = vmatprep.subr.mxu0 %v1364
        %3369 = vmatpush1.msra.mxu0 %v1363
        %3370 = vmatprep.subr.mxu0 %v1366
        %3371 = vmatpush1.msra.mxu0 %v1365
        %3372 = vmatprep.subr.mxu0 %v1368
        %3373 = vmatpush1.msra.mxu0 %v1367
        %3374 = vmatprep.subr.mxu0 %v1370
        %3375 = vmatpush1.msra.mxu0 %v1369
        %3376 = vmatprep.subr.mxu0 %v1372
        %3377 = vmatpush1.msra.mxu0 %v1371
        %3378 = vmatprep.subr.mxu0 %v1374
        %3379 = vmatpush1.msra.mxu0 %v1373
        %3380 = vmatprep.subr.mxu0 %v1376
        %3381 = vmatpush1.msra.mxu0 %v1375
        %3382 = vmatprep.subr.mxu0 %v1378
        %3383 = vmatpush1.msra.mxu0 %v1377
        %3384 = vmatprep.subr.mxu0 %v1380
        %3385 = vmatpush1.msra.mxu0 %v1379
        %3386 = vmatprep.subr.mxu0 %v1382
        %3387 = vmatpush1.msra.mxu0 %v1381
        %3388 = vmatprep.subr.mxu0 %v1384
        %3389 = vmatpush1.msra.mxu0 %v1383
        %3390 = vmatprep.subr.mxu0 %v1386
        %3391 = vmatpush1.msra.mxu0 %v1385
        %3392 = vmatprep.subr.mxu0 %v1388
        %3393 = vmatpush1.msra.mxu0 %v1387
        %3394 = vmatprep.subr.mxu0 %v1390
        %3395 = vmatpush1.msra.mxu0 %v1389
        %3396 = vmatprep.subr.mxu0 %v1392
        %3397 = vmatpush1.msra.mxu0 %v1391
        %3398 = vmatprep.mubr.f32.mxu0 %v3319
        %3399 = vmatmul.mubr.f32.gmra.mrb[0].mxu0 %v3318
        %v3400 = vpop.f32.mrb[0].mxu0
        %v3401 = vadd.f32 0.0, %v3400
        %v3402 = vpop.f32.mrb[0].mxu0
        %v3403 = vadd.f32 0.0, %v3402
        %3404 = vmatprep.mubr.f32.mxu0 %v3323
        %3405 = vmatmul.mubr.f32.gmra.mrb[0].mxu0 %v3322
        %v3406 = vpop.f32.mrb[0].mxu0
        %v3407 = vadd.f32 0.0, %v3406
        %v3408 = vpop.f32.mrb[0].mxu0
        %v3409 = vadd.f32 0.0, %v3408
        %3410 = vmatprep.mubr.f32.mxu0 %v3327
        %3411 = vmatmul.mubr.f32.gmra.mrb[0].mxu0 %v3326
        %v3412 = vpop.f32.mrb[0].mxu0
        %v3413 = vadd.f32 0.0, %v3412
        %v3414 = vpop.f32.mrb[0].mxu0
        %v3415 = vadd.f32 0.0, %v3414
        %3416 = vmatprep.mubr.f32.mxu0 %v3331
        %3417 = vmatmul.mubr.f32.gmra.mrb[0].mxu0 %v3330
        %v3418 = vpop.f32.mrb[0].mxu0
        %v3419 = vadd.f32 0.0, %v3418
        %v3420 = vpop.f32.mrb[0].mxu0
        %v3421 = vadd.f32 0.0, %v3420
        %3422 = vdwg.mxu0
        %3423 = vmatprep.subr.mxu0 %v1394
        %3424 = vmatpush1.msra.mxu0 %v1393
        %3425 = vmatprep.subr.mxu0 %v1396
        %3426 = vmatpush1.msra.mxu0 %v1395
        %3427 = vmatprep.subr.mxu0 %v1398
        %3428 = vmatpush1.msra.mxu0 %v1397
        %3429 = vmatprep.subr.mxu0 %v1400
        %3430 = vmatpush1.msra.mxu0 %v1399
        %3431 = vmatprep.subr.mxu0 %v1402
        %3432 = vmatpush1.msra.mxu0 %v1401
        %3433 = vmatprep.subr.mxu0 %v1404
        %3434 = vmatpush1.msra.mxu0 %v1403
        %3435 = vmatprep.subr.mxu0 %v1406
        %3436 = vmatpush1.msra.mxu0 %v1405
        %3437 = vmatprep.subr.mxu0 %v1408
        %3438 = vmatpush1.msra.mxu0 %v1407
        %3439 = vmatprep.subr.mxu0 %v1410
        %3440 = vmatpush1.msra.mxu0 %v1409
        %3441 = vmatprep.subr.mxu0 %v1412
        %3442 = vmatpush1.msra.mxu0 %v1411
        %3443 = vmatprep.subr.mxu0 %v1414
        %3444 = vmatpush1.msra.mxu0 %v1413
        %3445 = vmatprep.subr.mxu0 %v1416
        %3446 = vmatpush1.msra.mxu0 %v1415
        %3447 = vmatprep.subr.mxu0 %v1418
        %3448 = vmatpush1.msra.mxu0 %v1417
        %3449 = vmatprep.subr.mxu0 %v1420
        %3450 = vmatpush1.msra.mxu0 %v1419
        %3451 = vmatprep.subr.mxu0 %v1422
        %3452 = vmatpush1.msra.mxu0 %v1421
        %3453 = vmatprep.subr.mxu0 %v1424
        %3454 = vmatpush1.msra.mxu0 %v1423
        %3455 = vmatprep.subr.mxu0 %v1426
        %3456 = vmatpush1.msra.mxu0 %v1425
        %3457 = vmatprep.subr.mxu0 %v1428
        %3458 = vmatpush1.msra.mxu0 %v1427
        %3459 = vmatprep.subr.mxu0 %v1430
        %3460 = vmatpush1.msra.mxu0 %v1429
        %3461 = vmatprep.subr.mxu0 %v1432
        %3462 = vmatpush1.msra.mxu0 %v1431
        %3463 = vmatprep.subr.mxu0 %v1434
        %3464 = vmatpush1.msra.mxu0 %v1433
        %3465 = vmatprep.subr.mxu0 %v1436
        %3466 = vmatpush1.msra.mxu0 %v1435
        %3467 = vmatprep.subr.mxu0 %v1438
        %3468 = vmatpush1.msra.mxu0 %v1437
        %3469 = vmatprep.subr.mxu0 %v1440
        %3470 = vmatpush1.msra.mxu0 %v1439
        %3471 = vmatprep.subr.mxu0 %v1442
        %3472 = vmatpush1.msra.mxu0 %v1441
        %3473 = vmatprep.subr.mxu0 %v1444
        %3474 = vmatpush1.msra.mxu0 %v1443
        %3475 = vmatprep.subr.mxu0 %v1446
        %3476 = vmatpush1.msra.mxu0 %v1445
        %3477 = vmatprep.subr.mxu0 %v1448
        %3478 = vmatpush1.msra.mxu0 %v1447
        %3479 = vmatprep.subr.mxu0 %v1450
        %3480 = vmatpush1.msra.mxu0 %v1449
        %3481 = vmatprep.subr.mxu0 %v1452
        %3482 = vmatpush1.msra.mxu0 %v1451
        %3483 = vmatprep.subr.mxu0 %v1454
        %3484 = vmatpush1.msra.mxu0 %v1453
        %3485 = vmatprep.subr.mxu0 %v1456
        %3486 = vmatpush1.msra.mxu0 %v1455
        %3487 = vmatprep.mubr.f32.mxu0 %v3321
        %3488 = vmatmul.mubr.f32.gmra.mrb[0].mxu0 %v3320
        %v3489 = vpop.f32.mrb[0].mxu0
        %v3490 = vadd.f32 %v3401, %v3489
        %v3491 = vpop.f32.mrb[0].mxu0
        %v3492 = vadd.f32 %v3403, %v3491
        %3493 = vmatprep.mubr.f32.mxu0 %v3325
        %3494 = vmatmul.mubr.f32.gmra.mrb[0].mxu0 %v3324
        %v3495 = vpop.f32.mrb[0].mxu0
        %v3496 = vadd.f32 %v3407, %v3495
        %v3497 = vpop.f32.mrb[0].mxu0
        %v3498 = vadd.f32 %v3409, %v3497
        %3499 = vmatprep.mubr.f32.mxu0 %v3329
        %3500 = vmatmul.mubr.f32.gmra.mrb[0].mxu0 %v3328
        %v3501 = vpop.f32.mrb[0].mxu0
        %v3502 = vadd.f32 %v3413, %v3501
        %v3503 = vpop.f32.mrb[0].mxu0
        %v3504 = vadd.f32 %v3415, %v3503
        %3505 = vmatprep.mubr.f32.mxu0 %v3333
        %3506 = vmatmul.mubr.f32.gmra.mrb[0].mxu0 %v3332
        %v3507 = vpop.f32.mrb[0].mxu0
        %v3508 = vadd.f32 %v3419, %v3507
        %v3509 = vpop.f32.mrb[0].mxu0
        %v3510 = vadd.f32 %v3421, %v3509
        %3511 = vdwg.mxu0
        %3512 = vmatprep.subr.mxu0 %v3492
        %3513 = vmatpush1.msra.mxu0 %v3490
        %3514 = vmatprep.subr.mxu0 %v3498
        %3515 = vmatpush1.msra.mxu0 %v3496
        %3516 = vmatprep.subr.mxu0 %v3504
        %3517 = vmatpush1.msra.mxu0 %v3502
        %3518 = vmatprep.subr.mxu0 %v3510
        %3519 = vmatpush1.msra.mxu0 %v3508
        %3520 = vmatprep.subr.mxu0 0.0
        %3521 = vmatpush1.msra.mxu0 0.0
        %3522 = vmatprep.subr.mxu0 0.0
        %3523 = vmatpush1.msra.mxu0 0.0
        %3524 = vmatprep.subr.mxu0 0.0
        %3525 = vmatpush1.msra.mxu0 0.0
        %3526 = vmatprep.subr.mxu0 0.0
        %3527 = vmatpush1.msra.mxu0 0.0
        %3528 = vmatprep.subr.mxu0 0.0
        %3529 = vmatpush1.msra.mxu0 0.0
        %3530 = vmatprep.subr.mxu0 0.0
        %3531 = vmatpush1.msra.mxu0 0.0
        %3532 = vmatprep.subr.mxu0 0.0
        %3533 = vmatpush1.msra.mxu0 0.0
        %3534 = vmatprep.subr.mxu0 0.0
        %3535 = vmatpush1.msra.mxu0 0.0
        %3536 = vmatprep.subr.mxu0 0.0
        %3537 = vmatpush1.msra.mxu0 0.0
        %3538 = vmatprep.subr.mxu0 0.0
        %3539 = vmatpush1.msra.mxu0 0.0
        %3540 = vmatprep.subr.mxu0 0.0
        %3541 = vmatpush1.msra.mxu0 0.0
        %3542 = vmatprep.subr.mxu0 0.0
        %3543 = vmatpush1.msra.mxu0 0.0
        %3544 = vmatprep.subr.mxu0 0.0
        %3545 = vmatpush1.msra.mxu0 0.0
        %3546 = vmatprep.subr.mxu0 0.0
        %3547 = vmatpush1.msra.mxu0 0.0
        %3548 = vmatprep.subr.mxu0 0.0
        %3549 = vmatpush1.msra.mxu0 0.0
        %3550 = vmatprep.subr.mxu0 0.0
        %3551 = vmatpush1.msra.mxu0 0.0
        %3552 = vmatprep.subr.mxu0 0.0
        %3553 = vmatpush1.msra.mxu0 0.0
        %3554 = vmatprep.subr.mxu0 0.0
        %3555 = vmatpush1.msra.mxu0 0.0
        %3556 = vmatprep.subr.mxu0 0.0
        %3557 = vmatpush1.msra.mxu0 0.0
        %3558 = vmatprep.subr.mxu0 0.0
        %3559 = vmatpush1.msra.mxu0 0.0
        %3560 = vmatprep.subr.mxu0 0.0
        %3561 = vmatpush1.msra.mxu0 0.0
        %3562 = vmatprep.subr.mxu0 0.0
        %3563 = vmatpush1.msra.mxu0 0.0
        %3564 = vmatprep.subr.mxu0 0.0
        %3565 = vmatpush1.msra.mxu0 0.0
        %3566 = vmatprep.subr.mxu0 0.0
        %3567 = vmatpush1.msra.mxu0 0.0
        %3568 = vmatprep.subr.mxu0 0.0
        %3569 = vmatpush1.msra.mxu0 0.0
        %3570 = vmatprep.subr.mxu0 0.0
        %3571 = vmatpush1.msra.mxu0 0.0
        %3572 = vmatprep.subr.mxu0 0.0
        %3573 = vmatpush1.msra.mxu0 0.0
        %3574 = vmatprep.subr.mxu0 0.0
        %3575 = vmatpush1.msra.mxu0 0.0
        %3576 = vmatprep.mubr.f32.mxu0 0.0
        %3577 = vmatmul.mubr.f32.gmra.mrb[0].mxu0 %v2448
        %v3578 = vpop.f32.mrb[0].mxu0
        %v3579 = vadd.f32 0.0, %v3578
        %v3580 = vpop.f32.mrb[0].mxu0
        %v3581 = vadd.f32 0.0, %v3580
        %3582 = vmatprep.mubr.f32.mxu0 0.0
        %3583 = vmatmul.mubr.f32.gmra.mrb[0].mxu0 %v2451
        %v3584 = vpop.f32.mrb[0].mxu0
        %v3585 = vadd.f32 0.0, %v3584
        %v3586 = vpop.f32.mrb[0].mxu0
        %v3587 = vadd.f32 0.0, %v3586
        %3588 = vdwg.mxu0
        %vm3589 = vcmp.gt.f32.partialorder %v3579, 0.5
        %vm3590 = vcmp.gt.f32.partialorder %v3581, 0.5
        %vm3591 = vcmp.gt.f32.partialorder %v3585, 0.5
        %vm3592 = vcmp.gt.f32.partialorder %v3587, 0.5
        %v3593 = vsel %vm3589, 1, 0
        %v3594 = vsel %vm3590, 1, 0
        %v3595 = vsel %vm3591, 1, 0
        %v3596 = vsel %vm3592, 1, 0
        %v3597 = vcvt.s32.f32 %v3593
        %v3598 = vcvt.s32.f32 %v3594
        %v3599 = vcvt.s32.f32 %v3595
        %v3600 = vcvt.s32.f32 %v3596
        %3601 = vst [vmem:[#allocation3 + $0x30] sm:$0xff] %v3597
        %3602 = vst [vmem:[#allocation3 + $0x38] sm:$0xff] %v3598
        %3603 = vst [vmem:[#allocation3 + $0x40] sm:$0xff] %v3599
        %3604 = vst [vmem:[#allocation3 + $0x48] sm:$0xff] %v3600
        %v3605 = vld [vmem:[#allocation2 + $0x80] sm:$0x80]
        %v3606 = vld [vmem:[#allocation2 + $0x88] sm:$0x80]
        %v3607 = vld [vmem:[#allocation2 + $0x90] sm:$0xff]
        %v3608 = vld [vmem:[#allocation2 + $0x98] sm:$0xff]
        %v3609 = vld [vmem:[#allocation2 + $0xa0] sm:$0xff]
        %v3610 = vld [vmem:[#allocation2 + $0xa8] sm:$0xff]
        %v3611 = vld [vmem:[#allocation2 + $0xb0] sm:$0xff]
        %v3612 = vld [vmem:[#allocation2 + $0xb8] sm:$0xff]
        %v3613 = vld [vmem:[#allocation2 + $0xc0] sm:$0x7f]
        %v3614 = vld [vmem:[#allocation2 + $0xc8] sm:$0x7f]
        %v3615 = vld [vmem:[#allocation2 + $0xc0] sm:$0xff]
        %v3616 = vld [vmem:[#allocation2 + $0xc8] sm:$0xff]
        %3617 = vmatprep.subr.mxu0 %v1072
        %3618 = vmatpush1.msra.mxu0 %v1071
        %3619 = vmatprep.subr.mxu0 %v1076
        %3620 = vmatpush1.msra.mxu0 %v1075
        %3621 = vmatprep.subr.mxu0 %v1080
        %3622 = vmatpush1.msra.mxu0 %v1079
        %3623 = vmatprep.subr.mxu0 %v1084
        %3624 = vmatpush1.msra.mxu0 %v1083
        %3625 = vmatprep.subr.mxu0 %v1088
        %3626 = vmatpush1.msra.mxu0 %v1087
        %3627 = vmatprep.subr.mxu0 %v1092
        %3628 = vmatpush1.msra.mxu0 %v1091
        %3629 = vmatprep.subr.mxu0 %v1096
        %3630 = vmatpush1.msra.mxu0 %v1095
        %3631 = vmatprep.subr.mxu0 %v1100
        %3632 = vmatpush1.msra.mxu0 %v1099
        %3633 = vmatprep.subr.mxu0 %v1104
        %3634 = vmatpush1.msra.mxu0 %v1103
        %3635 = vmatprep.subr.mxu0 %v1108
        %3636 = vmatpush1.msra.mxu0 %v1107
        %3637 = vmatprep.subr.mxu0 %v1112
        %3638 = vmatpush1.msra.mxu0 %v1111
        %3639 = vmatprep.subr.mxu0 %v1116
        %3640 = vmatpush1.msra.mxu0 %v1115
        %3641 = vmatprep.subr.mxu0 %v1120
        %3642 = vmatpush1.msra.mxu0 %v1119
        %3643 = vmatprep.subr.mxu0 %v1124
        %3644 = vmatpush1.msra.mxu0 %v1123
        %3645 = vmatprep.subr.mxu0 %v1128
        %3646 = vmatpush1.msra.mxu0 %v1127
        %3647 = vmatprep.subr.mxu0 %v1132
        %3648 = vmatpush1.msra.mxu0 %v1131
        %3649 = vmatprep.subr.mxu0 %v1136
        %3650 = vmatpush1.msra.mxu0 %v1135
        %3651 = vmatprep.subr.mxu0 %v1140
        %3652 = vmatpush1.msra.mxu0 %v1139
        %3653 = vmatprep.subr.mxu0 %v1144
        %3654 = vmatpush1.msra.mxu0 %v1143
        %3655 = vmatprep.subr.mxu0 %v1148
        %3656 = vmatpush1.msra.mxu0 %v1147
        %3657 = vmatprep.subr.mxu0 %v1152
        %3658 = vmatpush1.msra.mxu0 %v1151
        %3659 = vmatprep.subr.mxu0 %v1156
        %3660 = vmatpush1.msra.mxu0 %v1155
        %3661 = vmatprep.subr.mxu0 %v1160
        %3662 = vmatpush1.msra.mxu0 %v1159
        %3663 = vmatprep.subr.mxu0 %v1164
        %3664 = vmatpush1.msra.mxu0 %v1163
        %3665 = vmatprep.subr.mxu0 %v1168
        %3666 = vmatpush1.msra.mxu0 %v1167
        %3667 = vmatprep.subr.mxu0 %v1172
        %3668 = vmatpush1.msra.mxu0 %v1171
        %3669 = vmatprep.subr.mxu0 %v1176
        %3670 = vmatpush1.msra.mxu0 %v1175
        %3671 = vmatprep.subr.mxu0 %v1180
        %3672 = vmatpush1.msra.mxu0 %v1179
        %3673 = vmatprep.subr.mxu0 %v1184
        %3674 = vmatpush1.msra.mxu0 %v1183
        %3675 = vmatprep.subr.mxu0 %v1188
        %3676 = vmatpush1.msra.mxu0 %v1187
        %3677 = vmatprep.subr.mxu0 %v1192
        %3678 = vmatpush1.msra.mxu0 %v1191
        %3679 = vmatprep.subr.mxu0 %v1196
        %3680 = vmatpush1.msra.mxu0 %v1195
        %3681 = vmatprep.mubr.f32.mxu0 %v3608
        %3682 = vmatmul.mubr.f32.gmra.mrb[0].mxu0 %v3607
        %v3683 = vpop.f32.mrb[0].mxu0
        %v3684 = vadd.f32 0.0, %v3683
        %v3685 = vpop.f32.mrb[0].mxu0
        %v3686 = vadd.f32 0.0, %v3685
        %3687 = vmatprep.mubr.f32.mxu0 %v3610
        %3688 = vmatmul.mubr.f32.gmra.mrb[0].mxu0 %v3609
        %v3689 = vpop.f32.mrb[0].mxu0
        %v3690 = vadd.f32 0.0, %v3689
        %v3691 = vpop.f32.mrb[0].mxu0
        %v3692 = vadd.f32 0.0, %v3691
        %3693 = vmatprep.mubr.f32.mxu0 %v3612
        %3694 = vmatmul.mubr.f32.gmra.mrb[0].mxu0 %v3611
        %v3695 = vpop.f32.mrb[0].mxu0
        %v3696 = vadd.f32 0.0, %v3695
        %v3697 = vpop.f32.mrb[0].mxu0
        %v3698 = vadd.f32 0.0, %v3697
        %3699 = vmatprep.mubr.f32.mxu0 %v3616
        %3700 = vmatmul.mubr.f32.gmra.mrb[0].mxu0 %v3615
        %v3701 = vpop.f32.mrb[0].mxu0
        %v3702 = vadd.f32 0.0, %v3701
        %v3703 = vpop.f32.mrb[0].mxu0
        %v3704 = vadd.f32 0.0, %v3703
        %3705 = vdwg.mxu0
        %3706 = vmatprep.subr.mxu0 %v1074
        %3707 = vmatpush1.msra.mxu0 %v1073
        %3708 = vmatprep.subr.mxu0 %v1078
        %3709 = vmatpush1.msra.mxu0 %v1077
        %3710 = vmatprep.subr.mxu0 %v1082
        %3711 = vmatpush1.msra.mxu0 %v1081
        %3712 = vmatprep.subr.mxu0 %v1086
        %3713 = vmatpush1.msra.mxu0 %v1085
        %3714 = vmatprep.subr.mxu0 %v1090
        %3715 = vmatpush1.msra.mxu0 %v1089
        %3716 = vmatprep.subr.mxu0 %v1094
        %3717 = vmatpush1.msra.mxu0 %v1093
        %3718 = vmatprep.subr.mxu0 %v1098
        %3719 = vmatpush1.msra.mxu0 %v1097
        %3720 = vmatprep.subr.mxu0 %v1102
        %3721 = vmatpush1.msra.mxu0 %v1101
        %3722 = vmatprep.subr.mxu0 %v1106
        %3723 = vmatpush1.msra.mxu0 %v1105
        %3724 = vmatprep.subr.mxu0 %v1110
        %3725 = vmatpush1.msra.mxu0 %v1109
        %3726 = vmatprep.subr.mxu0 %v1114
        %3727 = vmatpush1.msra.mxu0 %v1113
        %3728 = vmatprep.subr.mxu0 %v1118
        %3729 = vmatpush1.msra.mxu0 %v1117
        %3730 = vmatprep.subr.mxu0 %v1122
        %3731 = vmatpush1.msra.mxu0 %v1121
        %3732 = vmatprep.subr.mxu0 %v1126
        %3733 = vmatpush1.msra.mxu0 %v1125
        %3734 = vmatprep.subr.mxu0 %v1130
        %3735 = vmatpush1.msra.mxu0 %v1129
        %3736 = vmatprep.subr.mxu0 %v1134
        %3737 = vmatpush1.msra.mxu0 %v1133
        %3738 = vmatprep.subr.mxu0 %v1138
        %3739 = vmatpush1.msra.mxu0 %v1137
        %3740 = vmatprep.subr.mxu0 %v1142
        %3741 = vmatpush1.msra.mxu0 %v1141
        %3742 = vmatprep.subr.mxu0 %v1146
        %3743 = vmatpush1.msra.mxu0 %v1145
        %3744 = vmatprep.subr.mxu0 %v1150
        %3745 = vmatpush1.msra.mxu0 %v1149
        %3746 = vmatprep.subr.mxu0 %v1154
        %3747 = vmatpush1.msra.mxu0 %v1153
        %3748 = vmatprep.subr.mxu0 %v1158
        %3749 = vmatpush1.msra.mxu0 %v1157
        %3750 = vmatprep.subr.mxu0 %v1162
        %3751 = vmatpush1.msra.mxu0 %v1161
        %3752 = vmatprep.subr.mxu0 %v1166
        %3753 = vmatpush1.msra.mxu0 %v1165
        %3754 = vmatprep.subr.mxu0 %v1170
        %3755 = vmatpush1.msra.mxu0 %v1169
        %3756 = vmatprep.subr.mxu0 %v1174
        %3757 = vmatpush1.msra.mxu0 %v1173
        %3758 = vmatprep.subr.mxu0 %v1178
        %3759 = vmatpush1.msra.mxu0 %v1177
        %3760 = vmatprep.subr.mxu0 %v1182
        %3761 = vmatpush1.msra.mxu0 %v1181
        %3762 = vmatprep.subr.mxu0 %v1186
        %3763 = vmatpush1.msra.mxu0 %v1185
        %3764 = vmatprep.subr.mxu0 %v1190
        %3765 = vmatpush1.msra.mxu0 %v1189
        %3766 = vmatprep.subr.mxu0 %v1194
        %3767 = vmatpush1.msra.mxu0 %v1193
        %3768 = vmatprep.subr.mxu0 %v1198
        %3769 = vmatpush1.msra.mxu0 %v1197
        %3770 = vmatprep.mubr.f32.mxu0 %v3608
        %3771 = vmatmul.mubr.f32.gmra.mrb[0].mxu0 %v3607
        %v3772 = vpop.f32.mrb[0].mxu0
        %v3773 = vadd.f32 0.0, %v3772
        %v3774 = vpop.f32.mrb[0].mxu0
        %v3775 = vadd.f32 0.0, %v3774
        %3776 = vmatprep.mubr.f32.mxu0 %v3610
        %3777 = vmatmul.mubr.f32.gmra.mrb[0].mxu0 %v3609
        %v3778 = vpop.f32.mrb[0].mxu0
        %v3779 = vadd.f32 0.0, %v3778
        %v3780 = vpop.f32.mrb[0].mxu0
        %v3781 = vadd.f32 0.0, %v3780
        %3782 = vmatprep.mubr.f32.mxu0 %v3612
        %3783 = vmatmul.mubr.f32.gmra.mrb[0].mxu0 %v3611
        %v3784 = vpop.f32.mrb[0].mxu0
        %v3785 = vadd.f32 0.0, %v3784
        %v3786 = vpop.f32.mrb[0].mxu0
        %v3787 = vadd.f32 0.0, %v3786
        %3788 = vmatprep.mubr.f32.mxu0 %v3616
        %3789 = vmatmul.mubr.f32.gmra.mrb[0].mxu0 %v3615
        %v3790 = vpop.f32.mrb[0].mxu0
        %v3791 = vadd.f32 0.0, %v3790
        %v3792 = vpop.f32.mrb[0].mxu0
        %v3793 = vadd.f32 0.0, %v3792
        %3794 = vdwg.mxu0
        %v3805 = vrot.slane %v3605, 7
        %v3806 = vrot.slane %v3607, 7
        %v3807 = vsel %vm1657, %v3805, %v3806
        %v3808 = vrot.slane %v3606, 7
        %v3809 = vrot.slane %v3608, 7
        %v3810 = vsel %vm1657, %v3808, %v3809
        %v3811 = vrot.slane %v3609, 7
        %v3812 = vsel %vm1657, %v3806, %v3811
        %v3813 = vrot.slane %v3610, 7
        %v3814 = vsel %vm1657, %v3809, %v3813
        %v3815 = vrot.slane %v3611, 7
        %v3816 = vsel %vm1657, %v3811, %v3815
        %v3817 = vrot.slane %v3612, 7
        %v3818 = vsel %vm1657, %v3813, %v3817
        %v3819 = vrot.slane %v3613, 7
        %v3820 = vsel %vm1657, %v3815, %v3819
        %v3821 = vrot.slane %v3614, 7
        %v3822 = vsel %vm1657, %v3817, %v3821
        %3831 = vmatprep.subr.mxu0 %v943
        %3832 = vmatpush1.msra.mxu0 %v942
        %3833 = vmatprep.subr.mxu0 %v947
        %3834 = vmatpush1.msra.mxu0 %v946
        %3835 = vmatprep.subr.mxu0 %v951
        %3836 = vmatpush1.msra.mxu0 %v950
        %3837 = vmatprep.subr.mxu0 %v955
        %3838 = vmatpush1.msra.mxu0 %v954
        %3839 = vmatprep.subr.mxu0 %v959
        %3840 = vmatpush1.msra.mxu0 %v958
        %3841 = vmatprep.subr.mxu0 %v963
        %3842 = vmatpush1.msra.mxu0 %v962
        %3843 = vmatprep.subr.mxu0 %v967
        %3844 = vmatpush1.msra.mxu0 %v966
        %3845 = vmatprep.subr.mxu0 %v971
        %3846 = vmatpush1.msra.mxu0 %v970
        %3847 = vmatprep.subr.mxu0 %v975
        %3848 = vmatpush1.msra.mxu0 %v974
        %3849 = vmatprep.subr.mxu0 %v979
        %3850 = vmatpush1.msra.mxu0 %v978
        %3851 = vmatprep.subr.mxu0 %v983
        %3852 = vmatpush1.msra.mxu0 %v982
        %3853 = vmatprep.subr.mxu0 %v987
        %3854 = vmatpush1.msra.mxu0 %v986
        %3855 = vmatprep.subr.mxu0 %v991
        %3856 = vmatpush1.msra.mxu0 %v990
        %3857 = vmatprep.subr.mxu0 %v995
        %3858 = vmatpush1.msra.mxu0 %v994
        %3859 = vmatprep.subr.mxu0 %v999
        %3860 = vmatpush1.msra.mxu0 %v998
        %3861 = vmatprep.subr.mxu0 %v1003
        %3862 = vmatpush1.msra.mxu0 %v1002
        %3863 = vmatprep.subr.mxu0 %v1007
        %3864 = vmatpush1.msra.mxu0 %v1006
        %3865 = vmatprep.subr.mxu0 %v1011
        %3866 = vmatpush1.msra.mxu0 %v1010
        %3867 = vmatprep.subr.mxu0 %v1015
        %3868 = vmatpush1.msra.mxu0 %v1014
        %3869 = vmatprep.subr.mxu0 %v1019
        %3870 = vmatpush1.msra.mxu0 %v1018
        %3871 = vmatprep.subr.mxu0 %v1023
        %3872 = vmatpush1.msra.mxu0 %v1022
        %3873 = vmatprep.subr.mxu0 %v1027
        %3874 = vmatpush1.msra.mxu0 %v1026
        %3875 = vmatprep.subr.mxu0 %v1031
        %3876 = vmatpush1.msra.mxu0 %v1030
        %3877 = vmatprep.subr.mxu0 %v1035
        %3878 = vmatpush1.msra.mxu0 %v1034
        %3879 = vmatprep.subr.mxu0 %v1039
        %3880 = vmatpush1.msra.mxu0 %v1038
        %3881 = vmatprep.subr.mxu0 %v1043
        %3882 = vmatpush1.msra.mxu0 %v1042
        %3883 = vmatprep.subr.mxu0 %v1047
        %3884 = vmatpush1.msra.mxu0 %v1046
        %3885 = vmatprep.subr.mxu0 %v1051
        %3886 = vmatpush1.msra.mxu0 %v1050
        %3887 = vmatprep.subr.mxu0 %v1055
        %3888 = vmatpush1.msra.mxu0 %v1054
        %3889 = vmatprep.subr.mxu0 %v1059
        %3890 = vmatpush1.msra.mxu0 %v1058
        %3891 = vmatprep.subr.mxu0 %v1063
        %3892 = vmatpush1.msra.mxu0 %v1062
        %3893 = vmatprep.subr.mxu0 %v1067
        %3894 = vmatpush1.msra.mxu0 %v1066
        %3895 = vmatprep.mubr.f32.mxu0 %v3810
        %3896 = vmatmul.mubr.f32.gmra.mrb[0].mxu0 %v3807
        %v3897 = vpop.f32.mrb[0].mxu0
        %v3898 = vadd.f32 %v3684, %v3897
        %v3899 = vpop.f32.mrb[0].mxu0
        %v3900 = vadd.f32 %v3686, %v3899
        %3901 = vmatprep.mubr.f32.mxu0 %v3814
        %3902 = vmatmul.mubr.f32.gmra.mrb[0].mxu0 %v3812
        %v3903 = vpop.f32.mrb[0].mxu0
        %v3904 = vadd.f32 %v3690, %v3903
        %v3905 = vpop.f32.mrb[0].mxu0
        %v3906 = vadd.f32 %v3692, %v3905
        %3907 = vmatprep.mubr.f32.mxu0 %v3818
        %3908 = vmatmul.mubr.f32.gmra.mrb[0].mxu0 %v3816
        %v3909 = vpop.f32.mrb[0].mxu0
        %v3910 = vadd.f32 %v3696, %v3909
        %v3911 = vpop.f32.mrb[0].mxu0
        %v3912 = vadd.f32 %v3698, %v3911
        %3913 = vmatprep.mubr.f32.mxu0 %v3822
        %3914 = vmatmul.mubr.f32.gmra.mrb[0].mxu0 %v3820
        %v3915 = vpop.f32.mrb[0].mxu0
        %v3916 = vadd.f32 %v3702, %v3915
        %v3917 = vpop.f32.mrb[0].mxu0
        %v3918 = vadd.f32 %v3704, %v3917
        %3919 = vdwg.mxu0
        %3920 = vmatprep.subr.mxu0 %v945
        %3921 = vmatpush1.msra.mxu0 %v944
        %3922 = vmatprep.subr.mxu0 %v949
        %3923 = vmatpush1.msra.mxu0 %v948
        %3924 = vmatprep.subr.mxu0 %v953
        %3925 = vmatpush1.msra.mxu0 %v952
        %3926 = vmatprep.subr.mxu0 %v957
        %3927 = vmatpush1.msra.mxu0 %v956
        %3928 = vmatprep.subr.mxu0 %v961
        %3929 = vmatpush1.msra.mxu0 %v960
        %3930 = vmatprep.subr.mxu0 %v965
        %3931 = vmatpush1.msra.mxu0 %v964
        %3932 = vmatprep.subr.mxu0 %v969
        %3933 = vmatpush1.msra.mxu0 %v968
        %3934 = vmatprep.subr.mxu0 %v973
        %3935 = vmatpush1.msra.mxu0 %v972
        %3936 = vmatprep.subr.mxu0 %v977
        %3937 = vmatpush1.msra.mxu0 %v976
        %3938 = vmatprep.subr.mxu0 %v981
        %3939 = vmatpush1.msra.mxu0 %v980
        %3940 = vmatprep.subr.mxu0 %v985
        %3941 = vmatpush1.msra.mxu0 %v984
        %3942 = vmatprep.subr.mxu0 %v989
        %3943 = vmatpush1.msra.mxu0 %v988
        %3944 = vmatprep.subr.mxu0 %v993
        %3945 = vmatpush1.msra.mxu0 %v992
        %3946 = vmatprep.subr.mxu0 %v997
        %3947 = vmatpush1.msra.mxu0 %v996
        %3948 = vmatprep.subr.mxu0 %v1001
        %3949 = vmatpush1.msra.mxu0 %v1000
        %3950 = vmatprep.subr.mxu0 %v1005
        %3951 = vmatpush1.msra.mxu0 %v1004
        %3952 = vmatprep.subr.mxu0 %v1009
        %3953 = vmatpush1.msra.mxu0 %v1008
        %3954 = vmatprep.subr.mxu0 %v1013
        %3955 = vmatpush1.msra.mxu0 %v1012
        %3956 = vmatprep.subr.mxu0 %v1017
        %3957 = vmatpush1.msra.mxu0 %v1016
        %3958 = vmatprep.subr.mxu0 %v1021
        %3959 = vmatpush1.msra.mxu0 %v1020
        %3960 = vmatprep.subr.mxu0 %v1025
        %3961 = vmatpush1.msra.mxu0 %v1024
        %3962 = vmatprep.subr.mxu0 %v1029
        %3963 = vmatpush1.msra.mxu0 %v1028
        %3964 = vmatprep.subr.mxu0 %v1033
        %3965 = vmatpush1.msra.mxu0 %v1032
        %3966 = vmatprep.subr.mxu0 %v1037
        %3967 = vmatpush1.msra.mxu0 %v1036
        %3968 = vmatprep.subr.mxu0 %v1041
        %3969 = vmatpush1.msra.mxu0 %v1040
        %3970 = vmatprep.subr.mxu0 %v1045
        %3971 = vmatpush1.msra.mxu0 %v1044
        %3972 = vmatprep.subr.mxu0 %v1049
        %3973 = vmatpush1.msra.mxu0 %v1048
        %3974 = vmatprep.subr.mxu0 %v1053
        %3975 = vmatpush1.msra.mxu0 %v1052
        %3976 = vmatprep.subr.mxu0 %v1057
        %3977 = vmatpush1.msra.mxu0 %v1056
        %3978 = vmatprep.subr.mxu0 %v1061
        %3979 = vmatpush1.msra.mxu0 %v1060
        %3980 = vmatprep.subr.mxu0 %v1065
        %3981 = vmatpush1.msra.mxu0 %v1064
        %3982 = vmatprep.subr.mxu0 %v1069
        %3983 = vmatpush1.msra.mxu0 %v1068
        %3984 = vmatprep.mubr.f32.mxu0 %v3810
        %3985 = vmatmul.mubr.f32.gmra.mrb[0].mxu0 %v3807
        %v3986 = vpop.f32.mrb[0].mxu0
        %v3987 = vadd.f32 %v3773, %v3986
        %v3988 = vpop.f32.mrb[0].mxu0
        %v3989 = vadd.f32 %v3775, %v3988
        %3990 = vmatprep.mubr.f32.mxu0 %v3814
        %3991 = vmatmul.mubr.f32.gmra.mrb[0].mxu0 %v3812
        %v3992 = vpop.f32.mrb[0].mxu0
        %v3993 = vadd.f32 %v3779, %v3992
        %v3994 = vpop.f32.mrb[0].mxu0
        %v3995 = vadd.f32 %v3781, %v3994
        %3996 = vmatprep.mubr.f32.mxu0 %v3818
        %3997 = vmatmul.mubr.f32.gmra.mrb[0].mxu0 %v3816
        %v3998 = vpop.f32.mrb[0].mxu0
        %v3999 = vadd.f32 %v3785, %v3998
        %v4000 = vpop.f32.mrb[0].mxu0
        %v4001 = vadd.f32 %v3787, %v4000
        %4002 = vmatprep.mubr.f32.mxu0 %v3822
        %4003 = vmatmul.mubr.f32.gmra.mrb[0].mxu0 %v3820
        %v4004 = vpop.f32.mrb[0].mxu0
        %v4005 = vadd.f32 %v3791, %v4004
        %v4006 = vpop.f32.mrb[0].mxu0
        %v4007 = vadd.f32 %v3793, %v4006
        %4008 = vdwg.mxu0
        %v4009 = vld [vmem:[#allocation2 + $0x90] sm:$0xfe]
        %v4010 = vld [vmem:[#allocation2 + $0x98] sm:$0xfe]
        %v4011 = vld [vmem:[#allocation2 + $0xa0] sm:$0xff]
        %v4012 = vld [vmem:[#allocation2 + $0xa8] sm:$0xff]
        %v4013 = vld [vmem:[#allocation2 + $0xb0] sm:$0xff]
        %v4014 = vld [vmem:[#allocation2 + $0xb8] sm:$0xff]
        %v4015 = vld [vmem:[#allocation2 + $0xc0] sm:$0xff]
        %v4016 = vld [vmem:[#allocation2 + $0xc8] sm:$0xff]
        %v4017 = vld [vmem:[#allocation2 + $0xd0] sm:$0x1]
        %v4018 = vld [vmem:[#allocation2 + $0xd8] sm:$0x1]
        %v4029 = vrot.slane %v4009, 1
        %v4030 = vrot.slane %v4011, 1
        %v4031 = vsel %vm1882, %v4029, %v4030
        %v4032 = vrot.slane %v4010, 1
        %v4033 = vrot.slane %v4012, 1
        %v4034 = vsel %vm1882, %v4032, %v4033
        %v4035 = vrot.slane %v4013, 1
        %v4036 = vsel %vm1882, %v4030, %v4035
        %v4037 = vrot.slane %v4014, 1
        %v4038 = vsel %vm1882, %v4033, %v4037
        %v4039 = vrot.slane %v4015, 1
        %v4040 = vsel %vm1882, %v4035, %v4039
        %v4041 = vrot.slane %v4016, 1
        %v4042 = vsel %vm1882, %v4037, %v4041
        %v4043 = vrot.slane %v4017, 1
        %v4044 = vsel %vm1882, %v4039, %v4043
        %v4045 = vrot.slane %v4018, 1
        %v4046 = vsel %vm1882, %v4041, %v4045
        %4055 = vmatprep.subr.mxu0 %v1201
        %4056 = vmatpush1.msra.mxu0 %v1200
        %4057 = vmatprep.subr.mxu0 %v1205
        %4058 = vmatpush1.msra.mxu0 %v1204
        %4059 = vmatprep.subr.mxu0 %v1209
        %4060 = vmatpush1.msra.mxu0 %v1208
        %4061 = vmatprep.subr.mxu0 %v1213
        %4062 = vmatpush1.msra.mxu0 %v1212
        %4063 = vmatprep.subr.mxu0 %v1217
        %4064 = vmatpush1.msra.mxu0 %v1216
        %4065 = vmatprep.subr.mxu0 %v1221
        %4066 = vmatpush1.msra.mxu0 %v1220
        %4067 = vmatprep.subr.mxu0 %v1225
        %4068 = vmatpush1.msra.mxu0 %v1224
        %4069 = vmatprep.subr.mxu0 %v1229
        %4070 = vmatpush1.msra.mxu0 %v1228
        %4071 = vmatprep.subr.mxu0 %v1233
        %4072 = vmatpush1.msra.mxu0 %v1232
        %4073 = vmatprep.subr.mxu0 %v1237
        %4074 = vmatpush1.msra.mxu0 %v1236
        %4075 = vmatprep.subr.mxu0 %v1241
        %4076 = vmatpush1.msra.mxu0 %v1240
        %4077 = vmatprep.subr.mxu0 %v1245
        %4078 = vmatpush1.msra.mxu0 %v1244
        %4079 = vmatprep.subr.mxu0 %v1249
        %4080 = vmatpush1.msra.mxu0 %v1248
        %4081 = vmatprep.subr.mxu0 %v1253
        %4082 = vmatpush1.msra.mxu0 %v1252
        %4083 = vmatprep.subr.mxu0 %v1257
        %4084 = vmatpush1.msra.mxu0 %v1256
        %4085 = vmatprep.subr.mxu0 %v1261
        %4086 = vmatpush1.msra.mxu0 %v1260
        %4087 = vmatprep.subr.mxu0 %v1265
        %4088 = vmatpush1.msra.mxu0 %v1264
        %4089 = vmatprep.subr.mxu0 %v1269
        %4090 = vmatpush1.msra.mxu0 %v1268
        %4091 = vmatprep.subr.mxu0 %v1273
        %4092 = vmatpush1.msra.mxu0 %v1272
        %4093 = vmatprep.subr.mxu0 %v1277
        %4094 = vmatpush1.msra.mxu0 %v1276
        %4095 = vmatprep.subr.mxu0 %v1281
        %4096 = vmatpush1.msra.mxu0 %v1280
        %4097 = vmatprep.subr.mxu0 %v1285
        %4098 = vmatpush1.msra.mxu0 %v1284
        %4099 = vmatprep.subr.mxu0 %v1289
        %4100 = vmatpush1.msra.mxu0 %v1288
        %4101 = vmatprep.subr.mxu0 %v1293
        %4102 = vmatpush1.msra.mxu0 %v1292
        %4103 = vmatprep.subr.mxu0 %v1297
        %4104 = vmatpush1.msra.mxu0 %v1296
        %4105 = vmatprep.subr.mxu0 %v1301
        %4106 = vmatpush1.msra.mxu0 %v1300
        %4107 = vmatprep.subr.mxu0 %v1305
        %4108 = vmatpush1.msra.mxu0 %v1304
        %4109 = vmatprep.subr.mxu0 %v1309
        %4110 = vmatpush1.msra.mxu0 %v1308
        %4111 = vmatprep.subr.mxu0 %v1313
        %4112 = vmatpush1.msra.mxu0 %v1312
        %4113 = vmatprep.subr.mxu0 %v1317
        %4114 = vmatpush1.msra.mxu0 %v1316
        %4115 = vmatprep.subr.mxu0 %v1321
        %4116 = vmatpush1.msra.mxu0 %v1320
        %4117 = vmatprep.subr.mxu0 %v1325
        %4118 = vmatpush1.msra.mxu0 %v1324
        %4119 = vmatprep.mubr.f32.mxu0 %v4034
        %4120 = vmatmul.mubr.f32.gmra.mrb[0].mxu0 %v4031
        %v4121 = vpop.f32.mrb[0].mxu0
        %v4122 = vadd.f32 0.0, %v4121
        %v4123 = vpop.f32.mrb[0].mxu0
        %v4124 = vadd.f32 0.0, %v4123
        %4125 = vmatprep.mubr.f32.mxu0 %v4038
        %4126 = vmatmul.mubr.f32.gmra.mrb[0].mxu0 %v4036
        %v4127 = vpop.f32.mrb[0].mxu0
        %v4128 = vadd.f32 0.0, %v4127
        %v4129 = vpop.f32.mrb[0].mxu0
        %v4130 = vadd.f32 0.0, %v4129
        %4131 = vmatprep.mubr.f32.mxu0 %v4042
        %4132 = vmatmul.mubr.f32.gmra.mrb[0].mxu0 %v4040
        %v4133 = vpop.f32.mrb[0].mxu0
        %v4134 = vadd.f32 0.0, %v4133
        %v4135 = vpop.f32.mrb[0].mxu0
        %v4136 = vadd.f32 0.0, %v4135
        %4137 = vmatprep.mubr.f32.mxu0 %v4046
        %4138 = vmatmul.mubr.f32.gmra.mrb[0].mxu0 %v4044
        %v4139 = vpop.f32.mrb[0].mxu0
        %v4140 = vadd.f32 0.0, %v4139
        %v4141 = vpop.f32.mrb[0].mxu0
        %v4142 = vadd.f32 0.0, %v4141
        %4143 = vdwg.mxu0
        %4144 = vmatprep.subr.mxu0 %v1203
        %4145 = vmatpush1.msra.mxu0 %v1202
        %4146 = vmatprep.subr.mxu0 %v1207
        %4147 = vmatpush1.msra.mxu0 %v1206
        %4148 = vmatprep.subr.mxu0 %v1211
        %4149 = vmatpush1.msra.mxu0 %v1210
        %4150 = vmatprep.subr.mxu0 %v1215
        %4151 = vmatpush1.msra.mxu0 %v1214
        %4152 = vmatprep.subr.mxu0 %v1219
        %4153 = vmatpush1.msra.mxu0 %v1218
        %4154 = vmatprep.subr.mxu0 %v1223
        %4155 = vmatpush1.msra.mxu0 %v1222
        %4156 = vmatprep.subr.mxu0 %v1227
        %4157 = vmatpush1.msra.mxu0 %v1226
        %4158 = vmatprep.subr.mxu0 %v1231
        %4159 = vmatpush1.msra.mxu0 %v1230
        %4160 = vmatprep.subr.mxu0 %v1235
        %4161 = vmatpush1.msra.mxu0 %v1234
        %4162 = vmatprep.subr.mxu0 %v1239
        %4163 = vmatpush1.msra.mxu0 %v1238
        %4164 = vmatprep.subr.mxu0 %v1243
        %4165 = vmatpush1.msra.mxu0 %v1242
        %4166 = vmatprep.subr.mxu0 %v1247
        %4167 = vmatpush1.msra.mxu0 %v1246
        %4168 = vmatprep.subr.mxu0 %v1251
        %4169 = vmatpush1.msra.mxu0 %v1250
        %4170 = vmatprep.subr.mxu0 %v1255
        %4171 = vmatpush1.msra.mxu0 %v1254
        %4172 = vmatprep.subr.mxu0 %v1259
        %4173 = vmatpush1.msra.mxu0 %v1258
        %4174 = vmatprep.subr.mxu0 %v1263
        %4175 = vmatpush1.msra.mxu0 %v1262
        %4176 = vmatprep.subr.mxu0 %v1267
        %4177 = vmatpush1.msra.mxu0 %v1266
        %4178 = vmatprep.subr.mxu0 %v1271
        %4179 = vmatpush1.msra.mxu0 %v1270
        %4180 = vmatprep.subr.mxu0 %v1275
        %4181 = vmatpush1.msra.mxu0 %v1274
        %4182 = vmatprep.subr.mxu0 %v1279
        %4183 = vmatpush1.msra.mxu0 %v1278
        %4184 = vmatprep.subr.mxu0 %v1283
        %4185 = vmatpush1.msra.mxu0 %v1282
        %4186 = vmatprep.subr.mxu0 %v1287
        %4187 = vmatpush1.msra.mxu0 %v1286
        %4188 = vmatprep.subr.mxu0 %v1291
        %4189 = vmatpush1.msra.mxu0 %v1290
        %4190 = vmatprep.subr.mxu0 %v1295
        %4191 = vmatpush1.msra.mxu0 %v1294
        %4192 = vmatprep.subr.mxu0 %v1299
        %4193 = vmatpush1.msra.mxu0 %v1298
        %4194 = vmatprep.subr.mxu0 %v1303
        %4195 = vmatpush1.msra.mxu0 %v1302
        %4196 = vmatprep.subr.mxu0 %v1307
        %4197 = vmatpush1.msra.mxu0 %v1306
        %4198 = vmatprep.subr.mxu0 %v1311
        %4199 = vmatpush1.msra.mxu0 %v1310
        %4200 = vmatprep.subr.mxu0 %v1315
        %4201 = vmatpush1.msra.mxu0 %v1314
        %4202 = vmatprep.subr.mxu0 %v1319
        %4203 = vmatpush1.msra.mxu0 %v1318
        %4204 = vmatprep.subr.mxu0 %v1323
        %4205 = vmatpush1.msra.mxu0 %v1322
        %4206 = vmatprep.subr.mxu0 %v1327
        %4207 = vmatpush1.msra.mxu0 %v1326
        %4208 = vmatprep.mubr.f32.mxu0 %v4034
        %4209 = vmatmul.mubr.f32.gmra.mrb[0].mxu0 %v4031
        %v4210 = vpop.f32.mrb[0].mxu0
        %v4211 = vadd.f32 0.0, %v4210
        %v4212 = vpop.f32.mrb[0].mxu0
        %v4213 = vadd.f32 0.0, %v4212
        %4214 = vmatprep.mubr.f32.mxu0 %v4038
        %4215 = vmatmul.mubr.f32.gmra.mrb[0].mxu0 %v4036
        %v4216 = vpop.f32.mrb[0].mxu0
        %v4217 = vadd.f32 0.0, %v4216
        %v4218 = vpop.f32.mrb[0].mxu0
        %v4219 = vadd.f32 0.0, %v4218
        %4220 = vmatprep.mubr.f32.mxu0 %v4042
        %4221 = vmatmul.mubr.f32.gmra.mrb[0].mxu0 %v4040
        %v4222 = vpop.f32.mrb[0].mxu0
        %v4223 = vadd.f32 0.0, %v4222
        %v4224 = vpop.f32.mrb[0].mxu0
        %v4225 = vadd.f32 0.0, %v4224
        %4226 = vmatprep.mubr.f32.mxu0 %v4046
        %4227 = vmatmul.mubr.f32.gmra.mrb[0].mxu0 %v4044
        %v4228 = vpop.f32.mrb[0].mxu0
        %v4229 = vadd.f32 0.0, %v4228
        %v4230 = vpop.f32.mrb[0].mxu0
        %v4231 = vadd.f32 0.0, %v4230
        %4232 = vdwg.mxu0
        %v4233 = vadd.f32 %v3898, %v4122
        %v4234 = vadd.f32 %v3900, %v4124
        %v4235 = vadd.f32 %v3987, %v4211
        %v4236 = vadd.f32 %v3989, %v4213
        %v4237 = vadd.f32 %v3904, %v4128
        %v4238 = vadd.f32 %v3906, %v4130
        %v4239 = vadd.f32 %v3993, %v4217
        %v4240 = vadd.f32 %v3995, %v4219
        %v4241 = vadd.f32 %v3910, %v4134
        %v4242 = vadd.f32 %v3912, %v4136
        %v4243 = vadd.f32 %v3999, %v4223
        %v4244 = vadd.f32 %v4001, %v4225
        %v4245 = vadd.f32 %v3916, %v4140
        %v4246 = vadd.f32 %v3918, %v4142
        %v4247 = vadd.f32 %v4005, %v4229
        %v4248 = vadd.f32 %v4007, %v4231
        %v4249 = vadd.f32 %v4233, %v2107
        %v4250 = vadd.f32 %v4234, %v2111
        %v4251 = vadd.f32 %v4235, %v2115
        %v4252 = vadd.f32 %v4236, %v2119
        %v4253 = vadd.f32 %v4237, %v2107
        %v4254 = vadd.f32 %v4238, %v2111
        %v4255 = vadd.f32 %v4239, %v2115
        %v4256 = vadd.f32 %v4240, %v2119
        %v4257 = vadd.f32 %v4241, %v2107
        %v4258 = vadd.f32 %v4242, %v2111
        %v4259 = vadd.f32 %v4243, %v2115
        %v4260 = vadd.f32 %v4244, %v2119
        %v4261 = vadd.f32 %v4245, %v2107
        %v4262 = vadd.f32 %v4246, %v2111
        %v4263 = vadd.f32 %v4247, %v2115
        %v4264 = vadd.f32 %v4248, %v2119
        %v4265 = vld [vmem:[#allocation7 + $0x100] sm:$0xff]
        %v4266 = vld [vmem:[#allocation7 + $0x108] sm:$0xff]
        %v4267 = vld [vmem:[#allocation7 + $0x110] sm:$0xff]
        %v4268 = vld [vmem:[#allocation7 + $0x118] sm:$0xff]
        %v4269 = vld [vmem:[#allocation7 + $0x120] sm:$0xff]
        %v4270 = vld [vmem:[#allocation7 + $0x128] sm:$0xff]
        %v4271 = vld [vmem:[#allocation7 + $0x130] sm:$0xff]
        %v4272 = vld [vmem:[#allocation7 + $0x138] sm:$0xff]
        %v4273 = vld [vmem:[#allocation7 + $0x140] sm:$0xff]
        %v4274 = vld [vmem:[#allocation7 + $0x148] sm:$0xff]
        %v4275 = vld [vmem:[#allocation7 + $0x150] sm:$0xff]
        %v4276 = vld [vmem:[#allocation7 + $0x158] sm:$0xff]
        %v4277 = vld [vmem:[#allocation7 + $0x160] sm:$0xff]
        %v4278 = vld [vmem:[#allocation7 + $0x168] sm:$0xff]
        %v4279 = vld [vmem:[#allocation7 + $0x170] sm:$0xff]
        %v4280 = vld [vmem:[#allocation7 + $0x178] sm:$0xff]
        %v4281 = vadd.f32 %v4265, %v4249
        %v4282 = vadd.f32 %v4266, %v4250
        %v4283 = vadd.f32 %v4267, %v4251
        %v4284 = vadd.f32 %v4268, %v4252
        %v4285 = vadd.f32 %v4269, %v4253
        %v4286 = vadd.f32 %v4270, %v4254
        %v4287 = vadd.f32 %v4271, %v4255
        %v4288 = vadd.f32 %v4272, %v4256
        %v4289 = vadd.f32 %v4273, %v4257
        %v4290 = vadd.f32 %v4274, %v4258
        %v4291 = vadd.f32 %v4275, %v4259
        %v4292 = vadd.f32 %v4276, %v4260
        %v4293 = vadd.f32 %v4277, %v4261
        %v4294 = vadd.f32 %v4278, %v4262
        %v4295 = vadd.f32 %v4279, %v4263
        %v4296 = vadd.f32 %v4280, %v4264
        %v4297 = vmul.f32 %v4281, 0.5
        %v4298 = vmul.f32 %v4282, 0.5
        %v4299 = vmul.f32 %v4283, 0.5
        %v4300 = vmul.f32 %v4284, 0.5
        %v4301 = vmul.f32 %v4285, 0.5
        %v4302 = vmul.f32 %v4286, 0.5
        %v4303 = vmul.f32 %v4287, 0.5
        %v4304 = vmul.f32 %v4288, 0.5
        %v4305 = vmul.f32 %v4289, 0.5
        %v4306 = vmul.f32 %v4290, 0.5
        %v4307 = vmul.f32 %v4291, 0.5
        %v4308 = vmul.f32 %v4292, 0.5
        %v4309 = vmul.f32 %v4293, 0.5
        %v4310 = vmul.f32 %v4294, 0.5
        %v4311 = vmul.f32 %v4295, 0.5
        %v4312 = vmul.f32 %v4296, 0.5
        %vm4313 = vcmp.ge.f32.partialorder %v4297, 1.0
        %vm4314 = vcmp.ge.f32.partialorder %v4298, 1.0
        %vm4315 = vcmp.ge.f32.partialorder %v4299, 1.0
        %vm4316 = vcmp.ge.f32.partialorder %v4300, 1.0
        %vm4317 = vcmp.ge.f32.partialorder %v4301, 1.0
        %vm4318 = vcmp.ge.f32.partialorder %v4302, 1.0
        %vm4319 = vcmp.ge.f32.partialorder %v4303, 1.0
        %vm4320 = vcmp.ge.f32.partialorder %v4304, 1.0
        %vm4321 = vcmp.ge.f32.partialorder %v4305, 1.0
        %vm4322 = vcmp.ge.f32.partialorder %v4306, 1.0
        %vm4323 = vcmp.ge.f32.partialorder %v4307, 1.0
        %vm4324 = vcmp.ge.f32.partialorder %v4308, 1.0
        %vm4325 = vcmp.ge.f32.partialorder %v4309, 1.0
        %vm4326 = vcmp.ge.f32.partialorder %v4310, 1.0
        %vm4327 = vcmp.ge.f32.partialorder %v4311, 1.0
        %vm4328 = vcmp.ge.f32.partialorder %v4312, 1.0
        %v4329 = vsel %vm4313, 0.0, %v4297
        %v4330 = vsel %vm4314, 0.0, %v4298
        %v4331 = vsel %vm4315, 0.0, %v4299
        %v4332 = vsel %vm4316, 0.0, %v4300
        %v4333 = vsel %vm4317, 0.0, %v4301
        %v4334 = vsel %vm4318, 0.0, %v4302
        %v4335 = vsel %vm4319, 0.0, %v4303
        %v4336 = vsel %vm4320, 0.0, %v4304
        %v4337 = vsel %vm4321, 0.0, %v4305
        %v4338 = vsel %vm4322, 0.0, %v4306
        %v4339 = vsel %vm4323, 0.0, %v4307
        %v4340 = vsel %vm4324, 0.0, %v4308
        %v4341 = vsel %vm4325, 0.0, %v4309
        %v4342 = vsel %vm4326, 0.0, %v4310
        %v4343 = vsel %vm4327, 0.0, %v4311
        %v4344 = vsel %vm4328, 0.0, %v4312
        %4345 = vst [vmem:[#allocation7 + $0x100] sm:$0xff] %v4329
        %4346 = vst [vmem:[#allocation7 + $0x108] sm:$0xff] %v4330
        %4347 = vst [vmem:[#allocation7 + $0x110] sm:$0xff] %v4331
        %4348 = vst [vmem:[#allocation7 + $0x118] sm:$0xff] %v4332
        %4349 = vst [vmem:[#allocation7 + $0x120] sm:$0xff] %v4333
        %4350 = vst [vmem:[#allocation7 + $0x128] sm:$0xff] %v4334
        %4351 = vst [vmem:[#allocation7 + $0x130] sm:$0xff] %v4335
        %4352 = vst [vmem:[#allocation7 + $0x138] sm:$0xff] %v4336
        %4353 = vst [vmem:[#allocation7 + $0x140] sm:$0xff] %v4337
        %4354 = vst [vmem:[#allocation7 + $0x148] sm:$0xff] %v4338
        %4355 = vst [vmem:[#allocation7 + $0x150] sm:$0xff] %v4339
        %4356 = vst [vmem:[#allocation7 + $0x158] sm:$0xff] %v4340
        %4357 = vst [vmem:[#allocation7 + $0x160] sm:$0xff] %v4341
        %4358 = vst [vmem:[#allocation7 + $0x168] sm:$0xff] %v4342
        %4359 = vst [vmem:[#allocation7 + $0x170] sm:$0xff] %v4343
        %4360 = vst [vmem:[#allocation7 + $0x178] sm:$0xff] %v4344
        %v4361 = vsel %vm4313, 1, 0
        %v4362 = vsel %vm4314, 1, 0
        %v4363 = vsel %vm4315, 1, 0
        %v4364 = vsel %vm4316, 1, 0
        %v4365 = vsel %vm4317, 1, 0
        %v4366 = vsel %vm4318, 1, 0
        %v4367 = vsel %vm4319, 1, 0
        %v4368 = vsel %vm4320, 1, 0
        %v4369 = vsel %vm4321, 1, 0
        %v4370 = vsel %vm4322, 1, 0
        %v4371 = vsel %vm4323, 1, 0
        %v4372 = vsel %vm4324, 1, 0
        %v4373 = vsel %vm4325, 1, 0
        %v4374 = vsel %vm4326, 1, 0
        %v4375 = vsel %vm4327, 1, 0
        %v4376 = vsel %vm4328, 1, 0
        %v4377 = vcvt.s32.f32 %v4361
        %v4378 = vcvt.s32.f32 %v4362
        %v4379 = vcvt.s32.f32 %v4363
        %v4380 = vcvt.s32.f32 %v4364
        %v4381 = vcvt.s32.f32 %v4365
        %v4382 = vcvt.s32.f32 %v4366
        %v4383 = vcvt.s32.f32 %v4367
        %v4384 = vcvt.s32.f32 %v4368
        %v4385 = vcvt.s32.f32 %v4369
        %v4386 = vcvt.s32.f32 %v4370
        %v4387 = vcvt.s32.f32 %v4371
        %v4388 = vcvt.s32.f32 %v4372
        %v4389 = vcvt.s32.f32 %v4373
        %v4390 = vcvt.s32.f32 %v4374
        %v4391 = vcvt.s32.f32 %v4375
        %v4392 = vcvt.s32.f32 %v4376
        %4393 = vmatprep.subr.mxu0 %v1330
        %4394 = vmatpush1.msra.mxu0 %v1329
        %4395 = vmatprep.subr.mxu0 %v1332
        %4396 = vmatpush1.msra.mxu0 %v1331
        %4397 = vmatprep.subr.mxu0 %v1334
        %4398 = vmatpush1.msra.mxu0 %v1333
        %4399 = vmatprep.subr.mxu0 %v1336
        %4400 = vmatpush1.msra.mxu0 %v1335
        %4401 = vmatprep.subr.mxu0 %v1338
        %4402 = vmatpush1.msra.mxu0 %v1337
        %4403 = vmatprep.subr.mxu0 %v1340
        %4404 = vmatpush1.msra.mxu0 %v1339
        %4405 = vmatprep.subr.mxu0 %v1342
        %4406 = vmatpush1.msra.mxu0 %v1341
        %4407 = vmatprep.subr.mxu0 %v1344
        %4408 = vmatpush1.msra.mxu0 %v1343
        %4409 = vmatprep.subr.mxu0 %v1346
        %4410 = vmatpush1.msra.mxu0 %v1345
        %4411 = vmatprep.subr.mxu0 %v1348
        %4412 = vmatpush1.msra.mxu0 %v1347
        %4413 = vmatprep.subr.mxu0 %v1350
        %4414 = vmatpush1.msra.mxu0 %v1349
        %4415 = vmatprep.subr.mxu0 %v1352
        %4416 = vmatpush1.msra.mxu0 %v1351
        %4417 = vmatprep.subr.mxu0 %v1354
        %4418 = vmatpush1.msra.mxu0 %v1353
        %4419 = vmatprep.subr.mxu0 %v1356
        %4420 = vmatpush1.msra.mxu0 %v1355
        %4421 = vmatprep.subr.mxu0 %v1358
        %4422 = vmatpush1.msra.mxu0 %v1357
        %4423 = vmatprep.subr.mxu0 %v1360
        %4424 = vmatpush1.msra.mxu0 %v1359
        %4425 = vmatprep.subr.mxu0 %v1362
        %4426 = vmatpush1.msra.mxu0 %v1361
        %4427 = vmatprep.subr.mxu0 %v1364
        %4428 = vmatpush1.msra.mxu0 %v1363
        %4429 = vmatprep.subr.mxu0 %v1366
        %4430 = vmatpush1.msra.mxu0 %v1365
        %4431 = vmatprep.subr.mxu0 %v1368
        %4432 = vmatpush1.msra.mxu0 %v1367
        %4433 = vmatprep.subr.mxu0 %v1370
        %4434 = vmatpush1.msra.mxu0 %v1369
        %4435 = vmatprep.subr.mxu0 %v1372
        %4436 = vmatpush1.msra.mxu0 %v1371
        %4437 = vmatprep.subr.mxu0 %v1374
        %4438 = vmatpush1.msra.mxu0 %v1373
        %4439 = vmatprep.subr.mxu0 %v1376
        %4440 = vmatpush1.msra.mxu0 %v1375
        %4441 = vmatprep.subr.mxu0 %v1378
        %4442 = vmatpush1.msra.mxu0 %v1377
        %4443 = vmatprep.subr.mxu0 %v1380
        %4444 = vmatpush1.msra.mxu0 %v1379
        %4445 = vmatprep.subr.mxu0 %v1382
        %4446 = vmatpush1.msra.mxu0 %v1381
        %4447 = vmatprep.subr.mxu0 %v1384
        %4448 = vmatpush1.msra.mxu0 %v1383
        %4449 = vmatprep.subr.mxu0 %v1386
        %4450 = vmatpush1.msra.mxu0 %v1385
        %4451 = vmatprep.subr.mxu0 %v1388
        %4452 = vmatpush1.msra.mxu0 %v1387
        %4453 = vmatprep.subr.mxu0 %v1390
        %4454 = vmatpush1.msra.mxu0 %v1389
        %4455 = vmatprep.subr.mxu0 %v1392
        %4456 = vmatpush1.msra.mxu0 %v1391
        %4457 = vmatprep.mubr.f32.mxu0 %v4378
        %4458 = vmatmul.mubr.f32.gmra.mrb[0].mxu0 %v4377
        %v4459 = vpop.f32.mrb[0].mxu0
        %v4460 = vadd.f32 0.0, %v4459
        %v4461 = vpop.f32.mrb[0].mxu0
        %v4462 = vadd.f32 0.0, %v4461
        %4463 = vmatprep.mubr.f32.mxu0 %v4382
        %4464 = vmatmul.mubr.f32.gmra.mrb[0].mxu0 %v4381
        %v4465 = vpop.f32.mrb[0].mxu0
        %v4466 = vadd.f32 0.0, %v4465
        %v4467 = vpop.f32.mrb[0].mxu0
        %v4468 = vadd.f32 0.0, %v4467
        %4469 = vmatprep.mubr.f32.mxu0 %v4386
        %4470 = vmatmul.mubr.f32.gmra.mrb[0].mxu0 %v4385
        %v4471 = vpop.f32.mrb[0].mxu0
        %v4472 = vadd.f32 0.0, %v4471
        %v4473 = vpop.f32.mrb[0].mxu0
        %v4474 = vadd.f32 0.0, %v4473
        %4475 = vmatprep.mubr.f32.mxu0 %v4390
        %4476 = vmatmul.mubr.f32.gmra.mrb[0].mxu0 %v4389
        %v4477 = vpop.f32.mrb[0].mxu0
        %v4478 = vadd.f32 0.0, %v4477
        %v4479 = vpop.f32.mrb[0].mxu0
        %v4480 = vadd.f32 0.0, %v4479
        %4481 = vdwg.mxu0
        %4482 = vmatprep.subr.mxu0 %v1394
        %4483 = vmatpush1.msra.mxu0 %v1393
        %4484 = vmatprep.subr.mxu0 %v1396
        %4485 = vmatpush1.msra.mxu0 %v1395
        %4486 = vmatprep.subr.mxu0 %v1398
        %4487 = vmatpush1.msra.mxu0 %v1397
        %4488 = vmatprep.subr.mxu0 %v1400
        %4489 = vmatpush1.msra.mxu0 %v1399
        %4490 = vmatprep.subr.mxu0 %v1402
        %4491 = vmatpush1.msra.mxu0 %v1401
        %4492 = vmatprep.subr.mxu0 %v1404
        %4493 = vmatpush1.msra.mxu0 %v1403
        %4494 = vmatprep.subr.mxu0 %v1406
        %4495 = vmatpush1.msra.mxu0 %v1405
        %4496 = vmatprep.subr.mxu0 %v1408
        %4497 = vmatpush1.msra.mxu0 %v1407
        %4498 = vmatprep.subr.mxu0 %v1410
        %4499 = vmatpush1.msra.mxu0 %v1409
        %4500 = vmatprep.subr.mxu0 %v1412
        %4501 = vmatpush1.msra.mxu0 %v1411
        %4502 = vmatprep.subr.mxu0 %v1414
        %4503 = vmatpush1.msra.mxu0 %v1413
        %4504 = vmatprep.subr.mxu0 %v1416
        %4505 = vmatpush1.msra.mxu0 %v1415
        %4506 = vmatprep.subr.mxu0 %v1418
        %4507 = vmatpush1.msra.mxu0 %v1417
        %4508 = vmatprep.subr.mxu0 %v1420
        %4509 = vmatpush1.msra.mxu0 %v1419
        %4510 = vmatprep.subr.mxu0 %v1422
        %4511 = vmatpush1.msra.mxu0 %v1421
        %4512 = vmatprep.subr.mxu0 %v1424
        %4513 = vmatpush1.msra.mxu0 %v1423
        %4514 = vmatprep.subr.mxu0 %v1426
        %4515 = vmatpush1.msra.mxu0 %v1425
        %4516 = vmatprep.subr.mxu0 %v1428
        %4517 = vmatpush1.msra.mxu0 %v1427
        %4518 = vmatprep.subr.mxu0 %v1430
        %4519 = vmatpush1.msra.mxu0 %v1429
        %4520 = vmatprep.subr.mxu0 %v1432
        %4521 = vmatpush1.msra.mxu0 %v1431
        %4522 = vmatprep.subr.mxu0 %v1434
        %4523 = vmatpush1.msra.mxu0 %v1433
        %4524 = vmatprep.subr.mxu0 %v1436
        %4525 = vmatpush1.msra.mxu0 %v1435
        %4526 = vmatprep.subr.mxu0 %v1438
        %4527 = vmatpush1.msra.mxu0 %v1437
        %4528 = vmatprep.subr.mxu0 %v1440
        %4529 = vmatpush1.msra.mxu0 %v1439
        %4530 = vmatprep.subr.mxu0 %v1442
        %4531 = vmatpush1.msra.mxu0 %v1441
        %4532 = vmatprep.subr.mxu0 %v1444
        %4533 = vmatpush1.msra.mxu0 %v1443
        %4534 = vmatprep.subr.mxu0 %v1446
        %4535 = vmatpush1.msra.mxu0 %v1445
        %4536 = vmatprep.subr.mxu0 %v1448
        %4537 = vmatpush1.msra.mxu0 %v1447
        %4538 = vmatprep.subr.mxu0 %v1450
        %4539 = vmatpush1.msra.mxu0 %v1449
        %4540 = vmatprep.subr.mxu0 %v1452
        %4541 = vmatpush1.msra.mxu0 %v1451
        %4542 = vmatprep.subr.mxu0 %v1454
        %4543 = vmatpush1.msra.mxu0 %v1453
        %4544 = vmatprep.subr.mxu0 %v1456
        %4545 = vmatpush1.msra.mxu0 %v1455
        %4546 = vmatprep.mubr.f32.mxu0 %v4380
        %4547 = vmatmul.mubr.f32.gmra.mrb[0].mxu0 %v4379
        %v4548 = vpop.f32.mrb[0].mxu0
        %v4549 = vadd.f32 %v4460, %v4548
        %v4550 = vpop.f32.mrb[0].mxu0
        %v4551 = vadd.f32 %v4462, %v4550
        %4552 = vmatprep.mubr.f32.mxu0 %v4384
        %4553 = vmatmul.mubr.f32.gmra.mrb[0].mxu0 %v4383
        %v4554 = vpop.f32.mrb[0].mxu0
        %v4555 = vadd.f32 %v4466, %v4554
        %v4556 = vpop.f32.mrb[0].mxu0
        %v4557 = vadd.f32 %v4468, %v4556
        %4558 = vmatprep.mubr.f32.mxu0 %v4388
        %4559 = vmatmul.mubr.f32.gmra.mrb[0].mxu0 %v4387
        %v4560 = vpop.f32.mrb[0].mxu0
        %v4561 = vadd.f32 %v4472, %v4560
        %v4562 = vpop.f32.mrb[0].mxu0
        %v4563 = vadd.f32 %v4474, %v4562
        %4564 = vmatprep.mubr.f32.mxu0 %v4392
        %4565 = vmatmul.mubr.f32.gmra.mrb[0].mxu0 %v4391
        %v4566 = vpop.f32.mrb[0].mxu0
        %v4567 = vadd.f32 %v4478, %v4566
        %v4568 = vpop.f32.mrb[0].mxu0
        %v4569 = vadd.f32 %v4480, %v4568
        %4570 = vdwg.mxu0
        %4571 = vmatprep.subr.mxu0 %v4551
        %4572 = vmatpush1.msra.mxu0 %v4549
        %4573 = vmatprep.subr.mxu0 %v4557
        %4574 = vmatpush1.msra.mxu0 %v4555
        %4575 = vmatprep.subr.mxu0 %v4563
        %4576 = vmatpush1.msra.mxu0 %v4561
        %4577 = vmatprep.subr.mxu0 %v4569
        %4578 = vmatpush1.msra.mxu0 %v4567
        %4579 = vmatprep.subr.mxu0 0.0
        %4580 = vmatpush1.msra.mxu0 0.0
        %4581 = vmatprep.subr.mxu0 0.0
        %4582 = vmatpush1.msra.mxu0 0.0
        %4583 = vmatprep.subr.mxu0 0.0
        %4584 = vmatpush1.msra.mxu0 0.0
        %4585 = vmatprep.subr.mxu0 0.0
        %4586 = vmatpush1.msra.mxu0 0.0
        %4587 = vmatprep.subr.mxu0 0.0
        %4588 = vmatpush1.msra.mxu0 0.0
        %4589 = vmatprep.subr.mxu0 0.0
        %4590 = vmatpush1.msra.mxu0 0.0
        %4591 = vmatprep.subr.mxu0 0.0
        %4592 = vmatpush1.msra.mxu0 0.0
        %4593 = vmatprep.subr.mxu0 0.0
        %4594 = vmatpush1.msra.mxu0 0.0
        %4595 = vmatprep.subr.mxu0 0.0
        %4596 = vmatpush1.msra.mxu0 0.0
        %4597 = vmatprep.subr.mxu0 0.0
        %4598 = vmatpush1.msra.mxu0 0.0
        %4599 = vmatprep.subr.mxu0 0.0
        %4600 = vmatpush1.msra.mxu0 0.0
        %4601 = vmatprep.subr.mxu0 0.0
        %4602 = vmatpush1.msra.mxu0 0.0
        %4603 = vmatprep.subr.mxu0 0.0
        %4604 = vmatpush1.msra.mxu0 0.0
        %4605 = vmatprep.subr.mxu0 0.0
        %4606 = vmatpush1.msra.mxu0 0.0
        %4607 = vmatprep.subr.mxu0 0.0
        %4608 = vmatpush1.msra.mxu0 0.0
        %4609 = vmatprep.subr.mxu0 0.0
        %4610 = vmatpush1.msra.mxu0 0.0
        %4611 = vmatprep.subr.mxu0 0.0
        %4612 = vmatpush1.msra.mxu0 0.0
        %4613 = vmatprep.subr.mxu0 0.0
        %4614 = vmatpush1.msra.mxu0 0.0
        %4615 = vmatprep.subr.mxu0 0.0
        %4616 = vmatpush1.msra.mxu0 0.0
        %4617 = vmatprep.subr.mxu0 0.0
        %4618 = vmatpush1.msra.mxu0 0.0
        %4619 = vmatprep.subr.mxu0 0.0
        %4620 = vmatpush1.msra.mxu0 0.0
        %4621 = vmatprep.subr.mxu0 0.0
        %4622 = vmatpush1.msra.mxu0 0.0
        %4623 = vmatprep.subr.mxu0 0.0
        %4624 = vmatpush1.msra.mxu0 0.0
        %4625 = vmatprep.subr.mxu0 0.0
        %4626 = vmatpush1.msra.mxu0 0.0
        %4627 = vmatprep.subr.mxu0 0.0
        %4628 = vmatpush1.msra.mxu0 0.0
        %4629 = vmatprep.subr.mxu0 0.0
        %4630 = vmatpush1.msra.mxu0 0.0
        %4631 = vmatprep.subr.mxu0 0.0
        %4632 = vmatpush1.msra.mxu0 0.0
        %4633 = vmatprep.subr.mxu0 0.0
        %4634 = vmatpush1.msra.mxu0 0.0
        %4635 = vmatprep.mubr.f32.mxu0 0.0
        %4636 = vmatmul.mubr.f32.gmra.mrb[0].mxu0 %v2448
        %v4637 = vpop.f32.mrb[0].mxu0
        %v4638 = vadd.f32 0.0, %v4637
        %v4639 = vpop.f32.mrb[0].mxu0
        %v4640 = vadd.f32 0.0, %v4639
        %4641 = vmatprep.mubr.f32.mxu0 0.0
        %4642 = vmatmul.mubr.f32.gmra.mrb[0].mxu0 %v2451
        %v4643 = vpop.f32.mrb[0].mxu0
        %v4644 = vadd.f32 0.0, %v4643
        %v4645 = vpop.f32.mrb[0].mxu0
        %v4646 = vadd.f32 0.0, %v4645
        %4647 = vdwg.mxu0
        %vm4648 = vcmp.gt.f32.partialorder %v4638, 0.5
        %vm4649 = vcmp.gt.f32.partialorder %v4640, 0.5
        %vm4650 = vcmp.gt.f32.partialorder %v4644, 0.5
        %vm4651 = vcmp.gt.f32.partialorder %v4646, 0.5
        %v4652 = vsel %vm4648, 1, 0
        %v4653 = vsel %vm4649, 1, 0
        %v4654 = vsel %vm4650, 1, 0
        %v4655 = vsel %vm4651, 1, 0
        %v4656 = vcvt.s32.f32 %v4652
        %v4657 = vcvt.s32.f32 %v4653
        %v4658 = vcvt.s32.f32 %v4654
        %v4659 = vcvt.s32.f32 %v4655
        %4660 = vst [vmem:[#allocation3 + $0x50] sm:$0xff] %v4656
        %4661 = vst [vmem:[#allocation3 + $0x58] sm:$0xff] %v4657
        %4662 = vst [vmem:[#allocation3 + $0x60] sm:$0xff] %v4658
        %4663 = vst [vmem:[#allocation3 + $0x68] sm:$0xff] %v4659
        %v4664 = vld [vmem:[#allocation2 + $0xc0] sm:$0x80]
        %v4665 = vld [vmem:[#allocation2 + $0xc8] sm:$0x80]
        %v4666 = vld [vmem:[#allocation2 + $0xd0] sm:$0xff]
        %v4667 = vld [vmem:[#allocation2 + $0xd8] sm:$0xff]
        %v4668 = vld [vmem:[#allocation2 + $0xe0] sm:$0xff]
        %v4669 = vld [vmem:[#allocation2 + $0xe8] sm:$0xff]
        %v4670 = vld [vmem:[#allocation2 + $0xf0] sm:$0xff]
        %v4671 = vld [vmem:[#allocation2 + $0xf8] sm:$0xff]
        %v4672 = vld [vmem:[#allocation2 + $0x100] sm:$0x7f]
        %v4673 = vld [vmem:[#allocation2 + $0x108] sm:$0x7f]
        %v4674 = vld [vmem:[#allocation2 + $0x100] sm:$0xff]
        %v4675 = vld [vmem:[#allocation2 + $0x108] sm:$0xff]
        %4676 = vmatprep.subr.mxu0 %v1072
        %4677 = vmatpush1.msra.mxu0 %v1071
        %4678 = vmatprep.subr.mxu0 %v1076
        %4679 = vmatpush1.msra.mxu0 %v1075
        %4680 = vmatprep.subr.mxu0 %v1080
        %4681 = vmatpush1.msra.mxu0 %v1079
        %4682 = vmatprep.subr.mxu0 %v1084
        %4683 = vmatpush1.msra.mxu0 %v1083
        %4684 = vmatprep.subr.mxu0 %v1088
        %4685 = vmatpush1.msra.mxu0 %v1087
        %4686 = vmatprep.subr.mxu0 %v1092
        %4687 = vmatpush1.msra.mxu0 %v1091
        %4688 = vmatprep.subr.mxu0 %v1096
        %4689 = vmatpush1.msra.mxu0 %v1095
        %4690 = vmatprep.subr.mxu0 %v1100
        %4691 = vmatpush1.msra.mxu0 %v1099
        %4692 = vmatprep.subr.mxu0 %v1104
        %4693 = vmatpush1.msra.mxu0 %v1103
        %4694 = vmatprep.subr.mxu0 %v1108
        %4695 = vmatpush1.msra.mxu0 %v1107
        %4696 = vmatprep.subr.mxu0 %v1112
        %4697 = vmatpush1.msra.mxu0 %v1111
        %4698 = vmatprep.subr.mxu0 %v1116
        %4699 = vmatpush1.msra.mxu0 %v1115
        %4700 = vmatprep.subr.mxu0 %v1120
        %4701 = vmatpush1.msra.mxu0 %v1119
        %4702 = vmatprep.subr.mxu0 %v1124
        %4703 = vmatpush1.msra.mxu0 %v1123
        %4704 = vmatprep.subr.mxu0 %v1128
        %4705 = vmatpush1.msra.mxu0 %v1127
        %4706 = vmatprep.subr.mxu0 %v1132
        %4707 = vmatpush1.msra.mxu0 %v1131
        %4708 = vmatprep.subr.mxu0 %v1136
        %4709 = vmatpush1.msra.mxu0 %v1135
        %4710 = vmatprep.subr.mxu0 %v1140
        %4711 = vmatpush1.msra.mxu0 %v1139
        %4712 = vmatprep.subr.mxu0 %v1144
        %4713 = vmatpush1.msra.mxu0 %v1143
        %4714 = vmatprep.subr.mxu0 %v1148
        %4715 = vmatpush1.msra.mxu0 %v1147
        %4716 = vmatprep.subr.mxu0 %v1152
        %4717 = vmatpush1.msra.mxu0 %v1151
        %4718 = vmatprep.subr.mxu0 %v1156
        %4719 = vmatpush1.msra.mxu0 %v1155
        %4720 = vmatprep.subr.mxu0 %v1160
        %4721 = vmatpush1.msra.mxu0 %v1159
        %4722 = vmatprep.subr.mxu0 %v1164
        %4723 = vmatpush1.msra.mxu0 %v1163
        %4724 = vmatprep.subr.mxu0 %v1168
        %4725 = vmatpush1.msra.mxu0 %v1167
        %4726 = vmatprep.subr.mxu0 %v1172
        %4727 = vmatpush1.msra.mxu0 %v1171
        %4728 = vmatprep.subr.mxu0 %v1176
        %4729 = vmatpush1.msra.mxu0 %v1175
        %4730 = vmatprep.subr.mxu0 %v1180
        %4731 = vmatpush1.msra.mxu0 %v1179
        %4732 = vmatprep.subr.mxu0 %v1184
        %4733 = vmatpush1.msra.mxu0 %v1183
        %4734 = vmatprep.subr.mxu0 %v1188
        %4735 = vmatpush1.msra.mxu0 %v1187
        %4736 = vmatprep.subr.mxu0 %v1192
        %4737 = vmatpush1.msra.mxu0 %v1191
        %4738 = vmatprep.subr.mxu0 %v1196
        %4739 = vmatpush1.msra.mxu0 %v1195
        %4740 = vmatprep.mubr.f32.mxu0 %v4667
        %4741 = vmatmul.mubr.f32.gmra.mrb[0].mxu0 %v4666
        %v4742 = vpop.f32.mrb[0].mxu0
        %v4743 = vadd.f32 0.0, %v4742
        %v4744 = vpop.f32.mrb[0].mxu0
        %v4745 = vadd.f32 0.0, %v4744
        %4746 = vmatprep.mubr.f32.mxu0 %v4669
        %4747 = vmatmul.mubr.f32.gmra.mrb[0].mxu0 %v4668
        %v4748 = vpop.f32.mrb[0].mxu0
        %v4749 = vadd.f32 0.0, %v4748
        %v4750 = vpop.f32.mrb[0].mxu0
        %v4751 = vadd.f32 0.0, %v4750
        %4752 = vmatprep.mubr.f32.mxu0 %v4671
        %4753 = vmatmul.mubr.f32.gmra.mrb[0].mxu0 %v4670
        %v4754 = vpop.f32.mrb[0].mxu0
        %v4755 = vadd.f32 0.0, %v4754
        %v4756 = vpop.f32.mrb[0].mxu0
        %v4757 = vadd.f32 0.0, %v4756
        %4758 = vmatprep.mubr.f32.mxu0 %v4675
        %4759 = vmatmul.mubr.f32.gmra.mrb[0].mxu0 %v4674
        %v4760 = vpop.f32.mrb[0].mxu0
        %v4761 = vadd.f32 0.0, %v4760
        %v4762 = vpop.f32.mrb[0].mxu0
        %v4763 = vadd.f32 0.0, %v4762
        %4764 = vdwg.mxu0
        %4765 = vmatprep.subr.mxu0 %v1074
        %4766 = vmatpush1.msra.mxu0 %v1073
        %4767 = vmatprep.subr.mxu0 %v1078
        %4768 = vmatpush1.msra.mxu0 %v1077
        %4769 = vmatprep.subr.mxu0 %v1082
        %4770 = vmatpush1.msra.mxu0 %v1081
        %4771 = vmatprep.subr.mxu0 %v1086
        %4772 = vmatpush1.msra.mxu0 %v1085
        %4773 = vmatprep.subr.mxu0 %v1090
        %4774 = vmatpush1.msra.mxu0 %v1089
        %4775 = vmatprep.subr.mxu0 %v1094
        %4776 = vmatpush1.msra.mxu0 %v1093
        %4777 = vmatprep.subr.mxu0 %v1098
        %4778 = vmatpush1.msra.mxu0 %v1097
        %4779 = vmatprep.subr.mxu0 %v1102
        %4780 = vmatpush1.msra.mxu0 %v1101
        %4781 = vmatprep.subr.mxu0 %v1106
        %4782 = vmatpush1.msra.mxu0 %v1105
        %4783 = vmatprep.subr.mxu0 %v1110
        %4784 = vmatpush1.msra.mxu0 %v1109
        %4785 = vmatprep.subr.mxu0 %v1114
        %4786 = vmatpush1.msra.mxu0 %v1113
        %4787 = vmatprep.subr.mxu0 %v1118
        %4788 = vmatpush1.msra.mxu0 %v1117
        %4789 = vmatprep.subr.mxu0 %v1122
        %4790 = vmatpush1.msra.mxu0 %v1121
        %4791 = vmatprep.subr.mxu0 %v1126
        %4792 = vmatpush1.msra.mxu0 %v1125
        %4793 = vmatprep.subr.mxu0 %v1130
        %4794 = vmatpush1.msra.mxu0 %v1129
        %4795 = vmatprep.subr.mxu0 %v1134
        %4796 = vmatpush1.msra.mxu0 %v1133
        %4797 = vmatprep.subr.mxu0 %v1138
        %4798 = vmatpush1.msra.mxu0 %v1137
        %4799 = vmatprep.subr.mxu0 %v1142
        %4800 = vmatpush1.msra.mxu0 %v1141
        %4801 = vmatprep.subr.mxu0 %v1146
        %4802 = vmatpush1.msra.mxu0 %v1145
        %4803 = vmatprep.subr.mxu0 %v1150
        %4804 = vmatpush1.msra.mxu0 %v1149
        %4805 = vmatprep.subr.mxu0 %v1154
        %4806 = vmatpush1.msra.mxu0 %v1153
        %4807 = vmatprep.subr.mxu0 %v1158
        %4808 = vmatpush1.msra.mxu0 %v1157
        %4809 = vmatprep.subr.mxu0 %v1162
        %4810 = vmatpush1.msra.mxu0 %v1161
        %4811 = vmatprep.subr.mxu0 %v1166
        %4812 = vmatpush1.msra.mxu0 %v1165
        %4813 = vmatprep.subr.mxu0 %v1170
        %4814 = vmatpush1.msra.mxu0 %v1169
        %4815 = vmatprep.subr.mxu0 %v1174
        %4816 = vmatpush1.msra.mxu0 %v1173
        %4817 = vmatprep.subr.mxu0 %v1178
        %4818 = vmatpush1.msra.mxu0 %v1177
        %4819 = vmatprep.subr.mxu0 %v1182
        %4820 = vmatpush1.msra.mxu0 %v1181
        %4821 = vmatprep.subr.mxu0 %v1186
        %4822 = vmatpush1.msra.mxu0 %v1185
        %4823 = vmatprep.subr.mxu0 %v1190
        %4824 = vmatpush1.msra.mxu0 %v1189
        %4825 = vmatprep.subr.mxu0 %v1194
        %4826 = vmatpush1.msra.mxu0 %v1193
        %4827 = vmatprep.subr.mxu0 %v1198
        %4828 = vmatpush1.msra.mxu0 %v1197
        %4829 = vmatprep.mubr.f32.mxu0 %v4667
        %4830 = vmatmul.mubr.f32.gmra.mrb[0].mxu0 %v4666
        %v4831 = vpop.f32.mrb[0].mxu0
        %v4832 = vadd.f32 0.0, %v4831
        %v4833 = vpop.f32.mrb[0].mxu0
        %v4834 = vadd.f32 0.0, %v4833
        %4835 = vmatprep.mubr.f32.mxu0 %v4669
        %4836 = vmatmul.mubr.f32.gmra.mrb[0].mxu0 %v4668
        %v4837 = vpop.f32.mrb[0].mxu0
        %v4838 = vadd.f32 0.0, %v4837
        %v4839 = vpop.f32.mrb[0].mxu0
        %v4840 = vadd.f32 0.0, %v4839
        %4841 = vmatprep.mubr.f32.mxu0 %v4671
        %4842 = vmatmul.mubr.f32.gmra.mrb[0].mxu0 %v4670
        %v4843 = vpop.f32.mrb[0].mxu0
        %v4844 = vadd.f32 0.0, %v4843
        %v4845 = vpop.f32.mrb[0].mxu0
        %v4846 = vadd.f32 0.0, %v4845
        %4847 = vmatprep.mubr.f32.mxu0 %v4675
        %4848 = vmatmul.mubr.f32.gmra.mrb[0].mxu0 %v4674
        %v4849 = vpop.f32.mrb[0].mxu0
        %v4850 = vadd.f32 0.0, %v4849
        %v4851 = vpop.f32.mrb[0].mxu0
        %v4852 = vadd.f32 0.0, %v4851
        %4853 = vdwg.mxu0
        %v4864 = vrot.slane %v4664, 7
        %v4865 = vrot.slane %v4666, 7
        %v4866 = vsel %vm1657, %v4864, %v4865
        %v4867 = vrot.slane %v4665, 7
        %v4868 = vrot.slane %v4667, 7
        %v4869 = vsel %vm1657, %v4867, %v4868
        %v4870 = vrot.slane %v4668, 7
        %v4871 = vsel %vm1657, %v4865, %v4870
        %v4872 = vrot.slane %v4669, 7
        %v4873 = vsel %vm1657, %v4868, %v4872
        %v4874 = vrot.slane %v4670, 7
        %v4875 = vsel %vm1657, %v4870, %v4874
        %v4876 = vrot.slane %v4671, 7
        %v4877 = vsel %vm1657, %v4872, %v4876
        %v4878 = vrot.slane %v4672, 7
        %v4879 = vsel %vm1657, %v4874, %v4878
        %v4880 = vrot.slane %v4673, 7
        %v4881 = vsel %vm1657, %v4876, %v4880
        %4890 = vmatprep.subr.mxu0 %v943
        %4891 = vmatpush1.msra.mxu0 %v942
        %4892 = vmatprep.subr.mxu0 %v947
        %4893 = vmatpush1.msra.mxu0 %v946
        %4894 = vmatprep.subr.mxu0 %v951
        %4895 = vmatpush1.msra.mxu0 %v950
        %4896 = vmatprep.subr.mxu0 %v955
        %4897 = vmatpush1.msra.mxu0 %v954
        %4898 = vmatprep.subr.mxu0 %v959
        %4899 = vmatpush1.msra.mxu0 %v958
        %4900 = vmatprep.subr.mxu0 %v963
        %4901 = vmatpush1.msra.mxu0 %v962
        %4902 = vmatprep.subr.mxu0 %v967
        %4903 = vmatpush1.msra.mxu0 %v966
        %4904 = vmatprep.subr.mxu0 %v971
        %4905 = vmatpush1.msra.mxu0 %v970
        %4906 = vmatprep.subr.mxu0 %v975
        %4907 = vmatpush1.msra.mxu0 %v974
        %4908 = vmatprep.subr.mxu0 %v979
        %4909 = vmatpush1.msra.mxu0 %v978
        %4910 = vmatprep.subr.mxu0 %v983
        %4911 = vmatpush1.msra.mxu0 %v982
        %4912 = vmatprep.subr.mxu0 %v987
        %4913 = vmatpush1.msra.mxu0 %v986
        %4914 = vmatprep.subr.mxu0 %v991
        %4915 = vmatpush1.msra.mxu0 %v990
        %4916 = vmatprep.subr.mxu0 %v995
        %4917 = vmatpush1.msra.mxu0 %v994
        %4918 = vmatprep.subr.mxu0 %v999
        %4919 = vmatpush1.msra.mxu0 %v998
        %4920 = vmatprep.subr.mxu0 %v1003
        %4921 = vmatpush1.msra.mxu0 %v1002
        %4922 = vmatprep.subr.mxu0 %v1007
        %4923 = vmatpush1.msra.mxu0 %v1006
        %4924 = vmatprep.subr.mxu0 %v1011
        %4925 = vmatpush1.msra.mxu0 %v1010
        %4926 = vmatprep.subr.mxu0 %v1015
        %4927 = vmatpush1.msra.mxu0 %v1014
        %4928 = vmatprep.subr.mxu0 %v1019
        %4929 = vmatpush1.msra.mxu0 %v1018
        %4930 = vmatprep.subr.mxu0 %v1023
        %4931 = vmatpush1.msra.mxu0 %v1022
        %4932 = vmatprep.subr.mxu0 %v1027
        %4933 = vmatpush1.msra.mxu0 %v1026
        %4934 = vmatprep.subr.mxu0 %v1031
        %4935 = vmatpush1.msra.mxu0 %v1030
        %4936 = vmatprep.subr.mxu0 %v1035
        %4937 = vmatpush1.msra.mxu0 %v1034
        %4938 = vmatprep.subr.mxu0 %v1039
        %4939 = vmatpush1.msra.mxu0 %v1038
        %4940 = vmatprep.subr.mxu0 %v1043
        %4941 = vmatpush1.msra.mxu0 %v1042
        %4942 = vmatprep.subr.mxu0 %v1047
        %4943 = vmatpush1.msra.mxu0 %v1046
        %4944 = vmatprep.subr.mxu0 %v1051
        %4945 = vmatpush1.msra.mxu0 %v1050
        %4946 = vmatprep.subr.mxu0 %v1055
        %4947 = vmatpush1.msra.mxu0 %v1054
        %4948 = vmatprep.subr.mxu0 %v1059
        %4949 = vmatpush1.msra.mxu0 %v1058
        %4950 = vmatprep.subr.mxu0 %v1063
        %4951 = vmatpush1.msra.mxu0 %v1062
        %4952 = vmatprep.subr.mxu0 %v1067
        %4953 = vmatpush1.msra.mxu0 %v1066
        %4954 = vmatprep.mubr.f32.mxu0 %v4869
        %4955 = vmatmul.mubr.f32.gmra.mrb[0].mxu0 %v4866
        %v4956 = vpop.f32.mrb[0].mxu0
        %v4957 = vadd.f32 %v4743, %v4956
        %v4958 = vpop.f32.mrb[0].mxu0
        %v4959 = vadd.f32 %v4745, %v4958
        %4960 = vmatprep.mubr.f32.mxu0 %v4873
        %4961 = vmatmul.mubr.f32.gmra.mrb[0].mxu0 %v4871
        %v4962 = vpop.f32.mrb[0].mxu0
        %v4963 = vadd.f32 %v4749, %v4962
        %v4964 = vpop.f32.mrb[0].mxu0
        %v4965 = vadd.f32 %v4751, %v4964
        %4966 = vmatprep.mubr.f32.mxu0 %v4877
        %4967 = vmatmul.mubr.f32.gmra.mrb[0].mxu0 %v4875
        %v4968 = vpop.f32.mrb[0].mxu0
        %v4969 = vadd.f32 %v4755, %v4968
        %v4970 = vpop.f32.mrb[0].mxu0
        %v4971 = vadd.f32 %v4757, %v4970
        %4972 = vmatprep.mubr.f32.mxu0 %v4881
        %4973 = vmatmul.mubr.f32.gmra.mrb[0].mxu0 %v4879
        %v4974 = vpop.f32.mrb[0].mxu0
        %v4975 = vadd.f32 %v4761, %v4974
        %v4976 = vpop.f32.mrb[0].mxu0
        %v4977 = vadd.f32 %v4763, %v4976
        %4978 = vdwg.mxu0
        %4979 = vmatprep.subr.mxu0 %v945
        %4980 = vmatpush1.msra.mxu0 %v944
        %4981 = vmatprep.subr.mxu0 %v949
        %4982 = vmatpush1.msra.mxu0 %v948
        %4983 = vmatprep.subr.mxu0 %v953
        %4984 = vmatpush1.msra.mxu0 %v952
        %4985 = vmatprep.subr.mxu0 %v957
        %4986 = vmatpush1.msra.mxu0 %v956
        %4987 = vmatprep.subr.mxu0 %v961
        %4988 = vmatpush1.msra.mxu0 %v960
        %4989 = vmatprep.subr.mxu0 %v965
        %4990 = vmatpush1.msra.mxu0 %v964
        %4991 = vmatprep.subr.mxu0 %v969
        %4992 = vmatpush1.msra.mxu0 %v968
        %4993 = vmatprep.subr.mxu0 %v973
        %4994 = vmatpush1.msra.mxu0 %v972
        %4995 = vmatprep.subr.mxu0 %v977
        %4996 = vmatpush1.msra.mxu0 %v976
        %4997 = vmatprep.subr.mxu0 %v981
        %4998 = vmatpush1.msra.mxu0 %v980
        %4999 = vmatprep.subr.mxu0 %v985
        %5000 = vmatpush1.msra.mxu0 %v984
        %5001 = vmatprep.subr.mxu0 %v989
        %5002 = vmatpush1.msra.mxu0 %v988
        %5003 = vmatprep.subr.mxu0 %v993
        %5004 = vmatpush1.msra.mxu0 %v992
        %5005 = vmatprep.subr.mxu0 %v997
        %5006 = vmatpush1.msra.mxu0 %v996
        %5007 = vmatprep.subr.mxu0 %v1001
        %5008 = vmatpush1.msra.mxu0 %v1000
        %5009 = vmatprep.subr.mxu0 %v1005
        %5010 = vmatpush1.msra.mxu0 %v1004
        %5011 = vmatprep.subr.mxu0 %v1009
        %5012 = vmatpush1.msra.mxu0 %v1008
        %5013 = vmatprep.subr.mxu0 %v1013
        %5014 = vmatpush1.msra.mxu0 %v1012
        %5015 = vmatprep.subr.mxu0 %v1017
        %5016 = vmatpush1.msra.mxu0 %v1016
        %5017 = vmatprep.subr.mxu0 %v1021
        %5018 = vmatpush1.msra.mxu0 %v1020
        %5019 = vmatprep.subr.mxu0 %v1025
        %5020 = vmatpush1.msra.mxu0 %v1024
        %5021 = vmatprep.subr.mxu0 %v1029
        %5022 = vmatpush1.msra.mxu0 %v1028
        %5023 = vmatprep.subr.mxu0 %v1033
        %5024 = vmatpush1.msra.mxu0 %v1032
        %5025 = vmatprep.subr.mxu0 %v1037
        %5026 = vmatpush1.msra.mxu0 %v1036
        %5027 = vmatprep.subr.mxu0 %v1041
        %5028 = vmatpush1.msra.mxu0 %v1040
        %5029 = vmatprep.subr.mxu0 %v1045
        %5030 = vmatpush1.msra.mxu0 %v1044
        %5031 = vmatprep.subr.mxu0 %v1049
        %5032 = vmatpush1.msra.mxu0 %v1048
        %5033 = vmatprep.subr.mxu0 %v1053
        %5034 = vmatpush1.msra.mxu0 %v1052
        %5035 = vmatprep.subr.mxu0 %v1057
        %5036 = vmatpush1.msra.mxu0 %v1056
        %5037 = vmatprep.subr.mxu0 %v1061
        %5038 = vmatpush1.msra.mxu0 %v1060
        %5039 = vmatprep.subr.mxu0 %v1065
        %5040 = vmatpush1.msra.mxu0 %v1064
        %5041 = vmatprep.subr.mxu0 %v1069
        %5042 = vmatpush1.msra.mxu0 %v1068
        %5043 = vmatprep.mubr.f32.mxu0 %v4869
        %5044 = vmatmul.mubr.f32.gmra.mrb[0].mxu0 %v4866
        %v5045 = vpop.f32.mrb[0].mxu0
        %v5046 = vadd.f32 %v4832, %v5045
        %v5047 = vpop.f32.mrb[0].mxu0
        %v5048 = vadd.f32 %v4834, %v5047
        %5049 = vmatprep.mubr.f32.mxu0 %v4873
        %5050 = vmatmul.mubr.f32.gmra.mrb[0].mxu0 %v4871
        %v5051 = vpop.f32.mrb[0].mxu0
        %v5052 = vadd.f32 %v4838, %v5051
        %v5053 = vpop.f32.mrb[0].mxu0
        %v5054 = vadd.f32 %v4840, %v5053
        %5055 = vmatprep.mubr.f32.mxu0 %v4877
        %5056 = vmatmul.mubr.f32.gmra.mrb[0].mxu0 %v4875
        %v5057 = vpop.f32.mrb[0].mxu0
        %v5058 = vadd.f32 %v4844, %v5057
        %v5059 = vpop.f32.mrb[0].mxu0
        %v5060 = vadd.f32 %v4846, %v5059
        %5061 = vmatprep.mubr.f32.mxu0 %v4881
        %5062 = vmatmul.mubr.f32.gmra.mrb[0].mxu0 %v4879
        %v5063 = vpop.f32.mrb[0].mxu0
        %v5064 = vadd.f32 %v4850, %v5063
        %v5065 = vpop.f32.mrb[0].mxu0
        %v5066 = vadd.f32 %v4852, %v5065
        %5067 = vdwg.mxu0
        %v5068 = vld [vmem:[#allocation2 + $0xd0] sm:$0xfe]
        %v5069 = vld [vmem:[#allocation2 + $0xd8] sm:$0xfe]
        %v5070 = vld [vmem:[#allocation2 + $0xe0] sm:$0xff]
        %v5071 = vld [vmem:[#allocation2 + $0xe8] sm:$0xff]
        %v5072 = vld [vmem:[#allocation2 + $0xf0] sm:$0xff]
        %v5073 = vld [vmem:[#allocation2 + $0xf8] sm:$0xff]
        %v5074 = vld [vmem:[#allocation2 + $0x100] sm:$0xff]
        %v5075 = vld [vmem:[#allocation2 + $0x108] sm:$0xff]
        %v5076 = vld [vmem:[#allocation2 + $0x110] sm:$0x1]
        %v5077 = vld [vmem:[#allocation2 + $0x118] sm:$0x1]
        %v5088 = vrot.slane %v5068, 1
        %v5089 = vrot.slane %v5070, 1
        %v5090 = vsel %vm1882, %v5088, %v5089
        %v5091 = vrot.slane %v5069, 1
        %v5092 = vrot.slane %v5071, 1
        %v5093 = vsel %vm1882, %v5091, %v5092
        %v5094 = vrot.slane %v5072, 1
        %v5095 = vsel %vm1882, %v5089, %v5094
        %v5096 = vrot.slane %v5073, 1
        %v5097 = vsel %vm1882, %v5092, %v5096
        %v5098 = vrot.slane %v5074, 1
        %v5099 = vsel %vm1882, %v5094, %v5098
        %v5100 = vrot.slane %v5075, 1
        %v5101 = vsel %vm1882, %v5096, %v5100
        %v5102 = vrot.slane %v5076, 1
        %v5103 = vsel %vm1882, %v5098, %v5102
        %v5104 = vrot.slane %v5077, 1
        %v5105 = vsel %vm1882, %v5100, %v5104
        %5114 = vmatprep.subr.mxu0 %v1201
        %5115 = vmatpush1.msra.mxu0 %v1200
        %5116 = vmatprep.subr.mxu0 %v1205
        %5117 = vmatpush1.msra.mxu0 %v1204
        %5118 = vmatprep.subr.mxu0 %v1209
        %5119 = vmatpush1.msra.mxu0 %v1208
        %5120 = vmatprep.subr.mxu0 %v1213
        %5121 = vmatpush1.msra.mxu0 %v1212
        %5122 = vmatprep.subr.mxu0 %v1217
        %5123 = vmatpush1.msra.mxu0 %v1216
        %5124 = vmatprep.subr.mxu0 %v1221
        %5125 = vmatpush1.msra.mxu0 %v1220
        %5126 = vmatprep.subr.mxu0 %v1225
        %5127 = vmatpush1.msra.mxu0 %v1224
        %5128 = vmatprep.subr.mxu0 %v1229
        %5129 = vmatpush1.msra.mxu0 %v1228
        %5130 = vmatprep.subr.mxu0 %v1233
        %5131 = vmatpush1.msra.mxu0 %v1232
        %5132 = vmatprep.subr.mxu0 %v1237
        %5133 = vmatpush1.msra.mxu0 %v1236
        %5134 = vmatprep.subr.mxu0 %v1241
        %5135 = vmatpush1.msra.mxu0 %v1240
        %5136 = vmatprep.subr.mxu0 %v1245
        %5137 = vmatpush1.msra.mxu0 %v1244
        %5138 = vmatprep.subr.mxu0 %v1249
        %5139 = vmatpush1.msra.mxu0 %v1248
        %5140 = vmatprep.subr.mxu0 %v1253
        %5141 = vmatpush1.msra.mxu0 %v1252
        %5142 = vmatprep.subr.mxu0 %v1257
        %5143 = vmatpush1.msra.mxu0 %v1256
        %5144 = vmatprep.subr.mxu0 %v1261
        %5145 = vmatpush1.msra.mxu0 %v1260
        %5146 = vmatprep.subr.mxu0 %v1265
        %5147 = vmatpush1.msra.mxu0 %v1264
        %5148 = vmatprep.subr.mxu0 %v1269
        %5149 = vmatpush1.msra.mxu0 %v1268
        %5150 = vmatprep.subr.mxu0 %v1273
        %5151 = vmatpush1.msra.mxu0 %v1272
        %5152 = vmatprep.subr.mxu0 %v1277
        %5153 = vmatpush1.msra.mxu0 %v1276
        %5154 = vmatprep.subr.mxu0 %v1281
        %5155 = vmatpush1.msra.mxu0 %v1280
        %5156 = vmatprep.subr.mxu0 %v1285
        %5157 = vmatpush1.msra.mxu0 %v1284
        %5158 = vmatprep.subr.mxu0 %v1289
        %5159 = vmatpush1.msra.mxu0 %v1288
        %5160 = vmatprep.subr.mxu0 %v1293
        %5161 = vmatpush1.msra.mxu0 %v1292
        %5162 = vmatprep.subr.mxu0 %v1297
        %5163 = vmatpush1.msra.mxu0 %v1296
        %5164 = vmatprep.subr.mxu0 %v1301
        %5165 = vmatpush1.msra.mxu0 %v1300
        %5166 = vmatprep.subr.mxu0 %v1305
        %5167 = vmatpush1.msra.mxu0 %v1304
        %5168 = vmatprep.subr.mxu0 %v1309
        %5169 = vmatpush1.msra.mxu0 %v1308
        %5170 = vmatprep.subr.mxu0 %v1313
        %5171 = vmatpush1.msra.mxu0 %v1312
        %5172 = vmatprep.subr.mxu0 %v1317
        %5173 = vmatpush1.msra.mxu0 %v1316
        %5174 = vmatprep.subr.mxu0 %v1321
        %5175 = vmatpush1.msra.mxu0 %v1320
        %5176 = vmatprep.subr.mxu0 %v1325
        %5177 = vmatpush1.msra.mxu0 %v1324
        %5178 = vmatprep.mubr.f32.mxu0 %v5093
        %5179 = vmatmul.mubr.f32.gmra.mrb[0].mxu0 %v5090
        %v5180 = vpop.f32.mrb[0].mxu0
        %v5181 = vadd.f32 0.0, %v5180
        %v5182 = vpop.f32.mrb[0].mxu0
        %v5183 = vadd.f32 0.0, %v5182
        %5184 = vmatprep.mubr.f32.mxu0 %v5097
        %5185 = vmatmul.mubr.f32.gmra.mrb[0].mxu0 %v5095
        %v5186 = vpop.f32.mrb[0].mxu0
        %v5187 = vadd.f32 0.0, %v5186
        %v5188 = vpop.f32.mrb[0].mxu0
        %v5189 = vadd.f32 0.0, %v5188
        %5190 = vmatprep.mubr.f32.mxu0 %v5101
        %5191 = vmatmul.mubr.f32.gmra.mrb[0].mxu0 %v5099
        %v5192 = vpop.f32.mrb[0].mxu0
        %v5193 = vadd.f32 0.0, %v5192
        %v5194 = vpop.f32.mrb[0].mxu0
        %v5195 = vadd.f32 0.0, %v5194
        %5196 = vmatprep.mubr.f32.mxu0 %v5105
        %5197 = vmatmul.mubr.f32.gmra.mrb[0].mxu0 %v5103
        %v5198 = vpop.f32.mrb[0].mxu0
        %v5199 = vadd.f32 0.0, %v5198
        %v5200 = vpop.f32.mrb[0].mxu0
        %v5201 = vadd.f32 0.0, %v5200
        %5202 = vdwg.mxu0
        %5203 = vmatprep.subr.mxu0 %v1203
        %5204 = vmatpush1.msra.mxu0 %v1202
        %5205 = vmatprep.subr.mxu0 %v1207
        %5206 = vmatpush1.msra.mxu0 %v1206
        %5207 = vmatprep.subr.mxu0 %v1211
        %5208 = vmatpush1.msra.mxu0 %v1210
        %5209 = vmatprep.subr.mxu0 %v1215
        %5210 = vmatpush1.msra.mxu0 %v1214
        %5211 = vmatprep.subr.mxu0 %v1219
        %5212 = vmatpush1.msra.mxu0 %v1218
        %5213 = vmatprep.subr.mxu0 %v1223
        %5214 = vmatpush1.msra.mxu0 %v1222
        %5215 = vmatprep.subr.mxu0 %v1227
        %5216 = vmatpush1.msra.mxu0 %v1226
        %5217 = vmatprep.subr.mxu0 %v1231
        %5218 = vmatpush1.msra.mxu0 %v1230
        %5219 = vmatprep.subr.mxu0 %v1235
        %5220 = vmatpush1.msra.mxu0 %v1234
        %5221 = vmatprep.subr.mxu0 %v1239
        %5222 = vmatpush1.msra.mxu0 %v1238
        %5223 = vmatprep.subr.mxu0 %v1243
        %5224 = vmatpush1.msra.mxu0 %v1242
        %5225 = vmatprep.subr.mxu0 %v1247
        %5226 = vmatpush1.msra.mxu0 %v1246
        %5227 = vmatprep.subr.mxu0 %v1251
        %5228 = vmatpush1.msra.mxu0 %v1250
        %5229 = vmatprep.subr.mxu0 %v1255
        %5230 = vmatpush1.msra.mxu0 %v1254
        %5231 = vmatprep.subr.mxu0 %v1259
        %5232 = vmatpush1.msra.mxu0 %v1258
        %5233 = vmatprep.subr.mxu0 %v1263
        %5234 = vmatpush1.msra.mxu0 %v1262
        %5235 = vmatprep.subr.mxu0 %v1267
        %5236 = vmatpush1.msra.mxu0 %v1266
        %5237 = vmatprep.subr.mxu0 %v1271
        %5238 = vmatpush1.msra.mxu0 %v1270
        %5239 = vmatprep.subr.mxu0 %v1275
        %5240 = vmatpush1.msra.mxu0 %v1274
        %5241 = vmatprep.subr.mxu0 %v1279
        %5242 = vmatpush1.msra.mxu0 %v1278
        %5243 = vmatprep.subr.mxu0 %v1283
        %5244 = vmatpush1.msra.mxu0 %v1282
        %5245 = vmatprep.subr.mxu0 %v1287
        %5246 = vmatpush1.msra.mxu0 %v1286
        %5247 = vmatprep.subr.mxu0 %v1291
        %5248 = vmatpush1.msra.mxu0 %v1290
        %5249 = vmatprep.subr.mxu0 %v1295
        %5250 = vmatpush1.msra.mxu0 %v1294
        %5251 = vmatprep.subr.mxu0 %v1299
        %5252 = vmatpush1.msra.mxu0 %v1298
        %5253 = vmatprep.subr.mxu0 %v1303
        %5254 = vmatpush1.msra.mxu0 %v1302
        %5255 = vmatprep.subr.mxu0 %v1307
        %5256 = vmatpush1.msra.mxu0 %v1306
        %5257 = vmatprep.subr.mxu0 %v1311
        %5258 = vmatpush1.msra.mxu0 %v1310
        %5259 = vmatprep.subr.mxu0 %v1315
        %5260 = vmatpush1.msra.mxu0 %v1314
        %5261 = vmatprep.subr.mxu0 %v1319
        %5262 = vmatpush1.msra.mxu0 %v1318
        %5263 = vmatprep.subr.mxu0 %v1323
        %5264 = vmatpush1.msra.mxu0 %v1322
        %5265 = vmatprep.subr.mxu0 %v1327
        %5266 = vmatpush1.msra.mxu0 %v1326
        %5267 = vmatprep.mubr.f32.mxu0 %v5093
        %5268 = vmatmul.mubr.f32.gmra.mrb[0].mxu0 %v5090
        %v5269 = vpop.f32.mrb[0].mxu0
        %v5270 = vadd.f32 0.0, %v5269
        %v5271 = vpop.f32.mrb[0].mxu0
        %v5272 = vadd.f32 0.0, %v5271
        %5273 = vmatprep.mubr.f32.mxu0 %v5097
        %5274 = vmatmul.mubr.f32.gmra.mrb[0].mxu0 %v5095
        %v5275 = vpop.f32.mrb[0].mxu0
        %v5276 = vadd.f32 0.0, %v5275
        %v5277 = vpop.f32.mrb[0].mxu0
        %v5278 = vadd.f32 0.0, %v5277
        %5279 = vmatprep.mubr.f32.mxu0 %v5101
        %5280 = vmatmul.mubr.f32.gmra.mrb[0].mxu0 %v5099
        %v5281 = vpop.f32.mrb[0].mxu0
        %v5282 = vadd.f32 0.0, %v5281
        %v5283 = vpop.f32.mrb[0].mxu0
        %v5284 = vadd.f32 0.0, %v5283
        %5285 = vmatprep.mubr.f32.mxu0 %v5105
        %5286 = vmatmul.mubr.f32.gmra.mrb[0].mxu0 %v5103
        %v5287 = vpop.f32.mrb[0].mxu0
        %v5288 = vadd.f32 0.0, %v5287
        %v5289 = vpop.f32.mrb[0].mxu0
        %v5290 = vadd.f32 0.0, %v5289
        %5291 = vdwg.mxu0
        %v5292 = vadd.f32 %v4957, %v5181
        %v5293 = vadd.f32 %v4959, %v5183
        %v5294 = vadd.f32 %v5046, %v5270
        %v5295 = vadd.f32 %v5048, %v5272
        %v5296 = vadd.f32 %v4963, %v5187
        %v5297 = vadd.f32 %v4965, %v5189
        %v5298 = vadd.f32 %v5052, %v5276
        %v5299 = vadd.f32 %v5054, %v5278
        %v5300 = vadd.f32 %v4969, %v5193
        %v5301 = vadd.f32 %v4971, %v5195
        %v5302 = vadd.f32 %v5058, %v5282
        %v5303 = vadd.f32 %v5060, %v5284
        %v5304 = vadd.f32 %v4975, %v5199
        %v5305 = vadd.f32 %v4977, %v5201
        %v5306 = vadd.f32 %v5064, %v5288
        %v5307 = vadd.f32 %v5066, %v5290
        %v5308 = vadd.f32 %v5292, %v2107
        %v5309 = vadd.f32 %v5293, %v2111
        %v5310 = vadd.f32 %v5294, %v2115
        %v5311 = vadd.f32 %v5295, %v2119
        %v5312 = vadd.f32 %v5296, %v2107
        %v5313 = vadd.f32 %v5297, %v2111
        %v5314 = vadd.f32 %v5298, %v2115
        %v5315 = vadd.f32 %v5299, %v2119
        %v5316 = vadd.f32 %v5300, %v2107
        %v5317 = vadd.f32 %v5301, %v2111
        %v5318 = vadd.f32 %v5302, %v2115
        %v5319 = vadd.f32 %v5303, %v2119
        %v5320 = vadd.f32 %v5304, %v2107
        %v5321 = vadd.f32 %v5305, %v2111
        %v5322 = vadd.f32 %v5306, %v2115
        %v5323 = vadd.f32 %v5307, %v2119
        %v5324 = vld [vmem:[#allocation7 + $0x180] sm:$0xff]
        %v5325 = vld [vmem:[#allocation7 + $0x188] sm:$0xff]
        %v5326 = vld [vmem:[#allocation7 + $0x190] sm:$0xff]
        %v5327 = vld [vmem:[#allocation7 + $0x198] sm:$0xff]
        %v5328 = vld [vmem:[#allocation7 + $0x1a0] sm:$0xff]
        %v5329 = vld [vmem:[#allocation7 + $0x1a8] sm:$0xff]
        %v5330 = vld [vmem:[#allocation7 + $0x1b0] sm:$0xff]
        %v5331 = vld [vmem:[#allocation7 + $0x1b8] sm:$0xff]
        %v5332 = vld [vmem:[#allocation7 + $0x1c0] sm:$0xff]
        %v5333 = vld [vmem:[#allocation7 + $0x1c8] sm:$0xff]
        %v5334 = vld [vmem:[#allocation7 + $0x1d0] sm:$0xff]
        %v5335 = vld [vmem:[#allocation7 + $0x1d8] sm:$0xff]
        %v5336 = vld [vmem:[#allocation7 + $0x1e0] sm:$0xff]
        %v5337 = vld [vmem:[#allocation7 + $0x1e8] sm:$0xff]
        %v5338 = vld [vmem:[#allocation7 + $0x1f0] sm:$0xff]
        %v5339 = vld [vmem:[#allocation7 + $0x1f8] sm:$0xff]
        %v5340 = vadd.f32 %v5324, %v5308
        %v5341 = vadd.f32 %v5325, %v5309
        %v5342 = vadd.f32 %v5326, %v5310
        %v5343 = vadd.f32 %v5327, %v5311
        %v5344 = vadd.f32 %v5328, %v5312
        %v5345 = vadd.f32 %v5329, %v5313
        %v5346 = vadd.f32 %v5330, %v5314
        %v5347 = vadd.f32 %v5331, %v5315
        %v5348 = vadd.f32 %v5332, %v5316
        %v5349 = vadd.f32 %v5333, %v5317
        %v5350 = vadd.f32 %v5334, %v5318
        %v5351 = vadd.f32 %v5335, %v5319
        %v5352 = vadd.f32 %v5336, %v5320
        %v5353 = vadd.f32 %v5337, %v5321
        %v5354 = vadd.f32 %v5338, %v5322
        %v5355 = vadd.f32 %v5339, %v5323
        %v5356 = vmul.f32 %v5340, 0.5
        %v5357 = vmul.f32 %v5341, 0.5
        %v5358 = vmul.f32 %v5342, 0.5
        %v5359 = vmul.f32 %v5343, 0.5
        %v5360 = vmul.f32 %v5344, 0.5
        %v5361 = vmul.f32 %v5345, 0.5
        %v5362 = vmul.f32 %v5346, 0.5
        %v5363 = vmul.f32 %v5347, 0.5
        %v5364 = vmul.f32 %v5348, 0.5
        %v5365 = vmul.f32 %v5349, 0.5
        %v5366 = vmul.f32 %v5350, 0.5
        %v5367 = vmul.f32 %v5351, 0.5
        %v5368 = vmul.f32 %v5352, 0.5
        %v5369 = vmul.f32 %v5353, 0.5
        %v5370 = vmul.f32 %v5354, 0.5
        %v5371 = vmul.f32 %v5355, 0.5
        %vm5372 = vcmp.ge.f32.partialorder %v5356, 1.0
        %vm5373 = vcmp.ge.f32.partialorder %v5357, 1.0
        %vm5374 = vcmp.ge.f32.partialorder %v5358, 1.0
        %vm5375 = vcmp.ge.f32.partialorder %v5359, 1.0
        %vm5376 = vcmp.ge.f32.partialorder %v5360, 1.0
        %vm5377 = vcmp.ge.f32.partialorder %v5361, 1.0
        %vm5378 = vcmp.ge.f32.partialorder %v5362, 1.0
        %vm5379 = vcmp.ge.f32.partialorder %v5363, 1.0
        %vm5380 = vcmp.ge.f32.partialorder %v5364, 1.0
        %vm5381 = vcmp.ge.f32.partialorder %v5365, 1.0
        %vm5382 = vcmp.ge.f32.partialorder %v5366, 1.0
        %vm5383 = vcmp.ge.f32.partialorder %v5367, 1.0
        %vm5384 = vcmp.ge.f32.partialorder %v5368, 1.0
        %vm5385 = vcmp.ge.f32.partialorder %v5369, 1.0
        %vm5386 = vcmp.ge.f32.partialorder %v5370, 1.0
        %vm5387 = vcmp.ge.f32.partialorder %v5371, 1.0
        %v5388 = vsel %vm5372, 0.0, %v5356
        %v5389 = vsel %vm5373, 0.0, %v5357
        %v5390 = vsel %vm5374, 0.0, %v5358
        %v5391 = vsel %vm5375, 0.0, %v5359
        %v5392 = vsel %vm5376, 0.0, %v5360
        %v5393 = vsel %vm5377, 0.0, %v5361
        %v5394 = vsel %vm5378, 0.0, %v5362
        %v5395 = vsel %vm5379, 0.0, %v5363
        %v5396 = vsel %vm5380, 0.0, %v5364
        %v5397 = vsel %vm5381, 0.0, %v5365
        %v5398 = vsel %vm5382, 0.0, %v5366
        %v5399 = vsel %vm5383, 0.0, %v5367
        %v5400 = vsel %vm5384, 0.0, %v5368
        %v5401 = vsel %vm5385, 0.0, %v5369
        %v5402 = vsel %vm5386, 0.0, %v5370
        %v5403 = vsel %vm5387, 0.0, %v5371
        %5404 = vst [vmem:[#allocation7 + $0x180] sm:$0xff] %v5388
        %5405 = vst [vmem:[#allocation7 + $0x188] sm:$0xff] %v5389
        %5406 = vst [vmem:[#allocation7 + $0x190] sm:$0xff] %v5390
        %5407 = vst [vmem:[#allocation7 + $0x198] sm:$0xff] %v5391
        %5408 = vst [vmem:[#allocation7 + $0x1a0] sm:$0xff] %v5392
        %5409 = vst [vmem:[#allocation7 + $0x1a8] sm:$0xff] %v5393
        %5410 = vst [vmem:[#allocation7 + $0x1b0] sm:$0xff] %v5394
        %5411 = vst [vmem:[#allocation7 + $0x1b8] sm:$0xff] %v5395
        %5412 = vst [vmem:[#allocation7 + $0x1c0] sm:$0xff] %v5396
        %5413 = vst [vmem:[#allocation7 + $0x1c8] sm:$0xff] %v5397
        %5414 = vst [vmem:[#allocation7 + $0x1d0] sm:$0xff] %v5398
        %5415 = vst [vmem:[#allocation7 + $0x1d8] sm:$0xff] %v5399
        %5416 = vst [vmem:[#allocation7 + $0x1e0] sm:$0xff] %v5400
        %5417 = vst [vmem:[#allocation7 + $0x1e8] sm:$0xff] %v5401
        %5418 = vst [vmem:[#allocation7 + $0x1f0] sm:$0xff] %v5402
        %5419 = vst [vmem:[#allocation7 + $0x1f8] sm:$0xff] %v5403
        %v5420 = vsel %vm5372, 1, 0
        %v5421 = vsel %vm5373, 1, 0
        %v5422 = vsel %vm5374, 1, 0
        %v5423 = vsel %vm5375, 1, 0
        %v5424 = vsel %vm5376, 1, 0
        %v5425 = vsel %vm5377, 1, 0
        %v5426 = vsel %vm5378, 1, 0
        %v5427 = vsel %vm5379, 1, 0
        %v5428 = vsel %vm5380, 1, 0
        %v5429 = vsel %vm5381, 1, 0
        %v5430 = vsel %vm5382, 1, 0
        %v5431 = vsel %vm5383, 1, 0
        %v5432 = vsel %vm5384, 1, 0
        %v5433 = vsel %vm5385, 1, 0
        %v5434 = vsel %vm5386, 1, 0
        %v5435 = vsel %vm5387, 1, 0
        %v5436 = vcvt.s32.f32 %v5420
        %v5437 = vcvt.s32.f32 %v5421
        %v5438 = vcvt.s32.f32 %v5422
        %v5439 = vcvt.s32.f32 %v5423
        %v5440 = vcvt.s32.f32 %v5424
        %v5441 = vcvt.s32.f32 %v5425
        %v5442 = vcvt.s32.f32 %v5426
        %v5443 = vcvt.s32.f32 %v5427
        %v5444 = vcvt.s32.f32 %v5428
        %v5445 = vcvt.s32.f32 %v5429
        %v5446 = vcvt.s32.f32 %v5430
        %v5447 = vcvt.s32.f32 %v5431
        %v5448 = vcvt.s32.f32 %v5432
        %v5449 = vcvt.s32.f32 %v5433
        %v5450 = vcvt.s32.f32 %v5434
        %v5451 = vcvt.s32.f32 %v5435
        %5452 = vmatprep.subr.mxu0 %v1330
        %5453 = vmatpush1.msra.mxu0 %v1329
        %5454 = vmatprep.subr.mxu0 %v1332
        %5455 = vmatpush1.msra.mxu0 %v1331
        %5456 = vmatprep.subr.mxu0 %v1334
        %5457 = vmatpush1.msra.mxu0 %v1333
        %5458 = vmatprep.subr.mxu0 %v1336
        %5459 = vmatpush1.msra.mxu0 %v1335
        %5460 = vmatprep.subr.mxu0 %v1338
        %5461 = vmatpush1.msra.mxu0 %v1337
        %5462 = vmatprep.subr.mxu0 %v1340
        %5463 = vmatpush1.msra.mxu0 %v1339
        %5464 = vmatprep.subr.mxu0 %v1342
        %5465 = vmatpush1.msra.mxu0 %v1341
        %5466 = vmatprep.subr.mxu0 %v1344
        %5467 = vmatpush1.msra.mxu0 %v1343
        %5468 = vmatprep.subr.mxu0 %v1346
        %5469 = vmatpush1.msra.mxu0 %v1345
        %5470 = vmatprep.subr.mxu0 %v1348
        %5471 = vmatpush1.msra.mxu0 %v1347
        %5472 = vmatprep.subr.mxu0 %v1350
        %5473 = vmatpush1.msra.mxu0 %v1349
        %5474 = vmatprep.subr.mxu0 %v1352
        %5475 = vmatpush1.msra.mxu0 %v1351
        %5476 = vmatprep.subr.mxu0 %v1354
        %5477 = vmatpush1.msra.mxu0 %v1353
        %5478 = vmatprep.subr.mxu0 %v1356
        %5479 = vmatpush1.msra.mxu0 %v1355
        %5480 = vmatprep.subr.mxu0 %v1358
        %5481 = vmatpush1.msra.mxu0 %v1357
        %5482 = vmatprep.subr.mxu0 %v1360
        %5483 = vmatpush1.msra.mxu0 %v1359
        %5484 = vmatprep.subr.mxu0 %v1362
        %5485 = vmatpush1.msra.mxu0 %v1361
        %5486 = vmatprep.subr.mxu0 %v1364
        %5487 = vmatpush1.msra.mxu0 %v1363
        %5488 = vmatprep.subr.mxu0 %v1366
        %5489 = vmatpush1.msra.mxu0 %v1365
        %5490 = vmatprep.subr.mxu0 %v1368
        %5491 = vmatpush1.msra.mxu0 %v1367
        %5492 = vmatprep.subr.mxu0 %v1370
        %5493 = vmatpush1.msra.mxu0 %v1369
        %5494 = vmatprep.subr.mxu0 %v1372
        %5495 = vmatpush1.msra.mxu0 %v1371
        %5496 = vmatprep.subr.mxu0 %v1374
        %5497 = vmatpush1.msra.mxu0 %v1373
        %5498 = vmatprep.subr.mxu0 %v1376
        %5499 = vmatpush1.msra.mxu0 %v1375
        %5500 = vmatprep.subr.mxu0 %v1378
        %5501 = vmatpush1.msra.mxu0 %v1377
        %5502 = vmatprep.subr.mxu0 %v1380
        %5503 = vmatpush1.msra.mxu0 %v1379
        %5504 = vmatprep.subr.mxu0 %v1382
        %5505 = vmatpush1.msra.mxu0 %v1381
        %5506 = vmatprep.subr.mxu0 %v1384
        %5507 = vmatpush1.msra.mxu0 %v1383
        %5508 = vmatprep.subr.mxu0 %v1386
        %5509 = vmatpush1.msra.mxu0 %v1385
        %5510 = vmatprep.subr.mxu0 %v1388
        %5511 = vmatpush1.msra.mxu0 %v1387
        %5512 = vmatprep.subr.mxu0 %v1390
        %5513 = vmatpush1.msra.mxu0 %v1389
        %5514 = vmatprep.subr.mxu0 %v1392
        %5515 = vmatpush1.msra.mxu0 %v1391
        %5516 = vmatprep.mubr.f32.mxu0 %v5437
        %5517 = vmatmul.mubr.f32.gmra.mrb[0].mxu0 %v5436
        %v5518 = vpop.f32.mrb[0].mxu0
        %v5519 = vadd.f32 0.0, %v5518
        %v5520 = vpop.f32.mrb[0].mxu0
        %v5521 = vadd.f32 0.0, %v5520
        %5522 = vmatprep.mubr.f32.mxu0 %v5441
        %5523 = vmatmul.mubr.f32.gmra.mrb[0].mxu0 %v5440
        %v5524 = vpop.f32.mrb[0].mxu0
        %v5525 = vadd.f32 0.0, %v5524
        %v5526 = vpop.f32.mrb[0].mxu0
        %v5527 = vadd.f32 0.0, %v5526
        %5528 = vmatprep.mubr.f32.mxu0 %v5445
        %5529 = vmatmul.mubr.f32.gmra.mrb[0].mxu0 %v5444
        %v5530 = vpop.f32.mrb[0].mxu0
        %v5531 = vadd.f32 0.0, %v5530
        %v5532 = vpop.f32.mrb[0].mxu0
        %v5533 = vadd.f32 0.0, %v5532
        %5534 = vmatprep.mubr.f32.mxu0 %v5449
        %5535 = vmatmul.mubr.f32.gmra.mrb[0].mxu0 %v5448
        %v5536 = vpop.f32.mrb[0].mxu0
        %v5537 = vadd.f32 0.0, %v5536
        %v5538 = vpop.f32.mrb[0].mxu0
        %v5539 = vadd.f32 0.0, %v5538
        %5540 = vdwg.mxu0
        %5541 = vmatprep.subr.mxu0 %v1394
        %5542 = vmatpush1.msra.mxu0 %v1393
        %5543 = vmatprep.subr.mxu0 %v1396
        %5544 = vmatpush1.msra.mxu0 %v1395
        %5545 = vmatprep.subr.mxu0 %v1398
        %5546 = vmatpush1.msra.mxu0 %v1397
        %5547 = vmatprep.subr.mxu0 %v1400
        %5548 = vmatpush1.msra.mxu0 %v1399
        %5549 = vmatprep.subr.mxu0 %v1402
        %5550 = vmatpush1.msra.mxu0 %v1401
        %5551 = vmatprep.subr.mxu0 %v1404
        %5552 = vmatpush1.msra.mxu0 %v1403
        %5553 = vmatprep.subr.mxu0 %v1406
        %5554 = vmatpush1.msra.mxu0 %v1405
        %5555 = vmatprep.subr.mxu0 %v1408
        %5556 = vmatpush1.msra.mxu0 %v1407
        %5557 = vmatprep.subr.mxu0 %v1410
        %5558 = vmatpush1.msra.mxu0 %v1409
        %5559 = vmatprep.subr.mxu0 %v1412
        %5560 = vmatpush1.msra.mxu0 %v1411
        %5561 = vmatprep.subr.mxu0 %v1414
        %5562 = vmatpush1.msra.mxu0 %v1413
        %5563 = vmatprep.subr.mxu0 %v1416
        %5564 = vmatpush1.msra.mxu0 %v1415
        %5565 = vmatprep.subr.mxu0 %v1418
        %5566 = vmatpush1.msra.mxu0 %v1417
        %5567 = vmatprep.subr.mxu0 %v1420
        %5568 = vmatpush1.msra.mxu0 %v1419
        %5569 = vmatprep.subr.mxu0 %v1422
        %5570 = vmatpush1.msra.mxu0 %v1421
        %5571 = vmatprep.subr.mxu0 %v1424
        %5572 = vmatpush1.msra.mxu0 %v1423
        %5573 = vmatprep.subr.mxu0 %v1426
        %5574 = vmatpush1.msra.mxu0 %v1425
        %5575 = vmatprep.subr.mxu0 %v1428
        %5576 = vmatpush1.msra.mxu0 %v1427
        %5577 = vmatprep.subr.mxu0 %v1430
        %5578 = vmatpush1.msra.mxu0 %v1429
        %5579 = vmatprep.subr.mxu0 %v1432
        %5580 = vmatpush1.msra.mxu0 %v1431
        %5581 = vmatprep.subr.mxu0 %v1434
        %5582 = vmatpush1.msra.mxu0 %v1433
        %5583 = vmatprep.subr.mxu0 %v1436
        %5584 = vmatpush1.msra.mxu0 %v1435
        %5585 = vmatprep.subr.mxu0 %v1438
        %5586 = vmatpush1.msra.mxu0 %v1437
        %5587 = vmatprep.subr.mxu0 %v1440
        %5588 = vmatpush1.msra.mxu0 %v1439
        %5589 = vmatprep.subr.mxu0 %v1442
        %5590 = vmatpush1.msra.mxu0 %v1441
        %5591 = vmatprep.subr.mxu0 %v1444
        %5592 = vmatpush1.msra.mxu0 %v1443
        %5593 = vmatprep.subr.mxu0 %v1446
        %5594 = vmatpush1.msra.mxu0 %v1445
        %5595 = vmatprep.subr.mxu0 %v1448
        %5596 = vmatpush1.msra.mxu0 %v1447
        %5597 = vmatprep.subr.mxu0 %v1450
        %5598 = vmatpush1.msra.mxu0 %v1449
        %5599 = vmatprep.subr.mxu0 %v1452
        %5600 = vmatpush1.msra.mxu0 %v1451
        %5601 = vmatprep.subr.mxu0 %v1454
        %5602 = vmatpush1.msra.mxu0 %v1453
        %5603 = vmatprep.subr.mxu0 %v1456
        %5604 = vmatpush1.msra.mxu0 %v1455
        %5605 = vmatprep.mubr.f32.mxu0 %v5439
        %5606 = vmatmul.mubr.f32.gmra.mrb[0].mxu0 %v5438
        %v5607 = vpop.f32.mrb[0].mxu0
        %v5608 = vadd.f32 %v5519, %v5607
        %v5609 = vpop.f32.mrb[0].mxu0
        %v5610 = vadd.f32 %v5521, %v5609
        %5611 = vmatprep.mubr.f32.mxu0 %v5443
        %5612 = vmatmul.mubr.f32.gmra.mrb[0].mxu0 %v5442
        %v5613 = vpop.f32.mrb[0].mxu0
        %v5614 = vadd.f32 %v5525, %v5613
        %v5615 = vpop.f32.mrb[0].mxu0
        %v5616 = vadd.f32 %v5527, %v5615
        %5617 = vmatprep.mubr.f32.mxu0 %v5447
        %5618 = vmatmul.mubr.f32.gmra.mrb[0].mxu0 %v5446
        %v5619 = vpop.f32.mrb[0].mxu0
        %v5620 = vadd.f32 %v5531, %v5619
        %v5621 = vpop.f32.mrb[0].mxu0
        %v5622 = vadd.f32 %v5533, %v5621
        %5623 = vmatprep.mubr.f32.mxu0 %v5451
        %5624 = vmatmul.mubr.f32.gmra.mrb[0].mxu0 %v5450
        %v5625 = vpop.f32.mrb[0].mxu0
        %v5626 = vadd.f32 %v5537, %v5625
        %v5627 = vpop.f32.mrb[0].mxu0
        %v5628 = vadd.f32 %v5539, %v5627
        %5629 = vdwg.mxu0
        %5630 = vmatprep.subr.mxu0 %v5610
        %5631 = vmatpush1.msra.mxu0 %v5608
        %5632 = vmatprep.subr.mxu0 %v5616
        %5633 = vmatpush1.msra.mxu0 %v5614
        %5634 = vmatprep.subr.mxu0 %v5622
        %5635 = vmatpush1.msra.mxu0 %v5620
        %5636 = vmatprep.subr.mxu0 %v5628
        %5637 = vmatpush1.msra.mxu0 %v5626
        %5638 = vmatprep.subr.mxu0 0.0
        %5639 = vmatpush1.msra.mxu0 0.0
        %5640 = vmatprep.subr.mxu0 0.0
        %5641 = vmatpush1.msra.mxu0 0.0
        %5642 = vmatprep.subr.mxu0 0.0
        %5643 = vmatpush1.msra.mxu0 0.0
        %5644 = vmatprep.subr.mxu0 0.0
        %5645 = vmatpush1.msra.mxu0 0.0
        %5646 = vmatprep.subr.mxu0 0.0
        %5647 = vmatpush1.msra.mxu0 0.0
        %5648 = vmatprep.subr.mxu0 0.0
        %5649 = vmatpush1.msra.mxu0 0.0
        %5650 = vmatprep.subr.mxu0 0.0
        %5651 = vmatpush1.msra.mxu0 0.0
        %5652 = vmatprep.subr.mxu0 0.0
        %5653 = vmatpush1.msra.mxu0 0.0
        %5654 = vmatprep.subr.mxu0 0.0
        %5655 = vmatpush1.msra.mxu0 0.0
        %5656 = vmatprep.subr.mxu0 0.0
        %5657 = vmatpush1.msra.mxu0 0.0
        %5658 = vmatprep.subr.mxu0 0.0
        %5659 = vmatpush1.msra.mxu0 0.0
        %5660 = vmatprep.subr.mxu0 0.0
        %5661 = vmatpush1.msra.mxu0 0.0
        %5662 = vmatprep.subr.mxu0 0.0
        %5663 = vmatpush1.msra.mxu0 0.0
        %5664 = vmatprep.subr.mxu0 0.0
        %5665 = vmatpush1.msra.mxu0 0.0
        %5666 = vmatprep.subr.mxu0 0.0
        %5667 = vmatpush1.msra.mxu0 0.0
        %5668 = vmatprep.subr.mxu0 0.0
        %5669 = vmatpush1.msra.mxu0 0.0
        %5670 = vmatprep.subr.mxu0 0.0
        %5671 = vmatpush1.msra.mxu0 0.0
        %5672 = vmatprep.subr.mxu0 0.0
        %5673 = vmatpush1.msra.mxu0 0.0
        %5674 = vmatprep.subr.mxu0 0.0
        %5675 = vmatpush1.msra.mxu0 0.0
        %5676 = vmatprep.subr.mxu0 0.0
        %5677 = vmatpush1.msra.mxu0 0.0
        %5678 = vmatprep.subr.mxu0 0.0
        %5679 = vmatpush1.msra.mxu0 0.0
        %5680 = vmatprep.subr.mxu0 0.0
        %5681 = vmatpush1.msra.mxu0 0.0
        %5682 = vmatprep.subr.mxu0 0.0
        %5683 = vmatpush1.msra.mxu0 0.0
        %5684 = vmatprep.subr.mxu0 0.0
        %5685 = vmatpush1.msra.mxu0 0.0
        %5686 = vmatprep.subr.mxu0 0.0
        %5687 = vmatpush1.msra.mxu0 0.0
        %5688 = vmatprep.subr.mxu0 0.0
        %5689 = vmatpush1.msra.mxu0 0.0
        %5690 = vmatprep.subr.mxu0 0.0
        %5691 = vmatpush1.msra.mxu0 0.0
        %5692 = vmatprep.subr.mxu0 0.0
        %5693 = vmatpush1.msra.mxu0 0.0
        %5694 = vmatprep.mubr.f32.mxu0 0.0
        %5695 = vmatmul.mubr.f32.gmra.mrb[0].mxu0 %v2448
        %v5696 = vpop.f32.mrb[0].mxu0
        %v5697 = vadd.f32 0.0, %v5696
        %v5698 = vpop.f32.mrb[0].mxu0
        %v5699 = vadd.f32 0.0, %v5698
        %5700 = vmatprep.mubr.f32.mxu0 0.0
        %5701 = vmatmul.mubr.f32.gmra.mrb[0].mxu0 %v2451
        %v5702 = vpop.f32.mrb[0].mxu0
        %v5703 = vadd.f32 0.0, %v5702
        %v5704 = vpop.f32.mrb[0].mxu0
        %v5705 = vadd.f32 0.0, %v5704
        %5706 = vdwg.mxu0
        %vm5707 = vcmp.gt.f32.partialorder %v5697, 0.5
        %vm5708 = vcmp.gt.f32.partialorder %v5699, 0.5
        %vm5709 = vcmp.gt.f32.partialorder %v5703, 0.5
        %vm5710 = vcmp.gt.f32.partialorder %v5705, 0.5
        %v5711 = vsel %vm5707, 1, 0
        %v5712 = vsel %vm5708, 1, 0
        %v5713 = vsel %vm5709, 1, 0
        %v5714 = vsel %vm5710, 1, 0
        %v5715 = vcvt.s32.f32 %v5711
        %v5716 = vcvt.s32.f32 %v5712
        %v5717 = vcvt.s32.f32 %v5713
        %v5718 = vcvt.s32.f32 %v5714
        %5719 = vst [vmem:[#allocation3 + $0x70] sm:$0xff] %v5715
        %5720 = vst [vmem:[#allocation3 + $0x78] sm:$0xff] %v5716
        %5721 = vst [vmem:[#allocation3 + $0x80] sm:$0xff] %v5717
        %5722 = vst [vmem:[#allocation3 + $0x88] sm:$0xff] %v5718
        %v5723 = vld [vmem:[%s2] sm:$0xff]
        %v5724 = vld [vmem:[%s2 + $0x8] sm:$0xff]
        %v5725 = vld [vmem:[%s2 + $0x10] sm:$0xff]
        %v5726 = vld [vmem:[%s2 + $0x18] sm:$0xff]
        %v5727 = vld [vmem:[%s2 + $0x20] sm:$0xff]
        %v5728 = vld [vmem:[%s2 + $0x28] sm:$0xff]
        %v5729 = vld [vmem:[%s2 + $0x30] sm:$0xff]
        %v5730 = vld [vmem:[%s2 + $0x38] sm:$0xff]
        %v5731 = vld [vmem:[%s2 + $0x40] sm:$0xff]
        %v5732 = vld [vmem:[%s2 + $0x48] sm:$0xff]
        %v5733 = vld [vmem:[%s2 + $0x50] sm:$0xff]
        %v5734 = vld [vmem:[%s2 + $0x58] sm:$0xff]
        %v5735 = vld [vmem:[%s2 + $0x60] sm:$0xff]
        %v5736 = vld [vmem:[%s2 + $0x68] sm:$0xff]
        %v5737 = vld [vmem:[%s2 + $0x70] sm:$0xff]
        %v5738 = vld [vmem:[%s2 + $0x78] sm:$0xff]
        %v5739 = vld [vmem:[%s2 + $0x80] sm:$0xff]
        %v5740 = vld [vmem:[%s2 + $0x88] sm:$0xff]
        %v5741 = vld [vmem:[%s2 + $0x90] sm:$0xff]
        %v5742 = vld [vmem:[%s2 + $0x98] sm:$0xff]
        %v5743 = vld [vmem:[%s2 + $0xa0] sm:$0xff]
        %v5744 = vld [vmem:[%s2 + $0xa8] sm:$0xff]
        %v5745 = vld [vmem:[%s2 + $0xb0] sm:$0xff]
        %v5746 = vld [vmem:[%s2 + $0xb8] sm:$0xff]
        %v5747 = vld [vmem:[%s2 + $0xc0] sm:$0xff]
        %v5748 = vld [vmem:[%s2 + $0xc8] sm:$0xff]
        %v5749 = vld [vmem:[%s2 + $0xd0] sm:$0xff]
        %v5750 = vld [vmem:[%s2 + $0xd8] sm:$0xff]
        %v5751 = vld [vmem:[%s2 + $0xe0] sm:$0xff]
        %v5752 = vld [vmem:[%s2 + $0xe8] sm:$0xff]
        %v5753 = vld [vmem:[%s2 + $0xf0] sm:$0xff]
        %v5754 = vld [vmem:[%s2 + $0xf8] sm:$0xff]
        %v5755 = vld [vmem:[%s2 + $0x100] sm:$0xff]
        %v5756 = vld [vmem:[%s2 + $0x108] sm:$0xff]
        %v5757 = vld [vmem:[%s2 + $0x110] sm:$0xff]
        %v5758 = vld [vmem:[%s2 + $0x118] sm:$0xff]
        %v5759 = vld [vmem:[%s2 + $0x120] sm:$0xff]
        %v5760 = vld [vmem:[%s2 + $0x128] sm:$0xff]
        %v5761 = vld [vmem:[%s2 + $0x130] sm:$0xff]
        %v5762 = vld [vmem:[%s2 + $0x138] sm:$0xff]
        %v5763 = vld [vmem:[%s2 + $0x140] sm:$0xff]
        %v5764 = vld [vmem:[%s2 + $0x148] sm:$0xff]
        %v5765 = vld [vmem:[%s2 + $0x150] sm:$0xff]
        %v5766 = vld [vmem:[%s2 + $0x158] sm:$0xff]
        %v5767 = vld [vmem:[%s2 + $0x160] sm:$0xff]
        %v5768 = vld [vmem:[%s2 + $0x168] sm:$0xff]
        %v5769 = vld [vmem:[%s2 + $0x170] sm:$0xff]
        %v5770 = vld [vmem:[%s2 + $0x178] sm:$0xff]
        %v5771 = vld [vmem:[%s2 + $0x180] sm:$0xff]
        %v5772 = vld [vmem:[%s2 + $0x188] sm:$0xff]
        %v5773 = vld [vmem:[%s2 + $0x190] sm:$0xff]
        %v5774 = vld [vmem:[%s2 + $0x198] sm:$0xff]
        %v5775 = vld [vmem:[%s2 + $0x1a0] sm:$0xff]
        %v5776 = vld [vmem:[%s2 + $0x1a8] sm:$0xff]
        %v5777 = vld [vmem:[%s2 + $0x1b0] sm:$0xff]
        %v5778 = vld [vmem:[%s2 + $0x1b8] sm:$0xff]
        %v5779 = vld [vmem:[%s2 + $0x1c0] sm:$0xff]
        %v5780 = vld [vmem:[%s2 + $0x1c8] sm:$0xff]
        %v5781 = vld [vmem:[%s2 + $0x1d0] sm:$0xff]
        %v5782 = vld [vmem:[%s2 + $0x1d8] sm:$0xff]
        %v5783 = vld [vmem:[%s2 + $0x1e0] sm:$0xff]
        %v5784 = vld [vmem:[%s2 + $0x1e8] sm:$0xff]
        %v5785 = vld [vmem:[%s2 + $0x1f0] sm:$0xff]
        %v5786 = vld [vmem:[%s2 + $0x1f8] sm:$0xff]
        %s5787 = scalar_lea.vmem %s2, 512
        %v5788 = vld [vmem:[%s5787] sm:$0xff]
        %v5789 = vld [vmem:[%s5787 + $0x8] sm:$0xff]
        %v5790 = vld [vmem:[%s5787 + $0x10] sm:$0xff]
        %v5791 = vld [vmem:[%s5787 + $0x18] sm:$0xff]
        %v5792 = vld [vmem:[%s5787 + $0x20] sm:$0xff]
        %v5793 = vld [vmem:[%s5787 + $0x28] sm:$0xff]
        %v5794 = vld [vmem:[%s5787 + $0x30] sm:$0xff]
        %v5795 = vld [vmem:[%s5787 + $0x38] sm:$0xff]
        %v5796 = vld [vmem:[%s5787 + $0x40] sm:$0xff]
        %v5797 = vld [vmem:[%s5787 + $0x48] sm:$0xff]
        %v5798 = vld [vmem:[%s5787 + $0x50] sm:$0xff]
        %v5799 = vld [vmem:[%s5787 + $0x58] sm:$0xff]
        %v5800 = vld [vmem:[%s5787 + $0x60] sm:$0xff]
        %v5801 = vld [vmem:[%s5787 + $0x68] sm:$0xff]
        %v5802 = vld [vmem:[%s5787 + $0x70] sm:$0xff]
        %v5803 = vld [vmem:[%s5787 + $0x78] sm:$0xff]
        %v5804 = vld [vmem:[%s5787 + $0x80] sm:$0xff]
        %v5805 = vld [vmem:[%s5787 + $0x88] sm:$0xff]
        %v5806 = vld [vmem:[%s5787 + $0x90] sm:$0xff]
        %v5807 = vld [vmem:[%s5787 + $0x98] sm:$0xff]
        %v5808 = vld [vmem:[%s5787 + $0xa0] sm:$0xff]
        %v5809 = vld [vmem:[%s5787 + $0xa8] sm:$0xff]
        %v5810 = vld [vmem:[%s5787 + $0xb0] sm:$0xff]
        %v5811 = vld [vmem:[%s5787 + $0xb8] sm:$0xff]
        %v5812 = vld [vmem:[%s5787 + $0xc0] sm:$0xff]
        %v5813 = vld [vmem:[%s5787 + $0xc8] sm:$0xff]
        %v5814 = vld [vmem:[%s5787 + $0xd0] sm:$0xff]
        %v5815 = vld [vmem:[%s5787 + $0xd8] sm:$0xff]
        %v5816 = vld [vmem:[%s5787 + $0xe0] sm:$0xff]
        %v5817 = vld [vmem:[%s5787 + $0xe8] sm:$0xff]
        %v5818 = vld [vmem:[%s5787 + $0xf0] sm:$0xff]
        %v5819 = vld [vmem:[%s5787 + $0xf8] sm:$0xff]
        %v5820 = vld [vmem:[%s5787 + $0x100] sm:$0xff]
        %v5821 = vld [vmem:[%s5787 + $0x108] sm:$0xff]
        %v5822 = vld [vmem:[%s5787 + $0x110] sm:$0xff]
        %v5823 = vld [vmem:[%s5787 + $0x118] sm:$0xff]
        %v5824 = vld [vmem:[%s5787 + $0x120] sm:$0xff]
        %v5825 = vld [vmem:[%s5787 + $0x128] sm:$0xff]
        %v5826 = vld [vmem:[%s5787 + $0x130] sm:$0xff]
        %v5827 = vld [vmem:[%s5787 + $0x138] sm:$0xff]
        %v5828 = vld [vmem:[%s5787 + $0x140] sm:$0xff]
        %v5829 = vld [vmem:[%s5787 + $0x148] sm:$0xff]
        %v5830 = vld [vmem:[%s5787 + $0x150] sm:$0xff]
        %v5831 = vld [vmem:[%s5787 + $0x158] sm:$0xff]
        %v5832 = vld [vmem:[%s5787 + $0x160] sm:$0xff]
        %v5833 = vld [vmem:[%s5787 + $0x168] sm:$0xff]
        %v5834 = vld [vmem:[%s5787 + $0x170] sm:$0xff]
        %v5835 = vld [vmem:[%s5787 + $0x178] sm:$0xff]
        %v5836 = vld [vmem:[%s5787 + $0x180] sm:$0xff]
        %v5837 = vld [vmem:[%s5787 + $0x188] sm:$0xff]
        %v5838 = vld [vmem:[%s5787 + $0x190] sm:$0xff]
        %v5839 = vld [vmem:[%s5787 + $0x198] sm:$0xff]
        %v5840 = vld [vmem:[%s5787 + $0x1a0] sm:$0xff]
        %v5841 = vld [vmem:[%s5787 + $0x1a8] sm:$0xff]
        %v5842 = vld [vmem:[%s5787 + $0x1b0] sm:$0xff]
        %v5843 = vld [vmem:[%s5787 + $0x1b8] sm:$0xff]
        %v5844 = vld [vmem:[%s5787 + $0x1c0] sm:$0xff]
        %v5845 = vld [vmem:[%s5787 + $0x1c8] sm:$0xff]
        %v5846 = vld [vmem:[%s5787 + $0x1d0] sm:$0xff]
        %v5847 = vld [vmem:[%s5787 + $0x1d8] sm:$0xff]
        %v5848 = vld [vmem:[%s5787 + $0x1e0] sm:$0xff]
        %v5849 = vld [vmem:[%s5787 + $0x1e8] sm:$0xff]
        %v5850 = vld [vmem:[%s5787 + $0x1f0] sm:$0xff]
        %v5851 = vld [vmem:[%s5787 + $0x1f8] sm:$0xff]
        %s5852 = scalar_lea.vmem %s2, 1024
        %v5853 = vld [vmem:[%s5852] sm:$0xff]
        %v5854 = vld [vmem:[%s5852 + $0x8] sm:$0xff]
        %v5855 = vld [vmem:[%s5852 + $0x10] sm:$0xff]
        %v5856 = vld [vmem:[%s5852 + $0x18] sm:$0xff]
        %v5857 = vld [vmem:[%s5852 + $0x20] sm:$0xff]
        %v5858 = vld [vmem:[%s5852 + $0x28] sm:$0xff]
        %v5859 = vld [vmem:[%s5852 + $0x30] sm:$0xff]
        %v5860 = vld [vmem:[%s5852 + $0x38] sm:$0xff]
        %v5861 = vld [vmem:[%s5852 + $0x40] sm:$0xff]
        %v5862 = vld [vmem:[%s5852 + $0x48] sm:$0xff]
        %v5863 = vld [vmem:[%s5852 + $0x50] sm:$0xff]
        %v5864 = vld [vmem:[%s5852 + $0x58] sm:$0xff]
        %v5865 = vld [vmem:[%s5852 + $0x60] sm:$0xff]
        %v5866 = vld [vmem:[%s5852 + $0x68] sm:$0xff]
        %v5867 = vld [vmem:[%s5852 + $0x70] sm:$0xff]
        %v5868 = vld [vmem:[%s5852 + $0x78] sm:$0xff]
        %v5869 = vld [vmem:[%s5852 + $0x80] sm:$0xff]
        %v5870 = vld [vmem:[%s5852 + $0x88] sm:$0xff]
        %v5871 = vld [vmem:[%s5852 + $0x90] sm:$0xff]
        %v5872 = vld [vmem:[%s5852 + $0x98] sm:$0xff]
        %v5873 = vld [vmem:[%s5852 + $0xa0] sm:$0xff]
        %v5874 = vld [vmem:[%s5852 + $0xa8] sm:$0xff]
        %v5875 = vld [vmem:[%s5852 + $0xb0] sm:$0xff]
        %v5876 = vld [vmem:[%s5852 + $0xb8] sm:$0xff]
        %v5877 = vld [vmem:[%s5852 + $0xc0] sm:$0xff]
        %v5878 = vld [vmem:[%s5852 + $0xc8] sm:$0xff]
        %v5879 = vld [vmem:[%s5852 + $0xd0] sm:$0xff]
        %v5880 = vld [vmem:[%s5852 + $0xd8] sm:$0xff]
        %v5881 = vld [vmem:[%s5852 + $0xe0] sm:$0xff]
        %v5882 = vld [vmem:[%s5852 + $0xe8] sm:$0xff]
        %v5883 = vld [vmem:[%s5852 + $0xf0] sm:$0xff]
        %v5884 = vld [vmem:[%s5852 + $0xf8] sm:$0xff]
        %v5885 = vld [vmem:[%s5852 + $0x100] sm:$0xff]
        %v5886 = vld [vmem:[%s5852 + $0x108] sm:$0xff]
        %v5887 = vld [vmem:[%s5852 + $0x110] sm:$0xff]
        %v5888 = vld [vmem:[%s5852 + $0x118] sm:$0xff]
        %v5889 = vld [vmem:[%s5852 + $0x120] sm:$0xff]
        %v5890 = vld [vmem:[%s5852 + $0x128] sm:$0xff]
        %v5891 = vld [vmem:[%s5852 + $0x130] sm:$0xff]
        %v5892 = vld [vmem:[%s5852 + $0x138] sm:$0xff]
        %v5893 = vld [vmem:[%s5852 + $0x140] sm:$0xff]
        %v5894 = vld [vmem:[%s5852 + $0x148] sm:$0xff]
        %v5895 = vld [vmem:[%s5852 + $0x150] sm:$0xff]
        %v5896 = vld [vmem:[%s5852 + $0x158] sm:$0xff]
        %v5897 = vld [vmem:[%s5852 + $0x160] sm:$0xff]
        %v5898 = vld [vmem:[%s5852 + $0x168] sm:$0xff]
        %v5899 = vld [vmem:[%s5852 + $0x170] sm:$0xff]
        %v5900 = vld [vmem:[%s5852 + $0x178] sm:$0xff]
        %v5901 = vld [vmem:[%s5852 + $0x180] sm:$0xff]
        %v5902 = vld [vmem:[%s5852 + $0x188] sm:$0xff]
        %v5903 = vld [vmem:[%s5852 + $0x190] sm:$0xff]
        %v5904 = vld [vmem:[%s5852 + $0x198] sm:$0xff]
        %v5905 = vld [vmem:[%s5852 + $0x1a0] sm:$0xff]
        %v5906 = vld [vmem:[%s5852 + $0x1a8] sm:$0xff]
        %v5907 = vld [vmem:[%s5852 + $0x1b0] sm:$0xff]
        %v5908 = vld [vmem:[%s5852 + $0x1b8] sm:$0xff]
        %v5909 = vld [vmem:[%s5852 + $0x1c0] sm:$0xff]
        %v5910 = vld [vmem:[%s5852 + $0x1c8] sm:$0xff]
        %v5911 = vld [vmem:[%s5852 + $0x1d0] sm:$0xff]
        %v5912 = vld [vmem:[%s5852 + $0x1d8] sm:$0xff]
        %v5913 = vld [vmem:[%s5852 + $0x1e0] sm:$0xff]
        %v5914 = vld [vmem:[%s5852 + $0x1e8] sm:$0xff]
        %v5915 = vld [vmem:[%s5852 + $0x1f0] sm:$0xff]
        %v5916 = vld [vmem:[%s5852 + $0x1f8] sm:$0xff]
        %v5917 = vld [vmem:[%s7] sm:$0x3]
        %v5918 = vld [vmem:[%s12] sm:$0xff]
        %v5919 = vld [vmem:[%s12 + $0x8] sm:$0xff]
        %v5920 = vld [vmem:[%s12 + $0x10] sm:$0xff]
        %v5921 = vld [vmem:[%s12 + $0x18] sm:$0xff]
        %v5922 = vld [vmem:[%s12 + $0x20] sm:$0xff]
        %v5923 = vld [vmem:[%s12 + $0x28] sm:$0xff]
        %v5924 = vld [vmem:[%s12 + $0x30] sm:$0xff]
        %v5925 = vld [vmem:[%s12 + $0x38] sm:$0xff]
        %v5926 = vld [vmem:[%s12 + $0x40] sm:$0xff]
        %v5927 = vld [vmem:[%s12 + $0x48] sm:$0xff]
        %v5928 = vld [vmem:[%s12 + $0x50] sm:$0xff]
        %v5929 = vld [vmem:[%s12 + $0x58] sm:$0xff]
        %v5930 = vld [vmem:[%s12 + $0x60] sm:$0xff]
        %v5931 = vld [vmem:[%s12 + $0x68] sm:$0xff]
        %v5932 = vld [vmem:[%s12 + $0x70] sm:$0xff]
        %v5933 = vld [vmem:[%s12 + $0x78] sm:$0xff]
        %v5934 = vld [vmem:[%s12 + $0x80] sm:$0xff]
        %v5935 = vld [vmem:[%s12 + $0x88] sm:$0xff]
        %v5936 = vld [vmem:[%s12 + $0x90] sm:$0xff]
        %v5937 = vld [vmem:[%s12 + $0x98] sm:$0xff]
        %v5938 = vld [vmem:[%s12 + $0xa0] sm:$0xff]
        %v5939 = vld [vmem:[%s12 + $0xa8] sm:$0xff]
        %v5940 = vld [vmem:[%s12 + $0xb0] sm:$0xff]
        %v5941 = vld [vmem:[%s12 + $0xb8] sm:$0xff]
        %v5942 = vld [vmem:[%s12 + $0xc0] sm:$0xff]
        %v5943 = vld [vmem:[%s12 + $0xc8] sm:$0xff]
        %v5944 = vld [vmem:[%s12 + $0xd0] sm:$0xff]
        %v5945 = vld [vmem:[%s12 + $0xd8] sm:$0xff]
        %v5946 = vld [vmem:[%s12 + $0xe0] sm:$0xff]
        %v5947 = vld [vmem:[%s12 + $0xe8] sm:$0xff]
        %v5948 = vld [vmem:[%s12 + $0xf0] sm:$0xff]
        %v5949 = vld [vmem:[%s12 + $0xf8] sm:$0xff]
        %v5950 = vld [vmem:[#allocation3] sm:$0x80]
        %v5951 = vld [vmem:[#allocation3 + $0x8] sm:$0x80]
        %v5952 = vld [vmem:[#allocation3 + $0x10] sm:$0xff]
        %v5953 = vld [vmem:[#allocation3 + $0x18] sm:$0xff]
        %v5954 = vld [vmem:[#allocation3 + $0x20] sm:$0xff]
        %v5955 = vld [vmem:[#allocation3 + $0x28] sm:$0xff]
        %v5956 = vld [vmem:[#allocation3 + $0x30] sm:$0xff]
        %v5957 = vld [vmem:[#allocation3 + $0x38] sm:$0xff]
        %v5958 = vld [vmem:[#allocation3 + $0x40] sm:$0x7f]
        %v5959 = vld [vmem:[#allocation3 + $0x48] sm:$0x7f]
        %v5960 = vld [vmem:[#allocation3 + $0x40] sm:$0xff]
        %v5961 = vld [vmem:[#allocation3 + $0x48] sm:$0xff]
        %5962 = vmatprep.subr.mxu0 %v5789
        %5963 = vmatpush1.msra.mxu0 %v5788
        %5964 = vmatprep.subr.mxu0 %v5791
        %5965 = vmatpush1.msra.mxu0 %v5790
        %5966 = vmatprep.subr.mxu0 %v5793
        %5967 = vmatpush1.msra.mxu0 %v5792
        %5968 = vmatprep.subr.mxu0 %v5795
        %5969 = vmatpush1.msra.mxu0 %v5794
        %5970 = vmatprep.subr.mxu0 %v5797
        %5971 = vmatpush1.msra.mxu0 %v5796
        %5972 = vmatprep.subr.mxu0 %v5799
        %5973 = vmatpush1.msra.mxu0 %v5798
        %5974 = vmatprep.subr.mxu0 %v5801
        %5975 = vmatpush1.msra.mxu0 %v5800
        %5976 = vmatprep.subr.mxu0 %v5803
        %5977 = vmatpush1.msra.mxu0 %v5802
        %5978 = vmatprep.subr.mxu0 %v5805
        %5979 = vmatpush1.msra.mxu0 %v5804
        %5980 = vmatprep.subr.mxu0 %v5807
        %5981 = vmatpush1.msra.mxu0 %v5806
        %5982 = vmatprep.subr.mxu0 %v5809
        %5983 = vmatpush1.msra.mxu0 %v5808
        %5984 = vmatprep.subr.mxu0 %v5811
        %5985 = vmatpush1.msra.mxu0 %v5810
        %5986 = vmatprep.subr.mxu0 %v5813
        %5987 = vmatpush1.msra.mxu0 %v5812
        %5988 = vmatprep.subr.mxu0 %v5815
        %5989 = vmatpush1.msra.mxu0 %v5814
        %5990 = vmatprep.subr.mxu0 %v5817
        %5991 = vmatpush1.msra.mxu0 %v5816
        %5992 = vmatprep.subr.mxu0 %v5819
        %5993 = vmatpush1.msra.mxu0 %v5818
        %5994 = vmatprep.subr.mxu0 %v5821
        %5995 = vmatpush1.msra.mxu0 %v5820
        %5996 = vmatprep.subr.mxu0 %v5823
        %5997 = vmatpush1.msra.mxu0 %v5822
        %5998 = vmatprep.subr.mxu0 %v5825
        %5999 = vmatpush1.msra.mxu0 %v5824
        %6000 = vmatprep.subr.mxu0 %v5827
        %6001 = vmatpush1.msra.mxu0 %v5826
        %6002 = vmatprep.subr.mxu0 %v5829
        %6003 = vmatpush1.msra.mxu0 %v5828
        %6004 = vmatprep.subr.mxu0 %v5831
        %6005 = vmatpush1.msra.mxu0 %v5830
        %6006 = vmatprep.subr.mxu0 %v5833
        %6007 = vmatpush1.msra.mxu0 %v5832
        %6008 = vmatprep.subr.mxu0 %v5835
        %6009 = vmatpush1.msra.mxu0 %v5834
        %6010 = vmatprep.subr.mxu0 %v5837
        %6011 = vmatpush1.msra.mxu0 %v5836
        %6012 = vmatprep.subr.mxu0 %v5839
        %6013 = vmatpush1.msra.mxu0 %v5838
        %6014 = vmatprep.subr.mxu0 %v5841
        %6015 = vmatpush1.msra.mxu0 %v5840
        %6016 = vmatprep.subr.mxu0 %v5843
        %6017 = vmatpush1.msra.mxu0 %v5842
        %6018 = vmatprep.subr.mxu0 %v5845
        %6019 = vmatpush1.msra.mxu0 %v5844
        %6020 = vmatprep.subr.mxu0 %v5847
        %6021 = vmatpush1.msra.mxu0 %v5846
        %6022 = vmatprep.subr.mxu0 %v5849
        %6023 = vmatpush1.msra.mxu0 %v5848
        %6024 = vmatprep.subr.mxu0 %v5851
        %6025 = vmatpush1.msra.mxu0 %v5850
        %6026 = vmatprep.mubr.f32.mxu0 %v5953
        %6027 = vmatmul.mubr.f32.gmra.mrb[0].mxu0 %v5952
        %v6028 = vpop.f32.mrb[0].mxu0
        %v6029 = vadd.f32 0.0, %v6028
        %v6030 = vpop.f32.mrb[0].mxu0
        %v6031 = vadd.f32 0.0, %v6030
        %6032 = vmatprep.mubr.f32.mxu0 %v5955
        %6033 = vmatmul.mubr.f32.gmra.mrb[0].mxu0 %v5954
        %v6034 = vpop.f32.mrb[0].mxu0
        %v6035 = vadd.f32 0.0, %v6034
        %v6036 = vpop.f32.mrb[0].mxu0
        %v6037 = vadd.f32 0.0, %v6036
        %6038 = vmatprep.mubr.f32.mxu0 %v5957
        %6039 = vmatmul.mubr.f32.gmra.mrb[0].mxu0 %v5956
        %v6040 = vpop.f32.mrb[0].mxu0
        %v6041 = vadd.f32 0.0, %v6040
        %v6042 = vpop.f32.mrb[0].mxu0
        %v6043 = vadd.f32 0.0, %v6042
        %6044 = vmatprep.mubr.f32.mxu0 %v5961
        %6045 = vmatmul.mubr.f32.gmra.mrb[0].mxu0 %v5960
        %v6046 = vpop.f32.mrb[0].mxu0
        %v6047 = vadd.f32 0.0, %v6046
        %v6048 = vpop.f32.mrb[0].mxu0
        %v6049 = vadd.f32 0.0, %v6048
        %6050 = vdwg.mxu0
        %v6061 = vrot.slane %v5950, 7
        %v6062 = vrot.slane %v5952, 7
        %v6063 = vsel %vm1657, %v6061, %v6062
        %v6064 = vrot.slane %v5951, 7
        %v6065 = vrot.slane %v5953, 7
        %v6066 = vsel %vm1657, %v6064, %v6065
        %v6067 = vrot.slane %v5954, 7
        %v6068 = vsel %vm1657, %v6062, %v6067
        %v6069 = vrot.slane %v5955, 7
        %v6070 = vsel %vm1657, %v6065, %v6069
        %v6071 = vrot.slane %v5956, 7
        %v6072 = vsel %vm1657, %v6067, %v6071
        %v6073 = vrot.slane %v5957, 7
        %v6074 = vsel %vm1657, %v6069, %v6073
        %v6075 = vrot.slane %v5958, 7
        %v6076 = vsel %vm1657, %v6071, %v6075
        %v6077 = vrot.slane %v5959, 7
        %v6078 = vsel %vm1657, %v6073, %v6077
        %6087 = vmatprep.subr.mxu0 %v5724
        %6088 = vmatpush1.msra.mxu0 %v5723
        %6089 = vmatprep.subr.mxu0 %v5726
        %6090 = vmatpush1.msra.mxu0 %v5725
        %6091 = vmatprep.subr.mxu0 %v5728
        %6092 = vmatpush1.msra.mxu0 %v5727
        %6093 = vmatprep.subr.mxu0 %v5730
        %6094 = vmatpush1.msra.mxu0 %v5729
        %6095 = vmatprep.subr.mxu0 %v5732
        %6096 = vmatpush1.msra.mxu0 %v5731
        %6097 = vmatprep.subr.mxu0 %v5734
        %6098 = vmatpush1.msra.mxu0 %v5733
        %6099 = vmatprep.subr.mxu0 %v5736
        %6100 = vmatpush1.msra.mxu0 %v5735
        %6101 = vmatprep.subr.mxu0 %v5738
        %6102 = vmatpush1.msra.mxu0 %v5737
        %6103 = vmatprep.subr.mxu0 %v5740
        %6104 = vmatpush1.msra.mxu0 %v5739
        %6105 = vmatprep.subr.mxu0 %v5742
        %6106 = vmatpush1.msra.mxu0 %v5741
        %6107 = vmatprep.subr.mxu0 %v5744
        %6108 = vmatpush1.msra.mxu0 %v5743
        %6109 = vmatprep.subr.mxu0 %v5746
        %6110 = vmatpush1.msra.mxu0 %v5745
        %6111 = vmatprep.subr.mxu0 %v5748
        %6112 = vmatpush1.msra.mxu0 %v5747
        %6113 = vmatprep.subr.mxu0 %v5750
        %6114 = vmatpush1.msra.mxu0 %v5749
        %6115 = vmatprep.subr.mxu0 %v5752
        %6116 = vmatpush1.msra.mxu0 %v5751
        %6117 = vmatprep.subr.mxu0 %v5754
        %6118 = vmatpush1.msra.mxu0 %v5753
        %6119 = vmatprep.subr.mxu0 %v5756
        %6120 = vmatpush1.msra.mxu0 %v5755
        %6121 = vmatprep.subr.mxu0 %v5758
        %6122 = vmatpush1.msra.mxu0 %v5757
        %6123 = vmatprep.subr.mxu0 %v5760
        %6124 = vmatpush1.msra.mxu0 %v5759
        %6125 = vmatprep.subr.mxu0 %v5762
        %6126 = vmatpush1.msra.mxu0 %v5761
        %6127 = vmatprep.subr.mxu0 %v5764
        %6128 = vmatpush1.msra.mxu0 %v5763
        %6129 = vmatprep.subr.mxu0 %v5766
        %6130 = vmatpush1.msra.mxu0 %v5765
        %6131 = vmatprep.subr.mxu0 %v5768
        %6132 = vmatpush1.msra.mxu0 %v5767
        %6133 = vmatprep.subr.mxu0 %v5770
        %6134 = vmatpush1.msra.mxu0 %v5769
        %6135 = vmatprep.subr.mxu0 %v5772
        %6136 = vmatpush1.msra.mxu0 %v5771
        %6137 = vmatprep.subr.mxu0 %v5774
        %6138 = vmatpush1.msra.mxu0 %v5773
        %6139 = vmatprep.subr.mxu0 %v5776
        %6140 = vmatpush1.msra.mxu0 %v5775
        %6141 = vmatprep.subr.mxu0 %v5778
        %6142 = vmatpush1.msra.mxu0 %v5777
        %6143 = vmatprep.subr.mxu0 %v5780
        %6144 = vmatpush1.msra.mxu0 %v5779
        %6145 = vmatprep.subr.mxu0 %v5782
        %6146 = vmatpush1.msra.mxu0 %v5781
        %6147 = vmatprep.subr.mxu0 %v5784
        %6148 = vmatpush1.msra.mxu0 %v5783
        %6149 = vmatprep.subr.mxu0 %v5786
        %6150 = vmatpush1.msra.mxu0 %v5785
        %6151 = vmatprep.mubr.f32.mxu0 %v6066
        %6152 = vmatmul.mubr.f32.gmra.mrb[0].mxu0 %v6063
        %v6153 = vpop.f32.mrb[0].mxu0
        %v6154 = vadd.f32 %v6029, %v6153
        %v6155 = vpop.f32.mrb[0].mxu0
        %v6156 = vadd.f32 %v6031, %v6155
        %6157 = vmatprep.mubr.f32.mxu0 %v6070
        %6158 = vmatmul.mubr.f32.gmra.mrb[0].mxu0 %v6068
        %v6159 = vpop.f32.mrb[0].mxu0
        %v6160 = vadd.f32 %v6035, %v6159
        %v6161 = vpop.f32.mrb[0].mxu0
        %v6162 = vadd.f32 %v6037, %v6161
        %6163 = vmatprep.mubr.f32.mxu0 %v6074
        %6164 = vmatmul.mubr.f32.gmra.mrb[0].mxu0 %v6072
        %v6165 = vpop.f32.mrb[0].mxu0
        %v6166 = vadd.f32 %v6041, %v6165
        %v6167 = vpop.f32.mrb[0].mxu0
        %v6168 = vadd.f32 %v6043, %v6167
        %6169 = vmatprep.mubr.f32.mxu0 %v6078
        %6170 = vmatmul.mubr.f32.gmra.mrb[0].mxu0 %v6076
        %v6171 = vpop.f32.mrb[0].mxu0
        %v6172 = vadd.f32 %v6047, %v6171
        %v6173 = vpop.f32.mrb[0].mxu0
        %v6174 = vadd.f32 %v6049, %v6173
        %6175 = vdwg.mxu0
        %v6176 = vld [vmem:[#allocation3 + $0x10] sm:$0xfe]
        %v6177 = vld [vmem:[#allocation3 + $0x18] sm:$0xfe]
        %v6178 = vld [vmem:[#allocation3 + $0x20] sm:$0xff]
        %v6179 = vld [vmem:[#allocation3 + $0x28] sm:$0xff]
        %v6180 = vld [vmem:[#allocation3 + $0x30] sm:$0xff]
        %v6181 = vld [vmem:[#allocation3 + $0x38] sm:$0xff]
        %v6182 = vld [vmem:[#allocation3 + $0x40] sm:$0xff]
        %v6183 = vld [vmem:[#allocation3 + $0x48] sm:$0xff]
        %v6184 = vld [vmem:[#allocation3 + $0x50] sm:$0x1]
        %v6185 = vld [vmem:[#allocation3 + $0x58] sm:$0x1]
        %v6196 = vrot.slane %v6176, 1
        %v6197 = vrot.slane %v6178, 1
        %v6198 = vsel %vm1882, %v6196, %v6197
        %v6199 = vrot.slane %v6177, 1
        %v6200 = vrot.slane %v6179, 1
        %v6201 = vsel %vm1882, %v6199, %v6200
        %v6202 = vrot.slane %v6180, 1
        %v6203 = vsel %vm1882, %v6197, %v6202
        %v6204 = vrot.slane %v6181, 1
        %v6205 = vsel %vm1882, %v6200, %v6204
        %v6206 = vrot.slane %v6182, 1
        %v6207 = vsel %vm1882, %v6202, %v6206
        %v6208 = vrot.slane %v6183, 1
        %v6209 = vsel %vm1882, %v6204, %v6208
        %v6210 = vrot.slane %v6184, 1
        %v6211 = vsel %vm1882, %v6206, %v6210
        %v6212 = vrot.slane %v6185, 1
        %v6213 = vsel %vm1882, %v6208, %v6212
        %6222 = vmatprep.subr.mxu0 %v5854
        %6223 = vmatpush1.msra.mxu0 %v5853
        %6224 = vmatprep.subr.mxu0 %v5856
        %6225 = vmatpush1.msra.mxu0 %v5855
        %6226 = vmatprep.subr.mxu0 %v5858
        %6227 = vmatpush1.msra.mxu0 %v5857
        %6228 = vmatprep.subr.mxu0 %v5860
        %6229 = vmatpush1.msra.mxu0 %v5859
        %6230 = vmatprep.subr.mxu0 %v5862
        %6231 = vmatpush1.msra.mxu0 %v5861
        %6232 = vmatprep.subr.mxu0 %v5864
        %6233 = vmatpush1.msra.mxu0 %v5863
        %6234 = vmatprep.subr.mxu0 %v5866
        %6235 = vmatpush1.msra.mxu0 %v5865
        %6236 = vmatprep.subr.mxu0 %v5868
        %6237 = vmatpush1.msra.mxu0 %v5867
        %6238 = vmatprep.subr.mxu0 %v5870
        %6239 = vmatpush1.msra.mxu0 %v5869
        %6240 = vmatprep.subr.mxu0 %v5872
        %6241 = vmatpush1.msra.mxu0 %v5871
        %6242 = vmatprep.subr.mxu0 %v5874
        %6243 = vmatpush1.msra.mxu0 %v5873
        %6244 = vmatprep.subr.mxu0 %v5876
        %6245 = vmatpush1.msra.mxu0 %v5875
        %6246 = vmatprep.subr.mxu0 %v5878
        %6247 = vmatpush1.msra.mxu0 %v5877
        %6248 = vmatprep.subr.mxu0 %v5880
        %6249 = vmatpush1.msra.mxu0 %v5879
        %6250 = vmatprep.subr.mxu0 %v5882
        %6251 = vmatpush1.msra.mxu0 %v5881
        %6252 = vmatprep.subr.mxu0 %v5884
        %6253 = vmatpush1.msra.mxu0 %v5883
        %6254 = vmatprep.subr.mxu0 %v5886
        %6255 = vmatpush1.msra.mxu0 %v5885
        %6256 = vmatprep.subr.mxu0 %v5888
        %6257 = vmatpush1.msra.mxu0 %v5887
        %6258 = vmatprep.subr.mxu0 %v5890
        %6259 = vmatpush1.msra.mxu0 %v5889
        %6260 = vmatprep.subr.mxu0 %v5892
        %6261 = vmatpush1.msra.mxu0 %v5891
        %6262 = vmatprep.subr.mxu0 %v5894
        %6263 = vmatpush1.msra.mxu0 %v5893
        %6264 = vmatprep.subr.mxu0 %v5896
        %6265 = vmatpush1.msra.mxu0 %v5895
        %6266 = vmatprep.subr.mxu0 %v5898
        %6267 = vmatpush1.msra.mxu0 %v5897
        %6268 = vmatprep.subr.mxu0 %v5900
        %6269 = vmatpush1.msra.mxu0 %v5899
        %6270 = vmatprep.subr.mxu0 %v5902
        %6271 = vmatpush1.msra.mxu0 %v5901
        %6272 = vmatprep.subr.mxu0 %v5904
        %6273 = vmatpush1.msra.mxu0 %v5903
        %6274 = vmatprep.subr.mxu0 %v5906
        %6275 = vmatpush1.msra.mxu0 %v5905
        %6276 = vmatprep.subr.mxu0 %v5908
        %6277 = vmatpush1.msra.mxu0 %v5907
        %6278 = vmatprep.subr.mxu0 %v5910
        %6279 = vmatpush1.msra.mxu0 %v5909
        %6280 = vmatprep.subr.mxu0 %v5912
        %6281 = vmatpush1.msra.mxu0 %v5911
        %6282 = vmatprep.subr.mxu0 %v5914
        %6283 = vmatpush1.msra.mxu0 %v5913
        %6284 = vmatprep.subr.mxu0 %v5916
        %6285 = vmatpush1.msra.mxu0 %v5915
        %6286 = vmatprep.mubr.f32.mxu0 %v6201
        %6287 = vmatmul.mubr.f32.gmra.mrb[0].mxu0 %v6198
        %v6288 = vpop.f32.mrb[0].mxu0
        %v6289 = vadd.f32 0.0, %v6288
        %v6290 = vpop.f32.mrb[0].mxu0
        %v6291 = vadd.f32 0.0, %v6290
        %6292 = vmatprep.mubr.f32.mxu0 %v6205
        %6293 = vmatmul.mubr.f32.gmra.mrb[0].mxu0 %v6203
        %v6294 = vpop.f32.mrb[0].mxu0
        %v6295 = vadd.f32 0.0, %v6294
        %v6296 = vpop.f32.mrb[0].mxu0
        %v6297 = vadd.f32 0.0, %v6296
        %6298 = vmatprep.mubr.f32.mxu0 %v6209
        %6299 = vmatmul.mubr.f32.gmra.mrb[0].mxu0 %v6207
        %v6300 = vpop.f32.mrb[0].mxu0
        %v6301 = vadd.f32 0.0, %v6300
        %v6302 = vpop.f32.mrb[0].mxu0
        %v6303 = vadd.f32 0.0, %v6302
        %6304 = vmatprep.mubr.f32.mxu0 %v6213
        %6305 = vmatmul.mubr.f32.gmra.mrb[0].mxu0 %v6211
        %v6306 = vpop.f32.mrb[0].mxu0
        %v6307 = vadd.f32 0.0, %v6306
        %v6308 = vpop.f32.mrb[0].mxu0
        %v6309 = vadd.f32 0.0, %v6308
        %6310 = vdwg.mxu0
        %v6311 = vadd.f32 %v6154, %v6289
        %v6312 = vadd.f32 %v6156, %v6291
        %v6313 = vadd.f32 %v6160, %v6295
        %v6314 = vadd.f32 %v6162, %v6297
        %v6315 = vadd.f32 %v6166, %v6301
        %v6316 = vadd.f32 %v6168, %v6303
        %v6317 = vadd.f32 %v6172, %v6307
        %v6318 = vadd.f32 %v6174, %v6309
        %v6320 = vlaneseq
        %v6321 = vshrl.u32 %v6320, 7
        %v6322 = vsub.s32 0, %v6321
        %v6323 = vrot.slane %v5917, %v6322
        %v6324 = vlaneseq
        %v6325 = vshrl.u32 %v6324, 7
        %v6326 = vsub.s32 1, %v6325
        %v6327 = vrot.slane %v5917, %v6326
        %v6330 = vadd.f32 %v6311, %v6323
        %v6331 = vadd.f32 %v6312, %v6327
        %v6332 = vadd.f32 %v6313, %v6323
        %v6333 = vadd.f32 %v6314, %v6327
        %v6334 = vadd.f32 %v6315, %v6323
        %v6335 = vadd.f32 %v6316, %v6327
        %v6336 = vadd.f32 %v6317, %v6323
        %v6337 = vadd.f32 %v6318, %v6327
        %v6338 = vld [vmem:[#allocation8] sm:$0xff]
        %v6339 = vld [vmem:[#allocation8 + $0x8] sm:$0xff]
        %v6340 = vld [vmem:[#allocation8 + $0x10] sm:$0xff]
        %v6341 = vld [vmem:[#allocation8 + $0x18] sm:$0xff]
        %v6342 = vld [vmem:[#allocation8 + $0x20] sm:$0xff]
        %v6343 = vld [vmem:[#allocation8 + $0x28] sm:$0xff]
        %v6344 = vld [vmem:[#allocation8 + $0x30] sm:$0xff]
        %v6345 = vld [vmem:[#allocation8 + $0x38] sm:$0xff]
        %v6346 = vadd.f32 %v6338, %v6330
        %v6347 = vadd.f32 %v6339, %v6331
        %v6348 = vadd.f32 %v6340, %v6332
        %v6349 = vadd.f32 %v6341, %v6333
        %v6350 = vadd.f32 %v6342, %v6334
        %v6351 = vadd.f32 %v6343, %v6335
        %v6352 = vadd.f32 %v6344, %v6336
        %v6353 = vadd.f32 %v6345, %v6337
        %v6354 = vmul.f32 %v6346, 0.5
        %v6355 = vmul.f32 %v6347, 0.5
        %v6356 = vmul.f32 %v6348, 0.5
        %v6357 = vmul.f32 %v6349, 0.5
        %v6358 = vmul.f32 %v6350, 0.5
        %v6359 = vmul.f32 %v6351, 0.5
        %v6360 = vmul.f32 %v6352, 0.5
        %v6361 = vmul.f32 %v6353, 0.5
        %vm6362 = vcmp.ge.f32.partialorder %v6354, 1.0
        %vm6363 = vcmp.ge.f32.partialorder %v6355, 1.0
        %vm6364 = vcmp.ge.f32.partialorder %v6356, 1.0
        %vm6365 = vcmp.ge.f32.partialorder %v6357, 1.0
        %vm6366 = vcmp.ge.f32.partialorder %v6358, 1.0
        %vm6367 = vcmp.ge.f32.partialorder %v6359, 1.0
        %vm6368 = vcmp.ge.f32.partialorder %v6360, 1.0
        %vm6369 = vcmp.ge.f32.partialorder %v6361, 1.0
        %v6370 = vsel %vm6362, 0.0, %v6354
        %v6371 = vsel %vm6363, 0.0, %v6355
        %v6372 = vsel %vm6364, 0.0, %v6356
        %v6373 = vsel %vm6365, 0.0, %v6357
        %v6374 = vsel %vm6366, 0.0, %v6358
        %v6375 = vsel %vm6367, 0.0, %v6359
        %v6376 = vsel %vm6368, 0.0, %v6360
        %v6377 = vsel %vm6369, 0.0, %v6361
        %6378 = vst [vmem:[#allocation8] sm:$0xff] %v6370
        %6379 = vst [vmem:[#allocation8 + $0x8] sm:$0xff] %v6371
        %6380 = vst [vmem:[#allocation8 + $0x10] sm:$0xff] %v6372
        %6381 = vst [vmem:[#allocation8 + $0x18] sm:$0xff] %v6373
        %6382 = vst [vmem:[#allocation8 + $0x20] sm:$0xff] %v6374
        %6383 = vst [vmem:[#allocation8 + $0x28] sm:$0xff] %v6375
        %6384 = vst [vmem:[#allocation8 + $0x30] sm:$0xff] %v6376
        %6385 = vst [vmem:[#allocation8 + $0x38] sm:$0xff] %v6377
        %v6386 = vsel %vm6362, 1, 0
        %v6387 = vsel %vm6363, 1, 0
        %v6388 = vsel %vm6364, 1, 0
        %v6389 = vsel %vm6365, 1, 0
        %v6390 = vsel %vm6366, 1, 0
        %v6391 = vsel %vm6367, 1, 0
        %v6392 = vsel %vm6368, 1, 0
        %v6393 = vsel %vm6369, 1, 0
        %v6394 = vcvt.s32.f32 %v6386
        %v6395 = vcvt.s32.f32 %v6387
        %v6396 = vcvt.s32.f32 %v6388
        %v6397 = vcvt.s32.f32 %v6389
        %v6398 = vcvt.s32.f32 %v6390
        %v6399 = vcvt.s32.f32 %v6391
        %v6400 = vcvt.s32.f32 %v6392
        %v6401 = vcvt.s32.f32 %v6393
        %6402 = vmatprep.subr.mxu0 0.0
        %6403 = vmatpush1.msra.mxu0 %v5918
        %6404 = vmatprep.subr.mxu0 0.0
        %6405 = vmatpush1.msra.mxu0 %v5919
        %6406 = vmatprep.subr.mxu0 0.0
        %6407 = vmatpush1.msra.mxu0 %v5920
        %6408 = vmatprep.subr.mxu0 0.0
        %6409 = vmatpush1.msra.mxu0 %v5921
        %6410 = vmatprep.subr.mxu0 0.0
        %6411 = vmatpush1.msra.mxu0 %v5922
        %6412 = vmatprep.subr.mxu0 0.0
        %6413 = vmatpush1.msra.mxu0 %v5923
        %6414 = vmatprep.subr.mxu0 0.0
        %6415 = vmatpush1.msra.mxu0 %v5924
        %6416 = vmatprep.subr.mxu0 0.0
        %6417 = vmatpush1.msra.mxu0 %v5925
        %6418 = vmatprep.subr.mxu0 0.0
        %6419 = vmatpush1.msra.mxu0 %v5926
        %6420 = vmatprep.subr.mxu0 0.0
        %6421 = vmatpush1.msra.mxu0 %v5927
        %6422 = vmatprep.subr.mxu0 0.0
        %6423 = vmatpush1.msra.mxu0 %v5928
        %6424 = vmatprep.subr.mxu0 0.0
        %6425 = vmatpush1.msra.mxu0 %v5929
        %6426 = vmatprep.subr.mxu0 0.0
        %6427 = vmatpush1.msra.mxu0 %v5930
        %6428 = vmatprep.subr.mxu0 0.0
        %6429 = vmatpush1.msra.mxu0 %v5931
        %6430 = vmatprep.subr.mxu0 0.0
        %6431 = vmatpush1.msra.mxu0 %v5932
        %6432 = vmatprep.subr.mxu0 0.0
        %6433 = vmatpush1.msra.mxu0 %v5933
        %6434 = vmatprep.subr.mxu0 0.0
        %6435 = vmatpush1.msra.mxu0 %v5934
        %6436 = vmatprep.subr.mxu0 0.0
        %6437 = vmatpush1.msra.mxu0 %v5935
        %6438 = vmatprep.subr.mxu0 0.0
        %6439 = vmatpush1.msra.mxu0 %v5936
        %6440 = vmatprep.subr.mxu0 0.0
        %6441 = vmatpush1.msra.mxu0 %v5937
        %6442 = vmatprep.subr.mxu0 0.0
        %6443 = vmatpush1.msra.mxu0 %v5938
        %6444 = vmatprep.subr.mxu0 0.0
        %6445 = vmatpush1.msra.mxu0 %v5939
        %6446 = vmatprep.subr.mxu0 0.0
        %6447 = vmatpush1.msra.mxu0 %v5940
        %6448 = vmatprep.subr.mxu0 0.0
        %6449 = vmatpush1.msra.mxu0 %v5941
        %6450 = vmatprep.subr.mxu0 0.0
        %6451 = vmatpush1.msra.mxu0 %v5942
        %6452 = vmatprep.subr.mxu0 0.0
        %6453 = vmatpush1.msra.mxu0 %v5943
        %6454 = vmatprep.subr.mxu0 0.0
        %6455 = vmatpush1.msra.mxu0 %v5944
        %6456 = vmatprep.subr.mxu0 0.0
        %6457 = vmatpush1.msra.mxu0 %v5945
        %6458 = vmatprep.subr.mxu0 0.0
        %6459 = vmatpush1.msra.mxu0 %v5946
        %6460 = vmatprep.subr.mxu0 0.0
        %6461 = vmatpush1.msra.mxu0 %v5947
        %6462 = vmatprep.subr.mxu0 0.0
        %6463 = vmatpush1.msra.mxu0 %v5948
        %6464 = vmatprep.subr.mxu0 0.0
        %6465 = vmatpush1.msra.mxu0 %v5949
        %6466 = vmatprep.mubr.f32.mxu0 %v6395
        %6467 = vmatmul.mubr.f32.gmra.mrb[0].mxu0 %v6394
        %v6468 = vpop.f32.mrb[0].mxu0
        %v6469 = vadd.f32 0.0, %v6468
        %v6470 = vpop.f32.mrb[0].mxu0
        %6471 = vmatprep.mubr.f32.mxu0 %v6397
        %6472 = vmatmul.mubr.f32.gmra.mrb[0].mxu0 %v6396
        %v6473 = vpop.f32.mrb[0].mxu0
        %v6474 = vadd.f32 0.0, %v6473
        %v6475 = vpop.f32.mrb[0].mxu0
        %6476 = vmatprep.mubr.f32.mxu0 %v6399
        %6477 = vmatmul.mubr.f32.gmra.mrb[0].mxu0 %v6398
        %v6478 = vpop.f32.mrb[0].mxu0
        %v6479 = vadd.f32 0.0, %v6478
        %v6480 = vpop.f32.mrb[0].mxu0
        %6481 = vmatprep.mubr.f32.mxu0 %v6401
        %6482 = vmatmul.mubr.f32.gmra.mrb[0].mxu0 %v6400
        %v6483 = vpop.f32.mrb[0].mxu0
        %v6484 = vadd.f32 0.0, %v6483
        %v6485 = vpop.f32.mrb[0].mxu0
        %6486 = vdwg.mxu0
        %6487 = vmatprep.subr.mxu0 0.0
        %6488 = vmatpush1.msra.mxu0 %v6469
        %6489 = vmatprep.subr.mxu0 0.0
        %6490 = vmatpush1.msra.mxu0 %v6474
        %6491 = vmatprep.subr.mxu0 0.0
        %6492 = vmatpush1.msra.mxu0 %v6479
        %6493 = vmatprep.subr.mxu0 0.0
        %6494 = vmatpush1.msra.mxu0 %v6484
        %6495 = vmatprep.subr.mxu0 0.0
        %6496 = vmatpush1.msra.mxu0 0.0
        %6497 = vmatprep.subr.mxu0 0.0
        %6498 = vmatpush1.msra.mxu0 0.0
        %6499 = vmatprep.subr.mxu0 0.0
        %6500 = vmatpush1.msra.mxu0 0.0
        %6501 = vmatprep.subr.mxu0 0.0
        %6502 = vmatpush1.msra.mxu0 0.0
        %6503 = vmatprep.subr.mxu0 0.0
        %6504 = vmatpush1.msra.mxu0 0.0
        %6505 = vmatprep.subr.mxu0 0.0
        %6506 = vmatpush1.msra.mxu0 0.0
        %6507 = vmatprep.subr.mxu0 0.0
        %6508 = vmatpush1.msra.mxu0 0.0
        %6509 = vmatprep.subr.mxu0 0.0
        %6510 = vmatpush1.msra.mxu0 0.0
        %6511 = vmatprep.subr.mxu0 0.0
        %6512 = vmatpush1.msra.mxu0 0.0
        %6513 = vmatprep.subr.mxu0 0.0
        %6514 = vmatpush1.msra.mxu0 0.0
        %6515 = vmatprep.subr.mxu0 0.0
        %6516 = vmatpush1.msra.mxu0 0.0
        %6517 = vmatprep.subr.mxu0 0.0
        %6518 = vmatpush1.msra.mxu0 0.0
        %6519 = vmatprep.subr.mxu0 0.0
        %6520 = vmatpush1.msra.mxu0 0.0
        %6521 = vmatprep.subr.mxu0 0.0
        %6522 = vmatpush1.msra.mxu0 0.0
        %6523 = vmatprep.subr.mxu0 0.0
        %6524 = vmatpush1.msra.mxu0 0.0
        %6525 = vmatprep.subr.mxu0 0.0
        %6526 = vmatpush1.msra.mxu0 0.0
        %6527 = vmatprep.subr.mxu0 0.0
        %6528 = vmatpush1.msra.mxu0 0.0
        %6529 = vmatprep.subr.mxu0 0.0
        %6530 = vmatpush1.msra.mxu0 0.0
        %6531 = vmatprep.subr.mxu0 0.0
        %6532 = vmatpush1.msra.mxu0 0.0
        %6533 = vmatprep.subr.mxu0 0.0
        %6534 = vmatpush1.msra.mxu0 0.0
        %6535 = vmatprep.subr.mxu0 0.0
        %6536 = vmatpush1.msra.mxu0 0.0
        %6537 = vmatprep.subr.mxu0 0.0
        %6538 = vmatpush1.msra.mxu0 0.0
        %6539 = vmatprep.subr.mxu0 0.0
        %6540 = vmatpush1.msra.mxu0 0.0
        %6541 = vmatprep.subr.mxu0 0.0
        %6542 = vmatpush1.msra.mxu0 0.0
        %6543 = vmatprep.subr.mxu0 0.0
        %6544 = vmatpush1.msra.mxu0 0.0
        %6545 = vmatprep.subr.mxu0 0.0
        %6546 = vmatpush1.msra.mxu0 0.0
        %6547 = vmatprep.subr.mxu0 0.0
        %6548 = vmatpush1.msra.mxu0 0.0
        %6549 = vmatprep.subr.mxu0 0.0
        %6550 = vmatpush1.msra.mxu0 0.0
        %6551 = vmatprep.mubr.f32.mxu0 0.0
        %6552 = vmatmul.mubr.f32.gmra.mrb[0].mxu0 %v2448
        %v6553 = vpop.f32.mrb[0].mxu0
        %v6554 = vadd.f32 0.0, %v6553
        %v6555 = vpop.f32.mrb[0].mxu0
        %6556 = vmatprep.mubr.f32.mxu0 0.0
        %6557 = vmatmul.mubr.f32.gmra.mrb[0].mxu0 %v2451
        %v6558 = vpop.f32.mrb[0].mxu0
        %v6559 = vadd.f32 0.0, %v6558
        %v6560 = vpop.f32.mrb[0].mxu0
        %6561 = vdwg.mxu0
        %vm6562 = vcmp.gt.f32.partialorder %v6554, 0.5
        %vm6563 = vcmp.gt.f32.partialorder %v6559, 0.5
        %v6564 = vsel %vm6562, 1, 0
        %v6565 = vsel %vm6563, 1, 0
        %v6566 = vcvt.s32.f32 %v6564
        %v6567 = vcvt.s32.f32 %v6565
        %6568 = vst [vmem:[#allocation4 + $0x8] sm:$0xff] %v6566
        %6569 = vst [vmem:[#allocation4 + $0x10] sm:$0xff] %v6567
        %v6570 = vld [vmem:[#allocation3 + $0x40] sm:$0x80]
        %v6571 = vld [vmem:[#allocation3 + $0x48] sm:$0x80]
        %v6572 = vld [vmem:[#allocation3 + $0x50] sm:$0xff]
        %v6573 = vld [vmem:[#allocation3 + $0x58] sm:$0xff]
        %v6574 = vld [vmem:[#allocation3 + $0x60] sm:$0xff]
        %v6575 = vld [vmem:[#allocation3 + $0x68] sm:$0xff]
        %v6576 = vld [vmem:[#allocation3 + $0x70] sm:$0xff]
        %v6577 = vld [vmem:[#allocation3 + $0x78] sm:$0xff]
        %v6578 = vld [vmem:[#allocation3 + $0x80] sm:$0x7f]
        %v6579 = vld [vmem:[#allocation3 + $0x88] sm:$0x7f]
        %v6580 = vld [vmem:[#allocation3 + $0x80] sm:$0xff]
        %v6581 = vld [vmem:[#allocation3 + $0x88] sm:$0xff]
        %6582 = vmatprep.subr.mxu0 %v5789
        %6583 = vmatpush1.msra.mxu0 %v5788
        %6584 = vmatprep.subr.mxu0 %v5791
        %6585 = vmatpush1.msra.mxu0 %v5790
        %6586 = vmatprep.subr.mxu0 %v5793
        %6587 = vmatpush1.msra.mxu0 %v5792
        %6588 = vmatprep.subr.mxu0 %v5795
        %6589 = vmatpush1.msra.mxu0 %v5794
        %6590 = vmatprep.subr.mxu0 %v5797
        %6591 = vmatpush1.msra.mxu0 %v5796
        %6592 = vmatprep.subr.mxu0 %v5799
        %6593 = vmatpush1.msra.mxu0 %v5798
        %6594 = vmatprep.subr.mxu0 %v5801
        %6595 = vmatpush1.msra.mxu0 %v5800
        %6596 = vmatprep.subr.mxu0 %v5803
        %6597 = vmatpush1.msra.mxu0 %v5802
        %6598 = vmatprep.subr.mxu0 %v5805
        %6599 = vmatpush1.msra.mxu0 %v5804
        %6600 = vmatprep.subr.mxu0 %v5807
        %6601 = vmatpush1.msra.mxu0 %v5806
        %6602 = vmatprep.subr.mxu0 %v5809
        %6603 = vmatpush1.msra.mxu0 %v5808
        %6604 = vmatprep.subr.mxu0 %v5811
        %6605 = vmatpush1.msra.mxu0 %v5810
        %6606 = vmatprep.subr.mxu0 %v5813
        %6607 = vmatpush1.msra.mxu0 %v5812
        %6608 = vmatprep.subr.mxu0 %v5815
        %6609 = vmatpush1.msra.mxu0 %v5814
        %6610 = vmatprep.subr.mxu0 %v5817
        %6611 = vmatpush1.msra.mxu0 %v5816
        %6612 = vmatprep.subr.mxu0 %v5819
        %6613 = vmatpush1.msra.mxu0 %v5818
        %6614 = vmatprep.subr.mxu0 %v5821
        %6615 = vmatpush1.msra.mxu0 %v5820
        %6616 = vmatprep.subr.mxu0 %v5823
        %6617 = vmatpush1.msra.mxu0 %v5822
        %6618 = vmatprep.subr.mxu0 %v5825
        %6619 = vmatpush1.msra.mxu0 %v5824
        %6620 = vmatprep.subr.mxu0 %v5827
        %6621 = vmatpush1.msra.mxu0 %v5826
        %6622 = vmatprep.subr.mxu0 %v5829
        %6623 = vmatpush1.msra.mxu0 %v5828
        %6624 = vmatprep.subr.mxu0 %v5831
        %6625 = vmatpush1.msra.mxu0 %v5830
        %6626 = vmatprep.subr.mxu0 %v5833
        %6627 = vmatpush1.msra.mxu0 %v5832
        %6628 = vmatprep.subr.mxu0 %v5835
        %6629 = vmatpush1.msra.mxu0 %v5834
        %6630 = vmatprep.subr.mxu0 %v5837
        %6631 = vmatpush1.msra.mxu0 %v5836
        %6632 = vmatprep.subr.mxu0 %v5839
        %6633 = vmatpush1.msra.mxu0 %v5838
        %6634 = vmatprep.subr.mxu0 %v5841
        %6635 = vmatpush1.msra.mxu0 %v5840
        %6636 = vmatprep.subr.mxu0 %v5843
        %6637 = vmatpush1.msra.mxu0 %v5842
        %6638 = vmatprep.subr.mxu0 %v5845
        %6639 = vmatpush1.msra.mxu0 %v5844
        %6640 = vmatprep.subr.mxu0 %v5847
        %6641 = vmatpush1.msra.mxu0 %v5846
        %6642 = vmatprep.subr.mxu0 %v5849
        %6643 = vmatpush1.msra.mxu0 %v5848
        %6644 = vmatprep.subr.mxu0 %v5851
        %6645 = vmatpush1.msra.mxu0 %v5850
        %6646 = vmatprep.mubr.f32.mxu0 %v6573
        %6647 = vmatmul.mubr.f32.gmra.mrb[0].mxu0 %v6572
        %v6648 = vpop.f32.mrb[0].mxu0
        %v6649 = vadd.f32 0.0, %v6648
        %v6650 = vpop.f32.mrb[0].mxu0
        %v6651 = vadd.f32 0.0, %v6650
        %6652 = vmatprep.mubr.f32.mxu0 %v6575
        %6653 = vmatmul.mubr.f32.gmra.mrb[0].mxu0 %v6574
        %v6654 = vpop.f32.mrb[0].mxu0
        %v6655 = vadd.f32 0.0, %v6654
        %v6656 = vpop.f32.mrb[0].mxu0
        %v6657 = vadd.f32 0.0, %v6656
        %6658 = vmatprep.mubr.f32.mxu0 %v6577
        %6659 = vmatmul.mubr.f32.gmra.mrb[0].mxu0 %v6576
        %v6660 = vpop.f32.mrb[0].mxu0
        %v6661 = vadd.f32 0.0, %v6660
        %v6662 = vpop.f32.mrb[0].mxu0
        %v6663 = vadd.f32 0.0, %v6662
        %6664 = vmatprep.mubr.f32.mxu0 %v6581
        %6665 = vmatmul.mubr.f32.gmra.mrb[0].mxu0 %v6580
        %v6666 = vpop.f32.mrb[0].mxu0
        %v6667 = vadd.f32 0.0, %v6666
        %v6668 = vpop.f32.mrb[0].mxu0
        %v6669 = vadd.f32 0.0, %v6668
        %6670 = vdwg.mxu0
        %v6681 = vrot.slane %v6570, 7
        %v6682 = vrot.slane %v6572, 7
        %v6683 = vsel %vm1657, %v6681, %v6682
        %v6684 = vrot.slane %v6571, 7
        %v6685 = vrot.slane %v6573, 7
        %v6686 = vsel %vm1657, %v6684, %v6685
        %v6687 = vrot.slane %v6574, 7
        %v6688 = vsel %vm1657, %v6682, %v6687
        %v6689 = vrot.slane %v6575, 7
        %v6690 = vsel %vm1657, %v6685, %v6689
        %v6691 = vrot.slane %v6576, 7
        %v6692 = vsel %vm1657, %v6687, %v6691
        %v6693 = vrot.slane %v6577, 7
        %v6694 = vsel %vm1657, %v6689, %v6693
        %v6695 = vrot.slane %v6578, 7
        %v6696 = vsel %vm1657, %v6691, %v6695
        %v6697 = vrot.slane %v6579, 7
        %v6698 = vsel %vm1657, %v6693, %v6697
        %6707 = vmatprep.subr.mxu0 %v5724
        %6708 = vmatpush1.msra.mxu0 %v5723
        %6709 = vmatprep.subr.mxu0 %v5726
        %6710 = vmatpush1.msra.mxu0 %v5725
        %6711 = vmatprep.subr.mxu0 %v5728
        %6712 = vmatpush1.msra.mxu0 %v5727
        %6713 = vmatprep.subr.mxu0 %v5730
        %6714 = vmatpush1.msra.mxu0 %v5729
        %6715 = vmatprep.subr.mxu0 %v5732
        %6716 = vmatpush1.msra.mxu0 %v5731
        %6717 = vmatprep.subr.mxu0 %v5734
        %6718 = vmatpush1.msra.mxu0 %v5733
        %6719 = vmatprep.subr.mxu0 %v5736
        %6720 = vmatpush1.msra.mxu0 %v5735
        %6721 = vmatprep.subr.mxu0 %v5738
        %6722 = vmatpush1.msra.mxu0 %v5737
        %6723 = vmatprep.subr.mxu0 %v5740
        %6724 = vmatpush1.msra.mxu0 %v5739
        %6725 = vmatprep.subr.mxu0 %v5742
        %6726 = vmatpush1.msra.mxu0 %v5741
        %6727 = vmatprep.subr.mxu0 %v5744
        %6728 = vmatpush1.msra.mxu0 %v5743
        %6729 = vmatprep.subr.mxu0 %v5746
        %6730 = vmatpush1.msra.mxu0 %v5745
        %6731 = vmatprep.subr.mxu0 %v5748
        %6732 = vmatpush1.msra.mxu0 %v5747
        %6733 = vmatprep.subr.mxu0 %v5750
        %6734 = vmatpush1.msra.mxu0 %v5749
        %6735 = vmatprep.subr.mxu0 %v5752
        %6736 = vmatpush1.msra.mxu0 %v5751
        %6737 = vmatprep.subr.mxu0 %v5754
        %6738 = vmatpush1.msra.mxu0 %v5753
        %6739 = vmatprep.subr.mxu0 %v5756
        %6740 = vmatpush1.msra.mxu0 %v5755
        %6741 = vmatprep.subr.mxu0 %v5758
        %6742 = vmatpush1.msra.mxu0 %v5757
        %6743 = vmatprep.subr.mxu0 %v5760
        %6744 = vmatpush1.msra.mxu0 %v5759
        %6745 = vmatprep.subr.mxu0 %v5762
        %6746 = vmatpush1.msra.mxu0 %v5761
        %6747 = vmatprep.subr.mxu0 %v5764
        %6748 = vmatpush1.msra.mxu0 %v5763
        %6749 = vmatprep.subr.mxu0 %v5766
        %6750 = vmatpush1.msra.mxu0 %v5765
        %6751 = vmatprep.subr.mxu0 %v5768
        %6752 = vmatpush1.msra.mxu0 %v5767
        %6753 = vmatprep.subr.mxu0 %v5770
        %6754 = vmatpush1.msra.mxu0 %v5769
        %6755 = vmatprep.subr.mxu0 %v5772
        %6756 = vmatpush1.msra.mxu0 %v5771
        %6757 = vmatprep.subr.mxu0 %v5774
        %6758 = vmatpush1.msra.mxu0 %v5773
        %6759 = vmatprep.subr.mxu0 %v5776
        %6760 = vmatpush1.msra.mxu0 %v5775
        %6761 = vmatprep.subr.mxu0 %v5778
        %6762 = vmatpush1.msra.mxu0 %v5777
        %6763 = vmatprep.subr.mxu0 %v5780
        %6764 = vmatpush1.msra.mxu0 %v5779
        %6765 = vmatprep.subr.mxu0 %v5782
        %6766 = vmatpush1.msra.mxu0 %v5781
        %6767 = vmatprep.subr.mxu0 %v5784
        %6768 = vmatpush1.msra.mxu0 %v5783
        %6769 = vmatprep.subr.mxu0 %v5786
        %6770 = vmatpush1.msra.mxu0 %v5785
        %6771 = vmatprep.mubr.f32.mxu0 %v6686
        %6772 = vmatmul.mubr.f32.gmra.mrb[0].mxu0 %v6683
        %v6773 = vpop.f32.mrb[0].mxu0
        %v6774 = vadd.f32 %v6649, %v6773
        %v6775 = vpop.f32.mrb[0].mxu0
        %v6776 = vadd.f32 %v6651, %v6775
        %6777 = vmatprep.mubr.f32.mxu0 %v6690
        %6778 = vmatmul.mubr.f32.gmra.mrb[0].mxu0 %v6688
        %v6779 = vpop.f32.mrb[0].mxu0
        %v6780 = vadd.f32 %v6655, %v6779
        %v6781 = vpop.f32.mrb[0].mxu0
        %v6782 = vadd.f32 %v6657, %v6781
        %6783 = vmatprep.mubr.f32.mxu0 %v6694
        %6784 = vmatmul.mubr.f32.gmra.mrb[0].mxu0 %v6692
        %v6785 = vpop.f32.mrb[0].mxu0
        %v6786 = vadd.f32 %v6661, %v6785
        %v6787 = vpop.f32.mrb[0].mxu0
        %v6788 = vadd.f32 %v6663, %v6787
        %6789 = vmatprep.mubr.f32.mxu0 %v6698
        %6790 = vmatmul.mubr.f32.gmra.mrb[0].mxu0 %v6696
        %v6791 = vpop.f32.mrb[0].mxu0
        %v6792 = vadd.f32 %v6667, %v6791
        %v6793 = vpop.f32.mrb[0].mxu0
        %v6794 = vadd.f32 %v6669, %v6793
        %6795 = vdwg.mxu0
        %v6796 = vld [vmem:[#allocation3 + $0x50] sm:$0xfe]
        %v6797 = vld [vmem:[#allocation3 + $0x58] sm:$0xfe]
        %v6798 = vld [vmem:[#allocation3 + $0x60] sm:$0xff]
        %v6799 = vld [vmem:[#allocation3 + $0x68] sm:$0xff]
        %v6800 = vld [vmem:[#allocation3 + $0x70] sm:$0xff]
        %v6801 = vld [vmem:[#allocation3 + $0x78] sm:$0xff]
        %v6802 = vld [vmem:[#allocation3 + $0x80] sm:$0xff]
        %v6803 = vld [vmem:[#allocation3 + $0x88] sm:$0xff]
        %v6804 = vld [vmem:[#allocation3 + $0x90] sm:$0x1]
        %v6805 = vld [vmem:[#allocation3 + $0x98] sm:$0x1]
        %v6816 = vrot.slane %v6796, 1
        %v6817 = vrot.slane %v6798, 1
        %v6818 = vsel %vm1882, %v6816, %v6817
        %v6819 = vrot.slane %v6797, 1
        %v6820 = vrot.slane %v6799, 1
        %v6821 = vsel %vm1882, %v6819, %v6820
        %v6822 = vrot.slane %v6800, 1
        %v6823 = vsel %vm1882, %v6817, %v6822
        %v6824 = vrot.slane %v6801, 1
        %v6825 = vsel %vm1882, %v6820, %v6824
        %v6826 = vrot.slane %v6802, 1
        %v6827 = vsel %vm1882, %v6822, %v6826
        %v6828 = vrot.slane %v6803, 1
        %v6829 = vsel %vm1882, %v6824, %v6828
        %v6830 = vrot.slane %v6804, 1
        %v6831 = vsel %vm1882, %v6826, %v6830
        %v6832 = vrot.slane %v6805, 1
        %v6833 = vsel %vm1882, %v6828, %v6832
        %6842 = vmatprep.subr.mxu0 %v5854
        %6843 = vmatpush1.msra.mxu0 %v5853
        %6844 = vmatprep.subr.mxu0 %v5856
        %6845 = vmatpush1.msra.mxu0 %v5855
        %6846 = vmatprep.subr.mxu0 %v5858
        %6847 = vmatpush1.msra.mxu0 %v5857
        %6848 = vmatprep.subr.mxu0 %v5860
        %6849 = vmatpush1.msra.mxu0 %v5859
        %6850 = vmatprep.subr.mxu0 %v5862
        %6851 = vmatpush1.msra.mxu0 %v5861
        %6852 = vmatprep.subr.mxu0 %v5864
        %6853 = vmatpush1.msra.mxu0 %v5863
        %6854 = vmatprep.subr.mxu0 %v5866
        %6855 = vmatpush1.msra.mxu0 %v5865
        %6856 = vmatprep.subr.mxu0 %v5868
        %6857 = vmatpush1.msra.mxu0 %v5867
        %6858 = vmatprep.subr.mxu0 %v5870
        %6859 = vmatpush1.msra.mxu0 %v5869
        %6860 = vmatprep.subr.mxu0 %v5872
        %6861 = vmatpush1.msra.mxu0 %v5871
        %6862 = vmatprep.subr.mxu0 %v5874
        %6863 = vmatpush1.msra.mxu0 %v5873
        %6864 = vmatprep.subr.mxu0 %v5876
        %6865 = vmatpush1.msra.mxu0 %v5875
        %6866 = vmatprep.subr.mxu0 %v5878
        %6867 = vmatpush1.msra.mxu0 %v5877
        %6868 = vmatprep.subr.mxu0 %v5880
        %6869 = vmatpush1.msra.mxu0 %v5879
        %6870 = vmatprep.subr.mxu0 %v5882
        %6871 = vmatpush1.msra.mxu0 %v5881
        %6872 = vmatprep.subr.mxu0 %v5884
        %6873 = vmatpush1.msra.mxu0 %v5883
        %6874 = vmatprep.subr.mxu0 %v5886
        %6875 = vmatpush1.msra.mxu0 %v5885
        %6876 = vmatprep.subr.mxu0 %v5888
        %6877 = vmatpush1.msra.mxu0 %v5887
        %6878 = vmatprep.subr.mxu0 %v5890
        %6879 = vmatpush1.msra.mxu0 %v5889
        %6880 = vmatprep.subr.mxu0 %v5892
        %6881 = vmatpush1.msra.mxu0 %v5891
        %6882 = vmatprep.subr.mxu0 %v5894
        %6883 = vmatpush1.msra.mxu0 %v5893
        %6884 = vmatprep.subr.mxu0 %v5896
        %6885 = vmatpush1.msra.mxu0 %v5895
        %6886 = vmatprep.subr.mxu0 %v5898
        %6887 = vmatpush1.msra.mxu0 %v5897
        %6888 = vmatprep.subr.mxu0 %v5900
        %6889 = vmatpush1.msra.mxu0 %v5899
        %6890 = vmatprep.subr.mxu0 %v5902
        %6891 = vmatpush1.msra.mxu0 %v5901
        %6892 = vmatprep.subr.mxu0 %v5904
        %6893 = vmatpush1.msra.mxu0 %v5903
        %6894 = vmatprep.subr.mxu0 %v5906
        %6895 = vmatpush1.msra.mxu0 %v5905
        %6896 = vmatprep.subr.mxu0 %v5908
        %6897 = vmatpush1.msra.mxu0 %v5907
        %6898 = vmatprep.subr.mxu0 %v5910
        %6899 = vmatpush1.msra.mxu0 %v5909
        %6900 = vmatprep.subr.mxu0 %v5912
        %6901 = vmatpush1.msra.mxu0 %v5911
        %6902 = vmatprep.subr.mxu0 %v5914
        %6903 = vmatpush1.msra.mxu0 %v5913
        %6904 = vmatprep.subr.mxu0 %v5916
        %6905 = vmatpush1.msra.mxu0 %v5915
        %6906 = vmatprep.mubr.f32.mxu0 %v6821
        %6907 = vmatmul.mubr.f32.gmra.mrb[0].mxu0 %v6818
        %v6908 = vpop.f32.mrb[0].mxu0
        %v6909 = vadd.f32 0.0, %v6908
        %v6910 = vpop.f32.mrb[0].mxu0
        %v6911 = vadd.f32 0.0, %v6910
        %6912 = vmatprep.mubr.f32.mxu0 %v6825
        %6913 = vmatmul.mubr.f32.gmra.mrb[0].mxu0 %v6823
        %v6914 = vpop.f32.mrb[0].mxu0
        %v6915 = vadd.f32 0.0, %v6914
        %v6916 = vpop.f32.mrb[0].mxu0
        %v6917 = vadd.f32 0.0, %v6916
        %6918 = vmatprep.mubr.f32.mxu0 %v6829
        %6919 = vmatmul.mubr.f32.gmra.mrb[0].mxu0 %v6827
        %v6920 = vpop.f32.mrb[0].mxu0
        %v6921 = vadd.f32 0.0, %v6920
        %v6922 = vpop.f32.mrb[0].mxu0
        %v6923 = vadd.f32 0.0, %v6922
        %6924 = vmatprep.mubr.f32.mxu0 %v6833
        %6925 = vmatmul.mubr.f32.gmra.mrb[0].mxu0 %v6831
        %v6926 = vpop.f32.mrb[0].mxu0
        %v6927 = vadd.f32 0.0, %v6926
        %v6928 = vpop.f32.mrb[0].mxu0
        %v6929 = vadd.f32 0.0, %v6928
        %6930 = vdwg.mxu0
        %v6931 = vadd.f32 %v6774, %v6909
        %v6932 = vadd.f32 %v6776, %v6911
        %v6933 = vadd.f32 %v6780, %v6915
        %v6934 = vadd.f32 %v6782, %v6917
        %v6935 = vadd.f32 %v6786, %v6921
        %v6936 = vadd.f32 %v6788, %v6923
        %v6937 = vadd.f32 %v6792, %v6927
        %v6938 = vadd.f32 %v6794, %v6929
        %v6939 = vadd.f32 %v6931, %v6323
        %v6940 = vadd.f32 %v6932, %v6327
        %v6941 = vadd.f32 %v6933, %v6323
        %v6942 = vadd.f32 %v6934, %v6327
        %v6943 = vadd.f32 %v6935, %v6323
        %v6944 = vadd.f32 %v6936, %v6327
        %v6945 = vadd.f32 %v6937, %v6323
        %v6946 = vadd.f32 %v6938, %v6327
        %v6947 = vld [vmem:[#allocation8 + $0x40] sm:$0xff]
        %v6948 = vld [vmem:[#allocation8 + $0x48] sm:$0xff]
        %v6949 = vld [vmem:[#allocation8 + $0x50] sm:$0xff]
        %v6950 = vld [vmem:[#allocation8 + $0x58] sm:$0xff]
        %v6951 = vld [vmem:[#allocation8 + $0x60] sm:$0xff]
        %v6952 = vld [vmem:[#allocation8 + $0x68] sm:$0xff]
        %v6953 = vld [vmem:[#allocation8 + $0x70] sm:$0xff]
        %v6954 = vld [vmem:[#allocation8 + $0x78] sm:$0xff]
        %v6955 = vadd.f32 %v6947, %v6939
        %v6956 = vadd.f32 %v6948, %v6940
        %v6957 = vadd.f32 %v6949, %v6941
        %v6958 = vadd.f32 %v6950, %v6942
        %v6959 = vadd.f32 %v6951, %v6943
        %v6960 = vadd.f32 %v6952, %v6944
        %v6961 = vadd.f32 %v6953, %v6945
        %v6962 = vadd.f32 %v6954, %v6946
        %v6963 = vmul.f32 %v6955, 0.5
        %v6964 = vmul.f32 %v6956, 0.5
        %v6965 = vmul.f32 %v6957, 0.5
        %v6966 = vmul.f32 %v6958, 0.5
        %v6967 = vmul.f32 %v6959, 0.5
        %v6968 = vmul.f32 %v6960, 0.5
        %v6969 = vmul.f32 %v6961, 0.5
        %v6970 = vmul.f32 %v6962, 0.5
        %vm6971 = vcmp.ge.f32.partialorder %v6963, 1.0
        %vm6972 = vcmp.ge.f32.partialorder %v6964, 1.0
        %vm6973 = vcmp.ge.f32.partialorder %v6965, 1.0
        %vm6974 = vcmp.ge.f32.partialorder %v6966, 1.0
        %vm6975 = vcmp.ge.f32.partialorder %v6967, 1.0
        %vm6976 = vcmp.ge.f32.partialorder %v6968, 1.0
        %vm6977 = vcmp.ge.f32.partialorder %v6969, 1.0
        %vm6978 = vcmp.ge.f32.partialorder %v6970, 1.0
        %v6979 = vsel %vm6971, 0.0, %v6963
        %v6980 = vsel %vm6972, 0.0, %v6964
        %v6981 = vsel %vm6973, 0.0, %v6965
        %v6982 = vsel %vm6974, 0.0, %v6966
        %v6983 = vsel %vm6975, 0.0, %v6967
        %v6984 = vsel %vm6976, 0.0, %v6968
        %v6985 = vsel %vm6977, 0.0, %v6969
        %v6986 = vsel %vm6978, 0.0, %v6970
        %6987 = vst [vmem:[#allocation8 + $0x40] sm:$0xff] %v6979
        %6988 = vst [vmem:[#allocation8 + $0x48] sm:$0xff] %v6980
        %6989 = vst [vmem:[#allocation8 + $0x50] sm:$0xff] %v6981
        %6990 = vst [vmem:[#allocation8 + $0x58] sm:$0xff] %v6982
        %6991 = vst [vmem:[#allocation8 + $0x60] sm:$0xff] %v6983
        %6992 = vst [vmem:[#allocation8 + $0x68] sm:$0xff] %v6984
        %6993 = vst [vmem:[#allocation8 + $0x70] sm:$0xff] %v6985
        %6994 = vst [vmem:[#allocation8 + $0x78] sm:$0xff] %v6986
        %v6995 = vsel %vm6971, 1, 0
        %v6996 = vsel %vm6972, 1, 0
        %v6997 = vsel %vm6973, 1, 0
        %v6998 = vsel %vm6974, 1, 0
        %v6999 = vsel %vm6975, 1, 0
        %v7000 = vsel %vm6976, 1, 0
        %v7001 = vsel %vm6977, 1, 0
        %v7002 = vsel %vm6978, 1, 0
        %v7003 = vcvt.s32.f32 %v6995
        %v7004 = vcvt.s32.f32 %v6996
        %v7005 = vcvt.s32.f32 %v6997
        %v7006 = vcvt.s32.f32 %v6998
        %v7007 = vcvt.s32.f32 %v6999
        %v7008 = vcvt.s32.f32 %v7000
        %v7009 = vcvt.s32.f32 %v7001
        %v7010 = vcvt.s32.f32 %v7002
        %7011 = vmatprep.subr.mxu0 0.0
        %7012 = vmatpush1.msra.mxu0 %v5918
        %7013 = vmatprep.subr.mxu0 0.0
        %7014 = vmatpush1.msra.mxu0 %v5919
        %7015 = vmatprep.subr.mxu0 0.0
        %7016 = vmatpush1.msra.mxu0 %v5920
        %7017 = vmatprep.subr.mxu0 0.0
        %7018 = vmatpush1.msra.mxu0 %v5921
        %7019 = vmatprep.subr.mxu0 0.0
        %7020 = vmatpush1.msra.mxu0 %v5922
        %7021 = vmatprep.subr.mxu0 0.0
        %7022 = vmatpush1.msra.mxu0 %v5923
        %7023 = vmatprep.subr.mxu0 0.0
        %7024 = vmatpush1.msra.mxu0 %v5924
        %7025 = vmatprep.subr.mxu0 0.0
        %7026 = vmatpush1.msra.mxu0 %v5925
        %7027 = vmatprep.subr.mxu0 0.0
        %7028 = vmatpush1.msra.mxu0 %v5926
        %7029 = vmatprep.subr.mxu0 0.0
        %7030 = vmatpush1.msra.mxu0 %v5927
        %7031 = vmatprep.subr.mxu0 0.0
        %7032 = vmatpush1.msra.mxu0 %v5928
        %7033 = vmatprep.subr.mxu0 0.0
        %7034 = vmatpush1.msra.mxu0 %v5929
        %7035 = vmatprep.subr.mxu0 0.0
        %7036 = vmatpush1.msra.mxu0 %v5930
        %7037 = vmatprep.subr.mxu0 0.0
        %7038 = vmatpush1.msra.mxu0 %v5931
        %7039 = vmatprep.subr.mxu0 0.0
        %7040 = vmatpush1.msra.mxu0 %v5932
        %7041 = vmatprep.subr.mxu0 0.0
        %7042 = vmatpush1.msra.mxu0 %v5933
        %7043 = vmatprep.subr.mxu0 0.0
        %7044 = vmatpush1.msra.mxu0 %v5934
        %7045 = vmatprep.subr.mxu0 0.0
        %7046 = vmatpush1.msra.mxu0 %v5935
        %7047 = vmatprep.subr.mxu0 0.0
        %7048 = vmatpush1.msra.mxu0 %v5936
        %7049 = vmatprep.subr.mxu0 0.0
        %7050 = vmatpush1.msra.mxu0 %v5937
        %7051 = vmatprep.subr.mxu0 0.0
        %7052 = vmatpush1.msra.mxu0 %v5938
        %7053 = vmatprep.subr.mxu0 0.0
        %7054 = vmatpush1.msra.mxu0 %v5939
        %7055 = vmatprep.subr.mxu0 0.0
        %7056 = vmatpush1.msra.mxu0 %v5940
        %7057 = vmatprep.subr.mxu0 0.0
        %7058 = vmatpush1.msra.mxu0 %v5941
        %7059 = vmatprep.subr.mxu0 0.0
        %7060 = vmatpush1.msra.mxu0 %v5942
        %7061 = vmatprep.subr.mxu0 0.0
        %7062 = vmatpush1.msra.mxu0 %v5943
        %7063 = vmatprep.subr.mxu0 0.0
        %7064 = vmatpush1.msra.mxu0 %v5944
        %7065 = vmatprep.subr.mxu0 0.0
        %7066 = vmatpush1.msra.mxu0 %v5945
        %7067 = vmatprep.subr.mxu0 0.0
        %7068 = vmatpush1.msra.mxu0 %v5946
        %7069 = vmatprep.subr.mxu0 0.0
        %7070 = vmatpush1.msra.mxu0 %v5947
        %7071 = vmatprep.subr.mxu0 0.0
        %7072 = vmatpush1.msra.mxu0 %v5948
        %7073 = vmatprep.subr.mxu0 0.0
        %7074 = vmatpush1.msra.mxu0 %v5949
        %7075 = vmatprep.mubr.f32.mxu0 %v7004
        %7076 = vmatmul.mubr.f32.gmra.mrb[0].mxu0 %v7003
        %v7077 = vpop.f32.mrb[0].mxu0
        %v7078 = vadd.f32 0.0, %v7077
        %v7079 = vpop.f32.mrb[0].mxu0
        %7080 = vmatprep.mubr.f32.mxu0 %v7006
        %7081 = vmatmul.mubr.f32.gmra.mrb[0].mxu0 %v7005
        %v7082 = vpop.f32.mrb[0].mxu0
        %v7083 = vadd.f32 0.0, %v7082
        %v7084 = vpop.f32.mrb[0].mxu0
        %7085 = vmatprep.mubr.f32.mxu0 %v7008
        %7086 = vmatmul.mubr.f32.gmra.mrb[0].mxu0 %v7007
        %v7087 = vpop.f32.mrb[0].mxu0
        %v7088 = vadd.f32 0.0, %v7087
        %v7089 = vpop.f32.mrb[0].mxu0
        %7090 = vmatprep.mubr.f32.mxu0 %v7010
        %7091 = vmatmul.mubr.f32.gmra.mrb[0].mxu0 %v7009
        %v7092 = vpop.f32.mrb[0].mxu0
        %v7093 = vadd.f32 0.0, %v7092
        %v7094 = vpop.f32.mrb[0].mxu0
        %7095 = vdwg.mxu0
        %7096 = vmatprep.subr.mxu0 0.0
        %7097 = vmatpush1.msra.mxu0 %v7078
        %7098 = vmatprep.subr.mxu0 0.0
        %7099 = vmatpush1.msra.mxu0 %v7083
        %7100 = vmatprep.subr.mxu0 0.0
        %7101 = vmatpush1.msra.mxu0 %v7088
        %7102 = vmatprep.subr.mxu0 0.0
        %7103 = vmatpush1.msra.mxu0 %v7093
        %7104 = vmatprep.subr.mxu0 0.0
        %7105 = vmatpush1.msra.mxu0 0.0
        %7106 = vmatprep.subr.mxu0 0.0
        %7107 = vmatpush1.msra.mxu0 0.0
        %7108 = vmatprep.subr.mxu0 0.0
        %7109 = vmatpush1.msra.mxu0 0.0
        %7110 = vmatprep.subr.mxu0 0.0
        %7111 = vmatpush1.msra.mxu0 0.0
        %7112 = vmatprep.subr.mxu0 0.0
        %7113 = vmatpush1.msra.mxu0 0.0
        %7114 = vmatprep.subr.mxu0 0.0
        %7115 = vmatpush1.msra.mxu0 0.0
        %7116 = vmatprep.subr.mxu0 0.0
        %7117 = vmatpush1.msra.mxu0 0.0
        %7118 = vmatprep.subr.mxu0 0.0
        %7119 = vmatpush1.msra.mxu0 0.0
        %7120 = vmatprep.subr.mxu0 0.0
        %7121 = vmatpush1.msra.mxu0 0.0
        %7122 = vmatprep.subr.mxu0 0.0
        %7123 = vmatpush1.msra.mxu0 0.0
        %7124 = vmatprep.subr.mxu0 0.0
        %7125 = vmatpush1.msra.mxu0 0.0
        %7126 = vmatprep.subr.mxu0 0.0
        %7127 = vmatpush1.msra.mxu0 0.0
        %7128 = vmatprep.subr.mxu0 0.0
        %7129 = vmatpush1.msra.mxu0 0.0
        %7130 = vmatprep.subr.mxu0 0.0
        %7131 = vmatpush1.msra.mxu0 0.0
        %7132 = vmatprep.subr.mxu0 0.0
        %7133 = vmatpush1.msra.mxu0 0.0
        %7134 = vmatprep.subr.mxu0 0.0
        %7135 = vmatpush1.msra.mxu0 0.0
        %7136 = vmatprep.subr.mxu0 0.0
        %7137 = vmatpush1.msra.mxu0 0.0
        %7138 = vmatprep.subr.mxu0 0.0
        %7139 = vmatpush1.msra.mxu0 0.0
        %7140 = vmatprep.subr.mxu0 0.0
        %7141 = vmatpush1.msra.mxu0 0.0
        %7142 = vmatprep.subr.mxu0 0.0
        %7143 = vmatpush1.msra.mxu0 0.0
        %7144 = vmatprep.subr.mxu0 0.0
        %7145 = vmatpush1.msra.mxu0 0.0
        %7146 = vmatprep.subr.mxu0 0.0
        %7147 = vmatpush1.msra.mxu0 0.0
        %7148 = vmatprep.subr.mxu0 0.0
        %7149 = vmatpush1.msra.mxu0 0.0
        %7150 = vmatprep.subr.mxu0 0.0
        %7151 = vmatpush1.msra.mxu0 0.0
        %7152 = vmatprep.subr.mxu0 0.0
        %7153 = vmatpush1.msra.mxu0 0.0
        %7154 = vmatprep.subr.mxu0 0.0
        %7155 = vmatpush1.msra.mxu0 0.0
        %7156 = vmatprep.subr.mxu0 0.0
        %7157 = vmatpush1.msra.mxu0 0.0
        %7158 = vmatprep.subr.mxu0 0.0
        %7159 = vmatpush1.msra.mxu0 0.0
        %7160 = vmatprep.mubr.f32.mxu0 0.0
        %7161 = vmatmul.mubr.f32.gmra.mrb[0].mxu0 %v2448
        %v7162 = vpop.f32.mrb[0].mxu0
        %v7163 = vadd.f32 0.0, %v7162
        %v7164 = vpop.f32.mrb[0].mxu0
        %7165 = vmatprep.mubr.f32.mxu0 0.0
        %7166 = vmatmul.mubr.f32.gmra.mrb[0].mxu0 %v2451
        %v7167 = vpop.f32.mrb[0].mxu0
        %v7168 = vadd.f32 0.0, %v7167
        %v7169 = vpop.f32.mrb[0].mxu0
        %7170 = vdwg.mxu0
        %vm7171 = vcmp.gt.f32.partialorder %v7163, 0.5
        %vm7172 = vcmp.gt.f32.partialorder %v7168, 0.5
        %v7173 = vsel %vm7171, 1, 0
        %v7174 = vsel %vm7172, 1, 0
        %v7175 = vcvt.s32.f32 %v7173
        %v7176 = vcvt.s32.f32 %v7174
        %7177 = vst [vmem:[#allocation4 + $0x18] sm:$0xff] %v7175
        %7178 = vst [vmem:[#allocation4 + $0x20] sm:$0xff] %v7176
        %v7179 = vld [vmem:[%s3] sm:$0xff]
        %v7180 = vld [vmem:[%s3 + $0x8] sm:$0xff]
        %v7181 = vld [vmem:[%s3 + $0x10] sm:$0xff]
        %v7182 = vld [vmem:[%s3 + $0x18] sm:$0xff]
        %v7183 = vld [vmem:[%s3 + $0x20] sm:$0xff]
        %v7184 = vld [vmem:[%s3 + $0x28] sm:$0xff]
        %v7185 = vld [vmem:[%s3 + $0x30] sm:$0xff]
        %v7186 = vld [vmem:[%s3 + $0x38] sm:$0xff]
        %v7187 = vld [vmem:[%s3 + $0x40] sm:$0xff]
        %v7188 = vld [vmem:[%s3 + $0x48] sm:$0xff]
        %v7189 = vld [vmem:[%s3 + $0x50] sm:$0xff]
        %v7190 = vld [vmem:[%s3 + $0x58] sm:$0xff]
        %v7191 = vld [vmem:[%s3 + $0x60] sm:$0xff]
        %v7192 = vld [vmem:[%s3 + $0x68] sm:$0xff]
        %v7193 = vld [vmem:[%s3 + $0x70] sm:$0xff]
        %v7194 = vld [vmem:[%s3 + $0x78] sm:$0xff]
        %s7195 = scalar_lea.vmem %s3, 128
        %v7196 = vld [vmem:[%s7195] sm:$0xff]
        %v7197 = vld [vmem:[%s7195 + $0x8] sm:$0xff]
        %v7198 = vld [vmem:[%s7195 + $0x10] sm:$0xff]
        %v7199 = vld [vmem:[%s7195 + $0x18] sm:$0xff]
        %v7200 = vld [vmem:[%s7195 + $0x20] sm:$0xff]
        %v7201 = vld [vmem:[%s7195 + $0x28] sm:$0xff]
        %v7202 = vld [vmem:[%s7195 + $0x30] sm:$0xff]
        %v7203 = vld [vmem:[%s7195 + $0x38] sm:$0xff]
        %v7204 = vld [vmem:[%s7195 + $0x40] sm:$0xff]
        %v7205 = vld [vmem:[%s7195 + $0x48] sm:$0xff]
        %v7206 = vld [vmem:[%s7195 + $0x50] sm:$0xff]
        %v7207 = vld [vmem:[%s7195 + $0x58] sm:$0xff]
        %v7208 = vld [vmem:[%s7195 + $0x60] sm:$0xff]
        %v7209 = vld [vmem:[%s7195 + $0x68] sm:$0xff]
        %v7210 = vld [vmem:[%s7195 + $0x70] sm:$0xff]
        %v7211 = vld [vmem:[%s7195 + $0x78] sm:$0xff]
        %s7212 = scalar_lea.vmem %s3, 256
        %v7213 = vld [vmem:[%s7212] sm:$0xff]
        %v7214 = vld [vmem:[%s7212 + $0x8] sm:$0xff]
        %v7215 = vld [vmem:[%s7212 + $0x10] sm:$0xff]
        %v7216 = vld [vmem:[%s7212 + $0x18] sm:$0xff]
        %v7217 = vld [vmem:[%s7212 + $0x20] sm:$0xff]
        %v7218 = vld [vmem:[%s7212 + $0x28] sm:$0xff]
        %v7219 = vld [vmem:[%s7212 + $0x30] sm:$0xff]
        %v7220 = vld [vmem:[%s7212 + $0x38] sm:$0xff]
        %v7221 = vld [vmem:[%s7212 + $0x40] sm:$0xff]
        %v7222 = vld [vmem:[%s7212 + $0x48] sm:$0xff]
        %v7223 = vld [vmem:[%s7212 + $0x50] sm:$0xff]
        %v7224 = vld [vmem:[%s7212 + $0x58] sm:$0xff]
        %v7225 = vld [vmem:[%s7212 + $0x60] sm:$0xff]
        %v7226 = vld [vmem:[%s7212 + $0x68] sm:$0xff]
        %v7227 = vld [vmem:[%s7212 + $0x70] sm:$0xff]
        %v7228 = vld [vmem:[%s7212 + $0x78] sm:$0xff]
        %v7229 = vld [vmem:[%s8] sm:$0x1]
        %v7230 = vld [vmem:[%s13] sm:$0xff]
        %v7231 = vld [vmem:[%s13 + $0x8] sm:$0xff]
        %v7232 = vld [vmem:[%s13 + $0x10] sm:$0xff]
        %v7233 = vld [vmem:[%s13 + $0x18] sm:$0xff]
        %v7234 = vld [vmem:[%s13 + $0x20] sm:$0xff]
        %v7235 = vld [vmem:[%s13 + $0x28] sm:$0xff]
        %v7236 = vld [vmem:[%s13 + $0x30] sm:$0xff]
        %v7237 = vld [vmem:[%s13 + $0x38] sm:$0xff]
        %v7238 = vld [vmem:[%s13 + $0x40] sm:$0xff]
        %v7239 = vld [vmem:[%s13 + $0x48] sm:$0xff]
        %v7240 = vld [vmem:[%s13 + $0x50] sm:$0xff]
        %v7241 = vld [vmem:[%s13 + $0x58] sm:$0xff]
        %v7242 = vld [vmem:[%s13 + $0x60] sm:$0xff]
        %v7243 = vld [vmem:[%s13 + $0x68] sm:$0xff]
        %v7244 = vld [vmem:[%s13 + $0x70] sm:$0xff]
        %v7245 = vld [vmem:[%s13 + $0x78] sm:$0xff]
        %v7246 = vld [vmem:[#allocation4 + $0x7] sm:$0xff]
        %v7247 = vld [vmem:[#allocation4 + $0xf] sm:$0xff]
        %v7248 = vld [vmem:[#allocation4 + $0x17] sm:$0xff]
        %v7249 = vld [vmem:[#allocation4 + $0x1f] sm:$0xff]
        %v7250 = vld [vmem:[#allocation4 + $0x8] sm:$0xff]
        %v7251 = vld [vmem:[#allocation4 + $0x10] sm:$0xff]
        %v7252 = vld [vmem:[#allocation4 + $0x18] sm:$0xff]
        %v7253 = vld [vmem:[#allocation4 + $0x20] sm:$0xff]
        %7254 = vmatprep.subr.mxu0 0.0
        %7255 = vmatpush1.msra.mxu0 %v7196
        %7256 = vmatprep.subr.mxu0 0.0
        %7257 = vmatpush1.msra.mxu0 %v7197
        %7258 = vmatprep.subr.mxu0 0.0
        %7259 = vmatpush1.msra.mxu0 %v7198
        %7260 = vmatprep.subr.mxu0 0.0
        %7261 = vmatpush1.msra.mxu0 %v7199
        %7262 = vmatprep.subr.mxu0 0.0
        %7263 = vmatpush1.msra.mxu0 %v7200
        %7264 = vmatprep.subr.mxu0 0.0
        %7265 = vmatpush1.msra.mxu0 %v7201
        %7266 = vmatprep.subr.mxu0 0.0
        %7267 = vmatpush1.msra.mxu0 %v7202
        %7268 = vmatprep.subr.mxu0 0.0
        %7269 = vmatpush1.msra.mxu0 %v7203
        %7270 = vmatprep.subr.mxu0 0.0
        %7271 = vmatpush1.msra.mxu0 %v7204
        %7272 = vmatprep.subr.mxu0 0.0
        %7273 = vmatpush1.msra.mxu0 %v7205
        %7274 = vmatprep.subr.mxu0 0.0
        %7275 = vmatpush1.msra.mxu0 %v7206
        %7276 = vmatprep.subr.mxu0 0.0
        %7277 = vmatpush1.msra.mxu0 %v7207
        %7278 = vmatprep.subr.mxu0 0.0
        %7279 = vmatpush1.msra.mxu0 %v7208
        %7280 = vmatprep.subr.mxu0 0.0
        %7281 = vmatpush1.msra.mxu0 %v7209
        %7282 = vmatprep.subr.mxu0 0.0
        %7283 = vmatpush1.msra.mxu0 %v7210
        %7284 = vmatprep.subr.mxu0 0.0
        %7285 = vmatpush1.msra.mxu0 %v7211
        %7286 = vmatprep.subr.mxu0 0.0
        %7287 = vmatpush1.msra.mxu0 0.0
        %7288 = vmatprep.subr.mxu0 0.0
        %7289 = vmatpush1.msra.mxu0 0.0
        %7290 = vmatprep.subr.mxu0 0.0
        %7291 = vmatpush1.msra.mxu0 0.0
        %7292 = vmatprep.subr.mxu0 0.0
        %7293 = vmatpush1.msra.mxu0 0.0
        %7294 = vmatprep.subr.mxu0 0.0
        %7295 = vmatpush1.msra.mxu0 0.0
        %7296 = vmatprep.subr.mxu0 0.0
        %7297 = vmatpush1.msra.mxu0 0.0
        %7298 = vmatprep.subr.mxu0 0.0
        %7299 = vmatpush1.msra.mxu0 0.0
        %7300 = vmatprep.subr.mxu0 0.0
        %7301 = vmatpush1.msra.mxu0 0.0
        %7302 = vmatprep.subr.mxu0 0.0
        %7303 = vmatpush1.msra.mxu0 0.0
        %7304 = vmatprep.subr.mxu0 0.0
        %7305 = vmatpush1.msra.mxu0 0.0
        %7306 = vmatprep.subr.mxu0 0.0
        %7307 = vmatpush1.msra.mxu0 0.0
        %7308 = vmatprep.subr.mxu0 0.0
        %7309 = vmatpush1.msra.mxu0 0.0
        %7310 = vmatprep.subr.mxu0 0.0
        %7311 = vmatpush1.msra.mxu0 0.0
        %7312 = vmatprep.subr.mxu0 0.0
        %7313 = vmatpush1.msra.mxu0 0.0
        %7314 = vmatprep.subr.mxu0 0.0
        %7315 = vmatpush1.msra.mxu0 0.0
        %7316 = vmatprep.subr.mxu0 0.0
        %7317 = vmatpush1.msra.mxu0 0.0
        %7318 = vmatprep.mubr.f32.mxu0 0.0
        %7319 = vmatmul.mubr.f32.gmra.mrb[0].mxu0 %v7250
        %v7320 = vpop.f32.mrb[0].mxu0
        %v7321 = vadd.f32 0.0, %v7320
        %v7322 = vpop.f32.mrb[0].mxu0
        %7323 = vmatprep.mubr.f32.mxu0 0.0
        %7324 = vmatmul.mubr.f32.gmra.mrb[0].mxu0 %v7251
        %v7325 = vpop.f32.mrb[0].mxu0
        %v7326 = vadd.f32 0.0, %v7325
        %v7327 = vpop.f32.mrb[0].mxu0
        %7328 = vmatprep.mubr.f32.mxu0 0.0
        %7329 = vmatmul.mubr.f32.gmra.mrb[0].mxu0 %v7252
        %v7330 = vpop.f32.mrb[0].mxu0
        %v7331 = vadd.f32 0.0, %v7330
        %v7332 = vpop.f32.mrb[0].mxu0
        %7333 = vmatprep.mubr.f32.mxu0 0.0
        %7334 = vmatmul.mubr.f32.gmra.mrb[0].mxu0 %v7253
        %v7335 = vpop.f32.mrb[0].mxu0
        %v7336 = vadd.f32 0.0, %v7335
        %v7337 = vpop.f32.mrb[0].mxu0
        %7338 = vdwg.mxu0
        %7339 = vmatprep.subr.mxu0 0.0
        %7340 = vmatpush1.msra.mxu0 %v7179
        %7341 = vmatprep.subr.mxu0 0.0
        %7342 = vmatpush1.msra.mxu0 %v7180
        %7343 = vmatprep.subr.mxu0 0.0
        %7344 = vmatpush1.msra.mxu0 %v7181
        %7345 = vmatprep.subr.mxu0 0.0
        %7346 = vmatpush1.msra.mxu0 %v7182
        %7347 = vmatprep.subr.mxu0 0.0
        %7348 = vmatpush1.msra.mxu0 %v7183
        %7349 = vmatprep.subr.mxu0 0.0
        %7350 = vmatpush1.msra.mxu0 %v7184
        %7351 = vmatprep.subr.mxu0 0.0
        %7352 = vmatpush1.msra.mxu0 %v7185
        %7353 = vmatprep.subr.mxu0 0.0
        %7354 = vmatpush1.msra.mxu0 %v7186
        %7355 = vmatprep.subr.mxu0 0.0
        %7356 = vmatpush1.msra.mxu0 %v7187
        %7357 = vmatprep.subr.mxu0 0.0
        %7358 = vmatpush1.msra.mxu0 %v7188
        %7359 = vmatprep.subr.mxu0 0.0
        %7360 = vmatpush1.msra.mxu0 %v7189
        %7361 = vmatprep.subr.mxu0 0.0
        %7362 = vmatpush1.msra.mxu0 %v7190
        %7363 = vmatprep.subr.mxu0 0.0
        %7364 = vmatpush1.msra.mxu0 %v7191
        %7365 = vmatprep.subr.mxu0 0.0
        %7366 = vmatpush1.msra.mxu0 %v7192
        %7367 = vmatprep.subr.mxu0 0.0
        %7368 = vmatpush1.msra.mxu0 %v7193
        %7369 = vmatprep.subr.mxu0 0.0
        %7370 = vmatpush1.msra.mxu0 %v7194
        %7371 = vmatprep.subr.mxu0 0.0
        %7372 = vmatpush1.msra.mxu0 0.0
        %7373 = vmatprep.subr.mxu0 0.0
        %7374 = vmatpush1.msra.mxu0 0.0
        %7375 = vmatprep.subr.mxu0 0.0
        %7376 = vmatpush1.msra.mxu0 0.0
        %7377 = vmatprep.subr.mxu0 0.0
        %7378 = vmatpush1.msra.mxu0 0.0
        %7379 = vmatprep.subr.mxu0 0.0
        %7380 = vmatpush1.msra.mxu0 0.0
        %7381 = vmatprep.subr.mxu0 0.0
        %7382 = vmatpush1.msra.mxu0 0.0
        %7383 = vmatprep.subr.mxu0 0.0
        %7384 = vmatpush1.msra.mxu0 0.0
        %7385 = vmatprep.subr.mxu0 0.0
        %7386 = vmatpush1.msra.mxu0 0.0
        %7387 = vmatprep.subr.mxu0 0.0
        %7388 = vmatpush1.msra.mxu0 0.0
        %7389 = vmatprep.subr.mxu0 0.0
        %7390 = vmatpush1.msra.mxu0 0.0
        %7391 = vmatprep.subr.mxu0 0.0
        %7392 = vmatpush1.msra.mxu0 0.0
        %7393 = vmatprep.subr.mxu0 0.0
        %7394 = vmatpush1.msra.mxu0 0.0
        %7395 = vmatprep.subr.mxu0 0.0
        %7396 = vmatpush1.msra.mxu0 0.0
        %7397 = vmatprep.subr.mxu0 0.0
        %7398 = vmatpush1.msra.mxu0 0.0
        %7399 = vmatprep.subr.mxu0 0.0
        %7400 = vmatpush1.msra.mxu0 0.0
        %7401 = vmatprep.subr.mxu0 0.0
        %7402 = vmatpush1.msra.mxu0 0.0
        %7403 = vmatprep.mubr.f32.mxu0 0.0
        %7404 = vmatmul.mubr.f32.gmra.mrb[0].mxu0 %v7246
        %v7405 = vpop.f32.mrb[0].mxu0
        %v7406 = vadd.f32 %v7321, %v7405
        %v7407 = vpop.f32.mrb[0].mxu0
        %7408 = vmatprep.mubr.f32.mxu0 0.0
        %7409 = vmatmul.mubr.f32.gmra.mrb[0].mxu0 %v7247
        %v7410 = vpop.f32.mrb[0].mxu0
        %v7411 = vadd.f32 %v7326, %v7410
        %v7412 = vpop.f32.mrb[0].mxu0
        %7413 = vmatprep.mubr.f32.mxu0 0.0
        %7414 = vmatmul.mubr.f32.gmra.mrb[0].mxu0 %v7248
        %v7415 = vpop.f32.mrb[0].mxu0
        %v7416 = vadd.f32 %v7331, %v7415
        %v7417 = vpop.f32.mrb[0].mxu0
        %7418 = vmatprep.mubr.f32.mxu0 0.0
        %7419 = vmatmul.mubr.f32.gmra.mrb[0].mxu0 %v7249
        %v7420 = vpop.f32.mrb[0].mxu0
        %v7421 = vadd.f32 %v7336, %v7420
        %v7422 = vpop.f32.mrb[0].mxu0
        %7423 = vdwg.mxu0
        %v7424 = vld [vmem:[#allocation4 + $0x9] sm:$0xff]
        %v7425 = vld [vmem:[#allocation4 + $0x11] sm:$0xff]
        %v7426 = vld [vmem:[#allocation4 + $0x19] sm:$0xff]
        %v7427 = vld [vmem:[#allocation4 + $0x21] sm:$0xff]
        %7428 = vmatprep.subr.mxu0 0.0
        %7429 = vmatpush1.msra.mxu0 %v7213
        %7430 = vmatprep.subr.mxu0 0.0
        %7431 = vmatpush1.msra.mxu0 %v7214
        %7432 = vmatprep.subr.mxu0 0.0
        %7433 = vmatpush1.msra.mxu0 %v7215
        %7434 = vmatprep.subr.mxu0 0.0
        %7435 = vmatpush1.msra.mxu0 %v7216
        %7436 = vmatprep.subr.mxu0 0.0
        %7437 = vmatpush1.msra.mxu0 %v7217
        %7438 = vmatprep.subr.mxu0 0.0
        %7439 = vmatpush1.msra.mxu0 %v7218
        %7440 = vmatprep.subr.mxu0 0.0
        %7441 = vmatpush1.msra.mxu0 %v7219
        %7442 = vmatprep.subr.mxu0 0.0
        %7443 = vmatpush1.msra.mxu0 %v7220
        %7444 = vmatprep.subr.mxu0 0.0
        %7445 = vmatpush1.msra.mxu0 %v7221
        %7446 = vmatprep.subr.mxu0 0.0
        %7447 = vmatpush1.msra.mxu0 %v7222
        %7448 = vmatprep.subr.mxu0 0.0
        %7449 = vmatpush1.msra.mxu0 %v7223
        %7450 = vmatprep.subr.mxu0 0.0
        %7451 = vmatpush1.msra.mxu0 %v7224
        %7452 = vmatprep.subr.mxu0 0.0
        %7453 = vmatpush1.msra.mxu0 %v7225
        %7454 = vmatprep.subr.mxu0 0.0
        %7455 = vmatpush1.msra.mxu0 %v7226
        %7456 = vmatprep.subr.mxu0 0.0
        %7457 = vmatpush1.msra.mxu0 %v7227
        %7458 = vmatprep.subr.mxu0 0.0
        %7459 = vmatpush1.msra.mxu0 %v7228
        %7460 = vmatprep.subr.mxu0 0.0
        %7461 = vmatpush1.msra.mxu0 0.0
        %7462 = vmatprep.subr.mxu0 0.0
        %7463 = vmatpush1.msra.mxu0 0.0
        %7464 = vmatprep.subr.mxu0 0.0
        %7465 = vmatpush1.msra.mxu0 0.0
        %7466 = vmatprep.subr.mxu0 0.0
        %7467 = vmatpush1.msra.mxu0 0.0
        %7468 = vmatprep.subr.mxu0 0.0
        %7469 = vmatpush1.msra.mxu0 0.0
        %7470 = vmatprep.subr.mxu0 0.0
        %7471 = vmatpush1.msra.mxu0 0.0
        %7472 = vmatprep.subr.mxu0 0.0
        %7473 = vmatpush1.msra.mxu0 0.0
        %7474 = vmatprep.subr.mxu0 0.0
        %7475 = vmatpush1.msra.mxu0 0.0
        %7476 = vmatprep.subr.mxu0 0.0
        %7477 = vmatpush1.msra.mxu0 0.0
        %7478 = vmatprep.subr.mxu0 0.0
        %7479 = vmatpush1.msra.mxu0 0.0
        %7480 = vmatprep.subr.mxu0 0.0
        %7481 = vmatpush1.msra.mxu0 0.0
        %7482 = vmatprep.subr.mxu0 0.0
        %7483 = vmatpush1.msra.mxu0 0.0
        %7484 = vmatprep.subr.mxu0 0.0
        %7485 = vmatpush1.msra.mxu0 0.0
        %7486 = vmatprep.subr.mxu0 0.0
        %7487 = vmatpush1.msra.mxu0 0.0
        %7488 = vmatprep.subr.mxu0 0.0
        %7489 = vmatpush1.msra.mxu0 0.0
        %7490 = vmatprep.subr.mxu0 0.0
        %7491 = vmatpush1.msra.mxu0 0.0
        %7492 = vmatprep.mubr.f32.mxu0 0.0
        %7493 = vmatmul.mubr.f32.gmra.mrb[0].mxu0 %v7424
        %v7494 = vpop.f32.mrb[0].mxu0
        %v7495 = vadd.f32 0.0, %v7494
        %v7496 = vpop.f32.mrb[0].mxu0
        %7497 = vmatprep.mubr.f32.mxu0 0.0
        %7498 = vmatmul.mubr.f32.gmra.mrb[0].mxu0 %v7425
        %v7499 = vpop.f32.mrb[0].mxu0
        %v7500 = vadd.f32 0.0, %v7499
        %v7501 = vpop.f32.mrb[0].mxu0
        %7502 = vmatprep.mubr.f32.mxu0 0.0
        %7503 = vmatmul.mubr.f32.gmra.mrb[0].mxu0 %v7426
        %v7504 = vpop.f32.mrb[0].mxu0
        %v7505 = vadd.f32 0.0, %v7504
        %v7506 = vpop.f32.mrb[0].mxu0
        %7507 = vmatprep.mubr.f32.mxu0 0.0
        %7508 = vmatmul.mubr.f32.gmra.mrb[0].mxu0 %v7427
        %v7509 = vpop.f32.mrb[0].mxu0
        %v7510 = vadd.f32 0.0, %v7509
        %v7511 = vpop.f32.mrb[0].mxu0
        %7512 = vdwg.mxu0
        %v7513 = vadd.f32 %v7406, %v7495
        %v7514 = vadd.f32 %v7411, %v7500
        %v7515 = vadd.f32 %v7416, %v7505
        %v7516 = vadd.f32 %v7421, %v7510
        %v7518 = vlaneseq
        %v7519 = vshrl.u32 %v7518, 7
        %v7520 = vsub.s32 0, %v7519
        %v7521 = vrot.slane %v7229, %v7520
        %v7523 = vadd.f32 %v7513, %v7521
        %v7524 = vadd.f32 %v7514, %v7521
        %v7525 = vadd.f32 %v7515, %v7521
        %v7526 = vadd.f32 %v7516, %v7521
        %v7527 = vld [vmem:[#allocation9] sm:$0xff]
        %v7528 = vld [vmem:[#allocation9 + $0x8] sm:$0xff]
        %v7529 = vld [vmem:[#allocation9 + $0x10] sm:$0xff]
        %v7530 = vld [vmem:[#allocation9 + $0x18] sm:$0xff]
        %v7531 = vadd.f32 %v7527, %v7523
        %v7532 = vadd.f32 %v7528, %v7524
        %v7533 = vadd.f32 %v7529, %v7525
        %v7534 = vadd.f32 %v7530, %v7526
        %v7535 = vmul.f32 %v7531, 0.5
        %v7536 = vmul.f32 %v7532, 0.5
        %v7537 = vmul.f32 %v7533, 0.5
        %v7538 = vmul.f32 %v7534, 0.5
        %vm7539 = vcmp.ge.f32.partialorder %v7535, 1.0
        %vm7540 = vcmp.ge.f32.partialorder %v7536, 1.0
        %vm7541 = vcmp.ge.f32.partialorder %v7537, 1.0
        %vm7542 = vcmp.ge.f32.partialorder %v7538, 1.0
        %v7543 = vsel %vm7539, 0.0, %v7535
        %v7544 = vsel %vm7540, 0.0, %v7536
        %v7545 = vsel %vm7541, 0.0, %v7537
        %v7546 = vsel %vm7542, 0.0, %v7538
        %7547 = vst [vmem:[#allocation9] sm:$0xff] %v7543
        %7548 = vst [vmem:[#allocation9 + $0x8] sm:$0xff] %v7544
        %7549 = vst [vmem:[#allocation9 + $0x10] sm:$0xff] %v7545
        %7550 = vst [vmem:[#allocation9 + $0x18] sm:$0xff] %v7546
        %v7551 = vsel %vm7539, 1, 0
        %v7552 = vsel %vm7540, 1, 0
        %v7553 = vsel %vm7541, 1, 0
        %v7554 = vsel %vm7542, 1, 0
        %v7555 = vcvt.s32.f32 %v7551
        %v7556 = vcvt.s32.f32 %v7552
        %v7557 = vcvt.s32.f32 %v7553
        %v7558 = vcvt.s32.f32 %v7554
        %7559 = vmatprep.subr.mxu0 0.0
        %7560 = vmatpush1.msra.mxu0 %v7230
        %7561 = vmatprep.subr.mxu0 0.0
        %7562 = vmatpush1.msra.mxu0 %v7231
        %7563 = vmatprep.subr.mxu0 0.0
        %7564 = vmatpush1.msra.mxu0 %v7232
        %7565 = vmatprep.subr.mxu0 0.0
        %7566 = vmatpush1.msra.mxu0 %v7233
        %7567 = vmatprep.subr.mxu0 0.0
        %7568 = vmatpush1.msra.mxu0 %v7234
        %7569 = vmatprep.subr.mxu0 0.0
        %7570 = vmatpush1.msra.mxu0 %v7235
        %7571 = vmatprep.subr.mxu0 0.0
        %7572 = vmatpush1.msra.mxu0 %v7236
        %7573 = vmatprep.subr.mxu0 0.0
        %7574 = vmatpush1.msra.mxu0 %v7237
        %7575 = vmatprep.subr.mxu0 0.0
        %7576 = vmatpush1.msra.mxu0 %v7238
        %7577 = vmatprep.subr.mxu0 0.0
        %7578 = vmatpush1.msra.mxu0 %v7239
        %7579 = vmatprep.subr.mxu0 0.0
        %7580 = vmatpush1.msra.mxu0 %v7240
        %7581 = vmatprep.subr.mxu0 0.0
        %7582 = vmatpush1.msra.mxu0 %v7241
        %7583 = vmatprep.subr.mxu0 0.0
        %7584 = vmatpush1.msra.mxu0 %v7242
        %7585 = vmatprep.subr.mxu0 0.0
        %7586 = vmatpush1.msra.mxu0 %v7243
        %7587 = vmatprep.subr.mxu0 0.0
        %7588 = vmatpush1.msra.mxu0 %v7244
        %7589 = vmatprep.subr.mxu0 0.0
        %7590 = vmatpush1.msra.mxu0 %v7245
        %7591 = vmatprep.subr.mxu0 0.0
        %7592 = vmatpush1.msra.mxu0 0.0
        %7593 = vmatprep.subr.mxu0 0.0
        %7594 = vmatpush1.msra.mxu0 0.0
        %7595 = vmatprep.subr.mxu0 0.0
        %7596 = vmatpush1.msra.mxu0 0.0
        %7597 = vmatprep.subr.mxu0 0.0
        %7598 = vmatpush1.msra.mxu0 0.0
        %7599 = vmatprep.subr.mxu0 0.0
        %7600 = vmatpush1.msra.mxu0 0.0
        %7601 = vmatprep.subr.mxu0 0.0
        %7602 = vmatpush1.msra.mxu0 0.0
        %7603 = vmatprep.subr.mxu0 0.0
        %7604 = vmatpush1.msra.mxu0 0.0
        %7605 = vmatprep.subr.mxu0 0.0
        %7606 = vmatpush1.msra.mxu0 0.0
        %7607 = vmatprep.subr.mxu0 0.0
        %7608 = vmatpush1.msra.mxu0 0.0
        %7609 = vmatprep.subr.mxu0 0.0
        %7610 = vmatpush1.msra.mxu0 0.0
        %7611 = vmatprep.subr.mxu0 0.0
        %7612 = vmatpush1.msra.mxu0 0.0
        %7613 = vmatprep.subr.mxu0 0.0
        %7614 = vmatpush1.msra.mxu0 0.0
        %7615 = vmatprep.subr.mxu0 0.0
        %7616 = vmatpush1.msra.mxu0 0.0
        %7617 = vmatprep.subr.mxu0 0.0
        %7618 = vmatpush1.msra.mxu0 0.0
        %7619 = vmatprep.subr.mxu0 0.0
        %7620 = vmatpush1.msra.mxu0 0.0
        %7621 = vmatprep.subr.mxu0 0.0
        %7622 = vmatpush1.msra.mxu0 0.0
        %7623 = vmatprep.mubr.f32.mxu0 0.0
        %7624 = vmatmul.mubr.f32.gmra.mrb[0].mxu0 %v7555
        %v7625 = vpop.f32.mrb[0].mxu0
        %v7626 = vadd.f32 0.0, %v7625
        %v7627 = vpop.f32.mrb[0].mxu0
        %7628 = vmatprep.mubr.f32.mxu0 0.0
        %7629 = vmatmul.mubr.f32.gmra.mrb[0].mxu0 %v7556
        %v7630 = vpop.f32.mrb[0].mxu0
        %v7631 = vadd.f32 0.0, %v7630
        %v7632 = vpop.f32.mrb[0].mxu0
        %7633 = vmatprep.mubr.f32.mxu0 0.0
        %7634 = vmatmul.mubr.f32.gmra.mrb[0].mxu0 %v7557
        %v7635 = vpop.f32.mrb[0].mxu0
        %v7636 = vadd.f32 0.0, %v7635
        %v7637 = vpop.f32.mrb[0].mxu0
        %7638 = vmatprep.mubr.f32.mxu0 0.0
        %7639 = vmatmul.mubr.f32.gmra.mrb[0].mxu0 %v7558
        %v7640 = vpop.f32.mrb[0].mxu0
        %v7641 = vadd.f32 0.0, %v7640
        %v7642 = vpop.f32.mrb[0].mxu0
        %7643 = vdwg.mxu0
        %7644 = vmatprep.subr.mxu0 0.0
        %7645 = vmatpush1.msra.mxu0 %v7626
        %7646 = vmatprep.subr.mxu0 0.0
        %7647 = vmatpush1.msra.mxu0 %v7631
        %7648 = vmatprep.subr.mxu0 0.0
        %7649 = vmatpush1.msra.mxu0 %v7636
        %7650 = vmatprep.subr.mxu0 0.0
        %7651 = vmatpush1.msra.mxu0 %v7641
        %7652 = vmatprep.subr.mxu0 0.0
        %7653 = vmatpush1.msra.mxu0 0.0
        %7654 = vmatprep.subr.mxu0 0.0
        %7655 = vmatpush1.msra.mxu0 0.0
        %7656 = vmatprep.subr.mxu0 0.0
        %7657 = vmatpush1.msra.mxu0 0.0
        %7658 = vmatprep.subr.mxu0 0.0
        %7659 = vmatpush1.msra.mxu0 0.0
        %7660 = vmatprep.subr.mxu0 0.0
        %7661 = vmatpush1.msra.mxu0 0.0
        %7662 = vmatprep.subr.mxu0 0.0
        %7663 = vmatpush1.msra.mxu0 0.0
        %7664 = vmatprep.subr.mxu0 0.0
        %7665 = vmatpush1.msra.mxu0 0.0
        %7666 = vmatprep.subr.mxu0 0.0
        %7667 = vmatpush1.msra.mxu0 0.0
        %7668 = vmatprep.subr.mxu0 0.0
        %7669 = vmatpush1.msra.mxu0 0.0
        %7670 = vmatprep.subr.mxu0 0.0
        %7671 = vmatpush1.msra.mxu0 0.0
        %7672 = vmatprep.subr.mxu0 0.0
        %7673 = vmatpush1.msra.mxu0 0.0
        %7674 = vmatprep.subr.mxu0 0.0
        %7675 = vmatpush1.msra.mxu0 0.0
        %7676 = vmatprep.subr.mxu0 0.0
        %7677 = vmatpush1.msra.mxu0 0.0
        %7678 = vmatprep.subr.mxu0 0.0
        %7679 = vmatpush1.msra.mxu0 0.0
        %7680 = vmatprep.subr.mxu0 0.0
        %7681 = vmatpush1.msra.mxu0 0.0
        %7682 = vmatprep.subr.mxu0 0.0
        %7683 = vmatpush1.msra.mxu0 0.0
        %7684 = vmatprep.subr.mxu0 0.0
        %7685 = vmatpush1.msra.mxu0 0.0
        %7686 = vmatprep.subr.mxu0 0.0
        %7687 = vmatpush1.msra.mxu0 0.0
        %7688 = vmatprep.subr.mxu0 0.0
        %7689 = vmatpush1.msra.mxu0 0.0
        %7690 = vmatprep.subr.mxu0 0.0
        %7691 = vmatpush1.msra.mxu0 0.0
        %7692 = vmatprep.subr.mxu0 0.0
        %7693 = vmatpush1.msra.mxu0 0.0
        %7694 = vmatprep.subr.mxu0 0.0
        %7695 = vmatpush1.msra.mxu0 0.0
        %7696 = vmatprep.subr.mxu0 0.0
        %7697 = vmatpush1.msra.mxu0 0.0
        %7698 = vmatprep.subr.mxu0 0.0
        %7699 = vmatpush1.msra.mxu0 0.0
        %7700 = vmatprep.subr.mxu0 0.0
        %7701 = vmatpush1.msra.mxu0 0.0
        %7702 = vmatprep.subr.mxu0 0.0
        %7703 = vmatpush1.msra.mxu0 0.0
        %7704 = vmatprep.subr.mxu0 0.0
        %7705 = vmatpush1.msra.mxu0 0.0
        %7706 = vmatprep.subr.mxu0 0.0
        %7707 = vmatpush1.msra.mxu0 0.0
        %7708 = vmatprep.mubr.f32.mxu0 0.0
        %7709 = vmatmul.mubr.f32.gmra.mrb[0].mxu0 %v2448
        %v7710 = vpop.f32.mrb[0].mxu0
        %v7711 = vadd.f32 0.0, %v7710
        %v7712 = vpop.f32.mrb[0].mxu0
        %7713 = vmatprep.mubr.f32.mxu0 0.0
        %7714 = vmatmul.mubr.f32.gmra.mrb[0].mxu0 %v2451
        %v7715 = vpop.f32.mrb[0].mxu0
        %v7716 = vadd.f32 0.0, %v7715
        %v7717 = vpop.f32.mrb[0].mxu0
        %7718 = vdwg.mxu0
        %vm7719 = vcmp.gt.f32.partialorder %v7711, 0.5
        %vm7720 = vcmp.gt.f32.partialorder %v7716, 0.5
        %v7721 = vsel %vm7719, 1, 0
        %v7722 = vsel %vm7720, 1, 0
        %v7723 = vcvt.s32.f32 %v7721
        %v7724 = vcvt.s32.f32 %v7722
        %vm7725 = vcmask 523264
        %7726 = vst.msk [vmem:[#allocation5 + $0x8] sm:$0xff] %vm7725, %v7723
        %7727 = vst.msk [vmem:[#allocation5 + $0x10] sm:$0xff] %vm7725, %v7724
        %v7728 = vld [vmem:[%s4] sm:$0xff]
        %v7729 = vld [vmem:[%s4 + $0x8] sm:$0xff]
        %v7730 = vld [vmem:[%s4 + $0x10] sm:$0xff]
        %v7731 = vld [vmem:[%s4 + $0x18] sm:$0xff]
        %v7732 = vld [vmem:[%s4 + $0x20] sm:$0xff]
        %v7733 = vld [vmem:[%s4 + $0x28] sm:$0xff]
        %v7734 = vld [vmem:[%s4 + $0x30] sm:$0xff]
        %v7735 = vld [vmem:[%s4 + $0x38] sm:$0xff]
        %s7736 = scalar_lea.vmem %s4, 64
        %v7737 = vld [vmem:[%s7736] sm:$0xff]
        %v7738 = vld [vmem:[%s7736 + $0x8] sm:$0xff]
        %v7739 = vld [vmem:[%s7736 + $0x10] sm:$0xff]
        %v7740 = vld [vmem:[%s7736 + $0x18] sm:$0xff]
        %v7741 = vld [vmem:[%s7736 + $0x20] sm:$0xff]
        %v7742 = vld [vmem:[%s7736 + $0x28] sm:$0xff]
        %v7743 = vld [vmem:[%s7736 + $0x30] sm:$0xff]
        %v7744 = vld [vmem:[%s7736 + $0x38] sm:$0xff]
        %s7745 = scalar_lea.vmem %s4, 128
        %v7746 = vld [vmem:[%s7745] sm:$0xff]
        %v7747 = vld [vmem:[%s7745 + $0x8] sm:$0xff]
        %v7748 = vld [vmem:[%s7745 + $0x10] sm:$0xff]
        %v7749 = vld [vmem:[%s7745 + $0x18] sm:$0xff]
        %v7750 = vld [vmem:[%s7745 + $0x20] sm:$0xff]
        %v7751 = vld [vmem:[%s7745 + $0x28] sm:$0xff]
        %v7752 = vld [vmem:[%s7745 + $0x30] sm:$0xff]
        %v7753 = vld [vmem:[%s7745 + $0x38] sm:$0xff]
        %v7754 = vld [vmem:[%s9] sm:$0x1]
        %v7755 = vld [vmem:[%s14] sm:$0xff]
        %v7756 = vld [vmem:[%s14 + $0x8] sm:$0xff]
        %v7757 = vld [vmem:[%s14 + $0x10] sm:$0xff]
        %v7758 = vld [vmem:[%s14 + $0x18] sm:$0xff]
        %v7759 = vld [vmem:[%s14 + $0x20] sm:$0xff]
        %v7760 = vld [vmem:[%s14 + $0x28] sm:$0xff]
        %v7761 = vld [vmem:[%s14 + $0x30] sm:$0xff]
        %v7762 = vld [vmem:[%s14 + $0x38] sm:$0xff]
        %v7763 = vld [vmem:[#allocation5 + $0x7] sm:$0xff]
        %v7764 = vld [vmem:[#allocation5 + $0xf] sm:$0xff]
        %v7765 = vld [vmem:[#allocation5 + $0x8] sm:$0xff]
        %v7766 = vld [vmem:[#allocation5 + $0x10] sm:$0xff]
        %v7768 = vsel %vm7725, %v7765, 0
        %v7771 = vsel %vm7725, %v7766, 0
        %7773 = vmatprep.subr.mxu0 0.0
        %7774 = vmatpush1.msra.mxu0 %v7737
        %7775 = vmatprep.subr.mxu0 0.0
        %7776 = vmatpush1.msra.mxu0 %v7738
        %7777 = vmatprep.subr.mxu0 0.0
        %7778 = vmatpush1.msra.mxu0 %v7739
        %7779 = vmatprep.subr.mxu0 0.0
        %7780 = vmatpush1.msra.mxu0 %v7740
        %7781 = vmatprep.subr.mxu0 0.0
        %7782 = vmatpush1.msra.mxu0 %v7741
        %7783 = vmatprep.subr.mxu0 0.0
        %7784 = vmatpush1.msra.mxu0 %v7742
        %7785 = vmatprep.subr.mxu0 0.0
        %7786 = vmatpush1.msra.mxu0 %v7743
        %7787 = vmatprep.subr.mxu0 0.0
        %7788 = vmatpush1.msra.mxu0 %v7744
        %7789 = vmatprep.subr.mxu0 0.0
        %7790 = vmatpush1.msra.mxu0 0.0
        %7791 = vmatprep.subr.mxu0 0.0
        %7792 = vmatpush1.msra.mxu0 0.0
        %7793 = vmatprep.subr.mxu0 0.0
        %7794 = vmatpush1.msra.mxu0 0.0
        %7795 = vmatprep.subr.mxu0 0.0
        %7796 = vmatpush1.msra.mxu0 0.0
        %7797 = vmatprep.subr.mxu0 0.0
        %7798 = vmatpush1.msra.mxu0 0.0
        %7799 = vmatprep.subr.mxu0 0.0
        %7800 = vmatpush1.msra.mxu0 0.0
        %7801 = vmatprep.subr.mxu0 0.0
        %7802 = vmatpush1.msra.mxu0 0.0
        %7803 = vmatprep.subr.mxu0 0.0
        %7804 = vmatpush1.msra.mxu0 0.0
        %7805 = vmatprep.subr.mxu0 0.0
        %7806 = vmatpush1.msra.mxu0 0.0
        %7807 = vmatprep.subr.mxu0 0.0
        %7808 = vmatpush1.msra.mxu0 0.0
        %7809 = vmatprep.subr.mxu0 0.0
        %7810 = vmatpush1.msra.mxu0 0.0
        %7811 = vmatprep.subr.mxu0 0.0
        %7812 = vmatpush1.msra.mxu0 0.0
        %7813 = vmatprep.subr.mxu0 0.0
        %7814 = vmatpush1.msra.mxu0 0.0
        %7815 = vmatprep.subr.mxu0 0.0
        %7816 = vmatpush1.msra.mxu0 0.0
        %7817 = vmatprep.subr.mxu0 0.0
        %7818 = vmatpush1.msra.mxu0 0.0
        %7819 = vmatprep.subr.mxu0 0.0
        %7820 = vmatpush1.msra.mxu0 0.0
        %7821 = vmatprep.subr.mxu0 0.0
        %7822 = vmatpush1.msra.mxu0 0.0
        %7823 = vmatprep.subr.mxu0 0.0
        %7824 = vmatpush1.msra.mxu0 0.0
        %7825 = vmatprep.subr.mxu0 0.0
        %7826 = vmatpush1.msra.mxu0 0.0
        %7827 = vmatprep.subr.mxu0 0.0
        %7828 = vmatpush1.msra.mxu0 0.0
        %7829 = vmatprep.subr.mxu0 0.0
        %7830 = vmatpush1.msra.mxu0 0.0
        %7831 = vmatprep.subr.mxu0 0.0
        %7832 = vmatpush1.msra.mxu0 0.0
        %7833 = vmatprep.subr.mxu0 0.0
        %7834 = vmatpush1.msra.mxu0 0.0
        %7835 = vmatprep.subr.mxu0 0.0
        %7836 = vmatpush1.msra.mxu0 0.0
        %7837 = vmatprep.mubr.f32.mxu0 0.0
        %7838 = vmatmul.mubr.f32.gmra.mrb[0].mxu0 %v7768
        %v7839 = vpop.f32.mrb[0].mxu0
        %v7840 = vadd.f32 0.0, %v7839
        %v7841 = vpop.f32.mrb[0].mxu0
        %7842 = vmatprep.mubr.f32.mxu0 0.0
        %7843 = vmatmul.mubr.f32.gmra.mrb[0].mxu0 %v7771
        %v7844 = vpop.f32.mrb[0].mxu0
        %v7845 = vadd.f32 0.0, %v7844
        %v7846 = vpop.f32.mrb[0].mxu0
        %7847 = vdwg.mxu0
        %v7849 = vsel %vm7725, %v7763, 0
        %v7852 = vsel %vm7725, %v7764, 0
        %7854 = vmatprep.subr.mxu0 0.0
        %7855 = vmatpush1.msra.mxu0 %v7728
        %7856 = vmatprep.subr.mxu0 0.0
        %7857 = vmatpush1.msra.mxu0 %v7729
        %7858 = vmatprep.subr.mxu0 0.0
        %7859 = vmatpush1.msra.mxu0 %v7730
        %7860 = vmatprep.subr.mxu0 0.0
        %7861 = vmatpush1.msra.mxu0 %v7731
        %7862 = vmatprep.subr.mxu0 0.0
        %7863 = vmatpush1.msra.mxu0 %v7732
        %7864 = vmatprep.subr.mxu0 0.0
        %7865 = vmatpush1.msra.mxu0 %v7733
        %7866 = vmatprep.subr.mxu0 0.0
        %7867 = vmatpush1.msra.mxu0 %v7734
        %7868 = vmatprep.subr.mxu0 0.0
        %7869 = vmatpush1.msra.mxu0 %v7735
        %7870 = vmatprep.subr.mxu0 0.0
        %7871 = vmatpush1.msra.mxu0 0.0
        %7872 = vmatprep.subr.mxu0 0.0
        %7873 = vmatpush1.msra.mxu0 0.0
        %7874 = vmatprep.subr.mxu0 0.0
        %7875 = vmatpush1.msra.mxu0 0.0
        %7876 = vmatprep.subr.mxu0 0.0
        %7877 = vmatpush1.msra.mxu0 0.0
        %7878 = vmatprep.subr.mxu0 0.0
        %7879 = vmatpush1.msra.mxu0 0.0
        %7880 = vmatprep.subr.mxu0 0.0
        %7881 = vmatpush1.msra.mxu0 0.0
        %7882 = vmatprep.subr.mxu0 0.0
        %7883 = vmatpush1.msra.mxu0 0.0
        %7884 = vmatprep.subr.mxu0 0.0
        %7885 = vmatpush1.msra.mxu0 0.0
        %7886 = vmatprep.subr.mxu0 0.0
        %7887 = vmatpush1.msra.mxu0 0.0
        %7888 = vmatprep.subr.mxu0 0.0
        %7889 = vmatpush1.msra.mxu0 0.0
        %7890 = vmatprep.subr.mxu0 0.0
        %7891 = vmatpush1.msra.mxu0 0.0
        %7892 = vmatprep.subr.mxu0 0.0
        %7893 = vmatpush1.msra.mxu0 0.0
        %7894 = vmatprep.subr.mxu0 0.0
        %7895 = vmatpush1.msra.mxu0 0.0
        %7896 = vmatprep.subr.mxu0 0.0
        %7897 = vmatpush1.msra.mxu0 0.0
        %7898 = vmatprep.subr.mxu0 0.0
        %7899 = vmatpush1.msra.mxu0 0.0
        %7900 = vmatprep.subr.mxu0 0.0
        %7901 = vmatpush1.msra.mxu0 0.0
        %7902 = vmatprep.subr.mxu0 0.0
        %7903 = vmatpush1.msra.mxu0 0.0
        %7904 = vmatprep.subr.mxu0 0.0
        %7905 = vmatpush1.msra.mxu0 0.0
        %7906 = vmatprep.subr.mxu0 0.0
        %7907 = vmatpush1.msra.mxu0 0.0
        %7908 = vmatprep.subr.mxu0 0.0
        %7909 = vmatpush1.msra.mxu0 0.0
        %7910 = vmatprep.subr.mxu0 0.0
        %7911 = vmatpush1.msra.mxu0 0.0
        %7912 = vmatprep.subr.mxu0 0.0
        %7913 = vmatpush1.msra.mxu0 0.0
        %7914 = vmatprep.subr.mxu0 0.0
        %7915 = vmatpush1.msra.mxu0 0.0
        %7916 = vmatprep.subr.mxu0 0.0
        %7917 = vmatpush1.msra.mxu0 0.0
        %7918 = vmatprep.mubr.f32.mxu0 0.0
        %7919 = vmatmul.mubr.f32.gmra.mrb[0].mxu0 %v7849
        %v7920 = vpop.f32.mrb[0].mxu0
        %v7921 = vadd.f32 %v7840, %v7920
        %v7922 = vpop.f32.mrb[0].mxu0
        %7923 = vmatprep.mubr.f32.mxu0 0.0
        %7924 = vmatmul.mubr.f32.gmra.mrb[0].mxu0 %v7852
        %v7925 = vpop.f32.mrb[0].mxu0
        %v7926 = vadd.f32 %v7845, %v7925
        %v7927 = vpop.f32.mrb[0].mxu0
        %7928 = vdwg.mxu0
        %v7929 = vld [vmem:[#allocation5 + $0x9] sm:$0xff]
        %v7930 = vld [vmem:[#allocation5 + $0x11] sm:$0xff]
        %v7932 = vsel %vm7725, %v7929, 0
        %v7935 = vsel %vm7725, %v7930, 0
        %7937 = vmatprep.subr.mxu0 0.0
        %7938 = vmatpush1.msra.mxu0 %v7746
        %7939 = vmatprep.subr.mxu0 0.0
        %7940 = vmatpush1.msra.mxu0 %v7747
        %7941 = vmatprep.subr.mxu0 0.0
        %7942 = vmatpush1.msra.mxu0 %v7748
        %7943 = vmatprep.subr.mxu0 0.0
        %7944 = vmatpush1.msra.mxu0 %v7749
        %7945 = vmatprep.subr.mxu0 0.0
        %7946 = vmatpush1.msra.mxu0 %v7750
        %7947 = vmatprep.subr.mxu0 0.0
        %7948 = vmatpush1.msra.mxu0 %v7751
        %7949 = vmatprep.subr.mxu0 0.0
        %7950 = vmatpush1.msra.mxu0 %v7752
        %7951 = vmatprep.subr.mxu0 0.0
        %7952 = vmatpush1.msra.mxu0 %v7753
        %7953 = vmatprep.subr.mxu0 0.0
        %7954 = vmatpush1.msra.mxu0 0.0
        %7955 = vmatprep.subr.mxu0 0.0
        %7956 = vmatpush1.msra.mxu0 0.0
        %7957 = vmatprep.subr.mxu0 0.0
        %7958 = vmatpush1.msra.mxu0 0.0
        %7959 = vmatprep.subr.mxu0 0.0
        %7960 = vmatpush1.msra.mxu0 0.0
        %7961 = vmatprep.subr.mxu0 0.0
        %7962 = vmatpush1.msra.mxu0 0.0
        %7963 = vmatprep.subr.mxu0 0.0
        %7964 = vmatpush1.msra.mxu0 0.0
        %7965 = vmatprep.subr.mxu0 0.0
        %7966 = vmatpush1.msra.mxu0 0.0
        %7967 = vmatprep.subr.mxu0 0.0
        %7968 = vmatpush1.msra.mxu0 0.0
        %7969 = vmatprep.subr.mxu0 0.0
        %7970 = vmatpush1.msra.mxu0 0.0
        %7971 = vmatprep.subr.mxu0 0.0
        %7972 = vmatpush1.msra.mxu0 0.0
        %7973 = vmatprep.subr.mxu0 0.0
        %7974 = vmatpush1.msra.mxu0 0.0
        %7975 = vmatprep.subr.mxu0 0.0
        %7976 = vmatpush1.msra.mxu0 0.0
        %7977 = vmatprep.subr.mxu0 0.0
        %7978 = vmatpush1.msra.mxu0 0.0
        %7979 = vmatprep.subr.mxu0 0.0
        %7980 = vmatpush1.msra.mxu0 0.0
        %7981 = vmatprep.subr.mxu0 0.0
        %7982 = vmatpush1.msra.mxu0 0.0
        %7983 = vmatprep.subr.mxu0 0.0
        %7984 = vmatpush1.msra.mxu0 0.0
        %7985 = vmatprep.subr.mxu0 0.0
        %7986 = vmatpush1.msra.mxu0 0.0
        %7987 = vmatprep.subr.mxu0 0.0
        %7988 = vmatpush1.msra.mxu0 0.0
        %7989 = vmatprep.subr.mxu0 0.0
        %7990 = vmatpush1.msra.mxu0 0.0
        %7991 = vmatprep.subr.mxu0 0.0
        %7992 = vmatpush1.msra.mxu0 0.0
        %7993 = vmatprep.subr.mxu0 0.0
        %7994 = vmatpush1.msra.mxu0 0.0
        %7995 = vmatprep.subr.mxu0 0.0
        %7996 = vmatpush1.msra.mxu0 0.0
        %7997 = vmatprep.subr.mxu0 0.0
        %7998 = vmatpush1.msra.mxu0 0.0
        %7999 = vmatprep.subr.mxu0 0.0
        %8000 = vmatpush1.msra.mxu0 0.0
        %8001 = vmatprep.mubr.f32.mxu0 0.0
        %8002 = vmatmul.mubr.f32.gmra.mrb[0].mxu0 %v7932
        %v8003 = vpop.f32.mrb[0].mxu0
        %v8004 = vadd.f32 0.0, %v8003
        %v8005 = vpop.f32.mrb[0].mxu0
        %8006 = vmatprep.mubr.f32.mxu0 0.0
        %8007 = vmatmul.mubr.f32.gmra.mrb[0].mxu0 %v7935
        %v8008 = vpop.f32.mrb[0].mxu0
        %v8009 = vadd.f32 0.0, %v8008
        %v8010 = vpop.f32.mrb[0].mxu0
        %8011 = vdwg.mxu0
        %v8012 = vadd.f32 %v7921, %v8004
        %v8013 = vadd.f32 %v7926, %v8009
        %v8015 = vlaneseq
        %v8016 = vshrl.u32 %v8015, 7
        %v8017 = vsub.s32 0, %v8016
        %v8018 = vrot.slane %v7754, %v8017
        %v8020 = vadd.f32 %v8012, %v8018
        %v8021 = vadd.f32 %v8013, %v8018
        %v8022 = vld [vmem:[#allocation10] sm:$0xff]
        %v8023 = vld [vmem:[#allocation10 + $0x8] sm:$0xff]
        %v8024 = vadd.f32 %v8022, %v8020
        %v8025 = vadd.f32 %v8023, %v8021
        %v8026 = vmul.f32 %v8024, 0.5
        %v8027 = vmul.f32 %v8025, 0.5
        %vm8028 = vcmp.ge.f32.partialorder %v8026, 1.0
        %vm8029 = vcmp.ge.f32.partialorder %v8027, 1.0
        %v8030 = vsel %vm8028, 0.0, %v8026
        %v8031 = vsel %vm8029, 0.0, %v8027
        %8032 = vst.msk [vmem:[#allocation10] sm:$0xff] %vm7725, %v8030
        %8033 = vst.msk [vmem:[#allocation10 + $0x8] sm:$0xff] %vm7725, %v8031
        %v8034 = vsel %vm8028, 1, 0
        %v8035 = vsel %vm8029, 1, 0
        %v8036 = vcvt.s32.f32 %v8034
        %v8037 = vcvt.s32.f32 %v8035
        %v8039 = vsel %vm7725, %v8036, 0
        %v8042 = vsel %vm7725, %v8037, 0
        %8044 = vmatprep.subr.mxu0 0.0
        %8045 = vmatpush1.msra.mxu0 %v7755
        %8046 = vmatprep.subr.mxu0 0.0
        %8047 = vmatpush1.msra.mxu0 %v7756
        %8048 = vmatprep.subr.mxu0 0.0
        %8049 = vmatpush1.msra.mxu0 %v7757
        %8050 = vmatprep.subr.mxu0 0.0
        %8051 = vmatpush1.msra.mxu0 %v7758
        %8052 = vmatprep.subr.mxu0 0.0
        %8053 = vmatpush1.msra.mxu0 %v7759
        %8054 = vmatprep.subr.mxu0 0.0
        %8055 = vmatpush1.msra.mxu0 %v7760
        %8056 = vmatprep.subr.mxu0 0.0
        %8057 = vmatpush1.msra.mxu0 %v7761
        %8058 = vmatprep.subr.mxu0 0.0
        %8059 = vmatpush1.msra.mxu0 %v7762
        %8060 = vmatprep.subr.mxu0 0.0
        %8061 = vmatpush1.msra.mxu0 0.0
        %8062 = vmatprep.subr.mxu0 0.0
        %8063 = vmatpush1.msra.mxu0 0.0
        %8064 = vmatprep.subr.mxu0 0.0
        %8065 = vmatpush1.msra.mxu0 0.0
        %8066 = vmatprep.subr.mxu0 0.0
        %8067 = vmatpush1.msra.mxu0 0.0
        %8068 = vmatprep.subr.mxu0 0.0
        %8069 = vmatpush1.msra.mxu0 0.0
        %8070 = vmatprep.subr.mxu0 0.0
        %8071 = vmatpush1.msra.mxu0 0.0
        %8072 = vmatprep.subr.mxu0 0.0
        %8073 = vmatpush1.msra.mxu0 0.0
        %8074 = vmatprep.subr.mxu0 0.0
        %8075 = vmatpush1.msra.mxu0 0.0
        %8076 = vmatprep.subr.mxu0 0.0
        %8077 = vmatpush1.msra.mxu0 0.0
        %8078 = vmatprep.subr.mxu0 0.0
        %8079 = vmatpush1.msra.mxu0 0.0
        %8080 = vmatprep.subr.mxu0 0.0
        %8081 = vmatpush1.msra.mxu0 0.0
        %8082 = vmatprep.subr.mxu0 0.0
        %8083 = vmatpush1.msra.mxu0 0.0
        %8084 = vmatprep.subr.mxu0 0.0
        %8085 = vmatpush1.msra.mxu0 0.0
        %8086 = vmatprep.subr.mxu0 0.0
        %8087 = vmatpush1.msra.mxu0 0.0
        %8088 = vmatprep.subr.mxu0 0.0
        %8089 = vmatpush1.msra.mxu0 0.0
        %8090 = vmatprep.subr.mxu0 0.0
        %8091 = vmatpush1.msra.mxu0 0.0
        %8092 = vmatprep.subr.mxu0 0.0
        %8093 = vmatpush1.msra.mxu0 0.0
        %8094 = vmatprep.subr.mxu0 0.0
        %8095 = vmatpush1.msra.mxu0 0.0
        %8096 = vmatprep.subr.mxu0 0.0
        %8097 = vmatpush1.msra.mxu0 0.0
        %8098 = vmatprep.subr.mxu0 0.0
        %8099 = vmatpush1.msra.mxu0 0.0
        %8100 = vmatprep.subr.mxu0 0.0
        %8101 = vmatpush1.msra.mxu0 0.0
        %8102 = vmatprep.subr.mxu0 0.0
        %8103 = vmatpush1.msra.mxu0 0.0
        %8104 = vmatprep.subr.mxu0 0.0
        %8105 = vmatpush1.msra.mxu0 0.0
        %8106 = vmatprep.subr.mxu0 0.0
        %8107 = vmatpush1.msra.mxu0 0.0
        %8108 = vmatprep.mubr.f32.mxu0 0.0
        %8109 = vmatmul.mubr.f32.gmra.mrb[0].mxu0 %v8039
        %v8110 = vpop.f32.mrb[0].mxu0
        %v8111 = vadd.f32 0.0, %v8110
        %v8112 = vpop.f32.mrb[0].mxu0
        %8113 = vmatprep.mubr.f32.mxu0 0.0
        %8114 = vmatmul.mubr.f32.gmra.mrb[0].mxu0 %v8042
        %v8115 = vpop.f32.mrb[0].mxu0
        %v8116 = vadd.f32 0.0, %v8115
        %v8117 = vpop.f32.mrb[0].mxu0
        %8118 = vdwg.mxu0
        %vm8119 = vcmask 130048
        %v8120 = vsel %vm8119, %v940, 0
        %8122 = vmatprep.subr.mxu0 0.0
        %8123 = vmatpush1.msra.mxu0 %v8111
        %8124 = vmatprep.subr.mxu0 0.0
        %8125 = vmatpush1.msra.mxu0 %v8116
        %8126 = vmatprep.subr.mxu0 0.0
        %8127 = vmatpush1.msra.mxu0 0.0
        %8128 = vmatprep.subr.mxu0 0.0
        %8129 = vmatpush1.msra.mxu0 0.0
        %8130 = vmatprep.subr.mxu0 0.0
        %8131 = vmatpush1.msra.mxu0 0.0
        %8132 = vmatprep.subr.mxu0 0.0
        %8133 = vmatpush1.msra.mxu0 0.0
        %8134 = vmatprep.subr.mxu0 0.0
        %8135 = vmatpush1.msra.mxu0 0.0
        %8136 = vmatprep.subr.mxu0 0.0
        %8137 = vmatpush1.msra.mxu0 0.0
        %8138 = vmatprep.subr.mxu0 0.0
        %8139 = vmatpush1.msra.mxu0 0.0
        %8140 = vmatprep.subr.mxu0 0.0
        %8141 = vmatpush1.msra.mxu0 0.0
        %8142 = vmatprep.subr.mxu0 0.0
        %8143 = vmatpush1.msra.mxu0 0.0
        %8144 = vmatprep.subr.mxu0 0.0
        %8145 = vmatpush1.msra.mxu0 0.0
        %8146 = vmatprep.subr.mxu0 0.0
        %8147 = vmatpush1.msra.mxu0 0.0
        %8148 = vmatprep.subr.mxu0 0.0
        %8149 = vmatpush1.msra.mxu0 0.0
        %8150 = vmatprep.subr.mxu0 0.0
        %8151 = vmatpush1.msra.mxu0 0.0
        %8152 = vmatprep.subr.mxu0 0.0
        %8153 = vmatpush1.msra.mxu0 0.0
        %8154 = vmatprep.subr.mxu0 0.0
        %8155 = vmatpush1.msra.mxu0 0.0
        %8156 = vmatprep.subr.mxu0 0.0
        %8157 = vmatpush1.msra.mxu0 0.0
        %8158 = vmatprep.subr.mxu0 0.0
        %8159 = vmatpush1.msra.mxu0 0.0
        %8160 = vmatprep.subr.mxu0 0.0
        %8161 = vmatpush1.msra.mxu0 0.0
        %8162 = vmatprep.subr.mxu0 0.0
        %8163 = vmatpush1.msra.mxu0 0.0
        %8164 = vmatprep.subr.mxu0 0.0
        %8165 = vmatpush1.msra.mxu0 0.0
        %8166 = vmatprep.subr.mxu0 0.0
        %8167 = vmatpush1.msra.mxu0 0.0
        %8168 = vmatprep.subr.mxu0 0.0
        %8169 = vmatpush1.msra.mxu0 0.0
        %8170 = vmatprep.subr.mxu0 0.0
        %8171 = vmatpush1.msra.mxu0 0.0
        %8172 = vmatprep.subr.mxu0 0.0
        %8173 = vmatpush1.msra.mxu0 0.0
        %8174 = vmatprep.subr.mxu0 0.0
        %8175 = vmatpush1.msra.mxu0 0.0
        %8176 = vmatprep.subr.mxu0 0.0
        %8177 = vmatpush1.msra.mxu0 0.0
        %8178 = vmatprep.subr.mxu0 0.0
        %8179 = vmatpush1.msra.mxu0 0.0
        %8180 = vmatprep.subr.mxu0 0.0
        %8181 = vmatpush1.msra.mxu0 0.0
        %8182 = vmatprep.subr.mxu0 0.0
        %8183 = vmatpush1.msra.mxu0 0.0
        %8184 = vmatprep.subr.mxu0 0.0
        %8185 = vmatpush1.msra.mxu0 0.0
        %8186 = vmatprep.mubr.f32.mxu0 0.0
        %8187 = vmatmul.mubr.f32.gmra.mrb[0].mxu0 %v8120
        %v8188 = vpop.f32.mrb[0].mxu0
        %v8189 = vadd.f32 0.0, %v8188
        %v8190 = vpop.f32.mrb[0].mxu0
        %8191 = vdwg.mxu0
        %vm8192 = vcmp.gt.f32.partialorder %v8189, 0.5
        %v8193 = vsel %vm8192, 1, 0
        %v8194 = vcvt.s32.f32 %v8193
        %8195 = vst.msk [vmem:[#allocation6 + $0x8] sm:$0xff] %vm2446, %v8194
        %v8196 = vld [vmem:[%s5] sm:$0xff]
        %v8197 = vld [vmem:[%s5 + $0x8] sm:$0xff]
        %v8198 = vld [vmem:[%s5 + $0x10] sm:$0xff]
        %v8199 = vld [vmem:[%s5 + $0x18] sm:$0xff]
        %s8200 = scalar_lea.vmem %s5, 32
        %v8201 = vld [vmem:[%s8200] sm:$0xff]
        %v8202 = vld [vmem:[%s8200 + $0x8] sm:$0xff]
        %v8203 = vld [vmem:[%s8200 + $0x10] sm:$0xff]
        %v8204 = vld [vmem:[%s8200 + $0x18] sm:$0xff]
        %s8205 = scalar_lea.vmem %s5, 64
        %v8206 = vld [vmem:[%s8205] sm:$0xff]
        %v8207 = vld [vmem:[%s8205 + $0x8] sm:$0xff]
        %v8208 = vld [vmem:[%s8205 + $0x10] sm:$0xff]
        %v8209 = vld [vmem:[%s8205 + $0x18] sm:$0xff]
        %v8210 = vld [vmem:[%s10] sm:$0x1]
        %v8211 = vld [vmem:[%s15] sm:$0xff]
        %v8212 = vld [vmem:[%s15 + $0x8] sm:$0xff]
        %v8213 = vld [vmem:[%s15 + $0x10] sm:$0xff]
        %v8214 = vld [vmem:[%s15 + $0x18] sm:$0xff]
        %v8215 = vld [vmem:[#allocation6 + $0x7] sm:$0xff]
        %v8216 = vld [vmem:[#allocation6 + $0x8] sm:$0xff]
        %v8218 = vsel %vm2446, %v8216, 0
        %8220 = vmatprep.subr.mxu0 0.0
        %8221 = vmatpush1.msra.mxu0 %v8201
        %8222 = vmatprep.subr.mxu0 0.0
        %8223 = vmatpush1.msra.mxu0 %v8202
        %8224 = vmatprep.subr.mxu0 0.0
        %8225 = vmatpush1.msra.mxu0 %v8203
        %8226 = vmatprep.subr.mxu0 0.0
        %8227 = vmatpush1.msra.mxu0 %v8204
        %8228 = vmatprep.subr.mxu0 0.0
        %8229 = vmatpush1.msra.mxu0 0.0
        %8230 = vmatprep.subr.mxu0 0.0
        %8231 = vmatpush1.msra.mxu0 0.0
        %8232 = vmatprep.subr.mxu0 0.0
        %8233 = vmatpush1.msra.mxu0 0.0
        %8234 = vmatprep.subr.mxu0 0.0
        %8235 = vmatpush1.msra.mxu0 0.0
        %8236 = vmatprep.subr.mxu0 0.0
        %8237 = vmatpush1.msra.mxu0 0.0
        %8238 = vmatprep.subr.mxu0 0.0
        %8239 = vmatpush1.msra.mxu0 0.0
        %8240 = vmatprep.subr.mxu0 0.0
        %8241 = vmatpush1.msra.mxu0 0.0
        %8242 = vmatprep.subr.mxu0 0.0
        %8243 = vmatpush1.msra.mxu0 0.0
        %8244 = vmatprep.subr.mxu0 0.0
        %8245 = vmatpush1.msra.mxu0 0.0
        %8246 = vmatprep.subr.mxu0 0.0
        %8247 = vmatpush1.msra.mxu0 0.0
        %8248 = vmatprep.subr.mxu0 0.0
        %8249 = vmatpush1.msra.mxu0 0.0
        %8250 = vmatprep.subr.mxu0 0.0
        %8251 = vmatpush1.msra.mxu0 0.0
        %8252 = vmatprep.subr.mxu0 0.0
        %8253 = vmatpush1.msra.mxu0 0.0
        %8254 = vmatprep.subr.mxu0 0.0
        %8255 = vmatpush1.msra.mxu0 0.0
        %8256 = vmatprep.subr.mxu0 0.0
        %8257 = vmatpush1.msra.mxu0 0.0
        %8258 = vmatprep.subr.mxu0 0.0
        %8259 = vmatpush1.msra.mxu0 0.0
        %8260 = vmatprep.subr.mxu0 0.0
        %8261 = vmatpush1.msra.mxu0 0.0
        %8262 = vmatprep.subr.mxu0 0.0
        %8263 = vmatpush1.msra.mxu0 0.0
        %8264 = vmatprep.subr.mxu0 0.0
        %8265 = vmatpush1.msra.mxu0 0.0
        %8266 = vmatprep.subr.mxu0 0.0
        %8267 = vmatpush1.msra.mxu0 0.0
        %8268 = vmatprep.subr.mxu0 0.0
        %8269 = vmatpush1.msra.mxu0 0.0
        %8270 = vmatprep.subr.mxu0 0.0
        %8271 = vmatpush1.msra.mxu0 0.0
        %8272 = vmatprep.subr.mxu0 0.0
        %8273 = vmatpush1.msra.mxu0 0.0
        %8274 = vmatprep.subr.mxu0 0.0
        %8275 = vmatpush1.msra.mxu0 0.0
        %8276 = vmatprep.subr.mxu0 0.0
        %8277 = vmatpush1.msra.mxu0 0.0
        %8278 = vmatprep.subr.mxu0 0.0
        %8279 = vmatpush1.msra.mxu0 0.0
        %8280 = vmatprep.subr.mxu0 0.0
        %8281 = vmatpush1.msra.mxu0 0.0
        %8282 = vmatprep.subr.mxu0 0.0
        %8283 = vmatpush1.msra.mxu0 0.0
        %8284 = vmatprep.mubr.f32.mxu0 0.0
        %8285 = vmatmul.mubr.f32.gmra.mrb[0].mxu0 %v8218
        %v8286 = vpop.f32.mrb[0].mxu0
        %v8287 = vadd.f32 0.0, %v8286
        %v8288 = vpop.f32.mrb[0].mxu0
        %8289 = vdwg.mxu0
        %v8291 = vsel %vm2446, %v8215, 0
        %8293 = vmatprep.subr.mxu0 0.0
        %8294 = vmatpush1.msra.mxu0 %v8196
        %8295 = vmatprep.subr.mxu0 0.0
        %8296 = vmatpush1.msra.mxu0 %v8197
        %8297 = vmatprep.subr.mxu0 0.0
        %8298 = vmatpush1.msra.mxu0 %v8198
        %8299 = vmatprep.subr.mxu0 0.0
        %8300 = vmatpush1.msra.mxu0 %v8199
        %8301 = vmatprep.subr.mxu0 0.0
        %8302 = vmatpush1.msra.mxu0 0.0
        %8303 = vmatprep.subr.mxu0 0.0
        %8304 = vmatpush1.msra.mxu0 0.0
        %8305 = vmatprep.subr.mxu0 0.0
        %8306 = vmatpush1.msra.mxu0 0.0
        %8307 = vmatprep.subr.mxu0 0.0
        %8308 = vmatpush1.msra.mxu0 0.0
        %8309 = vmatprep.subr.mxu0 0.0
        %8310 = vmatpush1.msra.mxu0 0.0
        %8311 = vmatprep.subr.mxu0 0.0
        %8312 = vmatpush1.msra.mxu0 0.0
        %8313 = vmatprep.subr.mxu0 0.0
        %8314 = vmatpush1.msra.mxu0 0.0
        %8315 = vmatprep.subr.mxu0 0.0
        %8316 = vmatpush1.msra.mxu0 0.0
        %8317 = vmatprep.subr.mxu0 0.0
        %8318 = vmatpush1.msra.mxu0 0.0
        %8319 = vmatprep.subr.mxu0 0.0
        %8320 = vmatpush1.msra.mxu0 0.0
        %8321 = vmatprep.subr.mxu0 0.0
        %8322 = vmatpush1.msra.mxu0 0.0
        %8323 = vmatprep.subr.mxu0 0.0
        %8324 = vmatpush1.msra.mxu0 0.0
        %8325 = vmatprep.subr.mxu0 0.0
        %8326 = vmatpush1.msra.mxu0 0.0
        %8327 = vmatprep.subr.mxu0 0.0
        %8328 = vmatpush1.msra.mxu0 0.0
        %8329 = vmatprep.subr.mxu0 0.0
        %8330 = vmatpush1.msra.mxu0 0.0
        %8331 = vmatprep.subr.mxu0 0.0
        %8332 = vmatpush1.msra.mxu0 0.0
        %8333 = vmatprep.subr.mxu0 0.0
        %8334 = vmatpush1.msra.mxu0 0.0
        %8335 = vmatprep.subr.mxu0 0.0
        %8336 = vmatpush1.msra.mxu0 0.0
        %8337 = vmatprep.subr.mxu0 0.0
        %8338 = vmatpush1.msra.mxu0 0.0
        %8339 = vmatprep.subr.mxu0 0.0
        %8340 = vmatpush1.msra.mxu0 0.0
        %8341 = vmatprep.subr.mxu0 0.0
        %8342 = vmatpush1.msra.mxu0 0.0
        %8343 = vmatprep.subr.mxu0 0.0
        %8344 = vmatpush1.msra.mxu0 0.0
        %8345 = vmatprep.subr.mxu0 0.0
        %8346 = vmatpush1.msra.mxu0 0.0
        %8347 = vmatprep.subr.mxu0 0.0
        %8348 = vmatpush1.msra.mxu0 0.0
        %8349 = vmatprep.subr.mxu0 0.0
        %8350 = vmatpush1.msra.mxu0 0.0
        %8351 = vmatprep.subr.mxu0 0.0
        %8352 = vmatpush1.msra.mxu0 0.0
        %8353 = vmatprep.subr.mxu0 0.0
        %8354 = vmatpush1.msra.mxu0 0.0
        %8355 = vmatprep.subr.mxu0 0.0
        %8356 = vmatpush1.msra.mxu0 0.0
        %8357 = vmatprep.mubr.f32.mxu0 0.0
        %8358 = vmatmul.mubr.f32.gmra.mrb[0].mxu0 %v8291
        %v8359 = vpop.f32.mrb[0].mxu0
        %v8360 = vadd.f32 %v8287, %v8359
        %v8361 = vpop.f32.mrb[0].mxu0
        %8362 = vdwg.mxu0
        %v8363 = vld [vmem:[#allocation6 + $0x9] sm:$0xff]
        %v8365 = vsel %vm2446, %v8363, 0
        %8367 = vmatprep.subr.mxu0 0.0
        %8368 = vmatpush1.msra.mxu0 %v8206
        %8369 = vmatprep.subr.mxu0 0.0
        %8370 = vmatpush1.msra.mxu0 %v8207
        %8371 = vmatprep.subr.mxu0 0.0
        %8372 = vmatpush1.msra.mxu0 %v8208
        %8373 = vmatprep.subr.mxu0 0.0
        %8374 = vmatpush1.msra.mxu0 %v8209
        %8375 = vmatprep.subr.mxu0 0.0
        %8376 = vmatpush1.msra.mxu0 0.0
        %8377 = vmatprep.subr.mxu0 0.0
        %8378 = vmatpush1.msra.mxu0 0.0
        %8379 = vmatprep.subr.mxu0 0.0
        %8380 = vmatpush1.msra.mxu0 0.0
        %8381 = vmatprep.subr.mxu0 0.0
        %8382 = vmatpush1.msra.mxu0 0.0
        %8383 = vmatprep.subr.mxu0 0.0
        %8384 = vmatpush1.msra.mxu0 0.0
        %8385 = vmatprep.subr.mxu0 0.0
        %8386 = vmatpush1.msra.mxu0 0.0
        %8387 = vmatprep.subr.mxu0 0.0
        %8388 = vmatpush1.msra.mxu0 0.0
        %8389 = vmatprep.subr.mxu0 0.0
        %8390 = vmatpush1.msra.mxu0 0.0
        %8391 = vmatprep.subr.mxu0 0.0
        %8392 = vmatpush1.msra.mxu0 0.0
        %8393 = vmatprep.subr.mxu0 0.0
        %8394 = vmatpush1.msra.mxu0 0.0
        %8395 = vmatprep.subr.mxu0 0.0
        %8396 = vmatpush1.msra.mxu0 0.0
        %8397 = vmatprep.subr.mxu0 0.0
        %8398 = vmatpush1.msra.mxu0 0.0
        %8399 = vmatprep.subr.mxu0 0.0
        %8400 = vmatpush1.msra.mxu0 0.0
        %8401 = vmatprep.subr.mxu0 0.0
        %8402 = vmatpush1.msra.mxu0 0.0
        %8403 = vmatprep.subr.mxu0 0.0
        %8404 = vmatpush1.msra.mxu0 0.0
        %8405 = vmatprep.subr.mxu0 0.0
        %8406 = vmatpush1.msra.mxu0 0.0
        %8407 = vmatprep.subr.mxu0 0.0
        %8408 = vmatpush1.msra.mxu0 0.0
        %8409 = vmatprep.subr.mxu0 0.0
        %8410 = vmatpush1.msra.mxu0 0.0
        %8411 = vmatprep.subr.mxu0 0.0
        %8412 = vmatpush1.msra.mxu0 0.0
        %8413 = vmatprep.subr.mxu0 0.0
        %8414 = vmatpush1.msra.mxu0 0.0
        %8415 = vmatprep.subr.mxu0 0.0
        %8416 = vmatpush1.msra.mxu0 0.0
        %8417 = vmatprep.subr.mxu0 0.0
        %8418 = vmatpush1.msra.mxu0 0.0
        %8419 = vmatprep.subr.mxu0 0.0
        %8420 = vmatpush1.msra.mxu0 0.0
        %8421 = vmatprep.subr.mxu0 0.0
        %8422 = vmatpush1.msra.mxu0 0.0
        %8423 = vmatprep.subr.mxu0 0.0
        %8424 = vmatpush1.msra.mxu0 0.0
        %8425 = vmatprep.subr.mxu0 0.0
        %8426 = vmatpush1.msra.mxu0 0.0
        %8427 = vmatprep.subr.mxu0 0.0
        %8428 = vmatpush1.msra.mxu0 0.0
        %8429 = vmatprep.subr.mxu0 0.0
        %8430 = vmatpush1.msra.mxu0 0.0
        %8431 = vmatprep.mubr.f32.mxu0 0.0
        %8432 = vmatmul.mubr.f32.gmra.mrb[0].mxu0 %v8365
        %v8433 = vpop.f32.mrb[0].mxu0
        %v8434 = vadd.f32 0.0, %v8433
        %v8435 = vpop.f32.mrb[0].mxu0
        %8436 = vdwg.mxu0
        %v8437 = vadd.f32 %v8360, %v8434
        %v8439 = vlaneseq
        %v8440 = vshrl.u32 %v8439, 7
        %v8441 = vsub.s32 0, %v8440
        %v8442 = vrot.slane %v8210, %v8441
        %v8444 = vadd.f32 %v8437, %v8442
        %v8445 = vld [vmem:[#allocation11] sm:$0xff]
        %v8446 = vadd.f32 %v8445, %v8444
        %v8447 = vmul.f32 %v8446, 0.5
        %vm8448 = vcmp.ge.f32.partialorder %v8447, 1.0
        %v8449 = vsel %vm8448, 0.0, %v8447
        %8450 = vst.msk [vmem:[#allocation11] sm:$0xff] %vm2446, %v8449
        %v8451 = vsel %vm8448, 1, 0
        %v8452 = vcvt.s32.f32 %v8451
        %v8454 = vsel %vm2446, %v8452, 0
        %8456 = vmatprep.subr.mxu0 0.0
        %8457 = vmatpush1.msra.mxu0 %v8211
        %8458 = vmatprep.subr.mxu0 0.0
        %8459 = vmatpush1.msra.mxu0 %v8212
        %8460 = vmatprep.subr.mxu0 0.0
        %8461 = vmatpush1.msra.mxu0 %v8213
        %8462 = vmatprep.subr.mxu0 0.0
        %8463 = vmatpush1.msra.mxu0 %v8214
        %8464 = vmatprep.subr.mxu0 0.0
        %8465 = vmatpush1.msra.mxu0 0.0
        %8466 = vmatprep.subr.mxu0 0.0
        %8467 = vmatpush1.msra.mxu0 0.0
        %8468 = vmatprep.subr.mxu0 0.0
        %8469 = vmatpush1.msra.mxu0 0.0
        %8470 = vmatprep.subr.mxu0 0.0
        %8471 = vmatpush1.msra.mxu0 0.0
        %8472 = vmatprep.subr.mxu0 0.0
        %8473 = vmatpush1.msra.mxu0 0.0
        %8474 = vmatprep.subr.mxu0 0.0
        %8475 = vmatpush1.msra.mxu0 0.0
        %8476 = vmatprep.subr.mxu0 0.0
        %8477 = vmatpush1.msra.mxu0 0.0
        %8478 = vmatprep.subr.mxu0 0.0
        %8479 = vmatpush1.msra.mxu0 0.0
        %8480 = vmatprep.subr.mxu0 0.0
        %8481 = vmatpush1.msra.mxu0 0.0
        %8482 = vmatprep.subr.mxu0 0.0
        %8483 = vmatpush1.msra.mxu0 0.0
        %8484 = vmatprep.subr.mxu0 0.0
        %8485 = vmatpush1.msra.mxu0 0.0
        %8486 = vmatprep.subr.mxu0 0.0
        %8487 = vmatpush1.msra.mxu0 0.0
        %8488 = vmatprep.subr.mxu0 0.0
        %8489 = vmatpush1.msra.mxu0 0.0
        %8490 = vmatprep.subr.mxu0 0.0
        %8491 = vmatpush1.msra.mxu0 0.0
        %8492 = vmatprep.subr.mxu0 0.0
        %8493 = vmatpush1.msra.mxu0 0.0
        %8494 = vmatprep.subr.mxu0 0.0
        %8495 = vmatpush1.msra.mxu0 0.0
        %8496 = vmatprep.subr.mxu0 0.0
        %8497 = vmatpush1.msra.mxu0 0.0
        %8498 = vmatprep.subr.mxu0 0.0
        %8499 = vmatpush1.msra.mxu0 0.0
        %8500 = vmatprep.subr.mxu0 0.0
        %8501 = vmatpush1.msra.mxu0 0.0
        %8502 = vmatprep.subr.mxu0 0.0
        %8503 = vmatpush1.msra.mxu0 0.0
        %8504 = vmatprep.subr.mxu0 0.0
        %8505 = vmatpush1.msra.mxu0 0.0
        %8506 = vmatprep.subr.mxu0 0.0
        %8507 = vmatpush1.msra.mxu0 0.0
        %8508 = vmatprep.subr.mxu0 0.0
        %8509 = vmatpush1.msra.mxu0 0.0
        %8510 = vmatprep.subr.mxu0 0.0
        %8511 = vmatpush1.msra.mxu0 0.0
        %8512 = vmatprep.subr.mxu0 0.0
        %8513 = vmatpush1.msra.mxu0 0.0
        %8514 = vmatprep.subr.mxu0 0.0
        %8515 = vmatpush1.msra.mxu0 0.0
        %8516 = vmatprep.subr.mxu0 0.0
        %8517 = vmatpush1.msra.mxu0 0.0
        %8518 = vmatprep.subr.mxu0 0.0
        %8519 = vmatpush1.msra.mxu0 0.0
        %8520 = vmatprep.mubr.f32.mxu0 0.0
        %8521 = vmatmul.mubr.f32.gmra.mrb[0].mxu0 %v8454
        %v8522 = vpop.f32.mrb[0].mxu0
        %v8523 = vadd.f32 0.0, %v8522
        %v8524 = vpop.f32.mrb[0].mxu0
        %8525 = vdwg.mxu0
        %vm8526 = vcmask 64512
        %v8527 = vsel %vm8526, %v940, 0
        %8529 = vmatprep.subr.mxu0 0.0
        %8530 = vmatpush1.msra.mxu0 %v8523
        %8531 = vmatprep.subr.mxu0 0.0
        %8532 = vmatpush1.msra.mxu0 0.0
        %8533 = vmatprep.subr.mxu0 0.0
        %8534 = vmatpush1.msra.mxu0 0.0
        %8535 = vmatprep.subr.mxu0 0.0
        %8536 = vmatpush1.msra.mxu0 0.0
        %8537 = vmatprep.subr.mxu0 0.0
        %8538 = vmatpush1.msra.mxu0 0.0
        %8539 = vmatprep.subr.mxu0 0.0
        %8540 = vmatpush1.msra.mxu0 0.0
        %8541 = vmatprep.subr.mxu0 0.0
        %8542 = vmatpush1.msra.mxu0 0.0
        %8543 = vmatprep.subr.mxu0 0.0
        %8544 = vmatpush1.msra.mxu0 0.0
        %8545 = vmatprep.subr.mxu0 0.0
        %8546 = vmatpush1.msra.mxu0 0.0
        %8547 = vmatprep.subr.mxu0 0.0
        %8548 = vmatpush1.msra.mxu0 0.0
        %8549 = vmatprep.subr.mxu0 0.0
        %8550 = vmatpush1.msra.mxu0 0.0
        %8551 = vmatprep.subr.mxu0 0.0
        %8552 = vmatpush1.msra.mxu0 0.0
        %8553 = vmatprep.subr.mxu0 0.0
        %8554 = vmatpush1.msra.mxu0 0.0
        %8555 = vmatprep.subr.mxu0 0.0
        %8556 = vmatpush1.msra.mxu0 0.0
        %8557 = vmatprep.subr.mxu0 0.0
        %8558 = vmatpush1.msra.mxu0 0.0
        %8559 = vmatprep.subr.mxu0 0.0
        %8560 = vmatpush1.msra.mxu0 0.0
        %8561 = vmatprep.subr.mxu0 0.0
        %8562 = vmatpush1.msra.mxu0 0.0
        %8563 = vmatprep.subr.mxu0 0.0
        %8564 = vmatpush1.msra.mxu0 0.0
        %8565 = vmatprep.subr.mxu0 0.0
        %8566 = vmatpush1.msra.mxu0 0.0
        %8567 = vmatprep.subr.mxu0 0.0
        %8568 = vmatpush1.msra.mxu0 0.0
        %8569 = vmatprep.subr.mxu0 0.0
        %8570 = vmatpush1.msra.mxu0 0.0
        %8571 = vmatprep.subr.mxu0 0.0
        %8572 = vmatpush1.msra.mxu0 0.0
        %8573 = vmatprep.subr.mxu0 0.0
        %8574 = vmatpush1.msra.mxu0 0.0
        %8575 = vmatprep.subr.mxu0 0.0
        %8576 = vmatpush1.msra.mxu0 0.0
        %8577 = vmatprep.subr.mxu0 0.0
        %8578 = vmatpush1.msra.mxu0 0.0
        %8579 = vmatprep.subr.mxu0 0.0
        %8580 = vmatpush1.msra.mxu0 0.0
        %8581 = vmatprep.subr.mxu0 0.0
        %8582 = vmatpush1.msra.mxu0 0.0
        %8583 = vmatprep.subr.mxu0 0.0
        %8584 = vmatpush1.msra.mxu0 0.0
        %8585 = vmatprep.subr.mxu0 0.0
        %8586 = vmatpush1.msra.mxu0 0.0
        %8587 = vmatprep.subr.mxu0 0.0
        %8588 = vmatpush1.msra.mxu0 0.0
        %8589 = vmatprep.subr.mxu0 0.0
        %8590 = vmatpush1.msra.mxu0 0.0
        %8591 = vmatprep.subr.mxu0 0.0
        %8592 = vmatpush1.msra.mxu0 0.0
        %8593 = vmatprep.mubr.f32.mxu0 0.0
        %8594 = vmatmul.mubr.f32.gmra.mrb[0].mxu0 %v8527
        %v8595 = vpop.f32.mrb[0].mxu0
        %v8596 = vadd.f32 0.0, %v8595
        %v8597 = vpop.f32.mrb[0].mxu0
        %8598 = vdwg.mxu0
        %vm8599 = vcmp.gt.f32.partialorder %v8596, 0.5
        %v8600 = vsel %vm8599, 1, 0
        %v8601 = vcvt.s32.f32 %v8600
        %s8602 = smul.u32 %s45, 4
        %s8603 = scalar_lea.vmem %s729, %s8602
        %vm8604 = vcmask 125952
        %8605 = vst.msk [vmem:[%s8603] sm:$0xf] %vm8604, %v8601
        %v8606 = vld [vmem:[%s17] sm:$0xff]
        %v8607 = vld [vmem:[%s17 + $0x8] sm:$0xff]
        %v8608 = vld [vmem:[%s17 + $0x10] sm:$0xff]
        %v8609 = vld [vmem:[%s17 + $0x18] sm:$0xff]
        %v8611 = vrot.slane %v8601, 1
        %v8612 = vsel %vm8119, %v8611, 0
        %8614 = vmatprep.subr.mxu0 0.0
        %8615 = vmatpush1.msra.mxu0 %v8608
        %8616 = vmatprep.subr.mxu0 0.0
        %8617 = vmatpush1.msra.mxu0 %v8609
        %8618 = vmatprep.subr.mxu0 0.0
        %8619 = vmatpush1.msra.mxu0 0.0
        %8620 = vmatprep.subr.mxu0 0.0
        %8621 = vmatpush1.msra.mxu0 0.0
        %8622 = vmatprep.subr.mxu0 0.0
        %8623 = vmatpush1.msra.mxu0 0.0
        %8624 = vmatprep.subr.mxu0 0.0
        %8625 = vmatpush1.msra.mxu0 0.0
        %8626 = vmatprep.subr.mxu0 0.0
        %8627 = vmatpush1.msra.mxu0 0.0
        %8628 = vmatprep.subr.mxu0 0.0
        %8629 = vmatpush1.msra.mxu0 0.0
        %8630 = vmatprep.subr.mxu0 0.0
        %8631 = vmatpush1.msra.mxu0 0.0
        %8632 = vmatprep.subr.mxu0 0.0
        %8633 = vmatpush1.msra.mxu0 0.0
        %8634 = vmatprep.subr.mxu0 0.0
        %8635 = vmatpush1.msra.mxu0 0.0
        %8636 = vmatprep.subr.mxu0 0.0
        %8637 = vmatpush1.msra.mxu0 0.0
        %8638 = vmatprep.subr.mxu0 0.0
        %8639 = vmatpush1.msra.mxu0 0.0
        %8640 = vmatprep.subr.mxu0 0.0
        %8641 = vmatpush1.msra.mxu0 0.0
        %8642 = vmatprep.subr.mxu0 0.0
        %8643 = vmatpush1.msra.mxu0 0.0
        %8644 = vmatprep.subr.mxu0 0.0
        %8645 = vmatpush1.msra.mxu0 0.0
        %8646 = vmatprep.subr.mxu0 0.0
        %8647 = vmatpush1.msra.mxu0 0.0
        %8648 = vmatprep.subr.mxu0 0.0
        %8649 = vmatpush1.msra.mxu0 0.0
        %8650 = vmatprep.subr.mxu0 0.0
        %8651 = vmatpush1.msra.mxu0 0.0
        %8652 = vmatprep.subr.mxu0 0.0
        %8653 = vmatpush1.msra.mxu0 0.0
        %8654 = vmatprep.subr.mxu0 0.0
        %8655 = vmatpush1.msra.mxu0 0.0
        %8656 = vmatprep.subr.mxu0 0.0
        %8657 = vmatpush1.msra.mxu0 0.0
        %8658 = vmatprep.subr.mxu0 0.0
        %8659 = vmatpush1.msra.mxu0 0.0
        %8660 = vmatprep.subr.mxu0 0.0
        %8661 = vmatpush1.msra.mxu0 0.0
        %8662 = vmatprep.subr.mxu0 0.0
        %8663 = vmatpush1.msra.mxu0 0.0
        %8664 = vmatprep.subr.mxu0 0.0
        %8665 = vmatpush1.msra.mxu0 0.0
        %8666 = vmatprep.subr.mxu0 0.0
        %8667 = vmatpush1.msra.mxu0 0.0
        %8668 = vmatprep.subr.mxu0 0.0
        %8669 = vmatpush1.msra.mxu0 0.0
        %8670 = vmatprep.subr.mxu0 0.0
        %8671 = vmatpush1.msra.mxu0 0.0
        %8672 = vmatprep.subr.mxu0 0.0
        %8673 = vmatpush1.msra.mxu0 0.0
        %8674 = vmatprep.subr.mxu0 0.0
        %8675 = vmatpush1.msra.mxu0 0.0
        %8676 = vmatprep.subr.mxu0 0.0
        %8677 = vmatpush1.msra.mxu0 0.0
        %8678 = vmatprep.mubr.f32.mxu0 0.0
        %8679 = vmatmul.mubr.f32.gmra.mrb[0].mxu0 %v8612
        %v8680 = vpop.f32.mrb[0].mxu0
        %v8681 = vadd.f32 0.0, %v8680
        %v8682 = vpop.f32.mrb[0].mxu0
        %8683 = vdwg.mxu0
        %v8684 = vsel %vm8119, %v8601, 0
        %8686 = vmatprep.subr.mxu0 0.0
        %8687 = vmatpush1.msra.mxu0 %v8606
        %8688 = vmatprep.subr.mxu0 0.0
        %8689 = vmatpush1.msra.mxu0 %v8607
        %8690 = vmatprep.subr.mxu0 0.0
        %8691 = vmatpush1.msra.mxu0 0.0
        %8692 = vmatprep.subr.mxu0 0.0
        %8693 = vmatpush1.msra.mxu0 0.0
        %8694 = vmatprep.subr.mxu0 0.0
        %8695 = vmatpush1.msra.mxu0 0.0
        %8696 = vmatprep.subr.mxu0 0.0
        %8697 = vmatpush1.msra.mxu0 0.0
        %8698 = vmatprep.subr.mxu0 0.0
        %8699 = vmatpush1.msra.mxu0 0.0
        %8700 = vmatprep.subr.mxu0 0.0
        %8701 = vmatpush1.msra.mxu0 0.0
        %8702 = vmatprep.subr.mxu0 0.0
        %8703 = vmatpush1.msra.mxu0 0.0
        %8704 = vmatprep.subr.mxu0 0.0
        %8705 = vmatpush1.msra.mxu0 0.0
        %8706 = vmatprep.subr.mxu0 0.0
        %8707 = vmatpush1.msra.mxu0 0.0
        %8708 = vmatprep.subr.mxu0 0.0
        %8709 = vmatpush1.msra.mxu0 0.0
        %8710 = vmatprep.subr.mxu0 0.0
        %8711 = vmatpush1.msra.mxu0 0.0
        %8712 = vmatprep.subr.mxu0 0.0
        %8713 = vmatpush1.msra.mxu0 0.0
        %8714 = vmatprep.subr.mxu0 0.0
        %8715 = vmatpush1.msra.mxu0 0.0
        %8716 = vmatprep.subr.mxu0 0.0
        %8717 = vmatpush1.msra.mxu0 0.0
        %8718 = vmatprep.subr.mxu0 0.0
        %8719 = vmatpush1.msra.mxu0 0.0
        %8720 = vmatprep.subr.mxu0 0.0
        %8721 = vmatpush1.msra.mxu0 0.0
        %8722 = vmatprep.subr.mxu0 0.0
        %8723 = vmatpush1.msra.mxu0 0.0
        %8724 = vmatprep.subr.mxu0 0.0
        %8725 = vmatpush1.msra.mxu0 0.0
        %8726 = vmatprep.subr.mxu0 0.0
        %8727 = vmatpush1.msra.mxu0 0.0
        %8728 = vmatprep.subr.mxu0 0.0
        %8729 = vmatpush1.msra.mxu0 0.0
        %8730 = vmatprep.subr.mxu0 0.0
        %8731 = vmatpush1.msra.mxu0 0.0
        %8732 = vmatprep.subr.mxu0 0.0
        %8733 = vmatpush1.msra.mxu0 0.0
        %8734 = vmatprep.subr.mxu0 0.0
        %8735 = vmatpush1.msra.mxu0 0.0
        %8736 = vmatprep.subr.mxu0 0.0
        %8737 = vmatpush1.msra.mxu0 0.0
        %8738 = vmatprep.subr.mxu0 0.0
        %8739 = vmatpush1.msra.mxu0 0.0
        %8740 = vmatprep.subr.mxu0 0.0
        %8741 = vmatpush1.msra.mxu0 0.0
        %8742 = vmatprep.subr.mxu0 0.0
        %8743 = vmatpush1.msra.mxu0 0.0
        %8744 = vmatprep.subr.mxu0 0.0
        %8745 = vmatpush1.msra.mxu0 0.0
        %8746 = vmatprep.subr.mxu0 0.0
        %8747 = vmatpush1.msra.mxu0 0.0
        %8748 = vmatprep.subr.mxu0 0.0
        %8749 = vmatpush1.msra.mxu0 0.0
        %8750 = vmatprep.mubr.f32.mxu0 0.0
        %8751 = vmatmul.mubr.f32.gmra.mrb[0].mxu0 %v8684
        %v8752 = vpop.f32.mrb[0].mxu0
        %v8753 = vadd.f32 %v8681, %v8752
        %v8754 = vpop.f32.mrb[0].mxu0
        %8755 = vdwg.mxu0
        %v8756 = vld [vmem:[%s17 + $0x20] sm:$0xff]
        %v8757 = vld [vmem:[%s17 + $0x28] sm:$0xff]
        %v8758 = vrot.slane %v8601, 2
        %v8759 = vsel %vm8119, %v8758, 0
        %8761 = vmatprep.subr.mxu0 0.0
        %8762 = vmatpush1.msra.mxu0 %v8756
        %8763 = vmatprep.subr.mxu0 0.0
        %8764 = vmatpush1.msra.mxu0 %v8757
        %8765 = vmatprep.subr.mxu0 0.0
        %8766 = vmatpush1.msra.mxu0 0.0
        %8767 = vmatprep.subr.mxu0 0.0
        %8768 = vmatpush1.msra.mxu0 0.0
        %8769 = vmatprep.subr.mxu0 0.0
        %8770 = vmatpush1.msra.mxu0 0.0
        %8771 = vmatprep.subr.mxu0 0.0
        %8772 = vmatpush1.msra.mxu0 0.0
        %8773 = vmatprep.subr.mxu0 0.0
        %8774 = vmatpush1.msra.mxu0 0.0
        %8775 = vmatprep.subr.mxu0 0.0
        %8776 = vmatpush1.msra.mxu0 0.0
        %8777 = vmatprep.subr.mxu0 0.0
        %8778 = vmatpush1.msra.mxu0 0.0
        %8779 = vmatprep.subr.mxu0 0.0
        %8780 = vmatpush1.msra.mxu0 0.0
        %8781 = vmatprep.subr.mxu0 0.0
        %8782 = vmatpush1.msra.mxu0 0.0
        %8783 = vmatprep.subr.mxu0 0.0
        %8784 = vmatpush1.msra.mxu0 0.0
        %8785 = vmatprep.subr.mxu0 0.0
        %8786 = vmatpush1.msra.mxu0 0.0
        %8787 = vmatprep.subr.mxu0 0.0
        %8788 = vmatpush1.msra.mxu0 0.0
        %8789 = vmatprep.subr.mxu0 0.0
        %8790 = vmatpush1.msra.mxu0 0.0
        %8791 = vmatprep.subr.mxu0 0.0
        %8792 = vmatpush1.msra.mxu0 0.0
        %8793 = vmatprep.subr.mxu0 0.0
        %8794 = vmatpush1.msra.mxu0 0.0
        %8795 = vmatprep.subr.mxu0 0.0
        %8796 = vmatpush1.msra.mxu0 0.0
        %8797 = vmatprep.subr.mxu0 0.0
        %8798 = vmatpush1.msra.mxu0 0.0
        %8799 = vmatprep.subr.mxu0 0.0
        %8800 = vmatpush1.msra.mxu0 0.0
        %8801 = vmatprep.subr.mxu0 0.0
        %8802 = vmatpush1.msra.mxu0 0.0
        %8803 = vmatprep.subr.mxu0 0.0
        %8804 = vmatpush1.msra.mxu0 0.0
        %8805 = vmatprep.subr.mxu0 0.0
        %8806 = vmatpush1.msra.mxu0 0.0
        %8807 = vmatprep.subr.mxu0 0.0
        %8808 = vmatpush1.msra.mxu0 0.0
        %8809 = vmatprep.subr.mxu0 0.0
        %8810 = vmatpush1.msra.mxu0 0.0
        %8811 = vmatprep.subr.mxu0 0.0
        %8812 = vmatpush1.msra.mxu0 0.0
        %8813 = vmatprep.subr.mxu0 0.0
        %8814 = vmatpush1.msra.mxu0 0.0
        %8815 = vmatprep.subr.mxu0 0.0
        %8816 = vmatpush1.msra.mxu0 0.0
        %8817 = vmatprep.subr.mxu0 0.0
        %8818 = vmatpush1.msra.mxu0 0.0
        %8819 = vmatprep.subr.mxu0 0.0
        %8820 = vmatpush1.msra.mxu0 0.0
        %8821 = vmatprep.subr.mxu0 0.0
        %8822 = vmatpush1.msra.mxu0 0.0
        %8823 = vmatprep.subr.mxu0 0.0
        %8824 = vmatpush1.msra.mxu0 0.0
        %8825 = vmatprep.mubr.f32.mxu0 0.0
        %8826 = vmatmul.mubr.f32.gmra.mrb[0].mxu0 %v8759
        %v8827 = vpop.f32.mrb[0].mxu0
        %v8828 = vadd.f32 0.0, %v8827
        %v8829 = vpop.f32.mrb[0].mxu0
        %8830 = vdwg.mxu0
        %v8831 = vadd.f32 %v8753, %v8828
        %v8832 = vld [vmem:[%s17 + $0x30] sm:$0xff]
        %v8833 = vld [vmem:[%s17 + $0x38] sm:$0xff]
        %v8834 = vrot.slane %v8601, 3
        %v8835 = vsel %vm8119, %v8834, 0
        %8837 = vmatprep.subr.mxu0 0.0
        %8838 = vmatpush1.msra.mxu0 %v8832
        %8839 = vmatprep.subr.mxu0 0.0
        %8840 = vmatpush1.msra.mxu0 %v8833
        %8841 = vmatprep.subr.mxu0 0.0
        %8842 = vmatpush1.msra.mxu0 0.0
        %8843 = vmatprep.subr.mxu0 0.0
        %8844 = vmatpush1.msra.mxu0 0.0
        %8845 = vmatprep.subr.mxu0 0.0
        %8846 = vmatpush1.msra.mxu0 0.0
        %8847 = vmatprep.subr.mxu0 0.0
        %8848 = vmatpush1.msra.mxu0 0.0
        %8849 = vmatprep.subr.mxu0 0.0
        %8850 = vmatpush1.msra.mxu0 0.0
        %8851 = vmatprep.subr.mxu0 0.0
        %8852 = vmatpush1.msra.mxu0 0.0
        %8853 = vmatprep.subr.mxu0 0.0
        %8854 = vmatpush1.msra.mxu0 0.0
        %8855 = vmatprep.subr.mxu0 0.0
        %8856 = vmatpush1.msra.mxu0 0.0
        %8857 = vmatprep.subr.mxu0 0.0
        %8858 = vmatpush1.msra.mxu0 0.0
        %8859 = vmatprep.subr.mxu0 0.0
        %8860 = vmatpush1.msra.mxu0 0.0
        %8861 = vmatprep.subr.mxu0 0.0
        %8862 = vmatpush1.msra.mxu0 0.0
        %8863 = vmatprep.subr.mxu0 0.0
        %8864 = vmatpush1.msra.mxu0 0.0
        %8865 = vmatprep.subr.mxu0 0.0
        %8866 = vmatpush1.msra.mxu0 0.0
        %8867 = vmatprep.subr.mxu0 0.0
        %8868 = vmatpush1.msra.mxu0 0.0
        %8869 = vmatprep.subr.mxu0 0.0
        %8870 = vmatpush1.msra.mxu0 0.0
        %8871 = vmatprep.subr.mxu0 0.0
        %8872 = vmatpush1.msra.mxu0 0.0
        %8873 = vmatprep.subr.mxu0 0.0
        %8874 = vmatpush1.msra.mxu0 0.0
        %8875 = vmatprep.subr.mxu0 0.0
        %8876 = vmatpush1.msra.mxu0 0.0
        %8877 = vmatprep.subr.mxu0 0.0
        %8878 = vmatpush1.msra.mxu0 0.0
        %8879 = vmatprep.subr.mxu0 0.0
        %8880 = vmatpush1.msra.mxu0 0.0
        %8881 = vmatprep.subr.mxu0 0.0
        %8882 = vmatpush1.msra.mxu0 0.0
        %8883 = vmatprep.subr.mxu0 0.0
        %8884 = vmatpush1.msra.mxu0 0.0
        %8885 = vmatprep.subr.mxu0 0.0
        %8886 = vmatpush1.msra.mxu0 0.0
        %8887 = vmatprep.subr.mxu0 0.0
        %8888 = vmatpush1.msra.mxu0 0.0
        %8889 = vmatprep.subr.mxu0 0.0
        %8890 = vmatpush1.msra.mxu0 0.0
        %8891 = vmatprep.subr.mxu0 0.0
        %8892 = vmatpush1.msra.mxu0 0.0
        %8893 = vmatprep.subr.mxu0 0.0
        %8894 = vmatpush1.msra.mxu0 0.0
        %8895 = vmatprep.subr.mxu0 0.0
        %8896 = vmatpush1.msra.mxu0 0.0
        %8897 = vmatprep.subr.mxu0 0.0
        %8898 = vmatpush1.msra.mxu0 0.0
        %8899 = vmatprep.subr.mxu0 0.0
        %8900 = vmatpush1.msra.mxu0 0.0
        %8901 = vmatprep.mubr.f32.mxu0 0.0
        %8902 = vmatmul.mubr.f32.gmra.mrb[0].mxu0 %v8835
        %v8903 = vpop.f32.mrb[0].mxu0
        %v8904 = vadd.f32 0.0, %v8903
        %v8905 = vpop.f32.mrb[0].mxu0
        %8906 = vdwg.mxu0
        %v8907 = vadd.f32 %v8831, %v8904
        %v8908 = vld [vmem:[#allocation12] sm:$0x1]
        %v8909 = vadd.f32 %v8908, %v8907
        %v8910 = vmul.f32 %v8909, 0.5
        %vm8911 = vcmp.ge.f32.partialorder %v8910, 1.0
        %v8912 = vsel %vm8911, 0.0, %v8910
        %vm8913 = vcmask 253952
        %8914 = vst.msk [vmem:[#allocation12] sm:$0x1] %vm8913, %v8912
        %v8915 = vsel %vm8911, 1, 0
        %v8916 = vcvt.s32.f32 %v8915
        %s8917 = scalar_lea.vmem %s715, %s45 [#allocation16]
        %8918 = vst.msk [vmem:[%s8917] sm:$0x1] %vm8913, %v8916
        %v8919 = vld [vmem:[%s18] sm:$0xff]
        %v8920 = vld [vmem:[%s18 + $0x8] sm:$0xff]
        %v8921 = vld [vmem:[%s18 + $0x10] sm:$0xff]
        %v8922 = vld [vmem:[%s18 + $0x18] sm:$0xff]
        %v8924 = vsel %vm2446, %v8916, 0
        %8926 = vmatprep.subr.mxu0 0.0
        %8927 = vmatpush1.msra.mxu0 %v8919
        %8928 = vmatprep.subr.mxu0 0.0
        %8929 = vmatpush1.msra.mxu0 %v8920
        %8930 = vmatprep.subr.mxu0 0.0
        %8931 = vmatpush1.msra.mxu0 %v8921
        %8932 = vmatprep.subr.mxu0 0.0
        %8933 = vmatpush1.msra.mxu0 %v8922
        %8934 = vmatprep.subr.mxu0 0.0
        %8935 = vmatpush1.msra.mxu0 0.0
        %8936 = vmatprep.subr.mxu0 0.0
        %8937 = vmatpush1.msra.mxu0 0.0
        %8938 = vmatprep.subr.mxu0 0.0
        %8939 = vmatpush1.msra.mxu0 0.0
        %8940 = vmatprep.subr.mxu0 0.0
        %8941 = vmatpush1.msra.mxu0 0.0
        %8942 = vmatprep.subr.mxu0 0.0
        %8943 = vmatpush1.msra.mxu0 0.0
        %8944 = vmatprep.subr.mxu0 0.0
        %8945 = vmatpush1.msra.mxu0 0.0
        %8946 = vmatprep.subr.mxu0 0.0
        %8947 = vmatpush1.msra.mxu0 0.0
        %8948 = vmatprep.subr.mxu0 0.0
        %8949 = vmatpush1.msra.mxu0 0.0
        %8950 = vmatprep.subr.mxu0 0.0
        %8951 = vmatpush1.msra.mxu0 0.0
        %8952 = vmatprep.subr.mxu0 0.0
        %8953 = vmatpush1.msra.mxu0 0.0
        %8954 = vmatprep.subr.mxu0 0.0
        %8955 = vmatpush1.msra.mxu0 0.0
        %8956 = vmatprep.subr.mxu0 0.0
        %8957 = vmatpush1.msra.mxu0 0.0
        %8958 = vmatprep.subr.mxu0 0.0
        %8959 = vmatpush1.msra.mxu0 0.0
        %8960 = vmatprep.subr.mxu0 0.0
        %8961 = vmatpush1.msra.mxu0 0.0
        %8962 = vmatprep.subr.mxu0 0.0
        %8963 = vmatpush1.msra.mxu0 0.0
        %8964 = vmatprep.subr.mxu0 0.0
        %8965 = vmatpush1.msra.mxu0 0.0
        %8966 = vmatprep.subr.mxu0 0.0
        %8967 = vmatpush1.msra.mxu0 0.0
        %8968 = vmatprep.subr.mxu0 0.0
        %8969 = vmatpush1.msra.mxu0 0.0
        %8970 = vmatprep.subr.mxu0 0.0
        %8971 = vmatpush1.msra.mxu0 0.0
        %8972 = vmatprep.subr.mxu0 0.0
        %8973 = vmatpush1.msra.mxu0 0.0
        %8974 = vmatprep.subr.mxu0 0.0
        %8975 = vmatpush1.msra.mxu0 0.0
        %8976 = vmatprep.subr.mxu0 0.0
        %8977 = vmatpush1.msra.mxu0 0.0
        %8978 = vmatprep.subr.mxu0 0.0
        %8979 = vmatpush1.msra.mxu0 0.0
        %8980 = vmatprep.subr.mxu0 0.0
        %8981 = vmatpush1.msra.mxu0 0.0
        %8982 = vmatprep.subr.mxu0 0.0
        %8983 = vmatpush1.msra.mxu0 0.0
        %8984 = vmatprep.subr.mxu0 0.0
        %8985 = vmatpush1.msra.mxu0 0.0
        %8986 = vmatprep.subr.mxu0 0.0
        %8987 = vmatpush1.msra.mxu0 0.0
        %8988 = vmatprep.subr.mxu0 0.0
        %8989 = vmatpush1.msra.mxu0 0.0
        %8990 = vmatprep.mubr.f32.mxu0 0.0
        %8991 = vmatmul.mubr.f32.gmra.mrb[0].mxu0 %v8924
        %v8992 = vpop.f32.mrb[0].mxu0
        %v8993 = vadd.f32 0.0, %v8992
        %v8994 = vpop.f32.mrb[0].mxu0
        %8995 = vdwg.mxu0
        %v8996 = vld [vmem:[#allocation13] sm:$0x1]
        %v8997 = vadd.f32 %v8996, %v8993
        %v8998 = vmul.f32 %v8997, 0.5
        %vm8999 = vcmp.ge.f32.partialorder %v8998, 1.0
        %v9000 = vsel %vm8999, 0.0, %v8998
        %vm9001 = vcmask 892928
        %9002 = vst.msk [vmem:[#allocation13] sm:$0x1] %vm9001, %v9000
        %v9003 = vsel %vm8999, 1, 0
        %v9004 = vcvt.s32.f32 %v9003
        %v9005 = vld [vmem:[%s701] sm:$0x1]
        %v9006 = vld [vmem:[%s19] sm:$0xff]
        %v9007 = vld [vmem:[%s19 + $0x8] sm:$0xff]
        %v9008 = vld [vmem:[%s19 + $0x10] sm:$0xff]
        %v9009 = vld [vmem:[%s19 + $0x18] sm:$0xff]
        %v9010 = vld [vmem:[%s19 + $0x20] sm:$0xff]
        %v9011 = vld [vmem:[%s19 + $0x28] sm:$0xff]
        %v9012 = vld [vmem:[%s19 + $0x30] sm:$0xff]
        %v9013 = vld [vmem:[%s19 + $0x38] sm:$0xff]
        %v9014 = vld [vmem:[%s19 + $0x40] sm:$0xff]
        %v9015 = vld [vmem:[%s19 + $0x48] sm:$0xff]
        %v9016 = vld [vmem:[%s19 + $0x50] sm:$0xff]
        %v9017 = vld [vmem:[%s19 + $0x58] sm:$0xff]
        %v9018 = vld [vmem:[%s19 + $0x60] sm:$0xff]
        %v9019 = vld [vmem:[%s19 + $0x68] sm:$0x3f]
        %vm9020 = vcmask 900096
        %v9022 = vsel %vm9020, %v9004, 0
        %vm9024 = vcmask 1045504
        %v9026 = vsel %vm9024, %v9019, 0
        %9028 = vmatprep.subr.mxu0 0.0
        %9029 = vmatpush1.msra.mxu0 %v9006
        %9030 = vmatprep.subr.mxu0 0.0
        %9031 = vmatpush1.msra.mxu0 %v9007
        %9032 = vmatprep.subr.mxu0 0.0
        %9033 = vmatpush1.msra.mxu0 %v9008
        %9034 = vmatprep.subr.mxu0 0.0
        %9035 = vmatpush1.msra.mxu0 %v9009
        %9036 = vmatprep.subr.mxu0 0.0
        %9037 = vmatpush1.msra.mxu0 %v9010
        %9038 = vmatprep.subr.mxu0 0.0
        %9039 = vmatpush1.msra.mxu0 %v9011
        %9040 = vmatprep.subr.mxu0 0.0
        %9041 = vmatpush1.msra.mxu0 %v9012
        %9042 = vmatprep.subr.mxu0 0.0
        %9043 = vmatpush1.msra.mxu0 %v9013
        %9044 = vmatprep.subr.mxu0 0.0
        %9045 = vmatpush1.msra.mxu0 %v9014
        %9046 = vmatprep.subr.mxu0 0.0
        %9047 = vmatpush1.msra.mxu0 %v9015
        %9048 = vmatprep.subr.mxu0 0.0
        %9049 = vmatpush1.msra.mxu0 %v9016
        %9050 = vmatprep.subr.mxu0 0.0
        %9051 = vmatpush1.msra.mxu0 %v9017
        %9052 = vmatprep.subr.mxu0 0.0
        %9053 = vmatpush1.msra.mxu0 %v9018
        %9054 = vmatprep.subr.mxu0 0.0
        %9055 = vmatpush1.msra.mxu0 %v9026
        %9056 = vmatprep.subr.mxu0 0.0
        %9057 = vmatpush1.msra.mxu0 0.0
        %9058 = vmatprep.subr.mxu0 0.0
        %9059 = vmatpush1.msra.mxu0 0.0
        %9060 = vmatprep.subr.mxu0 0.0
        %9061 = vmatpush1.msra.mxu0 0.0
        %9062 = vmatprep.subr.mxu0 0.0
        %9063 = vmatpush1.msra.mxu0 0.0
        %9064 = vmatprep.subr.mxu0 0.0
        %9065 = vmatpush1.msra.mxu0 0.0
        %9066 = vmatprep.subr.mxu0 0.0
        %9067 = vmatpush1.msra.mxu0 0.0
        %9068 = vmatprep.subr.mxu0 0.0
        %9069 = vmatpush1.msra.mxu0 0.0
        %9070 = vmatprep.subr.mxu0 0.0
        %9071 = vmatpush1.msra.mxu0 0.0
        %9072 = vmatprep.subr.mxu0 0.0
        %9073 = vmatpush1.msra.mxu0 0.0
        %9074 = vmatprep.subr.mxu0 0.0
        %9075 = vmatpush1.msra.mxu0 0.0
        %9076 = vmatprep.subr.mxu0 0.0
        %9077 = vmatpush1.msra.mxu0 0.0
        %9078 = vmatprep.subr.mxu0 0.0
        %9079 = vmatpush1.msra.mxu0 0.0
        %9080 = vmatprep.subr.mxu0 0.0
        %9081 = vmatpush1.msra.mxu0 0.0
        %9082 = vmatprep.subr.mxu0 0.0
        %9083 = vmatpush1.msra.mxu0 0.0
        %9084 = vmatprep.subr.mxu0 0.0
        %9085 = vmatpush1.msra.mxu0 0.0
        %9086 = vmatprep.subr.mxu0 0.0
        %9087 = vmatpush1.msra.mxu0 0.0
        %9088 = vmatprep.subr.mxu0 0.0
        %9089 = vmatpush1.msra.mxu0 0.0
        %9090 = vmatprep.subr.mxu0 0.0
        %9091 = vmatpush1.msra.mxu0 0.0
        %9092 = vmatprep.mubr.f32.mxu0 0.0
        %9093 = vmatmul.mubr.f32.gmra.mrb[0].mxu0 %v9022
        %v9094 = vpop.f32.mrb[0].mxu0
        %v9095 = vadd.f32 0.0, %v9094
        %v9096 = vpop.f32.mrb[0].mxu0
        %9097 = vdwg.mxu0
        %v9098 = vadd.f32 %v9005, %v9095
        %vm9099 = vcmask 81920
        %9100 = vst.msk [vmem:[%s701] sm:$0x1] %vm9099, %v9098
        %p9101 = scmp.eq.s32.totalorder %s45, 3
        // Predicated region
        $region105: #{python_net_forward.1} parent=99 // pred_check
          %p9102 = pneg %p9101
        $region106: #{python_net_forward.1} parent=99 // pred_check_branch
          %9104 = sbr.rel (%p9102) target = $region108
        $region107: #{python_net_forward.1} parent=99 // pred_region
          %v9105 = vld [vmem:[%s701] sm:$0x1]
          %v9106 = vmul.f32 %v9105, 0.25
          %9107 = vst.msk [vmem:[%s701] sm:$0x1] %vm9099, %v9106
        $region108: #{python_net_forward.1} parent=99 // pred_fallthru
          _
        %s9108 = sand.u32 %s487, 1
        %s9109 = scalar_lea.sflag [#allocation15], %s9108
        %s9110 = sand.u32 %s487, 1
        %s9111 = scalar_lea.vmem [#allocation14], %s9110
        %p9112 = scmp.lt.s32.totalorder %s44, 1
        %s9113 = scalar_select %p9112, %s44, 1
        %s9114 = smul.addr %s9113, 2
        %s9115 = smul.addr %s9114, 8
        %s9116 = scalar_lea.vmem %s21, %s9115
        %s9117 = sand.u32 %s539, 1
        %s9118 = scalar_lea.sflag [#allocation17], %s9117
        %s9119 = sand.u32 %s539, 1
        %s9120 = smul.addr %s9119, 4
        %s9121 = scalar_lea.vmem [#allocation16], %s9120
        // Predicated region
        $region109: #{python_net_forward.1} parent=99 // pred_check
          %p9122 = pneg %p497
        $region110: #{python_net_forward.1} parent=99 // pred_check_branch
          %9124 = sbr.rel (%p9122) target = $region112
        $region111: #{python_net_forward.1} parent=99 // pred_region
          %s9126 = ssub.s32 16, 16
          %9127 = vsyncadd %s9109, %s9126
          %s9128 = smul.addr %s44, 16
          %s9129 = scalar_lea.hbm %s20, %s9128
          %s9131 = sshll.u32 %s9111, 4
          %s9132 = int_to_ptr.vmem [resolvable:$true] %s9131
          %9134 = dma.vmem_to_hbm [thread:$0]  %s9132, 16, %s9129, %s9109
        $region112: #{python_net_forward.1} parent=99 // pred_fallthru
          _
        // Predicated region
        $region113: #{python_net_forward.1} parent=99 // pred_check
          %p9135 = pneg %p523
        $region114: #{python_net_forward.1} parent=99 // pred_check_branch
          %9137 = sbr.rel (%p9135) target = $region116
        $region115: #{python_net_forward.1} parent=99 // pred_region
          _
        $region116: #{python_net_forward.1} parent=99 // pred_fallthru
          _
        // Predicated region
        $region117: #{python_net_forward.1} parent=99 // pred_check
          %p9138 = pneg %p549
        $region118: #{python_net_forward.1} parent=99 // pred_check_branch
          %9140 = sbr.rel (%p9138) target = $region120
        $region119: #{python_net_forward.1} parent=99 // pred_region
          %s9142 = ssub.s32 64, 64
          %9143 = vsyncadd %s9118, %s9142
          %s9144 = smul.addr %s44, 64
          %s9145 = scalar_lea.hbm %s22, %s9144
          %s9147 = sshll.u32 %s9121, 4
          %s9148 = int_to_ptr.vmem [resolvable:$true] %s9147
          %9150 = dma.vmem_to_hbm [thread:$0]  %s9148, 64, %s9145, %s9118
        $region120: #{python_net_forward.1} parent=99 // pred_fallthru
          _
      $region100: #{python_net_forward.1} parent=5 // pred_fallthru
        _
      %p9151 = scmp.le.s32.totalorder 2, %s35
      // Predicated region
      $region121: #{python_net_forward.1} parent=5 // pred_check
        %p9152 = pneg %p9151
      $region122: #{python_net_forward.1} parent=5 // pred_check_branch
        %9154 = sbr.rel (%p9152) target = $region124
      $region123: #{python_net_forward.1} parent=5 // pred_region
        %s9155 = ssub.s32 %s35, 2
        // Predicated region
        $region125: #{python_net_forward.1} parent=123 // pred_check
          %p9156 = pneg %p503
        $region126: #{python_net_forward.1} parent=123 // pred_check_branch
          %9158 = sbr.rel (%p9156) target = $region128
        $region127: #{python_net_forward.1} parent=123 // pred_region
          %s9159 = sand.u32 %s488, 1
          %s9160 = scalar_lea.sflag [#allocation15], %s9159
          %s9161 = sand.u32 %s488, 1
          %s9162 = scalar_lea.vmem [#allocation14], %s9161
          %9163 = dma.done %s9160, 16
        $region128: #{python_net_forward.1} parent=123 // pred_fallthru
          _
        // Predicated region
        $region129: #{python_net_forward.1} parent=123 // pred_check
          %p9164 = pneg %p529
        $region130: #{python_net_forward.1} parent=123 // pred_check_branch
          %9166 = sbr.rel (%p9164) target = $region132
        $region131: #{python_net_forward.1} parent=123 // pred_region
          %p9167 = scmp.lt.s32.totalorder %s46, 1
          %s9168 = scalar_select %p9167, %s46, 1
          %s9169 = smul.addr %s9168, 2
          %s9170 = smul.addr %s9169, 8
          %s9171 = scalar_lea.vmem %s21, %s9170
        $region132: #{python_net_forward.1} parent=123 // pred_fallthru
          _
        // Predicated region
        $region133: #{python_net_forward.1} parent=123 // pred_check
          %p9172 = pneg %p555
        $region134: #{python_net_forward.1} parent=123 // pred_check_branch
          %9174 = sbr.rel (%p9172) target = $region136
        $region135: #{python_net_forward.1} parent=123 // pred_region
          %s9175 = sand.u32 %s540, 1
          %s9176 = scalar_lea.sflag [#allocation17], %s9175
          %s9177 = sand.u32 %s540, 1
          %s9178 = smul.addr %s9177, 4
          %s9179 = scalar_lea.vmem [#allocation16], %s9178
          %9180 = dma.done %s9176, 64
        $region136: #{python_net_forward.1} parent=123 // pred_fallthru
          _
      $region124: #{python_net_forward.1} parent=5 // pred_fallthru
        _
    $region6: #{python_net_forward.1} parent=1 // loop_footer
      %s39 = sadd.s32 1, %s35
    $region7: #{python_net_forward.1} parent=1 // loop_footer_branch
      %34 = sbr.rel target = $region3
    $region8: #{python_net_forward.1} parent=1 // loop_exit
      _
    %9181 = vsyncpa [#allocation15], 1
    %s9182 = scalar_lea.sflag [#allocation15], 1
    %9183 = vsyncpa %s9182, 1
    %9184 = vsyncpa [#allocation17], 1
    %s9185 = scalar_lea.sflag [#allocation17], 1
    %9186 = vsyncpa %s9185, 1

</llo_original>
